<compile_context>
chip_gen: v5e
topology: v5e:2x2
jax: 0.10.0
libtpu: 0.0.40
codegen_flags: <defaults>
</compile_context>

<pallas_src>
import functools

import jax
import jax.numpy as jnp
from jax import lax
from jax.experimental import pallas as pl
from jax.experimental.pallas import tpu as pltpu

EPS = 1e-5
LANE = 128


def _round_up(x, m):
    return ((x + m - 1) // m) * m


# ---------------------------------------------------------------------------
# Pass 1: fused [optional BN-affine + ReLU of the previous stage] -> 3x3 conv
#         -> per-image channel sum / sum-of-squares.
# ---------------------------------------------------------------------------
def _make_conv_stats_kernel(H, W, L, normalize_input):
    HW = H * W

    def kernel(a_ref, scale_ref, shift_ref, w_ref, y_ref, ssum_ref, ssq_ref, xpad_ref):
        # a_ref:     (HW, Ci)  bf16   un-normalized activation slab for one image
        # scale_ref: (1, Ci)   f32    previous-stage BN scale (unused for stage 1)
        # shift_ref: (1, Ci)   f32    previous-stage BN shift (unused for stage 1)
        # w_ref:     (9, Ci, Co) bf16 3x3 weights, tap-major (kh*3 + kw)
        # y_ref:     (HW, Co)  bf16   conv output (pre-BN) for this image
        # ssum_ref:  (1, Co)   f32    per-image channel sums
        # ssq_ref:   (1, Co)   f32    per-image channel sums of squares
        # xpad_ref:  (P, Ci)   f32    VMEM scratch: zero-bordered flattened image
        Co = w_ref.shape[-1]

        af = a_ref[...].astype(jnp.float32)
        if normalize_input:
            # Fused BN-affine + ReLU of the previous stage (single FMA).
            af = jnp.maximum(af * scale_ref[...] + shift_ref[...], 0.0)

        # Stage the image into a zero-bordered scratch so every (dy, dx) tap is a
        # contiguous static row-slice.  Fully rewritten each grid step.
        xpad_ref[...] = jnp.zeros_like(xpad_ref)
        xpad_ref[L:L + HW, :] = af

        # Column index of each output pixel (for masking the +/-1 horizontal taps).
        col = lax.broadcasted_iota(jnp.int32, (HW, 1), 0) % W

        acc = jnp.zeros((HW, Co), jnp.float32)
        for j, dx in enumerate((-1, 0, 1)):
            part = jnp.zeros((HW, Co), jnp.float32)
            for i, dy in enumerate((-1, 0, 1)):
                start = L + dy * W + dx
                patch = xpad_ref[start:start + HW, :].astype(jnp.bfloat16)
                part += jnp.dot(patch, w_ref[i * 3 + j],
                                preferred_element_type=jnp.float32)
            # Kill wrap-around contributions at the left/right image borders.
            if dx == -1:
                part = jnp.where(col >= 1, part, 0.0)
            elif dx == 1:
                part = jnp.where(col <= W - 2, part, 0.0)
            acc = acc + part

        y_ref[...] = acc.astype(y_ref.dtype)
        ssum_ref[...] = jnp.sum(acc, axis=0, keepdims=True)
        ssq_ref[...] = jnp.sum(acc * acc, axis=0, keepdims=True)

    return kernel


def conv_stats(a, scale_in, shift_in, w9, *, H, W, normalize_input):
    """a: (N, H*W, Ci) bf16; w9: (9, Ci, Co) bf16; scale/shift: (1, Ci) f32."""
    N, HW, Ci = a.shape
    Co = w9.shape[-1]
    L = _round_up(W + 1, 8)          # zero border rows (>= W+1, sublane aligned)
    P = L + HW + L                   # scratch rows

    kernel = _make_conv_stats_kernel(H, W, L, normalize_input)
    flops = 2 * N * HW * 9 * Ci * Co
    bytes_accessed = (N * HW * Ci * 2 + 9 * Ci * Co * 2 + N * HW * Co * 2
                      + 2 * N * Co * 4 + 2 * Ci * 4)

    return pl.pallas_call(
        kernel,
        out_shape=(
            jax.ShapeDtypeStruct((N, HW, Co), jnp.bfloat16),   # conv output (pre-BN)
            jax.ShapeDtypeStruct((N, 1, Co), jnp.float32),     # per-image sum
            jax.ShapeDtypeStruct((N, 1, Co), jnp.float32),     # per-image sum of squares
        ),
        grid=(N,),
        in_specs=[
            pl.BlockSpec((None, HW, Ci), lambda n: (n, 0, 0)),
            pl.BlockSpec((1, Ci), lambda n: (0, 0)),           # VMEM-resident
            pl.BlockSpec((1, Ci), lambda n: (0, 0)),           # VMEM-resident
            pl.BlockSpec((9, Ci, Co), lambda n: (0, 0, 0)),    # VMEM-resident
        ],
        out_specs=(
            pl.BlockSpec((None, HW, Co), lambda n: (n, 0, 0)),
            pl.BlockSpec((None, 1, Co), lambda n: (n, 0, 0)),
            pl.BlockSpec((None, 1, Co), lambda n: (n, 0, 0)),
        ),
        scratch_shapes=[pltpu.VMEM((P, Ci), jnp.float32)],
        compiler_params=pltpu.CompilerParams(
            dimension_semantics=("parallel",),
            vmem_limit_bytes=32 * 1024 * 1024,   # explicit; fits all generations (v7x incl.)
        ),
        cost_estimate=pl.CostEstimate(flops=flops, transcendentals=0,
                                      bytes_accessed=bytes_accessed),
    )(a, scale_in, shift_in, w9)


# ---------------------------------------------------------------------------
# Pass 2 (final stage only): BN-affine + ReLU, lane-dense (rows, 128*k) store.
# ---------------------------------------------------------------------------
def _bn_act_kernel(y_ref, scale_ref, shift_ref, o_ref):
    y = y_ref[...].astype(jnp.float32)
    o_ref[...] = jnp.maximum(y * scale_ref[...] + shift_ref[...], 0.0)


def bn_act(y, scale, shift):
    N, HW, Co = y.shape
    return pl.pallas_call(
        _bn_act_kernel,
        out_shape=jax.ShapeDtypeStruct((N, HW, Co), jnp.float32),
        grid=(N,),
        in_specs=[
            pl.BlockSpec((None, HW, Co), lambda n: (n, 0, 0)),
            pl.BlockSpec((1, Co), lambda n: (0, 0)),
            pl.BlockSpec((1, Co), lambda n: (0, 0)),
        ],
        out_specs=pl.BlockSpec((None, HW, Co), lambda n: (n, 0, 0)),
        compiler_params=pltpu.CompilerParams(
            dimension_semantics=("parallel",),
            vmem_limit_bytes=32 * 1024 * 1024,
        ),
    )(y, scale, shift)


def _fold_bn(ssum, ssq, gamma, beta, count):
    """Per-channel BN folding: scale = gamma/sqrt(var+eps), shift = beta - mean*scale."""
    total = jnp.sum(ssum, axis=0)          # (1, Co)
    total_sq = jnp.sum(ssq, axis=0)        # (1, Co)
    mean = total / count
    var = jnp.maximum(total_sq / count - mean * mean, 0.0)   # biased variance
    scale = gamma * lax.rsqrt(var + EPS)
    shift = beta - mean * scale
    return scale, shift


@jax.jit
def double_conv_forward(x_nchw, params):
    N, Cin, H, W = x_nchw.shape
    HW = H * W
    w1, w2 = params["w1"], params["w2"]        # HWIO; biases cancel under BN -> dropped
    gamma, beta = params["gamma"], params["beta"]
    out_ch = w1.shape[-1]
    Co = _round_up(out_ch, LANE)               # lane-dense padded channel count

    # NCHW -> (N, H*W, Cin), bf16 for the MXU.
    a0 = jnp.transpose(x_nchw, (0, 2, 3, 1)).reshape(N, HW, Cin).astype(jnp.bfloat16)

    # Pad weights / BN params to the lane-dense Co; tap-major (9, Ci, Co) weights.
    w1p = jnp.pad(w1, ((0, 0), (0, 0), (0, 0), (0, Co - out_ch))
                  ).reshape(9, Cin, Co).astype(jnp.bfloat16)
    w2p = jnp.pad(w2, ((0, 0), (0, 0), (0, Co - out_ch), (0, Co - out_ch))
                  ).reshape(9, Co, Co).astype(jnp.bfloat16)
    gp = jnp.pad(gamma, (0, Co - out_ch)).reshape(1, Co).astype(jnp.float32)
    bp = jnp.pad(beta, (0, Co - out_ch)).reshape(1, Co).astype(jnp.float32)

    ones_in = jnp.ones((1, Cin), jnp.float32)
    zeros_in = jnp.zeros((1, Cin), jnp.float32)
    count = float(N * HW)

    # Stage 1: conv1 + batch statistics.
    y1, s1, q1 = conv_stats(a0, ones_in, zeros_in, w1p, H=H, W=W, normalize_input=False)
    scale1, shift1 = _fold_bn(s1, q1, gp, bp, count)

    # Stage 2: fused [BN1-affine + ReLU] -> conv2 + batch statistics.
    y2, s2, q2 = conv_stats(y1, scale1, shift1, w2p, H=H, W=W, normalize_input=True)
    scale2, shift2 = _fold_bn(s2, q2, gp, bp, count)

    # Final BN2-affine + ReLU (lane-dense store), then back to NCHW.
    o = bn_act(y2, scale2, shift2)
    o = o.reshape(N, H, W, Co)[..., :out_ch]
    return jnp.transpose(o, (0, 3, 1, 2))


def _reference(x_nchw, p):
    """Pure-JAX f32 reference (lax.conv + training-mode BN), for correctness checking."""
    x = jnp.transpose(x_nchw, (0, 2, 3, 1))

    def stage(x, w, b):
        y = lax.conv_general_dilated(
            x, w, window_strides=(1, 1), padding="SAME",
            dimension_numbers=("NHWC", "HWIO", "NHWC")) + b
        mean = jnp.mean(y, axis=(0, 1, 2), keepdims=True)
        var = jnp.mean((y - mean) ** 2, axis=(0, 1, 2), keepdims=True)
        return jnp.maximum(
            (y - mean) * lax.rsqrt(var + EPS) * p["gamma"] + p["beta"], 0.0)

    x = stage(x, p["w1"], p["b1"])
    x = stage(x, p["w2"], p["b2"])
    return jnp.transpose(x, (0, 3, 1, 2))


if __name__ == "__main__":
    N, in_ch, out_ch, H, W = 2, 4, 8, 16, 16
    key = jax.random.PRNGKey(0)
    k0, k1, k2, k3, k4, k5, k6 = jax.random.split(key, 7)

    x = jax.random.normal(k0, (N, in_ch, H, W), jnp.float32)

    # Deterministic synthetic parameters (conv weights stored as HWIO).
    w1 = jax.random.normal(k1, (3, 3, in_ch, out_ch), jnp.float32) / jnp.sqrt(9.0 * in_ch)
    b1 = 0.1 * jax.random.normal(k2, (out_ch,), jnp.float32)
    w2 = jax.random.normal(k3, (3, 3, out_ch, out_ch), jnp.float32) / jnp.sqrt(9.0 * out_ch)
    b2 = 0.1 * jax.random.normal(k4, (out_ch,), jnp.float32)
    gamma = 1.0 + 0.1 * jax.random.normal(k5, (out_ch,), jnp.float32)
    beta = 0.1 * jax.random.normal(k6, (out_ch,), jnp.float32)

    params = {"w1": w1, "b1": b1, "w2": w2, "b2": b2, "gamma": gamma, "beta": beta}

    out = jax.block_until_ready(double_conv_forward(x, params))
    ref = _reference(x, params)

    assert out.shape == (N, out_ch, H, W), out.shape
    max_err = float(jnp.max(jnp.abs(out - ref)))
    # bf16 MXU inputs + bf16 intermediate -> tolerance loosened vs. the f32 reference.
    assert jnp.allclose(out, ref, atol=5e-2, rtol=5e-2), max_err

    print("KERNEL_OK")
</pallas_src>

<mosaic_0001>
module attributes {stable_mosaic.version = 11 : i64} {
  func.func @kernel(%arg0: i32, %arg1: memref<1x256x4xbf16, #tpu.memory_space<vmem>>, %arg2: memref<1x4xf32, #tpu.memory_space<vmem>>, %arg3: memref<1x4xf32, #tpu.memory_space<vmem>>, %arg4: memref<9x4x128xbf16, #tpu.memory_space<vmem>>, %arg5: memref<1x256x128xbf16, #tpu.memory_space<vmem>>, %arg6: memref<1x1x128xf32, #tpu.memory_space<vmem>>, %arg7: memref<1x1x128xf32, #tpu.memory_space<vmem>>, %arg8: memref<304x4xf32, #tpu.memory_space<vmem>>) attributes {dimension_semantics = [#tpu.dimension_semantics<parallel>], iteration_bounds = array<i64: 2>, scalar_prefetch = 0 : i64, scratch_operands = 1 : i64, tpu.core_type = #tpu.core_type<tc>, window_params = [{transform_indices = @transform_0, window_bounds = array<i64: 1, 256, 4>}, {pipeline_mode = #tpu.pipeline_mode<synchronous>, transform_indices = @transform_1, window_bounds = array<i64: 1, 4>}, {pipeline_mode = #tpu.pipeline_mode<synchronous>, transform_indices = @transform_2, window_bounds = array<i64: 1, 4>}, {pipeline_mode = #tpu.pipeline_mode<synchronous>, transform_indices = @transform_3, window_bounds = array<i64: 9, 4, 128>}, {transform_indices = @transform_4, window_bounds = array<i64: 1, 256, 128>}, {transform_indices = @transform_5, window_bounds = array<i64: 1, 1, 128>}, {transform_indices = @transform_6, window_bounds = array<i64: 1, 1, 128>}]} {
    %c0 = arith.constant 0 : index
    %c0_0 = arith.constant 0 : index
    %c0_1 = arith.constant 0 : index
    %0 = vector.load %arg1[%c0, %c0_0, %c0_1] : memref<1x256x4xbf16, #tpu.memory_space<vmem>>, vector<1x256x4xbf16>
    %1 = vector.shape_cast %0 : vector<1x256x4xbf16> to vector<256x4xbf16>
    %2 = arith.extf %1 : vector<256x4xbf16> to vector<256x4xf32>
    %cst = arith.constant 0.000000e+00 : f32
    %3 = vector.broadcast %cst : f32 to vector<304x4xf32>
    %c0_2 = arith.constant 0 : index
    %c0_3 = arith.constant 0 : index
    %4 = vector.load %arg8[%c0_2, %c0_3] : memref<304x4xf32, #tpu.memory_space<vmem>>, vector<304x4xf32>
    tpu.vector_store %arg8[%c0_2, %c0_3], %3 {strides = array<i32>} : memref<304x4xf32, #tpu.memory_space<vmem>>, vector<304x4xf32>,
    %c24 = arith.constant 24 : index
    %c0_4 = arith.constant 0 : index
    %5 = vector.load %arg8[%c24, %c0_4] : memref<304x4xf32, #tpu.memory_space<vmem>>, vector<256x4xf32>
    tpu.vector_store %arg8[%c24, %c0_4], %2 {strides = array<i32>} : memref<304x4xf32, #tpu.memory_space<vmem>>, vector<256x4xf32>,
    %6 = tpu.iota {dimensions = array<i32: 0>} : vector<256x1xi32>
    %c16_i32 = arith.constant 16 : i32
    %c0_i32 = arith.constant 0 : i32
    %7 = arith.cmpi eq, %c16_i32, %c0_i32 : i32
    %c1_i32 = arith.constant 1 : i32
    %8 = arith.select %7, %c1_i32, %c16_i32 : i32
    %9 = vector.broadcast %8 : i32 to vector<256x1xi32>
    %10 = arith.remsi %6, %9 : vector<256x1xi32>
    %c0_i32_5 = arith.constant 0 : i32
    %11 = vector.broadcast %c0_i32_5 : i32 to vector<256x1xi32>
    %12 = arith.cmpi ne, %10, %11 : vector<256x1xi32>
    %c0_i32_6 = arith.constant 0 : i32
    %13 = vector.broadcast %c0_i32_6 : i32 to vector<256x1xi32>
    %14 = arith.cmpi slt, %10, %13 : vector<256x1xi32>
    %c0_i32_7 = arith.constant 0 : i32
    %15 = arith.cmpi slt, %8, %c0_i32_7 : i32
    %16 = vector.broadcast %15 : i1 to vector<256x1xi1>
    %17 = vector.broadcast %16 : vector<256x1xi1> to vector<256x1xi1>
    %18 = arith.xori %14, %17 : vector<256x1xi1>
    %19 = arith.andi %18, %12 : vector<256x1xi1>
    %20 = vector.broadcast %8 : i32 to vector<256x1xi32>
    %21 = arith.addi %10, %20 : vector<256x1xi32>
    %22 = arith.select %19, %21, %10 : vector<256x1xi1>, vector<256x1xi32>
    %cst_8 = arith.constant 0.000000e+00 : f32
    %23 = vector.broadcast %cst_8 : f32 to vector<256x128xf32>
    %cst_9 = arith.constant 0.000000e+00 : f32
    %24 = vector.broadcast %cst_9 : f32 to vector<256x128xf32>
    %c7 = arith.constant 7 : index
    %c0_10 = arith.constant 0 : index
    %25 = vector.load %arg8[%c7, %c0_10] : memref<304x4xf32, #tpu.memory_space<vmem>>, vector<256x4xf32>
    %26 = arith.truncf %25 : vector<256x4xf32> to vector<256x4xbf16>
    %c0_11 = arith.constant 0 : index
    %c0_12 = arith.constant 0 : index
    %c0_13 = arith.constant 0 : index
    %27 = vector.load %arg4[%c0_11, %c0_12, %c0_13] : memref<9x4x128xbf16, #tpu.memory_space<vmem>>, vector<1x4x128xbf16>
    %28 = vector.shape_cast %27 : vector<1x4x128xbf16> to vector<4x128xbf16>
    %cst_14 = arith.constant dense<0.000000e+00> : vector<256x128xf32>
    %29 = tpu.matmul %26, %28, %cst_14 {dimension_numbers = #tpu.dot_dimension_numbers<[1], [0], [0], [1], [0, 0, 1, 1], [], []>} : vector<256x4xbf16>, vector<4x128xbf16>, vector<256x128xf32> -> vector<256x128xf32>
    %30 = arith.addf %24, %29 : vector<256x128xf32>
    %c23 = arith.constant 23 : index
    %c0_15 = arith.constant 0 : index
    %31 = vector.load %arg8[%c23, %c0_15] : memref<304x4xf32, #tpu.memory_space<vmem>>, vector<256x4xf32>
    %32 = arith.truncf %31 : vector<256x4xf32> to vector<256x4xbf16>
    %c3 = arith.constant 3 : index
    %c0_16 = arith.constant 0 : index
    %c0_17 = arith.constant 0 : index
    %33 = vector.load %arg4[%c3, %c0_16, %c0_17] : memref<9x4x128xbf16, #tpu.memory_space<vmem>>, vector<1x4x128xbf16>
    %34 = vector.shape_cast %33 : vector<1x4x128xbf16> to vector<4x128xbf16>
    %cst_18 = arith.constant dense<0.000000e+00> : vector<256x128xf32>
    %35 = tpu.matmul %32, %34, %cst_18 {dimension_numbers = #tpu.dot_dimension_numbers<[1], [0], [0], [1], [0, 0, 1, 1], [], []>} : vector<256x4xbf16>, vector<4x128xbf16>, vector<256x128xf32> -> vector<256x128xf32>
    %36 = arith.addf %30, %35 : vector<256x128xf32>
    %c39 = arith.constant 39 : index
    %c0_19 = arith.constant 0 : index
    %37 = vector.load %arg8[%c39, %c0_19] : memref<304x4xf32, #tpu.memory_space<vmem>>, vector<256x4xf32>
    %38 = arith.truncf %37 : vector<256x4xf32> to vector<256x4xbf16>
    %c6 = arith.constant 6 : index
    %c0_20 = arith.constant 0 : index
    %c0_21 = arith.constant 0 : index
    %39 = vector.load %arg4[%c6, %c0_20, %c0_21] : memref<9x4x128xbf16, #tpu.memory_space<vmem>>, vector<1x4x128xbf16>
    %40 = vector.shape_cast %39 : vector<1x4x128xbf16> to vector<4x128xbf16>
    %cst_22 = arith.constant dense<0.000000e+00> : vector<256x128xf32>
    %41 = tpu.matmul %38, %40, %cst_22 {dimension_numbers = #tpu.dot_dimension_numbers<[1], [0], [0], [1], [0, 0, 1, 1], [], []>} : vector<256x4xbf16>, vector<4x128xbf16>, vector<256x128xf32> -> vector<256x128xf32>
    %42 = arith.addf %36, %41 : vector<256x128xf32>
    %c1_i32_23 = arith.constant 1 : i32
    %43 = vector.broadcast %c1_i32_23 : i32 to vector<256x1xi32>
    %44 = arith.cmpi sge, %22, %43 : vector<256x1xi32>
    %cst_24 = arith.constant 0.000000e+00 : f32
    %45 = vector.shape_cast %44 : vector<256x1xi1> to vector<256x1xi1>
    %46 = vector.broadcast %45 : vector<256x1xi1> to vector<256x128xi1>
    %47 = vector.broadcast %cst_24 : f32 to vector<256x128xf32>
    %48 = arith.select %46, %42, %47 : vector<256x128xi1>, vector<256x128xf32>
    %49 = arith.addf %23, %48 : vector<256x128xf32>
    %cst_25 = arith.constant 0.000000e+00 : f32
    %50 = vector.broadcast %cst_25 : f32 to vector<256x128xf32>
    %c8 = arith.constant 8 : index
    %c0_26 = arith.constant 0 : index
    %51 = vector.load %arg8[%c8, %c0_26] : memref<304x4xf32, #tpu.memory_space<vmem>>, vector<256x4xf32>
    %52 = arith.truncf %51 : vector<256x4xf32> to vector<256x4xbf16>
    %c1 = arith.constant 1 : index
    %c0_27 = arith.constant 0 : index
    %c0_28 = arith.constant 0 : index
    %53 = vector.load %arg4[%c1, %c0_27, %c0_28] : memref<9x4x128xbf16, #tpu.memory_space<vmem>>, vector<1x4x128xbf16>
    %54 = vector.shape_cast %53 : vector<1x4x128xbf16> to vector<4x128xbf16>
    %cst_29 = arith.constant dense<0.000000e+00> : vector<256x128xf32>
    %55 = tpu.matmul %52, %54, %cst_29 {dimension_numbers = #tpu.dot_dimension_numbers<[1], [0], [0], [1], [0, 0, 1, 1], [], []>} : vector<256x4xbf16>, vector<4x128xbf16>, vector<256x128xf32> -> vector<256x128xf32>
    %56 = arith.addf %50, %55 : vector<256x128xf32>
    %c24_30 = arith.constant 24 : index
    %c0_31 = arith.constant 0 : index
    %57 = vector.load %arg8[%c24_30, %c0_31] : memref<304x4xf32, #tpu.memory_space<vmem>>, vector<256x4xf32>
    %58 = arith.truncf %57 : vector<256x4xf32> to vector<256x4xbf16>
    %c4 = arith.constant 4 : index
    %c0_32 = arith.constant 0 : index
    %c0_33 = arith.constant 0 : index
    %59 = vector.load %arg4[%c4, %c0_32, %c0_33] : memref<9x4x128xbf16, #tpu.memory_space<vmem>>, vector<1x4x128xbf16>
    %60 = vector.shape_cast %59 : vector<1x4x128xbf16> to vector<4x128xbf16>
    %cst_34 = arith.constant dense<0.000000e+00> : vector<256x128xf32>
    %61 = tpu.matmul %58, %60, %cst_34 {dimension_numbers = #tpu.dot_dimension_numbers<[1], [0], [0], [1], [0, 0, 1, 1], [], []>} : vector<256x4xbf16>, vector<4x128xbf16>, vector<256x128xf32> -> vector<256x128xf32>
    %62 = arith.addf %56, %61 : vector<256x128xf32>
    %c40 = arith.constant 40 : index
    %c0_35 = arith.constant 0 : index
    %63 = vector.load %arg8[%c40, %c0_35] : memref<304x4xf32, #tpu.memory_space<vmem>>, vector<256x4xf32>
    %64 = arith.truncf %63 : vector<256x4xf32> to vector<256x4xbf16>
    %c7_36 = arith.constant 7 : index
    %c0_37 = arith.constant 0 : index
    %c0_38 = arith.constant 0 : index
    %65 = vector.load %arg4[%c7_36, %c0_37, %c0_38] : memref<9x4x128xbf16, #tpu.memory_space<vmem>>, vector<1x4x128xbf16>
    %66 = vector.shape_cast %65 : vector<1x4x128xbf16> to vector<4x128xbf16>
    %cst_39 = arith.constant dense<0.000000e+00> : vector<256x128xf32>
    %67 = tpu.matmul %64, %66, %cst_39 {dimension_numbers = #tpu.dot_dimension_numbers<[1], [0], [0], [1], [0, 0, 1, 1], [], []>} : vector<256x4xbf16>, vector<4x128xbf16>, vector<256x128xf32> -> vector<256x128xf32>
    %68 = arith.addf %62, %67 : vector<256x128xf32>
    %69 = arith.addf %49, %68 : vector<256x128xf32>
    %cst_40 = arith.constant 0.000000e+00 : f32
    %70 = vector.broadcast %cst_40 : f32 to vector<256x128xf32>
    %c9 = arith.constant 9 : index
    %c0_41 = arith.constant 0 : index
    %71 = vector.load %arg8[%c9, %c0_41] : memref<304x4xf32, #tpu.memory_space<vmem>>, vector<256x4xf32>
    %72 = arith.truncf %71 : vector<256x4xf32> to vector<256x4xbf16>
    %c2 = arith.constant 2 : index
    %c0_42 = arith.constant 0 : index
    %c0_43 = arith.constant 0 : index
    %73 = vector.load %arg4[%c2, %c0_42, %c0_43] : memref<9x4x128xbf16, #tpu.memory_space<vmem>>, vector<1x4x128xbf16>
    %74 = vector.shape_cast %73 : vector<1x4x128xbf16> to vector<4x128xbf16>
    %cst_44 = arith.constant dense<0.000000e+00> : vector<256x128xf32>
    %75 = tpu.matmul %72, %74, %cst_44 {dimension_numbers = #tpu.dot_dimension_numbers<[1], [0], [0], [1], [0, 0, 1, 1], [], []>} : vector<256x4xbf16>, vector<4x128xbf16>, vector<256x128xf32> -> vector<256x128xf32>
    %76 = arith.addf %70, %75 : vector<256x128xf32>
    %c25 = arith.constant 25 : index
    %c0_45 = arith.constant 0 : index
    %77 = vector.load %arg8[%c25, %c0_45] : memref<304x4xf32, #tpu.memory_space<vmem>>, vector<256x4xf32>
    %78 = arith.truncf %77 : vector<256x4xf32> to vector<256x4xbf16>
    %c5 = arith.constant 5 : index
    %c0_46 = arith.constant 0 : index
    %c0_47 = arith.constant 0 : index
    %79 = vector.load %arg4[%c5, %c0_46, %c0_47] : memref<9x4x128xbf16, #tpu.memory_space<vmem>>, vector<1x4x128xbf16>
    %80 = vector.shape_cast %79 : vector<1x4x128xbf16> to vector<4x128xbf16>
    %cst_48 = arith.constant dense<0.000000e+00> : vector<256x128xf32>
    %81 = tpu.matmul %78, %80, %cst_48 {dimension_numbers = #tpu.dot_dimension_numbers<[1], [0], [0], [1], [0, 0, 1, 1], [], []>} : vector<256x4xbf16>, vector<4x128xbf16>, vector<256x128xf32> -> vector<256x128xf32>
    %82 = arith.addf %76, %81 : vector<256x128xf32>
    %c41 = arith.constant 41 : index
    %c0_49 = arith.constant 0 : index
    %83 = vector.load %arg8[%c41, %c0_49] : memref<304x4xf32, #tpu.memory_space<vmem>>, vector<256x4xf32>
    %84 = arith.truncf %83 : vector<256x4xf32> to vector<256x4xbf16>
    %c8_50 = arith.constant 8 : index
    %c0_51 = arith.constant 0 : index
    %c0_52 = arith.constant 0 : index
    %85 = vector.load %arg4[%c8_50, %c0_51, %c0_52] : memref<9x4x128xbf16, #tpu.memory_space<vmem>>, vector<1x4x128xbf16>
    %86 = vector.shape_cast %85 : vector<1x4x128xbf16> to vector<4x128xbf16>
    %cst_53 = arith.constant dense<0.000000e+00> : vector<256x128xf32>
    %87 = tpu.matmul %84, %86, %cst_53 {dimension_numbers = #tpu.dot_dimension_numbers<[1], [0], [0], [1], [0, 0, 1, 1], [], []>} : vector<256x4xbf16>, vector<4x128xbf16>, vector<256x128xf32> -> vector<256x128xf32>
    %88 = arith.addf %82, %87 : vector<256x128xf32>
    %c14_i32 = arith.constant 14 : i32
    %89 = vector.broadcast %c14_i32 : i32 to vector<256x1xi32>
    %90 = arith.cmpi sle, %22, %89 : vector<256x1xi32>
    %cst_54 = arith.constant 0.000000e+00 : f32
    %91 = vector.shape_cast %90 : vector<256x1xi1> to vector<256x1xi1>
    %92 = vector.broadcast %91 : vector<256x1xi1> to vector<256x128xi1>
    %93 = vector.broadcast %cst_54 : f32 to vector<256x128xf32>
    %94 = arith.select %92, %88, %93 : vector<256x128xi1>, vector<256x128xf32>
    %95 = arith.addf %69, %94 : vector<256x128xf32>
    %96 = arith.truncf %95 : vector<256x128xf32> to vector<256x128xbf16>
    %c0_55 = arith.constant 0 : index
    %c0_56 = arith.constant 0 : index
    %c0_57 = arith.constant 0 : index
    %97 = vector.load %arg5[%c0_55, %c0_56, %c0_57] : memref<1x256x128xbf16, #tpu.memory_space<vmem>>, vector<1x256x128xbf16>
    %98 = vector.shape_cast %97 : vector<1x256x128xbf16> to vector<256x128xbf16>
    %99 = vector.shape_cast %96 : vector<256x128xbf16> to vector<1x256x128xbf16>
    tpu.vector_store %arg5[%c0_55, %c0_56, %c0_57], %99 {strides = array<i32>} : memref<1x256x128xbf16, #tpu.memory_space<vmem>>, vector<1x256x128xbf16>,
    %cst_58 = arith.constant dense<0.000000e+00> : vector<128xf32>
    %100 = vector.multi_reduction <add>, %95, %cst_58 [0] : vector<256x128xf32> to vector<128xf32>
    %101 = vector.shape_cast %100 : vector<128xf32> to vector<1x128xf32>
    %c0_59 = arith.constant 0 : index
    %c0_60 = arith.constant 0 : index
    %c0_61 = arith.constant 0 : index
    %102 = vector.load %arg6[%c0_59, %c0_60, %c0_61] : memref<1x1x128xf32, #tpu.memory_space<vmem>>, vector<1x1x128xf32>
    %103 = vector.shape_cast %102 : vector<1x1x128xf32> to vector<1x128xf32>
    %104 = vector.shape_cast %101 : vector<1x128xf32> to vector<1x1x128xf32>
    tpu.vector_store %arg6[%c0_59, %c0_60, %c0_61], %104 {strides = array<i32>} : memref<1x1x128xf32, #tpu.memory_space<vmem>>, vector<1x1x128xf32>,
    %105 = arith.mulf %95, %95 : vector<256x128xf32>
    %cst_62 = arith.constant dense<0.000000e+00> : vector<128xf32>
    %106 = vector.multi_reduction <add>, %105, %cst_62 [0] : vector<256x128xf32> to vector<128xf32>
    %107 = vector.shape_cast %106 : vector<128xf32> to vector<1x128xf32>
    %c0_63 = arith.constant 0 : index
    %c0_64 = arith.constant 0 : index
    %c0_65 = arith.constant 0 : index
    %108 = vector.load %arg7[%c0_63, %c0_64, %c0_65] : memref<1x1x128xf32, #tpu.memory_space<vmem>>, vector<1x1x128xf32>
    %109 = vector.shape_cast %108 : vector<1x1x128xf32> to vector<1x128xf32>
    %110 = vector.shape_cast %107 : vector<1x128xf32> to vector<1x1x128xf32>
    tpu.vector_store %arg7[%c0_63, %c0_64, %c0_65], %110 {strides = array<i32>} : memref<1x1x128xf32, #tpu.memory_space<vmem>>, vector<1x1x128xf32>,
    return
  }
  func.func @transform_0(%arg0: i32) -> (i32, i32, i32) {
    %c0_i32 = arith.constant 0 : i32
    %c0_i32_0 = arith.constant 0 : i32
    %c0_i32_1 = arith.constant 0 : i32
    return %arg0, %c0_i32, %c0_i32_0 : i32, i32, i32
  }
  func.func @transform_1(%arg0: i32) -> (i32, i32) {
    %c0_i32 = arith.constant 0 : i32
    %c0_i32_0 = arith.constant 0 : i32
    %c0_i32_1 = arith.constant 0 : i32
    return %c0_i32, %c0_i32_0 : i32, i32
  }
  func.func @transform_2(%arg0: i32) -> (i32, i32) {
    %c0_i32 = arith.constant 0 : i32
    %c0_i32_0 = arith.constant 0 : i32
    %c0_i32_1 = arith.constant 0 : i32
    return %c0_i32, %c0_i32_0 : i32, i32
  }
  func.func @transform_3(%arg0: i32) -> (i32, i32, i32) {
    %c0_i32 = arith.constant 0 : i32
    %c0_i32_0 = arith.constant 0 : i32
    %c0_i32_1 = arith.constant 0 : i32
    %c0_i32_2 = arith.constant 0 : i32
    return %c0_i32, %c0_i32_0, %c0_i32_1 : i32, i32, i32
  }
  func.func @transform_4(%arg0: i32) -> (i32, i32, i32) {
    %c0_i32 = arith.constant 0 : i32
    %c0_i32_0 = arith.constant 0 : i32
    %c0_i32_1 = arith.constant 0 : i32
    return %arg0, %c0_i32, %c0_i32_0 : i32, i32, i32
  }
  func.func @transform_5(%arg0: i32) -> (i32, i32, i32) {
    %c0_i32 = arith.constant 0 : i32
    %c0_i32_0 = arith.constant 0 : i32
    %c0_i32_1 = arith.constant 0 : i32
    return %arg0, %c0_i32, %c0_i32_0 : i32, i32, i32
  }
  func.func @transform_6(%arg0: i32) -> (i32, i32, i32) {
    %c0_i32 = arith.constant 0 : i32
    %c0_i32_0 = arith.constant 0 : i32
    %c0_i32_1 = arith.constant 0 : i32
    return %arg0, %c0_i32, %c0_i32_0 : i32, i32, i32
  }
}

module attributes {stable_mosaic.version = 11 : i64} {
  func.func @kernel(%arg0: i32, %arg1: memref<1x256x128xbf16, #tpu.memory_space<vmem>>, %arg2: memref<1x128xf32, #tpu.memory_space<vmem>>, %arg3: memref<1x128xf32, #tpu.memory_space<vmem>>, %arg4: memref<9x128x128xbf16, #tpu.memory_space<vmem>>, %arg5: memref<1x256x128xbf16, #tpu.memory_space<vmem>>, %arg6: memref<1x1x128xf32, #tpu.memory_space<vmem>>, %arg7: memref<1x1x128xf32, #tpu.memory_space<vmem>>, %arg8: memref<304x128xf32, #tpu.memory_space<vmem>>) attributes {dimension_semantics = [#tpu.dimension_semantics<parallel>], iteration_bounds = array<i64: 2>, scalar_prefetch = 0 : i64, scratch_operands = 1 : i64, tpu.core_type = #tpu.core_type<tc>, window_params = [{transform_indices = @transform_0, window_bounds = array<i64: 1, 256, 128>}, {pipeline_mode = #tpu.pipeline_mode<synchronous>, transform_indices = @transform_1, window_bounds = array<i64: 1, 128>}, {pipeline_mode = #tpu.pipeline_mode<synchronous>, transform_indices = @transform_2, window_bounds = array<i64: 1, 128>}, {pipeline_mode = #tpu.pipeline_mode<synchronous>, transform_indices = @transform_3, window_bounds = array<i64: 9, 128, 128>}, {transform_indices = @transform_4, window_bounds = array<i64: 1, 256, 128>}, {transform_indices = @transform_5, window_bounds = array<i64: 1, 1, 128>}, {transform_indices = @transform_6, window_bounds = array<i64: 1, 1, 128>}]} {
    %c0 = arith.constant 0 : index
    %c0_0 = arith.constant 0 : index
    %c0_1 = arith.constant 0 : index
    %0 = vector.load %arg1[%c0, %c0_0, %c0_1] : memref<1x256x128xbf16, #tpu.memory_space<vmem>>, vector<1x256x128xbf16>
    %1 = vector.shape_cast %0 : vector<1x256x128xbf16> to vector<256x128xbf16>
    %2 = arith.extf %1 : vector<256x128xbf16> to vector<256x128xf32>
    %c0_2 = arith.constant 0 : index
    %c0_3 = arith.constant 0 : index
    %3 = vector.load %arg2[%c0_2, %c0_3] : memref<1x128xf32, #tpu.memory_space<vmem>>, vector<1x128xf32>
    %4 = vector.broadcast %3 : vector<1x128xf32> to vector<256x128xf32>
    %5 = arith.mulf %2, %4 : vector<256x128xf32>
    %c0_4 = arith.constant 0 : index
    %c0_5 = arith.constant 0 : index
    %6 = vector.load %arg3[%c0_4, %c0_5] : memref<1x128xf32, #tpu.memory_space<vmem>>, vector<1x128xf32>
    %7 = vector.broadcast %6 : vector<1x128xf32> to vector<256x128xf32>
    %8 = arith.addf %5, %7 : vector<256x128xf32>
    %cst = arith.constant 0.000000e+00 : f32
    %9 = vector.broadcast %cst : f32 to vector<256x128xf32>
    %10 = arith.maximumf %8, %9 : vector<256x128xf32>
    %cst_6 = arith.constant 0.000000e+00 : f32
    %11 = vector.broadcast %cst_6 : f32 to vector<304x128xf32>
    %c0_7 = arith.constant 0 : index
    %c0_8 = arith.constant 0 : index
    %12 = vector.load %arg8[%c0_7, %c0_8] : memref<304x128xf32, #tpu.memory_space<vmem>>, vector<304x128xf32>
    tpu.vector_store %arg8[%c0_7, %c0_8], %11 {strides = array<i32>} : memref<304x128xf32, #tpu.memory_space<vmem>>, vector<304x128xf32>,
    %c24 = arith.constant 24 : index
    %c0_9 = arith.constant 0 : index
    %13 = vector.load %arg8[%c24, %c0_9] : memref<304x128xf32, #tpu.memory_space<vmem>>, vector<256x128xf32>
    tpu.vector_store %arg8[%c24, %c0_9], %10 {strides = array<i32>} : memref<304x128xf32, #tpu.memory_space<vmem>>, vector<256x128xf32>,
    %14 = tpu.iota {dimensions = array<i32: 0>} : vector<256x1xi32>
    %c16_i32 = arith.constant 16 : i32
    %c0_i32 = arith.constant 0 : i32
    %15 = arith.cmpi eq, %c16_i32, %c0_i32 : i32
    %c1_i32 = arith.constant 1 : i32
    %16 = arith.select %15, %c1_i32, %c16_i32 : i32
    %17 = vector.broadcast %16 : i32 to vector<256x1xi32>
    %18 = arith.remsi %14, %17 : vector<256x1xi32>
    %c0_i32_10 = arith.constant 0 : i32
    %19 = vector.broadcast %c0_i32_10 : i32 to vector<256x1xi32>
    %20 = arith.cmpi ne, %18, %19 : vector<256x1xi32>
    %c0_i32_11 = arith.constant 0 : i32
    %21 = vector.broadcast %c0_i32_11 : i32 to vector<256x1xi32>
    %22 = arith.cmpi slt, %18, %21 : vector<256x1xi32>
    %c0_i32_12 = arith.constant 0 : i32
    %23 = arith.cmpi slt, %16, %c0_i32_12 : i32
    %24 = vector.broadcast %23 : i1 to vector<256x1xi1>
    %25 = vector.broadcast %24 : vector<256x1xi1> to vector<256x1xi1>
    %26 = arith.xori %22, %25 : vector<256x1xi1>
    %27 = arith.andi %26, %20 : vector<256x1xi1>
    %28 = vector.broadcast %16 : i32 to vector<256x1xi32>
    %29 = arith.addi %18, %28 : vector<256x1xi32>
    %30 = arith.select %27, %29, %18 : vector<256x1xi1>, vector<256x1xi32>
    %cst_13 = arith.constant 0.000000e+00 : f32
    %31 = vector.broadcast %cst_13 : f32 to vector<256x128xf32>
    %cst_14 = arith.constant 0.000000e+00 : f32
    %32 = vector.broadcast %cst_14 : f32 to vector<256x128xf32>
    %c7 = arith.constant 7 : index
    %c0_15 = arith.constant 0 : index
    %33 = vector.load %arg8[%c7, %c0_15] : memref<304x128xf32, #tpu.memory_space<vmem>>, vector<256x128xf32>
    %34 = arith.truncf %33 : vector<256x128xf32> to vector<256x128xbf16>
    %c0_16 = arith.constant 0 : index
    %c0_17 = arith.constant 0 : index
    %c0_18 = arith.constant 0 : index
    %35 = vector.load %arg4[%c0_16, %c0_17, %c0_18] : memref<9x128x128xbf16, #tpu.memory_space<vmem>>, vector<1x128x128xbf16>
    %36 = vector.shape_cast %35 : vector<1x128x128xbf16> to vector<128x128xbf16>
    %cst_19 = arith.constant dense<0.000000e+00> : vector<256x128xf32>
    %37 = tpu.matmul %34, %36, %cst_19 {dimension_numbers = #tpu.dot_dimension_numbers<[1], [0], [0], [1], [0, 0, 1, 1], [], []>} : vector<256x128xbf16>, vector<128x128xbf16>, vector<256x128xf32> -> vector<256x128xf32>
    %38 = arith.addf %32, %37 : vector<256x128xf32>
    %c23 = arith.constant 23 : index
    %c0_20 = arith.constant 0 : index
    %39 = vector.load %arg8[%c23, %c0_20] : memref<304x128xf32, #tpu.memory_space<vmem>>, vector<256x128xf32>
    %40 = arith.truncf %39 : vector<256x128xf32> to vector<256x128xbf16>
    %c3 = arith.constant 3 : index
    %c0_21 = arith.constant 0 : index
    %c0_22 = arith.constant 0 : index
    %41 = vector.load %arg4[%c3, %c0_21, %c0_22] : memref<9x128x128xbf16, #tpu.memory_space<vmem>>, vector<1x128x128xbf16>
    %42 = vector.shape_cast %41 : vector<1x128x128xbf16> to vector<128x128xbf16>
    %cst_23 = arith.constant dense<0.000000e+00> : vector<256x128xf32>
    %43 = tpu.matmul %40, %42, %cst_23 {dimension_numbers = #tpu.dot_dimension_numbers<[1], [0], [0], [1], [0, 0, 1, 1], [], []>} : vector<256x128xbf16>, vector<128x128xbf16>, vector<256x128xf32> -> vector<256x128xf32>
    %44 = arith.addf %38, %43 : vector<256x128xf32>
    %c39 = arith.constant 39 : index
    %c0_24 = arith.constant 0 : index
    %45 = vector.load %arg8[%c39, %c0_24] : memref<304x128xf32, #tpu.memory_space<vmem>>, vector<256x128xf32>
    %46 = arith.truncf %45 : vector<256x128xf32> to vector<256x128xbf16>
    %c6 = arith.constant 6 : index
    %c0_25 = arith.constant 0 : index
    %c0_26 = arith.constant 0 : index
    %47 = vector.load %arg4[%c6, %c0_25, %c0_26] : memref<9x128x128xbf16, #tpu.memory_space<vmem>>, vector<1x128x128xbf16>
    %48 = vector.shape_cast %47 : vector<1x128x128xbf16> to vector<128x128xbf16>
    %cst_27 = arith.constant dense<0.000000e+00> : vector<256x128xf32>
    %49 = tpu.matmul %46, %48, %cst_27 {dimension_numbers = #tpu.dot_dimension_numbers<[1], [0], [0], [1], [0, 0, 1, 1], [], []>} : vector<256x128xbf16>, vector<128x128xbf16>, vector<256x128xf32> -> vector<256x128xf32>
    %50 = arith.addf %44, %49 : vector<256x128xf32>
    %c1_i32_28 = arith.constant 1 : i32
    %51 = vector.broadcast %c1_i32_28 : i32 to vector<256x1xi32>
    %52 = arith.cmpi sge, %30, %51 : vector<256x1xi32>
    %cst_29 = arith.constant 0.000000e+00 : f32
    %53 = vector.shape_cast %52 : vector<256x1xi1> to vector<256x1xi1>
    %54 = vector.broadcast %53 : vector<256x1xi1> to vector<256x128xi1>
    %55 = vector.broadcast %cst_29 : f32 to vector<256x128xf32>
    %56 = arith.select %54, %50, %55 : vector<256x128xi1>, vector<256x128xf32>
    %57 = arith.addf %31, %56 : vector<256x128xf32>
    %cst_30 = arith.constant 0.000000e+00 : f32
    %58 = vector.broadcast %cst_30 : f32 to vector<256x128xf32>
    %c8 = arith.constant 8 : index
    %c0_31 = arith.constant 0 : index
    %59 = vector.load %arg8[%c8, %c0_31] : memref<304x128xf32, #tpu.memory_space<vmem>>, vector<256x128xf32>
    %60 = arith.truncf %59 : vector<256x128xf32> to vector<256x128xbf16>
    %c1 = arith.constant 1 : index
    %c0_32 = arith.constant 0 : index
    %c0_33 = arith.constant 0 : index
    %61 = vector.load %arg4[%c1, %c0_32, %c0_33] : memref<9x128x128xbf16, #tpu.memory_space<vmem>>, vector<1x128x128xbf16>
    %62 = vector.shape_cast %61 : vector<1x128x128xbf16> to vector<128x128xbf16>
    %cst_34 = arith.constant dense<0.000000e+00> : vector<256x128xf32>
    %63 = tpu.matmul %60, %62, %cst_34 {dimension_numbers = #tpu.dot_dimension_numbers<[1], [0], [0], [1], [0, 0, 1, 1], [], []>} : vector<256x128xbf16>, vector<128x128xbf16>, vector<256x128xf32> -> vector<256x128xf32>
    %64 = arith.addf %58, %63 : vector<256x128xf32>
    %c24_35 = arith.constant 24 : index
    %c0_36 = arith.constant 0 : index
    %65 = vector.load %arg8[%c24_35, %c0_36] : memref<304x128xf32, #tpu.memory_space<vmem>>, vector<256x128xf32>
    %66 = arith.truncf %65 : vector<256x128xf32> to vector<256x128xbf16>
    %c4 = arith.constant 4 : index
    %c0_37 = arith.constant 0 : index
    %c0_38 = arith.constant 0 : index
    %67 = vector.load %arg4[%c4, %c0_37, %c0_38] : memref<9x128x128xbf16, #tpu.memory_space<vmem>>, vector<1x128x128xbf16>
    %68 = vector.shape_cast %67 : vector<1x128x128xbf16> to vector<128x128xbf16>
    %cst_39 = arith.constant dense<0.000000e+00> : vector<256x128xf32>
    %69 = tpu.matmul %66, %68, %cst_39 {dimension_numbers = #tpu.dot_dimension_numbers<[1], [0], [0], [1], [0, 0, 1, 1], [], []>} : vector<256x128xbf16>, vector<128x128xbf16>, vector<256x128xf32> -> vector<256x128xf32>
    %70 = arith.addf %64, %69 : vector<256x128xf32>
    %c40 = arith.constant 40 : index
    %c0_40 = arith.constant 0 : index
    %71 = vector.load %arg8[%c40, %c0_40] : memref<304x128xf32, #tpu.memory_space<vmem>>, vector<256x128xf32>
    %72 = arith.truncf %71 : vector<256x128xf32> to vector<256x128xbf16>
    %c7_41 = arith.constant 7 : index
    %c0_42 = arith.constant 0 : index
    %c0_43 = arith.constant 0 : index
    %73 = vector.load %arg4[%c7_41, %c0_42, %c0_43] : memref<9x128x128xbf16, #tpu.memory_space<vmem>>, vector<1x128x128xbf16>
    %74 = vector.shape_cast %73 : vector<1x128x128xbf16> to vector<128x128xbf16>
    %cst_44 = arith.constant dense<0.000000e+00> : vector<256x128xf32>
    %75 = tpu.matmul %72, %74, %cst_44 {dimension_numbers = #tpu.dot_dimension_numbers<[1], [0], [0], [1], [0, 0, 1, 1], [], []>} : vector<256x128xbf16>, vector<128x128xbf16>, vector<256x128xf32> -> vector<256x128xf32>
    %76 = arith.addf %70, %75 : vector<256x128xf32>
    %77 = arith.addf %57, %76 : vector<256x128xf32>
    %cst_45 = arith.constant 0.000000e+00 : f32
    %78 = vector.broadcast %cst_45 : f32 to vector<256x128xf32>
    %c9 = arith.constant 9 : index
    %c0_46 = arith.constant 0 : index
    %79 = vector.load %arg8[%c9, %c0_46] : memref<304x128xf32, #tpu.memory_space<vmem>>, vector<256x128xf32>
    %80 = arith.truncf %79 : vector<256x128xf32> to vector<256x128xbf16>
    %c2 = arith.constant 2 : index
    %c0_47 = arith.constant 0 : index
    %c0_48 = arith.constant 0 : index
    %81 = vector.load %arg4[%c2, %c0_47, %c0_48] : memref<9x128x128xbf16, #tpu.memory_space<vmem>>, vector<1x128x128xbf16>
    %82 = vector.shape_cast %81 : vector<1x128x128xbf16> to vector<128x128xbf16>
    %cst_49 = arith.constant dense<0.000000e+00> : vector<256x128xf32>
    %83 = tpu.matmul %80, %82, %cst_49 {dimension_numbers = #tpu.dot_dimension_numbers<[1], [0], [0], [1], [0, 0, 1, 1], [], []>} : vector<256x128xbf16>, vector<128x128xbf16>, vector<256x128xf32> -> vector<256x128xf32>
    %84 = arith.addf %78, %83 : vector<256x128xf32>
    %c25 = arith.constant 25 : index
    %c0_50 = arith.constant 0 : index
    %85 = vector.load %arg8[%c25, %c0_50] : memref<304x128xf32, #tpu.memory_space<vmem>>, vector<256x128xf32>
    %86 = arith.truncf %85 : vector<256x128xf32> to vector<256x128xbf16>
    %c5 = arith.constant 5 : index
    %c0_51 = arith.constant 0 : index
    %c0_52 = arith.constant 0 : index
    %87 = vector.load %arg4[%c5, %c0_51, %c0_52] : memref<9x128x128xbf16, #tpu.memory_space<vmem>>, vector<1x128x128xbf16>
    %88 = vector.shape_cast %87 : vector<1x128x128xbf16> to vector<128x128xbf16>
    %cst_53 = arith.constant dense<0.000000e+00> : vector<256x128xf32>
    %89 = tpu.matmul %86, %88, %cst_53 {dimension_numbers = #tpu.dot_dimension_numbers<[1], [0], [0], [1], [0, 0, 1, 1], [], []>} : vector<256x128xbf16>, vector<128x128xbf16>, vector<256x128xf32> -> vector<256x128xf32>
    %90 = arith.addf %84, %89 : vector<256x128xf32>
    %c41 = arith.constant 41 : index
    %c0_54 = arith.constant 0 : index
    %91 = vector.load %arg8[%c41, %c0_54] : memref<304x128xf32, #tpu.memory_space<vmem>>, vector<256x128xf32>
    %92 = arith.truncf %91 : vector<256x128xf32> to vector<256x128xbf16>
    %c8_55 = arith.constant 8 : index
    %c0_56 = arith.constant 0 : index
    %c0_57 = arith.constant 0 : index
    %93 = vector.load %arg4[%c8_55, %c0_56, %c0_57] : memref<9x128x128xbf16, #tpu.memory_space<vmem>>, vector<1x128x128xbf16>
    %94 = vector.shape_cast %93 : vector<1x128x128xbf16> to vector<128x128xbf16>
    %cst_58 = arith.constant dense<0.000000e+00> : vector<256x128xf32>
    %95 = tpu.matmul %92, %94, %cst_58 {dimension_numbers = #tpu.dot_dimension_numbers<[1], [0], [0], [1], [0, 0, 1, 1], [], []>} : vector<256x128xbf16>, vector<128x128xbf16>, vector<256x128xf32> -> vector<256x128xf32>
    %96 = arith.addf %90, %95 : vector<256x128xf32>
    %c14_i32 = arith.constant 14 : i32
    %97 = vector.broadcast %c14_i32 : i32 to vector<256x1xi32>
    %98 = arith.cmpi sle, %30, %97 : vector<256x1xi32>
    %cst_59 = arith.constant 0.000000e+00 : f32
    %99 = vector.shape_cast %98 : vector<256x1xi1> to vector<256x1xi1>
    %100 = vector.broadcast %99 : vector<256x1xi1> to vector<256x128xi1>
    %101 = vector.broadcast %cst_59 : f32 to vector<256x128xf32>
    %102 = arith.select %100, %96, %101 : vector<256x128xi1>, vector<256x128xf32>
    %103 = arith.addf %77, %102 : vector<256x128xf32>
    %104 = arith.truncf %103 : vector<256x128xf32> to vector<256x128xbf16>
    %c0_60 = arith.constant 0 : index
    %c0_61 = arith.constant 0 : index
    %c0_62 = arith.constant 0 : index
    %105 = vector.load %arg5[%c0_60, %c0_61, %c0_62] : memref<1x256x128xbf16, #tpu.memory_space<vmem>>, vector<1x256x128xbf16>
    %106 = vector.shape_cast %105 : vector<1x256x128xbf16> to vector<256x128xbf16>
    %107 = vector.shape_cast %104 : vector<256x128xbf16> to vector<1x256x128xbf16>
    tpu.vector_store %arg5[%c0_60, %c0_61, %c0_62], %107 {strides = array<i32>} : memref<1x256x128xbf16, #tpu.memory_space<vmem>>, vector<1x256x128xbf16>,
    %cst_63 = arith.constant dense<0.000000e+00> : vector<128xf32>
    %108 = vector.multi_reduction <add>, %103, %cst_63 [0] : vector<256x128xf32> to vector<128xf32>
    %109 = vector.shape_cast %108 : vector<128xf32> to vector<1x128xf32>
    %c0_64 = arith.constant 0 : index
    %c0_65 = arith.constant 0 : index
    %c0_66 = arith.constant 0 : index
    %110 = vector.load %arg6[%c0_64, %c0_65, %c0_66] : memref<1x1x128xf32, #tpu.memory_space<vmem>>, vector<1x1x128xf32>
    %111 = vector.shape_cast %110 : vector<1x1x128xf32> to vector<1x128xf32>
    %112 = vector.shape_cast %109 : vector<1x128xf32> to vector<1x1x128xf32>
    tpu.vector_store %arg6[%c0_64, %c0_65, %c0_66], %112 {strides = array<i32>} : memref<1x1x128xf32, #tpu.memory_space<vmem>>, vector<1x1x128xf32>,
    %113 = arith.mulf %103, %103 : vector<256x128xf32>
    %cst_67 = arith.constant dense<0.000000e+00> : vector<128xf32>
    %114 = vector.multi_reduction <add>, %113, %cst_67 [0] : vector<256x128xf32> to vector<128xf32>
    %115 = vector.shape_cast %114 : vector<128xf32> to vector<1x128xf32>
    %c0_68 = arith.constant 0 : index
    %c0_69 = arith.constant 0 : index
    %c0_70 = arith.constant 0 : index
    %116 = vector.load %arg7[%c0_68, %c0_69, %c0_70] : memref<1x1x128xf32, #tpu.memory_space<vmem>>, vector<1x1x128xf32>
    %117 = vector.shape_cast %116 : vector<1x1x128xf32> to vector<1x128xf32>
    %118 = vector.shape_cast %115 : vector<1x128xf32> to vector<1x1x128xf32>
    tpu.vector_store %arg7[%c0_68, %c0_69, %c0_70], %118 {strides = array<i32>} : memref<1x1x128xf32, #tpu.memory_space<vmem>>, vector<1x1x128xf32>,
    return
  }
  func.func @transform_0(%arg0: i32) -> (i32, i32, i32) {
    %c0_i32 = arith.constant 0 : i32
    %c0_i32_0 = arith.constant 0 : i32
    %c0_i32_1 = arith.constant 0 : i32
    return %arg0, %c0_i32, %c0_i32_0 : i32, i32, i32
  }
  func.func @transform_1(%arg0: i32) -> (i32, i32) {
    %c0_i32 = arith.constant 0 : i32
    %c0_i32_0 = arith.constant 0 : i32
    %c0_i32_1 = arith.constant 0 : i32
    return %c0_i32, %c0_i32_0 : i32, i32
  }
  func.func @transform_2(%arg0: i32) -> (i32, i32) {
    %c0_i32 = arith.constant 0 : i32
    %c0_i32_0 = arith.constant 0 : i32
    %c0_i32_1 = arith.constant 0 : i32
    return %c0_i32, %c0_i32_0 : i32, i32
  }
  func.func @transform_3(%arg0: i32) -> (i32, i32, i32) {
    %c0_i32 = arith.constant 0 : i32
    %c0_i32_0 = arith.constant 0 : i32
    %c0_i32_1 = arith.constant 0 : i32
    %c0_i32_2 = arith.constant 0 : i32
    return %c0_i32, %c0_i32_0, %c0_i32_1 : i32, i32, i32
  }
  func.func @transform_4(%arg0: i32) -> (i32, i32, i32) {
    %c0_i32 = arith.constant 0 : i32
    %c0_i32_0 = arith.constant 0 : i32
    %c0_i32_1 = arith.constant 0 : i32
    return %arg0, %c0_i32, %c0_i32_0 : i32, i32, i32
  }
  func.func @transform_5(%arg0: i32) -> (i32, i32, i32) {
    %c0_i32 = arith.constant 0 : i32
    %c0_i32_0 = arith.constant 0 : i32
    %c0_i32_1 = arith.constant 0 : i32
    return %arg0, %c0_i32, %c0_i32_0 : i32, i32, i32
  }
  func.func @transform_6(%arg0: i32) -> (i32, i32, i32) {
    %c0_i32 = arith.constant 0 : i32
    %c0_i32_0 = arith.constant 0 : i32
    %c0_i32_1 = arith.constant 0 : i32
    return %arg0, %c0_i32, %c0_i32_0 : i32, i32, i32
  }
}

module attributes {stable_mosaic.version = 11 : i64} {
  func.func @_bn_act_kernel(%arg0: i32, %arg1: memref<1x256x128xbf16, #tpu.memory_space<vmem>>, %arg2: memref<1x128xf32, #tpu.memory_space<vmem>>, %arg3: memref<1x128xf32, #tpu.memory_space<vmem>>, %arg4: memref<1x256x128xf32, #tpu.memory_space<vmem>>) attributes {dimension_semantics = [#tpu.dimension_semantics<parallel>], iteration_bounds = array<i64: 2>, scalar_prefetch = 0 : i64, scratch_operands = 0 : i64, tpu.core_type = #tpu.core_type<tc>, window_params = [{transform_indices = @transform_0, window_bounds = array<i64: 1, 256, 128>}, {pipeline_mode = #tpu.pipeline_mode<synchronous>, transform_indices = @transform_1, window_bounds = array<i64: 1, 128>}, {pipeline_mode = #tpu.pipeline_mode<synchronous>, transform_indices = @transform_2, window_bounds = array<i64: 1, 128>}, {transform_indices = @transform_3, window_bounds = array<i64: 1, 256, 128>}]} {
    %c0 = arith.constant 0 : index
    %c0_0 = arith.constant 0 : index
    %c0_1 = arith.constant 0 : index
    %0 = vector.load %arg1[%c0, %c0_0, %c0_1] : memref<1x256x128xbf16, #tpu.memory_space<vmem>>, vector<1x256x128xbf16>
    %1 = vector.shape_cast %0 : vector<1x256x128xbf16> to vector<256x128xbf16>
    %2 = arith.extf %1 : vector<256x128xbf16> to vector<256x128xf32>
    %c0_2 = arith.constant 0 : index
    %c0_3 = arith.constant 0 : index
    %3 = vector.load %arg2[%c0_2, %c0_3] : memref<1x128xf32, #tpu.memory_space<vmem>>, vector<1x128xf32>
    %4 = vector.broadcast %3 : vector<1x128xf32> to vector<256x128xf32>
    %5 = arith.mulf %2, %4 : vector<256x128xf32>
    %c0_4 = arith.constant 0 : index
    %c0_5 = arith.constant 0 : index
    %6 = vector.load %arg3[%c0_4, %c0_5] : memref<1x128xf32, #tpu.memory_space<vmem>>, vector<1x128xf32>
    %7 = vector.broadcast %6 : vector<1x128xf32> to vector<256x128xf32>
    %8 = arith.addf %5, %7 : vector<256x128xf32>
    %cst = arith.constant 0.000000e+00 : f32
    %9 = vector.broadcast %cst : f32 to vector<256x128xf32>
    %10 = arith.maximumf %8, %9 : vector<256x128xf32>
    %c0_6 = arith.constant 0 : index
    %c0_7 = arith.constant 0 : index
    %c0_8 = arith.constant 0 : index
    %11 = vector.load %arg4[%c0_6, %c0_7, %c0_8] : memref<1x256x128xf32, #tpu.memory_space<vmem>>, vector<1x256x128xf32>
    %12 = vector.shape_cast %11 : vector<1x256x128xf32> to vector<256x128xf32>
    %13 = vector.shape_cast %10 : vector<256x128xf32> to vector<1x256x128xf32>
    tpu.vector_store %arg4[%c0_6, %c0_7, %c0_8], %13 {strides = array<i32>} : memref<1x256x128xf32, #tpu.memory_space<vmem>>, vector<1x256x128xf32>,
    return
  }
  func.func @transform_0(%arg0: i32) -> (i32, i32, i32) {
    %c0_i32 = arith.constant 0 : i32
    %c0_i32_0 = arith.constant 0 : i32
    %c0_i32_1 = arith.constant 0 : i32
    return %arg0, %c0_i32, %c0_i32_0 : i32, i32, i32
  }
  func.func @transform_1(%arg0: i32) -> (i32, i32) {
    %c0_i32 = arith.constant 0 : i32
    %c0_i32_0 = arith.constant 0 : i32
    %c0_i32_1 = arith.constant 0 : i32
    return %c0_i32, %c0_i32_0 : i32, i32
  }
  func.func @transform_2(%arg0: i32) -> (i32, i32) {
    %c0_i32 = arith.constant 0 : i32
    %c0_i32_0 = arith.constant 0 : i32
    %c0_i32_1 = arith.constant 0 : i32
    return %c0_i32, %c0_i32_0 : i32, i32
  }
  func.func @transform_3(%arg0: i32) -> (i32, i32, i32) {
    %c0_i32 = arith.constant 0 : i32
    %c0_i32_0 = arith.constant 0 : i32
    %c0_i32_1 = arith.constant 0 : i32
    return %arg0, %c0_i32, %c0_i32_0 : i32, i32, i32
  }
}

</mosaic_0001>

<llo_original>
// kernel: double_conv_forward.5
$region0: #{double_conv_forward.5}
  #allocation0 [shape = 'u32[]', space=smem, size = 0x4, offset = 0x4, fixed_abs, tag = 'smem constant byte address 0x4 - core index']
  #allocation1 [shape = 'u32[72,128]{1,0:T(1,128)}', space=vmem, size = 0x9000, scoped, tag = 'internal scratch']
  %s0 = inlined_call_operand.vmem [shape: bf16[2,256,128], index: 0, kind: input, shape index: {}]
  %s1 = inlined_call_operand.vmem [shape: f32[1,128], index: 1, kind: input, shape index: {}]
  %s2 = inlined_call_operand.vmem [shape: f32[1,128], index: 2, kind: input, shape index: {}]
  %s3 = inlined_call_operand.vmem [shape: f32[2,256,128], index: 3, kind: output, shape index: {}]
  %s4 = sld [smem:[#allocation0]]
  $region45: #{double_conv_forward.5} parent=0
    _
  %s6 = ssub.s32 1, %s4
  %s7 = scalar_select 0, %s6, %s4
  loop: start=0, step=1, limit=4
  $region2: #{double_conv_forward.5} parent=0 // loop_pre_header
    _
  $region3: #{double_conv_forward.5} parent=0 // loop_header
    %s9 = sphi 0, %s13
    %p10 = scmp.ge.s32.totalorder %s9, 4
    %s19 = sphi 0, %s21
    %s22 = sphi 0, %s19
    %s23 = sphi 0, %s22
    %s39 = sphi 0, %s23
    %s43 = sphi 0, %s43
    %s45 = sphi 0, %s43
    %s46 = sphi 0, %s45
    %s60 = sphi 0, %s46
    %s64 = sphi 0, %s64
    %s66 = sphi 0, %s64
    %s67 = sphi 0, %s66
    %s81 = sphi 0, %s67
    %s87 = sphi 0, %s89
    %s90 = sphi 0, %s87
    %s91 = sphi 0, %s90
    %s107 = sphi 0, %s91
  $region4: #{double_conv_forward.5} parent=0 // loop_header_branch
    %12 = sbr.rel (%p10) target = $region8
  $region5: #{double_conv_forward.5} parent=0 // loop_body
    %s14 = ssub.s32 %s9, 1
    %s15 = ssub.s32 %s9, 2
    %s16 = sadd.s32 %s9, 1
    %s17 = ssub.s32 %s9, %s16
    %p18 = scmp.eq.s32.totalorder %s17, 0
    %s20 = sadd.s32 %s19, 1
    %s21 = scalar_select %p18, %s19, %s20
    %p24 = pneg %p18
    %p25 = scmp.eq.s32.totalorder %s9, 1
    %p26 = por %p24, %p25
    %p27 = scmp.ne.s32.totalorder %s19, %s22
    %p28 = scmp.eq.s32.totalorder %s9, 0
    %p29 = por %p27, %p28
    %p30 = scmp.ne.s32.totalorder %s19, %s22
    %p31 = scmp.eq.s32.totalorder %s14, 1
    %p32 = por %p30, %p31
    %p33 = scmp.ne.s32.totalorder %s22, %s23
    %p34 = scmp.eq.s32.totalorder %s14, 0
    %p35 = por %p33, %p34
    %p36 = scmp.ne.s32.totalorder %s22, %s23
    %p37 = scmp.eq.s32.totalorder %s15, 1
    %p38 = por %p36, %p37
    %p40 = scmp.ne.s32.totalorder %s23, %s39
    %p41 = scmp.eq.s32.totalorder %s15, 0
    %p42 = por %p40, %p41
    %s44 = sadd.s32 %s43, 1
    %p47 = scmp.eq.s32.totalorder %s9, 1
    %p48 = scmp.ne.s32.totalorder %s43, %s45
    %p49 = scmp.eq.s32.totalorder %s9, 0
    %p50 = por %p48, %p49
    %p51 = scmp.ne.s32.totalorder %s43, %s45
    %p52 = scmp.eq.s32.totalorder %s14, 1
    %p53 = por %p51, %p52
    %p54 = scmp.ne.s32.totalorder %s45, %s46
    %p55 = scmp.eq.s32.totalorder %s14, 0
    %p56 = por %p54, %p55
    %p57 = scmp.ne.s32.totalorder %s45, %s46
    %p58 = scmp.eq.s32.totalorder %s15, 1
    %p59 = por %p57, %p58
    %p61 = scmp.ne.s32.totalorder %s46, %s60
    %p62 = scmp.eq.s32.totalorder %s15, 0
    %p63 = por %p61, %p62
    %s65 = sadd.s32 %s64, 1
    %p68 = scmp.eq.s32.totalorder %s9, 1
    %p69 = scmp.ne.s32.totalorder %s64, %s66
    %p70 = scmp.eq.s32.totalorder %s9, 0
    %p71 = por %p69, %p70
    %p72 = scmp.ne.s32.totalorder %s64, %s66
    %p73 = scmp.eq.s32.totalorder %s14, 1
    %p74 = por %p72, %p73
    %p75 = scmp.ne.s32.totalorder %s66, %s67
    %p76 = scmp.eq.s32.totalorder %s14, 0
    %p77 = por %p75, %p76
    %p78 = scmp.ne.s32.totalorder %s66, %s67
    %p79 = scmp.eq.s32.totalorder %s15, 1
    %p80 = por %p78, %p79
    %p82 = scmp.ne.s32.totalorder %s67, %s81
    %p83 = scmp.eq.s32.totalorder %s15, 0
    %p84 = por %p82, %p83
    %s85 = ssub.s32 %s9, %s16
    %p86 = scmp.eq.s32.totalorder %s85, 0
    %s88 = sadd.s32 %s87, 1
    %s89 = scalar_select %p86, %s87, %s88
    %p92 = pneg %p86
    %p93 = scmp.eq.s32.totalorder %s9, 1
    %p94 = por %p92, %p93
    %p95 = scmp.ne.s32.totalorder %s87, %s90
    %p96 = scmp.eq.s32.totalorder %s9, 0
    %p97 = por %p95, %p96
    %p98 = scmp.ne.s32.totalorder %s87, %s90
    %p99 = scmp.eq.s32.totalorder %s14, 1
    %p100 = por %p98, %p99
    %p101 = scmp.ne.s32.totalorder %s90, %s91
    %p102 = scmp.eq.s32.totalorder %s14, 0
    %p103 = por %p101, %p102
    %p104 = scmp.ne.s32.totalorder %s90, %s91
    %p105 = scmp.eq.s32.totalorder %s15, 1
    %p106 = por %p104, %p105
    %p108 = scmp.ne.s32.totalorder %s91, %s107
    %p109 = scmp.eq.s32.totalorder %s15, 0
    %p110 = por %p108, %p109
    %p111 = scmp.le.s32.totalorder 1, %s9
    %p112 = scmp.lt.s32.totalorder %s9, 3
    %p113 = pnand %p111, %p112
    %p114 = pneg %p113
    // Predicated region
    $region9: #{double_conv_forward.5} parent=5 // pred_check
      _
    $region10: #{double_conv_forward.5} parent=5 // pred_check_branch
      %116 = sbr.rel (%p113) target = $region12
    $region11: #{double_conv_forward.5} parent=5 // pred_region
      %s117 = ssub.s32 %s9, 1
      // Predicated region
      $region13: #{double_conv_forward.5} parent=11 // pred_check
        %p118 = pneg %p56
      $region14: #{double_conv_forward.5} parent=11 // pred_check_branch
        %120 = sbr.rel (%p118) target = $region16
      $region15: #{double_conv_forward.5} parent=11 // pred_region
        _
      $region16: #{double_conv_forward.5} parent=11 // pred_fallthru
        _
      // Predicated region
      $region17: #{double_conv_forward.5} parent=11 // pred_check
        %p121 = pneg %p77
      $region18: #{double_conv_forward.5} parent=11 // pred_check_branch
        %123 = sbr.rel (%p121) target = $region20
      $region19: #{double_conv_forward.5} parent=11 // pred_region
        _
      $region20: #{double_conv_forward.5} parent=11 // pred_fallthru
        _
    $region12: #{double_conv_forward.5} parent=5 // pred_fallthru
      _
    %p124 = scmp.lt.s32.totalorder %s9, 2
    // Predicated region
    $region21: #{double_conv_forward.5} parent=5 // pred_check
      %p125 = pneg %p124
    $region22: #{double_conv_forward.5} parent=5 // pred_check_branch
      %127 = sbr.rel (%p125) target = $region24
    $region23: #{double_conv_forward.5} parent=5 // pred_region
      // Predicated region
      $region25: #{double_conv_forward.5} parent=23 // pred_check
        %p128 = pneg %p29
      $region26: #{double_conv_forward.5} parent=23 // pred_check_branch
        %130 = sbr.rel (%p128) target = $region28
      $region27: #{double_conv_forward.5} parent=23 // pred_region
        %p131 = scmp.lt.s32.totalorder %s9, 1
        %s132 = scalar_select %p131, %s9, 1
        %s133 = smul.addr %s132, 32
        %s134 = smul.addr %s133, 4
        %s135 = scalar_lea.vmem %s0, %s134
      $region28: #{double_conv_forward.5} parent=23 // pred_fallthru
        _
    $region24: #{double_conv_forward.5} parent=5 // pred_fallthru
      _
    %p136 = scmp.le.s32.totalorder 1, %s9
    %p137 = scmp.lt.s32.totalorder %s9, 3
    %p138 = pnand %p136, %p137
    %p139 = pneg %p138
    // Predicated region
    $region29: #{double_conv_forward.5} parent=5 // pred_check
      _
    $region30: #{double_conv_forward.5} parent=5 // pred_check_branch
      %141 = sbr.rel (%p138) target = $region32
    $region31: #{double_conv_forward.5} parent=5 // pred_region
      %s142 = ssub.s32 %s9, 1
      %p143 = scmp.lt.s32.totalorder %s14, 1
      %s144 = scalar_select %p143, %s14, 1
      %s145 = smul.addr %s144, 32
      %s146 = smul.addr %s145, 4
      %s147 = scalar_lea.vmem %s0, %s146
      %p148 = pneg %p35
      %p149 = pneg %p32
      %p150 = pneg %p56
      %p151 = pneg %p53
      %p152 = pneg %p77
      %p153 = pneg %p74
      %p154 = pneg %p103
      %p155 = pneg %p100
      %p156 = scmp.lt.s32.totalorder %s14, 1
      %s157 = scalar_select %p156, %s14, 1
      %s158 = smul.addr %s157, 32
      %s159 = smul.addr %s158, 8
      %s160 = scalar_lea.vmem %s3, %s159
      %p161 = scmp.lt.s32.totalorder %s14, 1
      %s162 = scalar_select %p161, %s14, 1
      %s163 = smul.addr %s162, 32
      %s164 = smul.addr %s163, 4
      %s165 = scalar_lea.vmem %s0, %s164
      %p166 = scmp.lt.s32.totalorder %s14, 1
      %s167 = scalar_select %p166, %s14, 1
      %s168 = smul.addr %s167, 32
      %s169 = smul.addr %s168, 8
      %s170 = scalar_lea.vmem %s3, %s169
      %v171 = vld [vmem:[%s165] sm:$0xf]
      %v172 = vld [vmem:[%s165 + $0x4] sm:$0xf]
      %v173 = vld [vmem:[%s165 + $0x8] sm:$0xf]
      %v174 = vld [vmem:[%s165 + $0xc] sm:$0xf]
      %v175 = vld [vmem:[%s165 + $0x10] sm:$0xf]
      %v176 = vld [vmem:[%s165 + $0x14] sm:$0xf]
      %v177 = vld [vmem:[%s165 + $0x18] sm:$0xf]
      %v178 = vld [vmem:[%s165 + $0x1c] sm:$0xf]
      %v179 = vld [vmem:[%s165 + $0x20] sm:$0xf]
      %v180 = vld [vmem:[%s165 + $0x24] sm:$0xf]
      %v181 = vld [vmem:[%s165 + $0x28] sm:$0xf]
      %v182 = vld [vmem:[%s165 + $0x2c] sm:$0xf]
      %v183 = vld [vmem:[%s165 + $0x30] sm:$0xf]
      %v184 = vld [vmem:[%s165 + $0x34] sm:$0xf]
      %v185 = vld [vmem:[%s165 + $0x38] sm:$0xf]
      %v186 = vld [vmem:[%s165 + $0x3c] sm:$0xf]
      %v187 = vld [vmem:[%s165 + $0x40] sm:$0xf]
      %v188 = vld [vmem:[%s165 + $0x44] sm:$0xf]
      %v189 = vld [vmem:[%s165 + $0x48] sm:$0xf]
      %v190 = vld [vmem:[%s165 + $0x4c] sm:$0xf]
      %v191 = vld [vmem:[%s165 + $0x50] sm:$0xf]
      %v192 = vld [vmem:[%s165 + $0x54] sm:$0xf]
      %v193 = vld [vmem:[%s165 + $0x58] sm:$0xf]
      %v194 = vld [vmem:[%s165 + $0x5c] sm:$0xf]
      %v195 = vld [vmem:[%s165 + $0x60] sm:$0xf]
      %v196 = vld [vmem:[%s165 + $0x64] sm:$0xf]
      %v197 = vld [vmem:[%s165 + $0x68] sm:$0xf]
      %v198 = vld [vmem:[%s165 + $0x6c] sm:$0xf]
      %v199 = vld [vmem:[%s165 + $0x70] sm:$0xf]
      %v200 = vld [vmem:[%s165 + $0x74] sm:$0xf]
      %v201 = vld [vmem:[%s165 + $0x78] sm:$0xf]
      %v202 = vld [vmem:[%s165 + $0x7c] sm:$0xf]
      %v203 = vunpack.c.l.bf16 %v171
      %v204 = vunpack.c.l.bf16 %v172
      %v205 = vunpack.c.l.bf16 %v173
      %v206 = vunpack.c.l.bf16 %v174
      %v207 = vunpack.c.l.bf16 %v175
      %v208 = vunpack.c.l.bf16 %v176
      %v209 = vunpack.c.l.bf16 %v177
      %v210 = vunpack.c.l.bf16 %v178
      %v211 = vunpack.c.l.bf16 %v179
      %v212 = vunpack.c.l.bf16 %v180
      %v213 = vunpack.c.l.bf16 %v181
      %v214 = vunpack.c.l.bf16 %v182
      %v215 = vunpack.c.l.bf16 %v183
      %v216 = vunpack.c.l.bf16 %v184
      %v217 = vunpack.c.l.bf16 %v185
      %v218 = vunpack.c.l.bf16 %v186
      %v219 = vunpack.c.l.bf16 %v187
      %v220 = vunpack.c.l.bf16 %v188
      %v221 = vunpack.c.l.bf16 %v189
      %v222 = vunpack.c.l.bf16 %v190
      %v223 = vunpack.c.l.bf16 %v191
      %v224 = vunpack.c.l.bf16 %v192
      %v225 = vunpack.c.l.bf16 %v193
      %v226 = vunpack.c.l.bf16 %v194
      %v227 = vunpack.c.l.bf16 %v195
      %v228 = vunpack.c.l.bf16 %v196
      %v229 = vunpack.c.l.bf16 %v197
      %v230 = vunpack.c.l.bf16 %v198
      %v231 = vunpack.c.l.bf16 %v199
      %v232 = vunpack.c.l.bf16 %v200
      %v233 = vunpack.c.l.bf16 %v201
      %v234 = vunpack.c.l.bf16 %v202
      %v235 = vld [vmem:[%s1] sm:$0x1]
      %v237 = vperm.slane %v235, 0
      %v239 = vmul.f32 %v203, %v237
      %v240 = vmul.f32 %v204, %v237
      %v241 = vmul.f32 %v205, %v237
      %v242 = vmul.f32 %v206, %v237
      %v243 = vmul.f32 %v207, %v237
      %v244 = vmul.f32 %v208, %v237
      %v245 = vmul.f32 %v209, %v237
      %v246 = vmul.f32 %v210, %v237
      %v247 = vmul.f32 %v211, %v237
      %v248 = vmul.f32 %v212, %v237
      %v249 = vmul.f32 %v213, %v237
      %v250 = vmul.f32 %v214, %v237
      %v251 = vmul.f32 %v215, %v237
      %v252 = vmul.f32 %v216, %v237
      %v253 = vmul.f32 %v217, %v237
      %v254 = vmul.f32 %v218, %v237
      %v255 = vmul.f32 %v219, %v237
      %v256 = vmul.f32 %v220, %v237
      %v257 = vmul.f32 %v221, %v237
      %v258 = vmul.f32 %v222, %v237
      %v259 = vmul.f32 %v223, %v237
      %v260 = vmul.f32 %v224, %v237
      %v261 = vmul.f32 %v225, %v237
      %v262 = vmul.f32 %v226, %v237
      %v263 = vmul.f32 %v227, %v237
      %v264 = vmul.f32 %v228, %v237
      %v265 = vmul.f32 %v229, %v237
      %v266 = vmul.f32 %v230, %v237
      %v267 = vmul.f32 %v231, %v237
      %v268 = vmul.f32 %v232, %v237
      %v269 = vmul.f32 %v233, %v237
      %v270 = vmul.f32 %v234, %v237
      %v271 = vld [vmem:[%s2] sm:$0x1]
      %v273 = vperm.slane %v271, 0
      %v275 = vadd.f32 %v239, %v273
      %v276 = vadd.f32 %v240, %v273
      %v277 = vadd.f32 %v241, %v273
      %v278 = vadd.f32 %v242, %v273
      %v279 = vadd.f32 %v243, %v273
      %v280 = vadd.f32 %v244, %v273
      %v281 = vadd.f32 %v245, %v273
      %v282 = vadd.f32 %v246, %v273
      %v283 = vadd.f32 %v247, %v273
      %v284 = vadd.f32 %v248, %v273
      %v285 = vadd.f32 %v249, %v273
      %v286 = vadd.f32 %v250, %v273
      %v287 = vadd.f32 %v251, %v273
      %v288 = vadd.f32 %v252, %v273
      %v289 = vadd.f32 %v253, %v273
      %v290 = vadd.f32 %v254, %v273
      %v291 = vadd.f32 %v255, %v273
      %v292 = vadd.f32 %v256, %v273
      %v293 = vadd.f32 %v257, %v273
      %v294 = vadd.f32 %v258, %v273
      %v295 = vadd.f32 %v259, %v273
      %v296 = vadd.f32 %v260, %v273
      %v297 = vadd.f32 %v261, %v273
      %v298 = vadd.f32 %v262, %v273
      %v299 = vadd.f32 %v263, %v273
      %v300 = vadd.f32 %v264, %v273
      %v301 = vadd.f32 %v265, %v273
      %v302 = vadd.f32 %v266, %v273
      %v303 = vadd.f32 %v267, %v273
      %v304 = vadd.f32 %v268, %v273
      %v305 = vadd.f32 %v269, %v273
      %v306 = vadd.f32 %v270, %v273
      %v307 = vmax.f32 %v275, 0.0
      %v308 = vmax.f32 %v276, 0.0
      %v309 = vmax.f32 %v277, 0.0
      %v310 = vmax.f32 %v278, 0.0
      %v311 = vmax.f32 %v279, 0.0
      %v312 = vmax.f32 %v280, 0.0
      %v313 = vmax.f32 %v281, 0.0
      %v314 = vmax.f32 %v282, 0.0
      %v315 = vmax.f32 %v283, 0.0
      %v316 = vmax.f32 %v284, 0.0
      %v317 = vmax.f32 %v285, 0.0
      %v318 = vmax.f32 %v286, 0.0
      %v319 = vmax.f32 %v287, 0.0
      %v320 = vmax.f32 %v288, 0.0
      %v321 = vmax.f32 %v289, 0.0
      %v322 = vmax.f32 %v290, 0.0
      %v323 = vmax.f32 %v291, 0.0
      %v324 = vmax.f32 %v292, 0.0
      %v325 = vmax.f32 %v293, 0.0
      %v326 = vmax.f32 %v294, 0.0
      %v327 = vmax.f32 %v295, 0.0
      %v328 = vmax.f32 %v296, 0.0
      %v329 = vmax.f32 %v297, 0.0
      %v330 = vmax.f32 %v298, 0.0
      %v331 = vmax.f32 %v299, 0.0
      %v332 = vmax.f32 %v300, 0.0
      %v333 = vmax.f32 %v301, 0.0
      %v334 = vmax.f32 %v302, 0.0
      %v335 = vmax.f32 %v303, 0.0
      %v336 = vmax.f32 %v304, 0.0
      %v337 = vmax.f32 %v305, 0.0
      %v338 = vmax.f32 %v306, 0.0
      %339 = vst [vmem:[%s170] sm:$0xff] %v307
      %340 = vst [vmem:[%s170 + $0x8] sm:$0xff] %v308
      %341 = vst [vmem:[%s170 + $0x10] sm:$0xff] %v309
      %342 = vst [vmem:[%s170 + $0x18] sm:$0xff] %v310
      %343 = vst [vmem:[%s170 + $0x20] sm:$0xff] %v311
      %344 = vst [vmem:[%s170 + $0x28] sm:$0xff] %v312
      %345 = vst [vmem:[%s170 + $0x30] sm:$0xff] %v313
      %346 = vst [vmem:[%s170 + $0x38] sm:$0xff] %v314
      %347 = vst [vmem:[%s170 + $0x40] sm:$0xff] %v315
      %348 = vst [vmem:[%s170 + $0x48] sm:$0xff] %v316
      %349 = vst [vmem:[%s170 + $0x50] sm:$0xff] %v317
      %350 = vst [vmem:[%s170 + $0x58] sm:$0xff] %v318
      %351 = vst [vmem:[%s170 + $0x60] sm:$0xff] %v319
      %352 = vst [vmem:[%s170 + $0x68] sm:$0xff] %v320
      %353 = vst [vmem:[%s170 + $0x70] sm:$0xff] %v321
      %354 = vst [vmem:[%s170 + $0x78] sm:$0xff] %v322
      %355 = vst [vmem:[%s170 + $0x80] sm:$0xff] %v323
      %356 = vst [vmem:[%s170 + $0x88] sm:$0xff] %v324
      %357 = vst [vmem:[%s170 + $0x90] sm:$0xff] %v325
      %358 = vst [vmem:[%s170 + $0x98] sm:$0xff] %v326
      %359 = vst [vmem:[%s170 + $0xa0] sm:$0xff] %v327
      %360 = vst [vmem:[%s170 + $0xa8] sm:$0xff] %v328
      %361 = vst [vmem:[%s170 + $0xb0] sm:$0xff] %v329
      %362 = vst [vmem:[%s170 + $0xb8] sm:$0xff] %v330
      %363 = vst [vmem:[%s170 + $0xc0] sm:$0xff] %v331
      %364 = vst [vmem:[%s170 + $0xc8] sm:$0xff] %v332
      %365 = vst [vmem:[%s170 + $0xd0] sm:$0xff] %v333
      %366 = vst [vmem:[%s170 + $0xd8] sm:$0xff] %v334
      %367 = vst [vmem:[%s170 + $0xe0] sm:$0xff] %v335
      %368 = vst [vmem:[%s170 + $0xe8] sm:$0xff] %v336
      %369 = vst [vmem:[%s170 + $0xf0] sm:$0xff] %v337
      %370 = vst [vmem:[%s170 + $0xf8] sm:$0xff] %v338
      %p371 = scmp.lt.s32.totalorder %s14, 1
      %s372 = scalar_select %p371, %s14, 1
      %s373 = smul.addr %s372, 32
      %s374 = smul.addr %s373, 8
      %s375 = scalar_lea.vmem %s3, %s374
      // Predicated region
      $region33: #{double_conv_forward.5} parent=31 // pred_check
        %p376 = pneg %p100
      $region34: #{double_conv_forward.5} parent=31 // pred_check_branch
        %378 = sbr.rel (%p376) target = $region36
      $region35: #{double_conv_forward.5} parent=31 // pred_region
        _
      $region36: #{double_conv_forward.5} parent=31 // pred_fallthru
        _
    $region32: #{double_conv_forward.5} parent=5 // pred_fallthru
      _
    %p379 = scmp.le.s32.totalorder 2, %s9
    // Predicated region
    $region37: #{double_conv_forward.5} parent=5 // pred_check
      %p380 = pneg %p379
    $region38: #{double_conv_forward.5} parent=5 // pred_check_branch
      %382 = sbr.rel (%p380) target = $region40
    $region39: #{double_conv_forward.5} parent=5 // pred_region
      %s383 = ssub.s32 %s9, 2
      // Predicated region
      $region41: #{double_conv_forward.5} parent=39 // pred_check
        %p384 = pneg %p106
      $region42: #{double_conv_forward.5} parent=39 // pred_check_branch
        %386 = sbr.rel (%p384) target = $region44
      $region43: #{double_conv_forward.5} parent=39 // pred_region
        %p387 = scmp.lt.s32.totalorder %s15, 1
        %s388 = scalar_select %p387, %s15, 1
        %s389 = smul.addr %s388, 32
        %s390 = smul.addr %s389, 8
        %s391 = scalar_lea.vmem %s3, %s390
      $region44: #{double_conv_forward.5} parent=39 // pred_fallthru
        _
    $region40: #{double_conv_forward.5} parent=5 // pred_fallthru
      _
  $region6: #{double_conv_forward.5} parent=0 // loop_footer
    %s13 = sadd.s32 1, %s9
  $region7: #{double_conv_forward.5} parent=0 // loop_footer_branch
    %8 = sbr.rel target = $region3
  $region8: #{double_conv_forward.5} parent=0 // loop_exit
    _

// kernel: double_conv_forward.3
$region0: #{double_conv_forward.3}
  #allocation0 [shape = 'u32[]', space=smem, size = 0x4, offset = 0x4, fixed_abs, tag = 'smem constant byte address 0x4 - core index']
  #allocation1 [shape = 'u32[72,128]{1,0:T(1,128)}', space=vmem, size = 0x9000, scoped, tag = 'internal scratch']
  #allocation2 [shape = 'f32[304,4]{1,0:T(8,128)}', space=vmem, size = 0x26000, scoped, tag = 'scratch operand']
  %s0 = inlined_call_operand.vmem [shape: bf16[2,256,4], index: 0, kind: input, shape index: {}]
  %s1 = inlined_call_operand.vmem [shape: f32[1,4], index: 1, kind: input, shape index: {}]
  %s2 = inlined_call_operand.vmem [shape: f32[1,4], index: 2, kind: input, shape index: {}]
  %s3 = inlined_call_operand.vmem [shape: bf16[9,4,128], index: 3, kind: input, shape index: {}]
  %s4 = inlined_call_operand.vmem [shape: bf16[2,256,128], index: 4, kind: output, shape index: {0}]
  %s5 = inlined_call_operand.vmem [shape: f32[2,1,128], index: 5, kind: output, shape index: {1}]
  %s6 = inlined_call_operand.vmem [shape: f32[2,1,128], index: 6, kind: output, shape index: {2}]
  %7 = xla_tuple %s4, %s5, %s6
  %s8 = sld [smem:[#allocation0]]
  $region65: #{double_conv_forward.3} parent=0
    _
  %s10 = ssub.s32 1, %s8
  %s11 = scalar_select 0, %s10, %s8
  loop: start=0, step=1, limit=4
  $region2: #{double_conv_forward.3} parent=0 // loop_pre_header
    _
  $region3: #{double_conv_forward.3} parent=0 // loop_header
    %s13 = sphi 0, %s17
    %p14 = scmp.ge.s32.totalorder %s13, 4
    %s23 = sphi 0, %s25
    %s26 = sphi 0, %s23
    %s27 = sphi 0, %s26
    %s43 = sphi 0, %s27
    %s47 = sphi 0, %s47
    %s49 = sphi 0, %s47
    %s50 = sphi 0, %s49
    %s64 = sphi 0, %s50
    %s68 = sphi 0, %s68
    %s70 = sphi 0, %s68
    %s71 = sphi 0, %s70
    %s85 = sphi 0, %s71
    %s89 = sphi 0, %s89
    %s91 = sphi 0, %s89
    %s92 = sphi 0, %s91
    %s106 = sphi 0, %s92
    %s112 = sphi 0, %s114
    %s115 = sphi 0, %s112
    %s116 = sphi 0, %s115
    %s132 = sphi 0, %s116
    %s138 = sphi 0, %s140
    %s141 = sphi 0, %s138
    %s142 = sphi 0, %s141
    %s158 = sphi 0, %s142
    %s164 = sphi 0, %s166
    %s167 = sphi 0, %s164
    %s168 = sphi 0, %s167
    %s184 = sphi 0, %s168
  $region4: #{double_conv_forward.3} parent=0 // loop_header_branch
    %16 = sbr.rel (%p14) target = $region8
  $region5: #{double_conv_forward.3} parent=0 // loop_body
    %s18 = ssub.s32 %s13, 1
    %s19 = ssub.s32 %s13, 2
    %s20 = sadd.s32 %s13, 1
    %s21 = ssub.s32 %s13, %s20
    %p22 = scmp.eq.s32.totalorder %s21, 0
    %s24 = sadd.s32 %s23, 1
    %s25 = scalar_select %p22, %s23, %s24
    %p28 = pneg %p22
    %p29 = scmp.eq.s32.totalorder %s13, 1
    %p30 = por %p28, %p29
    %p31 = scmp.ne.s32.totalorder %s23, %s26
    %p32 = scmp.eq.s32.totalorder %s13, 0
    %p33 = por %p31, %p32
    %p34 = scmp.ne.s32.totalorder %s23, %s26
    %p35 = scmp.eq.s32.totalorder %s18, 1
    %p36 = por %p34, %p35
    %p37 = scmp.ne.s32.totalorder %s26, %s27
    %p38 = scmp.eq.s32.totalorder %s18, 0
    %p39 = por %p37, %p38
    %p40 = scmp.ne.s32.totalorder %s26, %s27
    %p41 = scmp.eq.s32.totalorder %s19, 1
    %p42 = por %p40, %p41
    %p44 = scmp.ne.s32.totalorder %s27, %s43
    %p45 = scmp.eq.s32.totalorder %s19, 0
    %p46 = por %p44, %p45
    %s48 = sadd.s32 %s47, 1
    %p51 = scmp.eq.s32.totalorder %s13, 1
    %p52 = scmp.ne.s32.totalorder %s47, %s49
    %p53 = scmp.eq.s32.totalorder %s13, 0
    %p54 = por %p52, %p53
    %p55 = scmp.ne.s32.totalorder %s47, %s49
    %p56 = scmp.eq.s32.totalorder %s18, 1
    %p57 = por %p55, %p56
    %p58 = scmp.ne.s32.totalorder %s49, %s50
    %p59 = scmp.eq.s32.totalorder %s18, 0
    %p60 = por %p58, %p59
    %p61 = scmp.ne.s32.totalorder %s49, %s50
    %p62 = scmp.eq.s32.totalorder %s19, 1
    %p63 = por %p61, %p62
    %p65 = scmp.ne.s32.totalorder %s50, %s64
    %p66 = scmp.eq.s32.totalorder %s19, 0
    %p67 = por %p65, %p66
    %s69 = sadd.s32 %s68, 1
    %p72 = scmp.eq.s32.totalorder %s13, 1
    %p73 = scmp.ne.s32.totalorder %s68, %s70
    %p74 = scmp.eq.s32.totalorder %s13, 0
    %p75 = por %p73, %p74
    %p76 = scmp.ne.s32.totalorder %s68, %s70
    %p77 = scmp.eq.s32.totalorder %s18, 1
    %p78 = por %p76, %p77
    %p79 = scmp.ne.s32.totalorder %s70, %s71
    %p80 = scmp.eq.s32.totalorder %s18, 0
    %p81 = por %p79, %p80
    %p82 = scmp.ne.s32.totalorder %s70, %s71
    %p83 = scmp.eq.s32.totalorder %s19, 1
    %p84 = por %p82, %p83
    %p86 = scmp.ne.s32.totalorder %s71, %s85
    %p87 = scmp.eq.s32.totalorder %s19, 0
    %p88 = por %p86, %p87
    %s90 = sadd.s32 %s89, 1
    %p93 = scmp.eq.s32.totalorder %s13, 1
    %p94 = scmp.ne.s32.totalorder %s89, %s91
    %p95 = scmp.eq.s32.totalorder %s13, 0
    %p96 = por %p94, %p95
    %p97 = scmp.ne.s32.totalorder %s89, %s91
    %p98 = scmp.eq.s32.totalorder %s18, 1
    %p99 = por %p97, %p98
    %p100 = scmp.ne.s32.totalorder %s91, %s92
    %p101 = scmp.eq.s32.totalorder %s18, 0
    %p102 = por %p100, %p101
    %p103 = scmp.ne.s32.totalorder %s91, %s92
    %p104 = scmp.eq.s32.totalorder %s19, 1
    %p105 = por %p103, %p104
    %p107 = scmp.ne.s32.totalorder %s92, %s106
    %p108 = scmp.eq.s32.totalorder %s19, 0
    %p109 = por %p107, %p108
    %s110 = ssub.s32 %s13, %s20
    %p111 = scmp.eq.s32.totalorder %s110, 0
    %s113 = sadd.s32 %s112, 1
    %s114 = scalar_select %p111, %s112, %s113
    %p117 = pneg %p111
    %p118 = scmp.eq.s32.totalorder %s13, 1
    %p119 = por %p117, %p118
    %p120 = scmp.ne.s32.totalorder %s112, %s115
    %p121 = scmp.eq.s32.totalorder %s13, 0
    %p122 = por %p120, %p121
    %p123 = scmp.ne.s32.totalorder %s112, %s115
    %p124 = scmp.eq.s32.totalorder %s18, 1
    %p125 = por %p123, %p124
    %p126 = scmp.ne.s32.totalorder %s115, %s116
    %p127 = scmp.eq.s32.totalorder %s18, 0
    %p128 = por %p126, %p127
    %p129 = scmp.ne.s32.totalorder %s115, %s116
    %p130 = scmp.eq.s32.totalorder %s19, 1
    %p131 = por %p129, %p130
    %p133 = scmp.ne.s32.totalorder %s116, %s132
    %p134 = scmp.eq.s32.totalorder %s19, 0
    %p135 = por %p133, %p134
    %s136 = ssub.s32 %s13, %s20
    %p137 = scmp.eq.s32.totalorder %s136, 0
    %s139 = sadd.s32 %s138, 1
    %s140 = scalar_select %p137, %s138, %s139
    %p143 = pneg %p137
    %p144 = scmp.eq.s32.totalorder %s13, 1
    %p145 = por %p143, %p144
    %p146 = scmp.ne.s32.totalorder %s138, %s141
    %p147 = scmp.eq.s32.totalorder %s13, 0
    %p148 = por %p146, %p147
    %p149 = scmp.ne.s32.totalorder %s138, %s141
    %p150 = scmp.eq.s32.totalorder %s18, 1
    %p151 = por %p149, %p150
    %p152 = scmp.ne.s32.totalorder %s141, %s142
    %p153 = scmp.eq.s32.totalorder %s18, 0
    %p154 = por %p152, %p153
    %p155 = scmp.ne.s32.totalorder %s141, %s142
    %p156 = scmp.eq.s32.totalorder %s19, 1
    %p157 = por %p155, %p156
    %p159 = scmp.ne.s32.totalorder %s142, %s158
    %p160 = scmp.eq.s32.totalorder %s19, 0
    %p161 = por %p159, %p160
    %s162 = ssub.s32 %s13, %s20
    %p163 = scmp.eq.s32.totalorder %s162, 0
    %s165 = sadd.s32 %s164, 1
    %s166 = scalar_select %p163, %s164, %s165
    %p169 = pneg %p163
    %p170 = scmp.eq.s32.totalorder %s13, 1
    %p171 = por %p169, %p170
    %p172 = scmp.ne.s32.totalorder %s164, %s167
    %p173 = scmp.eq.s32.totalorder %s13, 0
    %p174 = por %p172, %p173
    %p175 = scmp.ne.s32.totalorder %s164, %s167
    %p176 = scmp.eq.s32.totalorder %s18, 1
    %p177 = por %p175, %p176
    %p178 = scmp.ne.s32.totalorder %s167, %s168
    %p179 = scmp.eq.s32.totalorder %s18, 0
    %p180 = por %p178, %p179
    %p181 = scmp.ne.s32.totalorder %s167, %s168
    %p182 = scmp.eq.s32.totalorder %s19, 1
    %p183 = por %p181, %p182
    %p185 = scmp.ne.s32.totalorder %s168, %s184
    %p186 = scmp.eq.s32.totalorder %s19, 0
    %p187 = por %p185, %p186
    %p188 = scmp.le.s32.totalorder 1, %s13
    %p189 = scmp.lt.s32.totalorder %s13, 3
    %p190 = pnand %p188, %p189
    %p191 = pneg %p190
    // Predicated region
    $region9: #{double_conv_forward.3} parent=5 // pred_check
      _
    $region10: #{double_conv_forward.3} parent=5 // pred_check_branch
      %193 = sbr.rel (%p190) target = $region12
    $region11: #{double_conv_forward.3} parent=5 // pred_region
      %s194 = ssub.s32 %s13, 1
      // Predicated region
      $region13: #{double_conv_forward.3} parent=11 // pred_check
        %p195 = pneg %p60
      $region14: #{double_conv_forward.3} parent=11 // pred_check_branch
        %197 = sbr.rel (%p195) target = $region16
      $region15: #{double_conv_forward.3} parent=11 // pred_region
        _
      $region16: #{double_conv_forward.3} parent=11 // pred_fallthru
        _
      // Predicated region
      $region17: #{double_conv_forward.3} parent=11 // pred_check
        %p198 = pneg %p81
      $region18: #{double_conv_forward.3} parent=11 // pred_check_branch
        %200 = sbr.rel (%p198) target = $region20
      $region19: #{double_conv_forward.3} parent=11 // pred_region
        _
      $region20: #{double_conv_forward.3} parent=11 // pred_fallthru
        _
      // Predicated region
      $region21: #{double_conv_forward.3} parent=11 // pred_check
        %p201 = pneg %p102
      $region22: #{double_conv_forward.3} parent=11 // pred_check_branch
        %203 = sbr.rel (%p201) target = $region24
      $region23: #{double_conv_forward.3} parent=11 // pred_region
        _
      $region24: #{double_conv_forward.3} parent=11 // pred_fallthru
        _
    $region12: #{double_conv_forward.3} parent=5 // pred_fallthru
      _
    %p204 = scmp.lt.s32.totalorder %s13, 2
    // Predicated region
    $region25: #{double_conv_forward.3} parent=5 // pred_check
      %p205 = pneg %p204
    $region26: #{double_conv_forward.3} parent=5 // pred_check_branch
      %207 = sbr.rel (%p205) target = $region28
    $region27: #{double_conv_forward.3} parent=5 // pred_region
      // Predicated region
      $region29: #{double_conv_forward.3} parent=27 // pred_check
        %p208 = pneg %p33
      $region30: #{double_conv_forward.3} parent=27 // pred_check_branch
        %210 = sbr.rel (%p208) target = $region32
      $region31: #{double_conv_forward.3} parent=27 // pred_region
        %p211 = scmp.lt.s32.totalorder %s13, 1
        %s212 = scalar_select %p211, %s13, 1
        %s213 = smul.addr %s212, 32
        %s214 = smul.addr %s213, 4
        %s215 = scalar_lea.vmem %s0, %s214
      $region32: #{double_conv_forward.3} parent=27 // pred_fallthru
        _
    $region28: #{double_conv_forward.3} parent=5 // pred_fallthru
      _
    %p216 = scmp.le.s32.totalorder 1, %s13
    %p217 = scmp.lt.s32.totalorder %s13, 3
    %p218 = pnand %p216, %p217
    %p219 = pneg %p218
    // Predicated region
    $region33: #{double_conv_forward.3} parent=5 // pred_check
      _
    $region34: #{double_conv_forward.3} parent=5 // pred_check_branch
      %221 = sbr.rel (%p218) target = $region36
    $region35: #{double_conv_forward.3} parent=5 // pred_region
      %s222 = ssub.s32 %s13, 1
      %p223 = scmp.lt.s32.totalorder %s18, 1
      %s224 = scalar_select %p223, %s18, 1
      %s225 = smul.addr %s224, 32
      %s226 = smul.addr %s225, 4
      %s227 = scalar_lea.vmem %s0, %s226
      %p228 = pneg %p39
      %p229 = pneg %p36
      %p230 = pneg %p60
      %p231 = pneg %p57
      %p232 = pneg %p81
      %p233 = pneg %p78
      %p234 = pneg %p102
      %p235 = pneg %p99
      %p236 = pneg %p128
      %p237 = pneg %p125
      %p238 = scmp.lt.s32.totalorder %s18, 1
      %s239 = scalar_select %p238, %s18, 1
      %s240 = smul.addr %s239, 32
      %s241 = smul.addr %s240, 4
      %s242 = scalar_lea.vmem %s4, %s241
      %p243 = pneg %p154
      %p244 = pneg %p151
      %p245 = scmp.lt.s32.totalorder %s18, 1
      %s246 = scalar_select %p245, %s18, 1
      %s247 = scalar_lea.vmem %s5, %s246
      %p248 = pneg %p180
      %p249 = pneg %p177
      %p250 = scmp.lt.s32.totalorder %s18, 1
      %s251 = scalar_select %p250, %s18, 1
      %s252 = scalar_lea.vmem %s6, %s251
      %p253 = scmp.lt.s32.totalorder %s18, 1
      %s254 = scalar_select %p253, %s18, 1
      %s255 = smul.addr %s254, 32
      %s256 = smul.addr %s255, 4
      %s257 = scalar_lea.vmem %s0, %s256
      %p258 = scmp.lt.s32.totalorder %s18, 1
      %s259 = scalar_select %p258, %s18, 1
      %s260 = smul.addr %s259, 32
      %s261 = smul.addr %s260, 4
      %s262 = scalar_lea.vmem %s4, %s261
      %p263 = scmp.lt.s32.totalorder %s18, 1
      %s264 = scalar_select %p263, %s18, 1
      %s265 = scalar_lea.vmem %s5, %s264
      %p266 = scmp.lt.s32.totalorder %s18, 1
      %s267 = scalar_select %p266, %s18, 1
      %s268 = scalar_lea.vmem %s6, %s267
      %v270 = vld [vmem:[%s257] sm:$0xf]
      %v271 = vld [vmem:[%s257 + $0x4] sm:$0xf]
      %v272 = vld [vmem:[%s257 + $0x8] sm:$0xf]
      %v273 = vld [vmem:[%s257 + $0xc] sm:$0xf]
      %v274 = vld [vmem:[%s257 + $0x10] sm:$0xf]
      %v275 = vld [vmem:[%s257 + $0x14] sm:$0xf]
      %v276 = vld [vmem:[%s257 + $0x18] sm:$0xf]
      %v277 = vld [vmem:[%s257 + $0x1c] sm:$0xf]
      %v278 = vld [vmem:[%s257 + $0x20] sm:$0xf]
      %v279 = vld [vmem:[%s257 + $0x24] sm:$0xf]
      %v280 = vld [vmem:[%s257 + $0x28] sm:$0xf]
      %v281 = vld [vmem:[%s257 + $0x2c] sm:$0xf]
      %v282 = vld [vmem:[%s257 + $0x30] sm:$0xf]
      %v283 = vld [vmem:[%s257 + $0x34] sm:$0xf]
      %v284 = vld [vmem:[%s257 + $0x38] sm:$0xf]
      %v285 = vld [vmem:[%s257 + $0x3c] sm:$0xf]
      %v286 = vld [vmem:[%s257 + $0x40] sm:$0xf]
      %v287 = vld [vmem:[%s257 + $0x44] sm:$0xf]
      %v288 = vld [vmem:[%s257 + $0x48] sm:$0xf]
      %v289 = vld [vmem:[%s257 + $0x4c] sm:$0xf]
      %v290 = vld [vmem:[%s257 + $0x50] sm:$0xf]
      %v291 = vld [vmem:[%s257 + $0x54] sm:$0xf]
      %v292 = vld [vmem:[%s257 + $0x58] sm:$0xf]
      %v293 = vld [vmem:[%s257 + $0x5c] sm:$0xf]
      %v294 = vld [vmem:[%s257 + $0x60] sm:$0xf]
      %v295 = vld [vmem:[%s257 + $0x64] sm:$0xf]
      %v296 = vld [vmem:[%s257 + $0x68] sm:$0xf]
      %v297 = vld [vmem:[%s257 + $0x6c] sm:$0xf]
      %v298 = vld [vmem:[%s257 + $0x70] sm:$0xf]
      %v299 = vld [vmem:[%s257 + $0x74] sm:$0xf]
      %v300 = vld [vmem:[%s257 + $0x78] sm:$0xf]
      %v301 = vld [vmem:[%s257 + $0x7c] sm:$0xf]
      %v302 = vunpack.c.l.bf16 %v270
      %v303 = vunpack.c.l.bf16 %v271
      %v304 = vunpack.c.l.bf16 %v272
      %v305 = vunpack.c.l.bf16 %v273
      %v306 = vunpack.c.l.bf16 %v274
      %v307 = vunpack.c.l.bf16 %v275
      %v308 = vunpack.c.l.bf16 %v276
      %v309 = vunpack.c.l.bf16 %v277
      %v310 = vunpack.c.l.bf16 %v278
      %v311 = vunpack.c.l.bf16 %v279
      %v312 = vunpack.c.l.bf16 %v280
      %v313 = vunpack.c.l.bf16 %v281
      %v314 = vunpack.c.l.bf16 %v282
      %v315 = vunpack.c.l.bf16 %v283
      %v316 = vunpack.c.l.bf16 %v284
      %v317 = vunpack.c.l.bf16 %v285
      %v318 = vunpack.c.l.bf16 %v286
      %v319 = vunpack.c.l.bf16 %v287
      %v320 = vunpack.c.l.bf16 %v288
      %v321 = vunpack.c.l.bf16 %v289
      %v322 = vunpack.c.l.bf16 %v290
      %v323 = vunpack.c.l.bf16 %v291
      %v324 = vunpack.c.l.bf16 %v292
      %v325 = vunpack.c.l.bf16 %v293
      %v326 = vunpack.c.l.bf16 %v294
      %v327 = vunpack.c.l.bf16 %v295
      %v328 = vunpack.c.l.bf16 %v296
      %v329 = vunpack.c.l.bf16 %v297
      %v330 = vunpack.c.l.bf16 %v298
      %v331 = vunpack.c.l.bf16 %v299
      %v332 = vunpack.c.l.bf16 %v300
      %v333 = vunpack.c.l.bf16 %v301
      %vm334 = vcmask 31744
      %335 = vst.msk [vmem:[#allocation2] sm:$0xff] %vm334, 0.0
      %336 = vst.msk [vmem:[#allocation2 + $0x8] sm:$0xff] %vm334, 0.0
      %337 = vst.msk [vmem:[#allocation2 + $0x10] sm:$0xff] %vm334, 0.0
      %338 = vst.msk [vmem:[#allocation2 + $0x18] sm:$0xff] %vm334, 0.0
      %339 = vst.msk [vmem:[#allocation2 + $0x20] sm:$0xff] %vm334, 0.0
      %340 = vst.msk [vmem:[#allocation2 + $0x28] sm:$0xff] %vm334, 0.0
      %341 = vst.msk [vmem:[#allocation2 + $0x30] sm:$0xff] %vm334, 0.0
      %342 = vst.msk [vmem:[#allocation2 + $0x38] sm:$0xff] %vm334, 0.0
      %343 = vst.msk [vmem:[#allocation2 + $0x40] sm:$0xff] %vm334, 0.0
      %344 = vst.msk [vmem:[#allocation2 + $0x48] sm:$0xff] %vm334, 0.0
      %345 = vst.msk [vmem:[#allocation2 + $0x50] sm:$0xff] %vm334, 0.0
      %346 = vst.msk [vmem:[#allocation2 + $0x58] sm:$0xff] %vm334, 0.0
      %347 = vst.msk [vmem:[#allocation2 + $0x60] sm:$0xff] %vm334, 0.0
      %348 = vst.msk [vmem:[#allocation2 + $0x68] sm:$0xff] %vm334, 0.0
      %349 = vst.msk [vmem:[#allocation2 + $0x70] sm:$0xff] %vm334, 0.0
      %350 = vst.msk [vmem:[#allocation2 + $0x78] sm:$0xff] %vm334, 0.0
      %351 = vst.msk [vmem:[#allocation2 + $0x80] sm:$0xff] %vm334, 0.0
      %352 = vst.msk [vmem:[#allocation2 + $0x88] sm:$0xff] %vm334, 0.0
      %353 = vst.msk [vmem:[#allocation2 + $0x90] sm:$0xff] %vm334, 0.0
      %354 = vst.msk [vmem:[#allocation2 + $0x98] sm:$0xff] %vm334, 0.0
      %355 = vst.msk [vmem:[#allocation2 + $0xa0] sm:$0xff] %vm334, 0.0
      %356 = vst.msk [vmem:[#allocation2 + $0xa8] sm:$0xff] %vm334, 0.0
      %357 = vst.msk [vmem:[#allocation2 + $0xb0] sm:$0xff] %vm334, 0.0
      %358 = vst.msk [vmem:[#allocation2 + $0xb8] sm:$0xff] %vm334, 0.0
      %359 = vst.msk [vmem:[#allocation2 + $0xc0] sm:$0xff] %vm334, 0.0
      %360 = vst.msk [vmem:[#allocation2 + $0xc8] sm:$0xff] %vm334, 0.0
      %361 = vst.msk [vmem:[#allocation2 + $0xd0] sm:$0xff] %vm334, 0.0
      %362 = vst.msk [vmem:[#allocation2 + $0xd8] sm:$0xff] %vm334, 0.0
      %363 = vst.msk [vmem:[#allocation2 + $0xe0] sm:$0xff] %vm334, 0.0
      %364 = vst.msk [vmem:[#allocation2 + $0xe8] sm:$0xff] %vm334, 0.0
      %365 = vst.msk [vmem:[#allocation2 + $0xf0] sm:$0xff] %vm334, 0.0
      %366 = vst.msk [vmem:[#allocation2 + $0xf8] sm:$0xff] %vm334, 0.0
      %367 = vst.msk [vmem:[#allocation2 + $0x100] sm:$0xff] %vm334, 0.0
      %368 = vst.msk [vmem:[#allocation2 + $0x108] sm:$0xff] %vm334, 0.0
      %369 = vst.msk [vmem:[#allocation2 + $0x110] sm:$0xff] %vm334, 0.0
      %370 = vst.msk [vmem:[#allocation2 + $0x118] sm:$0xff] %vm334, 0.0
      %371 = vst.msk [vmem:[#allocation2 + $0x120] sm:$0xff] %vm334, 0.0
      %372 = vst.msk [vmem:[#allocation2 + $0x128] sm:$0xff] %vm334, 0.0
      %373 = vst.msk [vmem:[#allocation2 + $0x18] sm:$0xff] %vm334, %v302
      %374 = vst.msk [vmem:[#allocation2 + $0x20] sm:$0xff] %vm334, %v303
      %375 = vst.msk [vmem:[#allocation2 + $0x28] sm:$0xff] %vm334, %v304
      %376 = vst.msk [vmem:[#allocation2 + $0x30] sm:$0xff] %vm334, %v305
      %377 = vst.msk [vmem:[#allocation2 + $0x38] sm:$0xff] %vm334, %v306
      %378 = vst.msk [vmem:[#allocation2 + $0x40] sm:$0xff] %vm334, %v307
      %379 = vst.msk [vmem:[#allocation2 + $0x48] sm:$0xff] %vm334, %v308
      %380 = vst.msk [vmem:[#allocation2 + $0x50] sm:$0xff] %vm334, %v309
      %381 = vst.msk [vmem:[#allocation2 + $0x58] sm:$0xff] %vm334, %v310
      %382 = vst.msk [vmem:[#allocation2 + $0x60] sm:$0xff] %vm334, %v311
      %383 = vst.msk [vmem:[#allocation2 + $0x68] sm:$0xff] %vm334, %v312
      %384 = vst.msk [vmem:[#allocation2 + $0x70] sm:$0xff] %vm334, %v313
      %385 = vst.msk [vmem:[#allocation2 + $0x78] sm:$0xff] %vm334, %v314
      %386 = vst.msk [vmem:[#allocation2 + $0x80] sm:$0xff] %vm334, %v315
      %387 = vst.msk [vmem:[#allocation2 + $0x88] sm:$0xff] %vm334, %v316
      %388 = vst.msk [vmem:[#allocation2 + $0x90] sm:$0xff] %vm334, %v317
      %389 = vst.msk [vmem:[#allocation2 + $0x98] sm:$0xff] %vm334, %v318
      %390 = vst.msk [vmem:[#allocation2 + $0xa0] sm:$0xff] %vm334, %v319
      %391 = vst.msk [vmem:[#allocation2 + $0xa8] sm:$0xff] %vm334, %v320
      %392 = vst.msk [vmem:[#allocation2 + $0xb0] sm:$0xff] %vm334, %v321
      %393 = vst.msk [vmem:[#allocation2 + $0xb8] sm:$0xff] %vm334, %v322
      %394 = vst.msk [vmem:[#allocation2 + $0xc0] sm:$0xff] %vm334, %v323
      %395 = vst.msk [vmem:[#allocation2 + $0xc8] sm:$0xff] %vm334, %v324
      %396 = vst.msk [vmem:[#allocation2 + $0xd0] sm:$0xff] %vm334, %v325
      %397 = vst.msk [vmem:[#allocation2 + $0xd8] sm:$0xff] %vm334, %v326
      %398 = vst.msk [vmem:[#allocation2 + $0xe0] sm:$0xff] %vm334, %v327
      %399 = vst.msk [vmem:[#allocation2 + $0xe8] sm:$0xff] %vm334, %v328
      %400 = vst.msk [vmem:[#allocation2 + $0xf0] sm:$0xff] %vm334, %v329
      %401 = vst.msk [vmem:[#allocation2 + $0xf8] sm:$0xff] %vm334, %v330
      %402 = vst.msk [vmem:[#allocation2 + $0x100] sm:$0xff] %vm334, %v331
      %403 = vst.msk [vmem:[#allocation2 + $0x108] sm:$0xff] %vm334, %v332
      %404 = vst.msk [vmem:[#allocation2 + $0x110] sm:$0xff] %vm334, %v333
      %v405 = vlaneseq
      %v406 = vshrl.u32 %v405, 7
      %v407 = vadd.s32 %v406, 8
      %v408 = vadd.s32 %v406, 16
      %v409 = vadd.s32 %v406, 24
      %v410 = vadd.s32 %v406, 32
      %v411 = vadd.s32 %v406, 40
      %v412 = vadd.s32 %v406, 48
      %v413 = vadd.s32 %v406, 56
      %v414 = vadd.s32 %v406, 64
      %v415 = vadd.s32 %v406, 72
      %v416 = vadd.s32 %v406, 80
      %v417 = vadd.s32 %v406, 88
      %v418 = vadd.s32 %v406, 96
      %v419 = vadd.s32 %v406, 104
      %v420 = vadd.s32 %v406, 112
      %v421 = vadd.s32 %v406, 120
      %v422 = vadd.s32 %v406, 128
      %v423 = vadd.s32 %v406, 136
      %v424 = vadd.s32 %v406, 144
      %v425 = vadd.s32 %v406, 152
      %v426 = vadd.s32 %v406, 160
      %v427 = vadd.s32 %v406, 168
      %v428 = vadd.s32 %v406, 176
      %v429 = vadd.s32 %v406, 184
      %v430 = vadd.s32 %v406, 192
      %v431 = vadd.s32 %v406, 200
      %v432 = vadd.s32 %v406, 208
      %v433 = vadd.s32 %v406, 216
      %v434 = vadd.s32 %v406, 224
      %v435 = vadd.s32 %v406, 232
      %v436 = vadd.s32 %v406, 240
      %v437 = vadd.s32 %v406, 248
      %vm438 = vcmp.lt.s32.totalorder %v406, 0
      %v439 = vsub.s32 0, %v406
      %v440 = vsel %vm438, %v439, %v406
      %v441 = vshrl.u32 %v440, 4
      %v442 = vand.u32 %v440, 15
      %v443 = vsub.s32 0, %v442
      %v444 = vsel %vm438, %v443, %v442
      %vm445 = vcmp.lt.s32.totalorder %v407, 0
      %v446 = vsub.s32 0, %v407
      %v447 = vsel %vm445, %v446, %v407
      %v448 = vshrl.u32 %v447, 4
      %v449 = vand.u32 %v447, 15
      %v450 = vsub.s32 0, %v449
      %v451 = vsel %vm445, %v450, %v449
      %vm452 = vcmp.lt.s32.totalorder %v408, 0
      %v453 = vsub.s32 0, %v408
      %v454 = vsel %vm452, %v453, %v408
      %v455 = vshrl.u32 %v454, 4
      %v456 = vand.u32 %v454, 15
      %v457 = vsub.s32 0, %v456
      %v458 = vsel %vm452, %v457, %v456
      %vm459 = vcmp.lt.s32.totalorder %v409, 0
      %v460 = vsub.s32 0, %v409
      %v461 = vsel %vm459, %v460, %v409
      %v462 = vshrl.u32 %v461, 4
      %v463 = vand.u32 %v461, 15
      %v464 = vsub.s32 0, %v463
      %v465 = vsel %vm459, %v464, %v463
      %vm466 = vcmp.lt.s32.totalorder %v410, 0
      %v467 = vsub.s32 0, %v410
      %v468 = vsel %vm466, %v467, %v410
      %v469 = vshrl.u32 %v468, 4
      %v470 = vand.u32 %v468, 15
      %v471 = vsub.s32 0, %v470
      %v472 = vsel %vm466, %v471, %v470
      %vm473 = vcmp.lt.s32.totalorder %v411, 0
      %v474 = vsub.s32 0, %v411
      %v475 = vsel %vm473, %v474, %v411
      %v476 = vshrl.u32 %v475, 4
      %v477 = vand.u32 %v475, 15
      %v478 = vsub.s32 0, %v477
      %v479 = vsel %vm473, %v478, %v477
      %vm480 = vcmp.lt.s32.totalorder %v412, 0
      %v481 = vsub.s32 0, %v412
      %v482 = vsel %vm480, %v481, %v412
      %v483 = vshrl.u32 %v482, 4
      %v484 = vand.u32 %v482, 15
      %v485 = vsub.s32 0, %v484
      %v486 = vsel %vm480, %v485, %v484
      %vm487 = vcmp.lt.s32.totalorder %v413, 0
      %v488 = vsub.s32 0, %v413
      %v489 = vsel %vm487, %v488, %v413
      %v490 = vshrl.u32 %v489, 4
      %v491 = vand.u32 %v489, 15
      %v492 = vsub.s32 0, %v491
      %v493 = vsel %vm487, %v492, %v491
      %vm494 = vcmp.lt.s32.totalorder %v414, 0
      %v495 = vsub.s32 0, %v414
      %v496 = vsel %vm494, %v495, %v414
      %v497 = vshrl.u32 %v496, 4
      %v498 = vand.u32 %v496, 15
      %v499 = vsub.s32 0, %v498
      %v500 = vsel %vm494, %v499, %v498
      %vm501 = vcmp.lt.s32.totalorder %v415, 0
      %v502 = vsub.s32 0, %v415
      %v503 = vsel %vm501, %v502, %v415
      %v504 = vshrl.u32 %v503, 4
      %v505 = vand.u32 %v503, 15
      %v506 = vsub.s32 0, %v505
      %v507 = vsel %vm501, %v506, %v505
      %vm508 = vcmp.lt.s32.totalorder %v416, 0
      %v509 = vsub.s32 0, %v416
      %v510 = vsel %vm508, %v509, %v416
      %v511 = vshrl.u32 %v510, 4
      %v512 = vand.u32 %v510, 15
      %v513 = vsub.s32 0, %v512
      %v514 = vsel %vm508, %v513, %v512
      %vm515 = vcmp.lt.s32.totalorder %v417, 0
      %v516 = vsub.s32 0, %v417
      %v517 = vsel %vm515, %v516, %v417
      %v518 = vshrl.u32 %v517, 4
      %v519 = vand.u32 %v517, 15
      %v520 = vsub.s32 0, %v519
      %v521 = vsel %vm515, %v520, %v519
      %vm522 = vcmp.lt.s32.totalorder %v418, 0
      %v523 = vsub.s32 0, %v418
      %v524 = vsel %vm522, %v523, %v418
      %v525 = vshrl.u32 %v524, 4
      %v526 = vand.u32 %v524, 15
      %v527 = vsub.s32 0, %v526
      %v528 = vsel %vm522, %v527, %v526
      %vm529 = vcmp.lt.s32.totalorder %v419, 0
      %v530 = vsub.s32 0, %v419
      %v531 = vsel %vm529, %v530, %v419
      %v532 = vshrl.u32 %v531, 4
      %v533 = vand.u32 %v531, 15
      %v534 = vsub.s32 0, %v533
      %v535 = vsel %vm529, %v534, %v533
      %vm536 = vcmp.lt.s32.totalorder %v420, 0
      %v537 = vsub.s32 0, %v420
      %v538 = vsel %vm536, %v537, %v420
      %v539 = vshrl.u32 %v538, 4
      %v540 = vand.u32 %v538, 15
      %v541 = vsub.s32 0, %v540
      %v542 = vsel %vm536, %v541, %v540
      %vm543 = vcmp.lt.s32.totalorder %v421, 0
      %v544 = vsub.s32 0, %v421
      %v545 = vsel %vm543, %v544, %v421
      %v546 = vshrl.u32 %v545, 4
      %v547 = vand.u32 %v545, 15
      %v548 = vsub.s32 0, %v547
      %v549 = vsel %vm543, %v548, %v547
      %vm550 = vcmp.lt.s32.totalorder %v422, 0
      %v551 = vsub.s32 0, %v422
      %v552 = vsel %vm550, %v551, %v422
      %v553 = vshrl.u32 %v552, 4
      %v554 = vand.u32 %v552, 15
      %v555 = vsub.s32 0, %v554
      %v556 = vsel %vm550, %v555, %v554
      %vm557 = vcmp.lt.s32.totalorder %v423, 0
      %v558 = vsub.s32 0, %v423
      %v559 = vsel %vm557, %v558, %v423
      %v560 = vshrl.u32 %v559, 4
      %v561 = vand.u32 %v559, 15
      %v562 = vsub.s32 0, %v561
      %v563 = vsel %vm557, %v562, %v561
      %vm564 = vcmp.lt.s32.totalorder %v424, 0
      %v565 = vsub.s32 0, %v424
      %v566 = vsel %vm564, %v565, %v424
      %v567 = vshrl.u32 %v566, 4
      %v568 = vand.u32 %v566, 15
      %v569 = vsub.s32 0, %v568
      %v570 = vsel %vm564, %v569, %v568
      %vm571 = vcmp.lt.s32.totalorder %v425, 0
      %v572 = vsub.s32 0, %v425
      %v573 = vsel %vm571, %v572, %v425
      %v574 = vshrl.u32 %v573, 4
      %v575 = vand.u32 %v573, 15
      %v576 = vsub.s32 0, %v575
      %v577 = vsel %vm571, %v576, %v575
      %vm578 = vcmp.lt.s32.totalorder %v426, 0
      %v579 = vsub.s32 0, %v426
      %v580 = vsel %vm578, %v579, %v426
      %v581 = vshrl.u32 %v580, 4
      %v582 = vand.u32 %v580, 15
      %v583 = vsub.s32 0, %v582
      %v584 = vsel %vm578, %v583, %v582
      %vm585 = vcmp.lt.s32.totalorder %v427, 0
      %v586 = vsub.s32 0, %v427
      %v587 = vsel %vm585, %v586, %v427
      %v588 = vshrl.u32 %v587, 4
      %v589 = vand.u32 %v587, 15
      %v590 = vsub.s32 0, %v589
      %v591 = vsel %vm585, %v590, %v589
      %vm592 = vcmp.lt.s32.totalorder %v428, 0
      %v593 = vsub.s32 0, %v428
      %v594 = vsel %vm592, %v593, %v428
      %v595 = vshrl.u32 %v594, 4
      %v596 = vand.u32 %v594, 15
      %v597 = vsub.s32 0, %v596
      %v598 = vsel %vm592, %v597, %v596
      %vm599 = vcmp.lt.s32.totalorder %v429, 0
      %v600 = vsub.s32 0, %v429
      %v601 = vsel %vm599, %v600, %v429
      %v602 = vshrl.u32 %v601, 4
      %v603 = vand.u32 %v601, 15
      %v604 = vsub.s32 0, %v603
      %v605 = vsel %vm599, %v604, %v603
      %vm606 = vcmp.lt.s32.totalorder %v430, 0
      %v607 = vsub.s32 0, %v430
      %v608 = vsel %vm606, %v607, %v430
      %v609 = vshrl.u32 %v608, 4
      %v610 = vand.u32 %v608, 15
      %v611 = vsub.s32 0, %v610
      %v612 = vsel %vm606, %v611, %v610
      %vm613 = vcmp.lt.s32.totalorder %v431, 0
      %v614 = vsub.s32 0, %v431
      %v615 = vsel %vm613, %v614, %v431
      %v616 = vshrl.u32 %v615, 4
      %v617 = vand.u32 %v615, 15
      %v618 = vsub.s32 0, %v617
      %v619 = vsel %vm613, %v618, %v617
      %vm620 = vcmp.lt.s32.totalorder %v432, 0
      %v621 = vsub.s32 0, %v432
      %v622 = vsel %vm620, %v621, %v432
      %v623 = vshrl.u32 %v622, 4
      %v624 = vand.u32 %v622, 15
      %v625 = vsub.s32 0, %v624
      %v626 = vsel %vm620, %v625, %v624
      %vm627 = vcmp.lt.s32.totalorder %v433, 0
      %v628 = vsub.s32 0, %v433
      %v629 = vsel %vm627, %v628, %v433
      %v630 = vshrl.u32 %v629, 4
      %v631 = vand.u32 %v629, 15
      %v632 = vsub.s32 0, %v631
      %v633 = vsel %vm627, %v632, %v631
      %vm634 = vcmp.lt.s32.totalorder %v434, 0
      %v635 = vsub.s32 0, %v434
      %v636 = vsel %vm634, %v635, %v434
      %v637 = vshrl.u32 %v636, 4
      %v638 = vand.u32 %v636, 15
      %v639 = vsub.s32 0, %v638
      %v640 = vsel %vm634, %v639, %v638
      %vm641 = vcmp.lt.s32.totalorder %v435, 0
      %v642 = vsub.s32 0, %v435
      %v643 = vsel %vm641, %v642, %v435
      %v644 = vshrl.u32 %v643, 4
      %v645 = vand.u32 %v643, 15
      %v646 = vsub.s32 0, %v645
      %v647 = vsel %vm641, %v646, %v645
      %vm648 = vcmp.lt.s32.totalorder %v436, 0
      %v649 = vsub.s32 0, %v436
      %v650 = vsel %vm648, %v649, %v436
      %v651 = vshrl.u32 %v650, 4
      %v652 = vand.u32 %v650, 15
      %v653 = vsub.s32 0, %v652
      %v654 = vsel %vm648, %v653, %v652
      %vm655 = vcmp.lt.s32.totalorder %v437, 0
      %v656 = vsub.s32 0, %v437
      %v657 = vsel %vm655, %v656, %v437
      %v658 = vshrl.u32 %v657, 4
      %v659 = vand.u32 %v657, 15
      %v660 = vsub.s32 0, %v659
      %v661 = vsel %vm655, %v660, %v659
      %vm662 = vcmp.ne.s32.totalorder %v444, 0
      %vm663 = vcmp.ne.s32.totalorder %v451, 0
      %vm664 = vcmp.ne.s32.totalorder %v458, 0
      %vm665 = vcmp.ne.s32.totalorder %v465, 0
      %vm666 = vcmp.ne.s32.totalorder %v472, 0
      %vm667 = vcmp.ne.s32.totalorder %v479, 0
      %vm668 = vcmp.ne.s32.totalorder %v486, 0
      %vm669 = vcmp.ne.s32.totalorder %v493, 0
      %vm670 = vcmp.ne.s32.totalorder %v500, 0
      %vm671 = vcmp.ne.s32.totalorder %v507, 0
      %vm672 = vcmp.ne.s32.totalorder %v514, 0
      %vm673 = vcmp.ne.s32.totalorder %v521, 0
      %vm674 = vcmp.ne.s32.totalorder %v528, 0
      %vm675 = vcmp.ne.s32.totalorder %v535, 0
      %vm676 = vcmp.ne.s32.totalorder %v542, 0
      %vm677 = vcmp.ne.s32.totalorder %v549, 0
      %vm678 = vcmp.ne.s32.totalorder %v556, 0
      %vm679 = vcmp.ne.s32.totalorder %v563, 0
      %vm680 = vcmp.ne.s32.totalorder %v570, 0
      %vm681 = vcmp.ne.s32.totalorder %v577, 0
      %vm682 = vcmp.ne.s32.totalorder %v584, 0
      %vm683 = vcmp.ne.s32.totalorder %v591, 0
      %vm684 = vcmp.ne.s32.totalorder %v598, 0
      %vm685 = vcmp.ne.s32.totalorder %v605, 0
      %vm686 = vcmp.ne.s32.totalorder %v612, 0
      %vm687 = vcmp.ne.s32.totalorder %v619, 0
      %vm688 = vcmp.ne.s32.totalorder %v626, 0
      %vm689 = vcmp.ne.s32.totalorder %v633, 0
      %vm690 = vcmp.ne.s32.totalorder %v640, 0
      %vm691 = vcmp.ne.s32.totalorder %v647, 0
      %vm692 = vcmp.ne.s32.totalorder %v654, 0
      %vm693 = vcmp.ne.s32.totalorder %v661, 0
      %vm694 = vcmp.lt.s32.totalorder %v444, 0
      %vm695 = vcmp.lt.s32.totalorder %v451, 0
      %vm696 = vcmp.lt.s32.totalorder %v458, 0
      %vm697 = vcmp.lt.s32.totalorder %v465, 0
      %vm698 = vcmp.lt.s32.totalorder %v472, 0
      %vm699 = vcmp.lt.s32.totalorder %v479, 0
      %vm700 = vcmp.lt.s32.totalorder %v486, 0
      %vm701 = vcmp.lt.s32.totalorder %v493, 0
      %vm702 = vcmp.lt.s32.totalorder %v500, 0
      %vm703 = vcmp.lt.s32.totalorder %v507, 0
      %vm704 = vcmp.lt.s32.totalorder %v514, 0
      %vm705 = vcmp.lt.s32.totalorder %v521, 0
      %vm706 = vcmp.lt.s32.totalorder %v528, 0
      %vm707 = vcmp.lt.s32.totalorder %v535, 0
      %vm708 = vcmp.lt.s32.totalorder %v542, 0
      %vm709 = vcmp.lt.s32.totalorder %v549, 0
      %vm710 = vcmp.lt.s32.totalorder %v556, 0
      %vm711 = vcmp.lt.s32.totalorder %v563, 0
      %vm712 = vcmp.lt.s32.totalorder %v570, 0
      %vm713 = vcmp.lt.s32.totalorder %v577, 0
      %vm714 = vcmp.lt.s32.totalorder %v584, 0
      %vm715 = vcmp.lt.s32.totalorder %v591, 0
      %vm716 = vcmp.lt.s32.totalorder %v598, 0
      %vm717 = vcmp.lt.s32.totalorder %v605, 0
      %vm718 = vcmp.lt.s32.totalorder %v612, 0
      %vm719 = vcmp.lt.s32.totalorder %v619, 0
      %vm720 = vcmp.lt.s32.totalorder %v626, 0
      %vm721 = vcmp.lt.s32.totalorder %v633, 0
      %vm722 = vcmp.lt.s32.totalorder %v640, 0
      %vm723 = vcmp.lt.s32.totalorder %v647, 0
      %vm724 = vcmp.lt.s32.totalorder %v654, 0
      %vm725 = vcmp.lt.s32.totalorder %v661, 0
      %vm726 = vmand %vm694, %vm662
      %vm727 = vmand %vm695, %vm663
      %vm728 = vmand %vm696, %vm664
      %vm729 = vmand %vm697, %vm665
      %vm730 = vmand %vm698, %vm666
      %vm731 = vmand %vm699, %vm667
      %vm732 = vmand %vm700, %vm668
      %vm733 = vmand %vm701, %vm669
      %vm734 = vmand %vm702, %vm670
      %vm735 = vmand %vm703, %vm671
      %vm736 = vmand %vm704, %vm672
      %vm737 = vmand %vm705, %vm673
      %vm738 = vmand %vm706, %vm674
      %vm739 = vmand %vm707, %vm675
      %vm740 = vmand %vm708, %vm676
      %vm741 = vmand %vm709, %vm677
      %vm742 = vmand %vm710, %vm678
      %vm743 = vmand %vm711, %vm679
      %vm744 = vmand %vm712, %vm680
      %vm745 = vmand %vm713, %vm681
      %vm746 = vmand %vm714, %vm682
      %vm747 = vmand %vm715, %vm683
      %vm748 = vmand %vm716, %vm684
      %vm749 = vmand %vm717, %vm685
      %vm750 = vmand %vm718, %vm686
      %vm751 = vmand %vm719, %vm687
      %vm752 = vmand %vm720, %vm688
      %vm753 = vmand %vm721, %vm689
      %vm754 = vmand %vm722, %vm690
      %vm755 = vmand %vm723, %vm691
      %vm756 = vmand %vm724, %vm692
      %vm757 = vmand %vm725, %vm693
      %v758 = vadd.s32 %v444, 16
      %v759 = vadd.s32 %v451, 16
      %v760 = vadd.s32 %v458, 16
      %v761 = vadd.s32 %v465, 16
      %v762 = vadd.s32 %v472, 16
      %v763 = vadd.s32 %v479, 16
      %v764 = vadd.s32 %v486, 16
      %v765 = vadd.s32 %v493, 16
      %v766 = vadd.s32 %v500, 16
      %v767 = vadd.s32 %v507, 16
      %v768 = vadd.s32 %v514, 16
      %v769 = vadd.s32 %v521, 16
      %v770 = vadd.s32 %v528, 16
      %v771 = vadd.s32 %v535, 16
      %v772 = vadd.s32 %v542, 16
      %v773 = vadd.s32 %v549, 16
      %v774 = vadd.s32 %v556, 16
      %v775 = vadd.s32 %v563, 16
      %v776 = vadd.s32 %v570, 16
      %v777 = vadd.s32 %v577, 16
      %v778 = vadd.s32 %v584, 16
      %v779 = vadd.s32 %v591, 16
      %v780 = vadd.s32 %v598, 16
      %v781 = vadd.s32 %v605, 16
      %v782 = vadd.s32 %v612, 16
      %v783 = vadd.s32 %v619, 16
      %v784 = vadd.s32 %v626, 16
      %v785 = vadd.s32 %v633, 16
      %v786 = vadd.s32 %v640, 16
      %v787 = vadd.s32 %v647, 16
      %v788 = vadd.s32 %v654, 16
      %v789 = vadd.s32 %v661, 16
      %v790 = vsel %vm726, %v758, %v444
      %v791 = vsel %vm727, %v759, %v451
      %v792 = vsel %vm728, %v760, %v458
      %v793 = vsel %vm729, %v761, %v465
      %v794 = vsel %vm730, %v762, %v472
      %v795 = vsel %vm731, %v763, %v479
      %v796 = vsel %vm732, %v764, %v486
      %v797 = vsel %vm733, %v765, %v493
      %v798 = vsel %vm734, %v766, %v500
      %v799 = vsel %vm735, %v767, %v507
      %v800 = vsel %vm736, %v768, %v514
      %v801 = vsel %vm737, %v769, %v521
      %v802 = vsel %vm738, %v770, %v528
      %v803 = vsel %vm739, %v771, %v535
      %v804 = vsel %vm740, %v772, %v542
      %v805 = vsel %vm741, %v773, %v549
      %v806 = vsel %vm742, %v774, %v556
      %v807 = vsel %vm743, %v775, %v563
      %v808 = vsel %vm744, %v776, %v570
      %v809 = vsel %vm745, %v777, %v577
      %v810 = vsel %vm746, %v778, %v584
      %v811 = vsel %vm747, %v779, %v591
      %v812 = vsel %vm748, %v780, %v598
      %v813 = vsel %vm749, %v781, %v605
      %v814 = vsel %vm750, %v782, %v612
      %v815 = vsel %vm751, %v783, %v619
      %v816 = vsel %vm752, %v784, %v626
      %v817 = vsel %vm753, %v785, %v633
      %v818 = vsel %vm754, %v786, %v640
      %v819 = vsel %vm755, %v787, %v647
      %v820 = vsel %vm756, %v788, %v654
      %v821 = vsel %vm757, %v789, %v661
      %v822 = vld [vmem:[#allocation2 + $0x7] sm:$0xff]
      %v823 = vld [vmem:[#allocation2 + $0xf] sm:$0xff]
      %v824 = vld [vmem:[#allocation2 + $0x17] sm:$0xff]
      %v825 = vld [vmem:[#allocation2 + $0x1f] sm:$0xff]
      %v826 = vld [vmem:[#allocation2 + $0x27] sm:$0xff]
      %v827 = vld [vmem:[#allocation2 + $0x2f] sm:$0xff]
      %v828 = vld [vmem:[#allocation2 + $0x37] sm:$0xff]
      %v829 = vld [vmem:[#allocation2 + $0x3f] sm:$0xff]
      %v830 = vld [vmem:[#allocation2 + $0x47] sm:$0xff]
      %v831 = vld [vmem:[#allocation2 + $0x4f] sm:$0xff]
      %v832 = vld [vmem:[#allocation2 + $0x57] sm:$0xff]
      %v833 = vld [vmem:[#allocation2 + $0x5f] sm:$0xff]
      %v834 = vld [vmem:[#allocation2 + $0x67] sm:$0xff]
      %v835 = vld [vmem:[#allocation2 + $0x6f] sm:$0xff]
      %v836 = vld [vmem:[#allocation2 + $0x77] sm:$0xff]
      %v837 = vld [vmem:[#allocation2 + $0x7f] sm:$0xff]
      %v838 = vld [vmem:[#allocation2 + $0x87] sm:$0xff]
      %v839 = vld [vmem:[#allocation2 + $0x8f] sm:$0xff]
      %v840 = vld [vmem:[#allocation2 + $0x97] sm:$0xff]
      %v841 = vld [vmem:[#allocation2 + $0x9f] sm:$0xff]
      %v842 = vld [vmem:[#allocation2 + $0xa7] sm:$0xff]
      %v843 = vld [vmem:[#allocation2 + $0xaf] sm:$0xff]
      %v844 = vld [vmem:[#allocation2 + $0xb7] sm:$0xff]
      %v845 = vld [vmem:[#allocation2 + $0xbf] sm:$0xff]
      %v846 = vld [vmem:[#allocation2 + $0xc7] sm:$0xff]
      %v847 = vld [vmem:[#allocation2 + $0xcf] sm:$0xff]
      %v848 = vld [vmem:[#allocation2 + $0xd7] sm:$0xff]
      %v849 = vld [vmem:[#allocation2 + $0xdf] sm:$0xff]
      %v850 = vld [vmem:[#allocation2 + $0xe7] sm:$0xff]
      %v851 = vld [vmem:[#allocation2 + $0xef] sm:$0xff]
      %v852 = vld [vmem:[#allocation2 + $0xf7] sm:$0xff]
      %v853 = vld [vmem:[#allocation2 + $0xff] sm:$0xff]
      %v854 = vpack.c.bf16 %v823, %v822
      %v855 = vpack.c.bf16 %v825, %v824
      %v856 = vpack.c.bf16 %v827, %v826
      %v857 = vpack.c.bf16 %v829, %v828
      %v858 = vpack.c.bf16 %v831, %v830
      %v859 = vpack.c.bf16 %v833, %v832
      %v860 = vpack.c.bf16 %v835, %v834
      %v861 = vpack.c.bf16 %v837, %v836
      %v862 = vpack.c.bf16 %v839, %v838
      %v863 = vpack.c.bf16 %v841, %v840
      %v864 = vpack.c.bf16 %v843, %v842
      %v865 = vpack.c.bf16 %v845, %v844
      %v866 = vpack.c.bf16 %v847, %v846
      %v867 = vpack.c.bf16 %v849, %v848
      %v868 = vpack.c.bf16 %v851, %v850
      %v869 = vpack.c.bf16 %v853, %v852
      %v870 = vld [vmem:[%s3] sm:$0x3]
      %v871 = vld [vmem:[#allocation2 + $0x107] sm:$0xff]
      %v872 = vld [vmem:[#allocation2 + $0x10f] sm:$0xff]
      %v873 = vpack.c.bf16 %v872, %v871
      %s874 = scalar_lea.vmem %s3, 6
      %v875 = vld [vmem:[%s874] sm:$0x3]
      %v877 = vsel %vm334, %v855, 0
      %v880 = vsel %vm334, %v856, 0
      %v883 = vsel %vm334, %v857, 0
      %v886 = vsel %vm334, %v858, 0
      %v889 = vsel %vm334, %v859, 0
      %v892 = vsel %vm334, %v860, 0
      %v895 = vsel %vm334, %v861, 0
      %v898 = vsel %vm334, %v862, 0
      %v901 = vsel %vm334, %v863, 0
      %v904 = vsel %vm334, %v864, 0
      %v907 = vsel %vm334, %v865, 0
      %v910 = vsel %vm334, %v866, 0
      %v913 = vsel %vm334, %v867, 0
      %v916 = vsel %vm334, %v868, 0
      %v919 = vsel %vm334, %v869, 0
      %v922 = vsel %vm334, %v873, 0
      %vm924 = vcmask 1041408
      %v926 = vsel %vm924, %v875, 0
      %928 = vmatpush.bf16.msra.mxu0 0
      %929 = vmatpush.bf16.msra.mxu0 0
      %930 = vmatpush.bf16.msra.mxu0 0
      %931 = vmatpush.bf16.msra.mxu0 0
      %932 = vmatpush.bf16.msra.mxu0 0
      %933 = vmatpush.bf16.msra.mxu0 0
      %934 = vmatpush.bf16.msra.mxu0 0
      %935 = vmatpush.bf16.msra.mxu0 %v926
      %936 = vmatmul.bf16.gmra.mxu0 %v877
      %v937 = vpop.f32.mrf.mxu0
      %v938 = vadd.f32 0.0, %v937
      %v939 = vpop.f32.mrf.mxu0
      %v940 = vadd.f32 0.0, %v939
      %941 = vmatmul.bf16.gmra.mxu0 %v880
      %v942 = vpop.f32.mrf.mxu0
      %v943 = vadd.f32 0.0, %v942
      %v944 = vpop.f32.mrf.mxu0
      %v945 = vadd.f32 0.0, %v944
      %946 = vmatmul.bf16.gmra.mxu0 %v883
      %v947 = vpop.f32.mrf.mxu0
      %v948 = vadd.f32 0.0, %v947
      %v949 = vpop.f32.mrf.mxu0
      %v950 = vadd.f32 0.0, %v949
      %951 = vmatmul.bf16.gmra.mxu0 %v886
      %v952 = vpop.f32.mrf.mxu0
      %v953 = vadd.f32 0.0, %v952
      %v954 = vpop.f32.mrf.mxu0
      %v955 = vadd.f32 0.0, %v954
      %956 = vmatmul.bf16.gmra.mxu0 %v889
      %v957 = vpop.f32.mrf.mxu0
      %v958 = vadd.f32 0.0, %v957
      %v959 = vpop.f32.mrf.mxu0
      %v960 = vadd.f32 0.0, %v959
      %961 = vmatmul.bf16.gmra.mxu0 %v892
      %v962 = vpop.f32.mrf.mxu0
      %v963 = vadd.f32 0.0, %v962
      %v964 = vpop.f32.mrf.mxu0
      %v965 = vadd.f32 0.0, %v964
      %966 = vmatmul.bf16.gmra.mxu0 %v895
      %v967 = vpop.f32.mrf.mxu0
      %v968 = vadd.f32 0.0, %v967
      %v969 = vpop.f32.mrf.mxu0
      %v970 = vadd.f32 0.0, %v969
      %971 = vmatmul.bf16.gmra.mxu0 %v898
      %v972 = vpop.f32.mrf.mxu0
      %v973 = vadd.f32 0.0, %v972
      %v974 = vpop.f32.mrf.mxu0
      %v975 = vadd.f32 0.0, %v974
      %976 = vmatmul.bf16.gmra.mxu0 %v901
      %v977 = vpop.f32.mrf.mxu0
      %v978 = vadd.f32 0.0, %v977
      %v979 = vpop.f32.mrf.mxu0
      %v980 = vadd.f32 0.0, %v979
      %981 = vmatmul.bf16.gmra.mxu0 %v904
      %v982 = vpop.f32.mrf.mxu0
      %v983 = vadd.f32 0.0, %v982
      %v984 = vpop.f32.mrf.mxu0
      %v985 = vadd.f32 0.0, %v984
      %986 = vmatmul.bf16.gmra.mxu0 %v907
      %v987 = vpop.f32.mrf.mxu0
      %v988 = vadd.f32 0.0, %v987
      %v989 = vpop.f32.mrf.mxu0
      %v990 = vadd.f32 0.0, %v989
      %991 = vmatmul.bf16.gmra.mxu0 %v910
      %v992 = vpop.f32.mrf.mxu0
      %v993 = vadd.f32 0.0, %v992
      %v994 = vpop.f32.mrf.mxu0
      %v995 = vadd.f32 0.0, %v994
      %996 = vmatmul.bf16.gmra.mxu0 %v913
      %v997 = vpop.f32.mrf.mxu0
      %v998 = vadd.f32 0.0, %v997
      %v999 = vpop.f32.mrf.mxu0
      %v1000 = vadd.f32 0.0, %v999
      %1001 = vmatmul.bf16.gmra.mxu0 %v916
      %v1002 = vpop.f32.mrf.mxu0
      %v1003 = vadd.f32 0.0, %v1002
      %v1004 = vpop.f32.mrf.mxu0
      %v1005 = vadd.f32 0.0, %v1004
      %1006 = vmatmul.bf16.gmra.mxu0 %v919
      %v1007 = vpop.f32.mrf.mxu0
      %v1008 = vadd.f32 0.0, %v1007
      %v1009 = vpop.f32.mrf.mxu0
      %v1010 = vadd.f32 0.0, %v1009
      %1011 = vmatmul.bf16.gmra.mxu0 %v922
      %v1012 = vpop.f32.mrf.mxu0
      %v1013 = vadd.f32 0.0, %v1012
      %v1014 = vpop.f32.mrf.mxu0
      %v1015 = vadd.f32 0.0, %v1014
      %1016 = vdwg.mxu0
      %v1018 = vsel %vm334, %v854, 0
      %v1021 = vsel %vm924, %v870, 0
      %1023 = vmatpush.bf16.msra.mxu0 0
      %1024 = vmatpush.bf16.msra.mxu0 0
      %1025 = vmatpush.bf16.msra.mxu0 0
      %1026 = vmatpush.bf16.msra.mxu0 0
      %1027 = vmatpush.bf16.msra.mxu0 0
      %1028 = vmatpush.bf16.msra.mxu0 0
      %1029 = vmatpush.bf16.msra.mxu0 0
      %1030 = vmatpush.bf16.msra.mxu0 %v1021
      %1031 = vmatmul.bf16.gmra.mxu0 %v1018
      %v1032 = vpop.f32.mrf.mxu0
      %v1033 = vadd.f32 %v938, %v1032
      %v1034 = vpop.f32.mrf.mxu0
      %v1035 = vadd.f32 %v940, %v1034
      %1036 = vmatmul.bf16.gmra.mxu0 %v877
      %v1037 = vpop.f32.mrf.mxu0
      %v1038 = vadd.f32 %v943, %v1037
      %v1039 = vpop.f32.mrf.mxu0
      %v1040 = vadd.f32 %v945, %v1039
      %1041 = vmatmul.bf16.gmra.mxu0 %v880
      %v1042 = vpop.f32.mrf.mxu0
      %v1043 = vadd.f32 %v948, %v1042
      %v1044 = vpop.f32.mrf.mxu0
      %v1045 = vadd.f32 %v950, %v1044
      %1046 = vmatmul.bf16.gmra.mxu0 %v883
      %v1047 = vpop.f32.mrf.mxu0
      %v1048 = vadd.f32 %v953, %v1047
      %v1049 = vpop.f32.mrf.mxu0
      %v1050 = vadd.f32 %v955, %v1049
      %1051 = vmatmul.bf16.gmra.mxu0 %v886
      %v1052 = vpop.f32.mrf.mxu0
      %v1053 = vadd.f32 %v958, %v1052
      %v1054 = vpop.f32.mrf.mxu0
      %v1055 = vadd.f32 %v960, %v1054
      %1056 = vmatmul.bf16.gmra.mxu0 %v889
      %v1057 = vpop.f32.mrf.mxu0
      %v1058 = vadd.f32 %v963, %v1057
      %v1059 = vpop.f32.mrf.mxu0
      %v1060 = vadd.f32 %v965, %v1059
      %1061 = vmatmul.bf16.gmra.mxu0 %v892
      %v1062 = vpop.f32.mrf.mxu0
      %v1063 = vadd.f32 %v968, %v1062
      %v1064 = vpop.f32.mrf.mxu0
      %v1065 = vadd.f32 %v970, %v1064
      %1066 = vmatmul.bf16.gmra.mxu0 %v895
      %v1067 = vpop.f32.mrf.mxu0
      %v1068 = vadd.f32 %v973, %v1067
      %v1069 = vpop.f32.mrf.mxu0
      %v1070 = vadd.f32 %v975, %v1069
      %1071 = vmatmul.bf16.gmra.mxu0 %v898
      %v1072 = vpop.f32.mrf.mxu0
      %v1073 = vadd.f32 %v978, %v1072
      %v1074 = vpop.f32.mrf.mxu0
      %v1075 = vadd.f32 %v980, %v1074
      %1076 = vmatmul.bf16.gmra.mxu0 %v901
      %v1077 = vpop.f32.mrf.mxu0
      %v1078 = vadd.f32 %v983, %v1077
      %v1079 = vpop.f32.mrf.mxu0
      %v1080 = vadd.f32 %v985, %v1079
      %1081 = vmatmul.bf16.gmra.mxu0 %v904
      %v1082 = vpop.f32.mrf.mxu0
      %v1083 = vadd.f32 %v988, %v1082
      %v1084 = vpop.f32.mrf.mxu0
      %v1085 = vadd.f32 %v990, %v1084
      %1086 = vmatmul.bf16.gmra.mxu0 %v907
      %v1087 = vpop.f32.mrf.mxu0
      %v1088 = vadd.f32 %v993, %v1087
      %v1089 = vpop.f32.mrf.mxu0
      %v1090 = vadd.f32 %v995, %v1089
      %1091 = vmatmul.bf16.gmra.mxu0 %v910
      %v1092 = vpop.f32.mrf.mxu0
      %v1093 = vadd.f32 %v998, %v1092
      %v1094 = vpop.f32.mrf.mxu0
      %v1095 = vadd.f32 %v1000, %v1094
      %1096 = vmatmul.bf16.gmra.mxu0 %v913
      %v1097 = vpop.f32.mrf.mxu0
      %v1098 = vadd.f32 %v1003, %v1097
      %v1099 = vpop.f32.mrf.mxu0
      %v1100 = vadd.f32 %v1005, %v1099
      %1101 = vmatmul.bf16.gmra.mxu0 %v916
      %v1102 = vpop.f32.mrf.mxu0
      %v1103 = vadd.f32 %v1008, %v1102
      %v1104 = vpop.f32.mrf.mxu0
      %v1105 = vadd.f32 %v1010, %v1104
      %1106 = vmatmul.bf16.gmra.mxu0 %v919
      %v1107 = vpop.f32.mrf.mxu0
      %v1108 = vadd.f32 %v1013, %v1107
      %v1109 = vpop.f32.mrf.mxu0
      %v1110 = vadd.f32 %v1015, %v1109
      %1111 = vdwg.mxu0
      %v1112 = vld [vmem:[#allocation2 + $0x27] sm:$0xff]
      %v1113 = vld [vmem:[#allocation2 + $0x2f] sm:$0xff]
      %v1114 = vld [vmem:[#allocation2 + $0x37] sm:$0xff]
      %v1115 = vld [vmem:[#allocation2 + $0x3f] sm:$0xff]
      %v1116 = vld [vmem:[#allocation2 + $0x47] sm:$0xff]
      %v1117 = vld [vmem:[#allocation2 + $0x4f] sm:$0xff]
      %v1118 = vld [vmem:[#allocation2 + $0x57] sm:$0xff]
      %v1119 = vld [vmem:[#allocation2 + $0x5f] sm:$0xff]
      %v1120 = vld [vmem:[#allocation2 + $0x67] sm:$0xff]
      %v1121 = vld [vmem:[#allocation2 + $0x6f] sm:$0xff]
      %v1122 = vld [vmem:[#allocation2 + $0x77] sm:$0xff]
      %v1123 = vld [vmem:[#allocation2 + $0x7f] sm:$0xff]
      %v1124 = vld [vmem:[#allocation2 + $0x87] sm:$0xff]
      %v1125 = vld [vmem:[#allocation2 + $0x8f] sm:$0xff]
      %v1126 = vld [vmem:[#allocation2 + $0x97] sm:$0xff]
      %v1127 = vld [vmem:[#allocation2 + $0x9f] sm:$0xff]
      %v1128 = vld [vmem:[#allocation2 + $0xa7] sm:$0xff]
      %v1129 = vld [vmem:[#allocation2 + $0xaf] sm:$0xff]
      %v1130 = vld [vmem:[#allocation2 + $0xb7] sm:$0xff]
      %v1131 = vld [vmem:[#allocation2 + $0xbf] sm:$0xff]
      %v1132 = vld [vmem:[#allocation2 + $0xc7] sm:$0xff]
      %v1133 = vld [vmem:[#allocation2 + $0xcf] sm:$0xff]
      %v1134 = vld [vmem:[#allocation2 + $0xd7] sm:$0xff]
      %v1135 = vld [vmem:[#allocation2 + $0xdf] sm:$0xff]
      %v1136 = vld [vmem:[#allocation2 + $0xe7] sm:$0xff]
      %v1137 = vld [vmem:[#allocation2 + $0xef] sm:$0xff]
      %v1138 = vld [vmem:[#allocation2 + $0xf7] sm:$0xff]
      %v1139 = vld [vmem:[#allocation2 + $0xff] sm:$0xff]
      %v1140 = vld [vmem:[#allocation2 + $0x107] sm:$0xff]
      %v1141 = vld [vmem:[#allocation2 + $0x10f] sm:$0xff]
      %v1142 = vld [vmem:[#allocation2 + $0x117] sm:$0xff]
      %v1143 = vld [vmem:[#allocation2 + $0x11f] sm:$0xff]
      %v1144 = vpack.c.bf16 %v1113, %v1112
      %v1145 = vpack.c.bf16 %v1115, %v1114
      %v1146 = vpack.c.bf16 %v1117, %v1116
      %v1147 = vpack.c.bf16 %v1119, %v1118
      %v1148 = vpack.c.bf16 %v1121, %v1120
      %v1149 = vpack.c.bf16 %v1123, %v1122
      %v1150 = vpack.c.bf16 %v1125, %v1124
      %v1151 = vpack.c.bf16 %v1127, %v1126
      %v1152 = vpack.c.bf16 %v1129, %v1128
      %v1153 = vpack.c.bf16 %v1131, %v1130
      %v1154 = vpack.c.bf16 %v1133, %v1132
      %v1155 = vpack.c.bf16 %v1135, %v1134
      %v1156 = vpack.c.bf16 %v1137, %v1136
      %v1157 = vpack.c.bf16 %v1139, %v1138
      %v1158 = vpack.c.bf16 %v1141, %v1140
      %v1159 = vpack.c.bf16 %v1143, %v1142
      %s1160 = scalar_lea.vmem %s3, 12
      %v1161 = vld [vmem:[%s1160] sm:$0x3]
      %v1163 = vsel %vm334, %v1144, 0
      %v1166 = vsel %vm334, %v1145, 0
      %v1169 = vsel %vm334, %v1146, 0
      %v1172 = vsel %vm334, %v1147, 0
      %v1175 = vsel %vm334, %v1148, 0
      %v1178 = vsel %vm334, %v1149, 0
      %v1181 = vsel %vm334, %v1150, 0
      %v1184 = vsel %vm334, %v1151, 0
      %v1187 = vsel %vm334, %v1152, 0
      %v1190 = vsel %vm334, %v1153, 0
      %v1193 = vsel %vm334, %v1154, 0
      %v1196 = vsel %vm334, %v1155, 0
      %v1199 = vsel %vm334, %v1156, 0
      %v1202 = vsel %vm334, %v1157, 0
      %v1205 = vsel %vm334, %v1158, 0
      %v1208 = vsel %vm334, %v1159, 0
      %v1211 = vsel %vm924, %v1161, 0
      %1213 = vmatpush.bf16.msra.mxu0 0
      %1214 = vmatpush.bf16.msra.mxu0 0
      %1215 = vmatpush.bf16.msra.mxu0 0
      %1216 = vmatpush.bf16.msra.mxu0 0
      %1217 = vmatpush.bf16.msra.mxu0 0
      %1218 = vmatpush.bf16.msra.mxu0 0
      %1219 = vmatpush.bf16.msra.mxu0 0
      %1220 = vmatpush.bf16.msra.mxu0 %v1211
      %1221 = vmatmul.bf16.gmra.mxu0 %v1163
      %v1222 = vpop.f32.mrf.mxu0
      %v1223 = vadd.f32 0.0, %v1222
      %v1224 = vpop.f32.mrf.mxu0
      %v1225 = vadd.f32 0.0, %v1224
      %1226 = vmatmul.bf16.gmra.mxu0 %v1166
      %v1227 = vpop.f32.mrf.mxu0
      %v1228 = vadd.f32 0.0, %v1227
      %v1229 = vpop.f32.mrf.mxu0
      %v1230 = vadd.f32 0.0, %v1229
      %1231 = vmatmul.bf16.gmra.mxu0 %v1169
      %v1232 = vpop.f32.mrf.mxu0
      %v1233 = vadd.f32 0.0, %v1232
      %v1234 = vpop.f32.mrf.mxu0
      %v1235 = vadd.f32 0.0, %v1234
      %1236 = vmatmul.bf16.gmra.mxu0 %v1172
      %v1237 = vpop.f32.mrf.mxu0
      %v1238 = vadd.f32 0.0, %v1237
      %v1239 = vpop.f32.mrf.mxu0
      %v1240 = vadd.f32 0.0, %v1239
      %1241 = vmatmul.bf16.gmra.mxu0 %v1175
      %v1242 = vpop.f32.mrf.mxu0
      %v1243 = vadd.f32 0.0, %v1242
      %v1244 = vpop.f32.mrf.mxu0
      %v1245 = vadd.f32 0.0, %v1244
      %1246 = vmatmul.bf16.gmra.mxu0 %v1178
      %v1247 = vpop.f32.mrf.mxu0
      %v1248 = vadd.f32 0.0, %v1247
      %v1249 = vpop.f32.mrf.mxu0
      %v1250 = vadd.f32 0.0, %v1249
      %1251 = vmatmul.bf16.gmra.mxu0 %v1181
      %v1252 = vpop.f32.mrf.mxu0
      %v1253 = vadd.f32 0.0, %v1252
      %v1254 = vpop.f32.mrf.mxu0
      %v1255 = vadd.f32 0.0, %v1254
      %1256 = vmatmul.bf16.gmra.mxu0 %v1184
      %v1257 = vpop.f32.mrf.mxu0
      %v1258 = vadd.f32 0.0, %v1257
      %v1259 = vpop.f32.mrf.mxu0
      %v1260 = vadd.f32 0.0, %v1259
      %1261 = vmatmul.bf16.gmra.mxu0 %v1187
      %v1262 = vpop.f32.mrf.mxu0
      %v1263 = vadd.f32 0.0, %v1262
      %v1264 = vpop.f32.mrf.mxu0
      %v1265 = vadd.f32 0.0, %v1264
      %1266 = vmatmul.bf16.gmra.mxu0 %v1190
      %v1267 = vpop.f32.mrf.mxu0
      %v1268 = vadd.f32 0.0, %v1267
      %v1269 = vpop.f32.mrf.mxu0
      %v1270 = vadd.f32 0.0, %v1269
      %1271 = vmatmul.bf16.gmra.mxu0 %v1193
      %v1272 = vpop.f32.mrf.mxu0
      %v1273 = vadd.f32 0.0, %v1272
      %v1274 = vpop.f32.mrf.mxu0
      %v1275 = vadd.f32 0.0, %v1274
      %1276 = vmatmul.bf16.gmra.mxu0 %v1196
      %v1277 = vpop.f32.mrf.mxu0
      %v1278 = vadd.f32 0.0, %v1277
      %v1279 = vpop.f32.mrf.mxu0
      %v1280 = vadd.f32 0.0, %v1279
      %1281 = vmatmul.bf16.gmra.mxu0 %v1199
      %v1282 = vpop.f32.mrf.mxu0
      %v1283 = vadd.f32 0.0, %v1282
      %v1284 = vpop.f32.mrf.mxu0
      %v1285 = vadd.f32 0.0, %v1284
      %1286 = vmatmul.bf16.gmra.mxu0 %v1202
      %v1287 = vpop.f32.mrf.mxu0
      %v1288 = vadd.f32 0.0, %v1287
      %v1289 = vpop.f32.mrf.mxu0
      %v1290 = vadd.f32 0.0, %v1289
      %1291 = vmatmul.bf16.gmra.mxu0 %v1205
      %v1292 = vpop.f32.mrf.mxu0
      %v1293 = vadd.f32 0.0, %v1292
      %v1294 = vpop.f32.mrf.mxu0
      %v1295 = vadd.f32 0.0, %v1294
      %1296 = vmatmul.bf16.gmra.mxu0 %v1208
      %v1297 = vpop.f32.mrf.mxu0
      %v1298 = vadd.f32 0.0, %v1297
      %v1299 = vpop.f32.mrf.mxu0
      %v1300 = vadd.f32 0.0, %v1299
      %1301 = vdwg.mxu0
      %v1302 = vadd.f32 %v1033, %v1223
      %v1303 = vadd.f32 %v1035, %v1225
      %v1304 = vadd.f32 %v1038, %v1228
      %v1305 = vadd.f32 %v1040, %v1230
      %v1306 = vadd.f32 %v1043, %v1233
      %v1307 = vadd.f32 %v1045, %v1235
      %v1308 = vadd.f32 %v1048, %v1238
      %v1309 = vadd.f32 %v1050, %v1240
      %v1310 = vadd.f32 %v1053, %v1243
      %v1311 = vadd.f32 %v1055, %v1245
      %v1312 = vadd.f32 %v1058, %v1248
      %v1313 = vadd.f32 %v1060, %v1250
      %v1314 = vadd.f32 %v1063, %v1253
      %v1315 = vadd.f32 %v1065, %v1255
      %v1316 = vadd.f32 %v1068, %v1258
      %v1317 = vadd.f32 %v1070, %v1260
      %v1318 = vadd.f32 %v1073, %v1263
      %v1319 = vadd.f32 %v1075, %v1265
      %v1320 = vadd.f32 %v1078, %v1268
      %v1321 = vadd.f32 %v1080, %v1270
      %v1322 = vadd.f32 %v1083, %v1273
      %v1323 = vadd.f32 %v1085, %v1275
      %v1324 = vadd.f32 %v1088, %v1278
      %v1325 = vadd.f32 %v1090, %v1280
      %v1326 = vadd.f32 %v1093, %v1283
      %v1327 = vadd.f32 %v1095, %v1285
      %v1328 = vadd.f32 %v1098, %v1288
      %v1329 = vadd.f32 %v1100, %v1290
      %v1330 = vadd.f32 %v1103, %v1293
      %v1331 = vadd.f32 %v1105, %v1295
      %v1332 = vadd.f32 %v1108, %v1298
      %v1333 = vadd.f32 %v1110, %v1300
      %vm1334 = vcmp.ge.s32.totalorder %v790, 1
      %vm1335 = vcmp.ge.s32.totalorder %v791, 1
      %vm1336 = vcmp.ge.s32.totalorder %v792, 1
      %vm1337 = vcmp.ge.s32.totalorder %v793, 1
      %vm1338 = vcmp.ge.s32.totalorder %v794, 1
      %vm1339 = vcmp.ge.s32.totalorder %v795, 1
      %vm1340 = vcmp.ge.s32.totalorder %v796, 1
      %vm1341 = vcmp.ge.s32.totalorder %v797, 1
      %vm1342 = vcmp.ge.s32.totalorder %v798, 1
      %vm1343 = vcmp.ge.s32.totalorder %v799, 1
      %vm1344 = vcmp.ge.s32.totalorder %v800, 1
      %vm1345 = vcmp.ge.s32.totalorder %v801, 1
      %vm1346 = vcmp.ge.s32.totalorder %v802, 1
      %vm1347 = vcmp.ge.s32.totalorder %v803, 1
      %vm1348 = vcmp.ge.s32.totalorder %v804, 1
      %vm1349 = vcmp.ge.s32.totalorder %v805, 1
      %vm1350 = vcmp.ge.s32.totalorder %v806, 1
      %vm1351 = vcmp.ge.s32.totalorder %v807, 1
      %vm1352 = vcmp.ge.s32.totalorder %v808, 1
      %vm1353 = vcmp.ge.s32.totalorder %v809, 1
      %vm1354 = vcmp.ge.s32.totalorder %v810, 1
      %vm1355 = vcmp.ge.s32.totalorder %v811, 1
      %vm1356 = vcmp.ge.s32.totalorder %v812, 1
      %vm1357 = vcmp.ge.s32.totalorder %v813, 1
      %vm1358 = vcmp.ge.s32.totalorder %v814, 1
      %vm1359 = vcmp.ge.s32.totalorder %v815, 1
      %vm1360 = vcmp.ge.s32.totalorder %v816, 1
      %vm1361 = vcmp.ge.s32.totalorder %v817, 1
      %vm1362 = vcmp.ge.s32.totalorder %v818, 1
      %vm1363 = vcmp.ge.s32.totalorder %v819, 1
      %vm1364 = vcmp.ge.s32.totalorder %v820, 1
      %vm1365 = vcmp.ge.s32.totalorder %v821, 1
      %v1366 = vsel %vm1334, 1, 0
      %v1367 = vsel %vm1335, 1, 0
      %v1368 = vsel %vm1336, 1, 0
      %v1369 = vsel %vm1337, 1, 0
      %v1370 = vsel %vm1338, 1, 0
      %v1371 = vsel %vm1339, 1, 0
      %v1372 = vsel %vm1340, 1, 0
      %v1373 = vsel %vm1341, 1, 0
      %v1374 = vsel %vm1342, 1, 0
      %v1375 = vsel %vm1343, 1, 0
      %v1376 = vsel %vm1344, 1, 0
      %v1377 = vsel %vm1345, 1, 0
      %v1378 = vsel %vm1346, 1, 0
      %v1379 = vsel %vm1347, 1, 0
      %v1380 = vsel %vm1348, 1, 0
      %v1381 = vsel %vm1349, 1, 0
      %v1382 = vsel %vm1350, 1, 0
      %v1383 = vsel %vm1351, 1, 0
      %v1384 = vsel %vm1352, 1, 0
      %v1385 = vsel %vm1353, 1, 0
      %v1386 = vsel %vm1354, 1, 0
      %v1387 = vsel %vm1355, 1, 0
      %v1388 = vsel %vm1356, 1, 0
      %v1389 = vsel %vm1357, 1, 0
      %v1390 = vsel %vm1358, 1, 0
      %v1391 = vsel %vm1359, 1, 0
      %v1392 = vsel %vm1360, 1, 0
      %v1393 = vsel %vm1361, 1, 0
      %v1394 = vsel %vm1362, 1, 0
      %v1395 = vsel %vm1363, 1, 0
      %v1396 = vsel %vm1364, 1, 0
      %v1397 = vsel %vm1365, 1, 0
      %vm1398 = vcmp.eq.s32.totalorder %v1366, 1
      %vm1399 = vcmp.eq.s32.totalorder %v1367, 1
      %vm1400 = vcmp.eq.s32.totalorder %v1368, 1
      %vm1401 = vcmp.eq.s32.totalorder %v1369, 1
      %vm1402 = vcmp.eq.s32.totalorder %v1370, 1
      %vm1403 = vcmp.eq.s32.totalorder %v1371, 1
      %vm1404 = vcmp.eq.s32.totalorder %v1372, 1
      %vm1405 = vcmp.eq.s32.totalorder %v1373, 1
      %vm1406 = vcmp.eq.s32.totalorder %v1374, 1
      %vm1407 = vcmp.eq.s32.totalorder %v1375, 1
      %vm1408 = vcmp.eq.s32.totalorder %v1376, 1
      %vm1409 = vcmp.eq.s32.totalorder %v1377, 1
      %vm1410 = vcmp.eq.s32.totalorder %v1378, 1
      %vm1411 = vcmp.eq.s32.totalorder %v1379, 1
      %vm1412 = vcmp.eq.s32.totalorder %v1380, 1
      %vm1413 = vcmp.eq.s32.totalorder %v1381, 1
      %vm1414 = vcmp.eq.s32.totalorder %v1382, 1
      %vm1415 = vcmp.eq.s32.totalorder %v1383, 1
      %vm1416 = vcmp.eq.s32.totalorder %v1384, 1
      %vm1417 = vcmp.eq.s32.totalorder %v1385, 1
      %vm1418 = vcmp.eq.s32.totalorder %v1386, 1
      %vm1419 = vcmp.eq.s32.totalorder %v1387, 1
      %vm1420 = vcmp.eq.s32.totalorder %v1388, 1
      %vm1421 = vcmp.eq.s32.totalorder %v1389, 1
      %vm1422 = vcmp.eq.s32.totalorder %v1390, 1
      %vm1423 = vcmp.eq.s32.totalorder %v1391, 1
      %vm1424 = vcmp.eq.s32.totalorder %v1392, 1
      %vm1425 = vcmp.eq.s32.totalorder %v1393, 1
      %vm1426 = vcmp.eq.s32.totalorder %v1394, 1
      %vm1427 = vcmp.eq.s32.totalorder %v1395, 1
      %vm1428 = vcmp.eq.s32.totalorder %v1396, 1
      %vm1429 = vcmp.eq.s32.totalorder %v1397, 1
      %v1430 = vsel %vm1398, %v1302, 0.0
      %v1431 = vsel %vm1399, %v1303, 0.0
      %v1432 = vsel %vm1400, %v1304, 0.0
      %v1433 = vsel %vm1401, %v1305, 0.0
      %v1434 = vsel %vm1402, %v1306, 0.0
      %v1435 = vsel %vm1403, %v1307, 0.0
      %v1436 = vsel %vm1404, %v1308, 0.0
      %v1437 = vsel %vm1405, %v1309, 0.0
      %v1438 = vsel %vm1406, %v1310, 0.0
      %v1439 = vsel %vm1407, %v1311, 0.0
      %v1440 = vsel %vm1408, %v1312, 0.0
      %v1441 = vsel %vm1409, %v1313, 0.0
      %v1442 = vsel %vm1410, %v1314, 0.0
      %v1443 = vsel %vm1411, %v1315, 0.0
      %v1444 = vsel %vm1412, %v1316, 0.0
      %v1445 = vsel %vm1413, %v1317, 0.0
      %v1446 = vsel %vm1414, %v1318, 0.0
      %v1447 = vsel %vm1415, %v1319, 0.0
      %v1448 = vsel %vm1416, %v1320, 0.0
      %v1449 = vsel %vm1417, %v1321, 0.0
      %v1450 = vsel %vm1418, %v1322, 0.0
      %v1451 = vsel %vm1419, %v1323, 0.0
      %v1452 = vsel %vm1420, %v1324, 0.0
      %v1453 = vsel %vm1421, %v1325, 0.0
      %v1454 = vsel %vm1422, %v1326, 0.0
      %v1455 = vsel %vm1423, %v1327, 0.0
      %v1456 = vsel %vm1424, %v1328, 0.0
      %v1457 = vsel %vm1425, %v1329, 0.0
      %v1458 = vsel %vm1426, %v1330, 0.0
      %v1459 = vsel %vm1427, %v1331, 0.0
      %v1460 = vsel %vm1428, %v1332, 0.0
      %v1461 = vsel %vm1429, %v1333, 0.0
      %v1462 = vadd.f32 %v1430, 0.0
      %v1463 = vadd.f32 %v1431, 0.0
      %v1464 = vadd.f32 %v1432, 0.0
      %v1465 = vadd.f32 %v1433, 0.0
      %v1466 = vadd.f32 %v1434, 0.0
      %v1467 = vadd.f32 %v1435, 0.0
      %v1468 = vadd.f32 %v1436, 0.0
      %v1469 = vadd.f32 %v1437, 0.0
      %v1470 = vadd.f32 %v1438, 0.0
      %v1471 = vadd.f32 %v1439, 0.0
      %v1472 = vadd.f32 %v1440, 0.0
      %v1473 = vadd.f32 %v1441, 0.0
      %v1474 = vadd.f32 %v1442, 0.0
      %v1475 = vadd.f32 %v1443, 0.0
      %v1476 = vadd.f32 %v1444, 0.0
      %v1477 = vadd.f32 %v1445, 0.0
      %v1478 = vadd.f32 %v1446, 0.0
      %v1479 = vadd.f32 %v1447, 0.0
      %v1480 = vadd.f32 %v1448, 0.0
      %v1481 = vadd.f32 %v1449, 0.0
      %v1482 = vadd.f32 %v1450, 0.0
      %v1483 = vadd.f32 %v1451, 0.0
      %v1484 = vadd.f32 %v1452, 0.0
      %v1485 = vadd.f32 %v1453, 0.0
      %v1486 = vadd.f32 %v1454, 0.0
      %v1487 = vadd.f32 %v1455, 0.0
      %v1488 = vadd.f32 %v1456, 0.0
      %v1489 = vadd.f32 %v1457, 0.0
      %v1490 = vadd.f32 %v1458, 0.0
      %v1491 = vadd.f32 %v1459, 0.0
      %v1492 = vadd.f32 %v1460, 0.0
      %v1493 = vadd.f32 %v1461, 0.0
      %v1494 = vld [vmem:[#allocation2 + $0x8] sm:$0xff]
      %v1495 = vld [vmem:[#allocation2 + $0x10] sm:$0xff]
      %v1496 = vld [vmem:[#allocation2 + $0x18] sm:$0xff]
      %v1497 = vld [vmem:[#allocation2 + $0x20] sm:$0xff]
      %v1498 = vld [vmem:[#allocation2 + $0x28] sm:$0xff]
      %v1499 = vld [vmem:[#allocation2 + $0x30] sm:$0xff]
      %v1500 = vld [vmem:[#allocation2 + $0x38] sm:$0xff]
      %v1501 = vld [vmem:[#allocation2 + $0x40] sm:$0xff]
      %v1502 = vld [vmem:[#allocation2 + $0x48] sm:$0xff]
      %v1503 = vld [vmem:[#allocation2 + $0x50] sm:$0xff]
      %v1504 = vld [vmem:[#allocation2 + $0x58] sm:$0xff]
      %v1505 = vld [vmem:[#allocation2 + $0x60] sm:$0xff]
      %v1506 = vld [vmem:[#allocation2 + $0x68] sm:$0xff]
      %v1507 = vld [vmem:[#allocation2 + $0x70] sm:$0xff]
      %v1508 = vld [vmem:[#allocation2 + $0x78] sm:$0xff]
      %v1509 = vld [vmem:[#allocation2 + $0x80] sm:$0xff]
      %v1510 = vld [vmem:[#allocation2 + $0x88] sm:$0xff]
      %v1511 = vld [vmem:[#allocation2 + $0x90] sm:$0xff]
      %v1512 = vld [vmem:[#allocation2 + $0x98] sm:$0xff]
      %v1513 = vld [vmem:[#allocation2 + $0xa0] sm:$0xff]
      %v1514 = vld [vmem:[#allocation2 + $0xa8] sm:$0xff]
      %v1515 = vld [vmem:[#allocation2 + $0xb0] sm:$0xff]
      %v1516 = vld [vmem:[#allocation2 + $0xb8] sm:$0xff]
      %v1517 = vld [vmem:[#allocation2 + $0xc0] sm:$0xff]
      %v1518 = vld [vmem:[#allocation2 + $0xc8] sm:$0xff]
      %v1519 = vld [vmem:[#allocation2 + $0xd0] sm:$0xff]
      %v1520 = vld [vmem:[#allocation2 + $0xd8] sm:$0xff]
      %v1521 = vld [vmem:[#allocation2 + $0xe0] sm:$0xff]
      %v1522 = vld [vmem:[#allocation2 + $0xe8] sm:$0xff]
      %v1523 = vld [vmem:[#allocation2 + $0xf0] sm:$0xff]
      %v1524 = vld [vmem:[#allocation2 + $0xf8] sm:$0xff]
      %v1525 = vld [vmem:[#allocation2 + $0x100] sm:$0xff]
      %v1526 = vpack.c.bf16 %v1495, %v1494
      %v1527 = vpack.c.bf16 %v1497, %v1496
      %v1528 = vpack.c.bf16 %v1499, %v1498
      %v1529 = vpack.c.bf16 %v1501, %v1500
      %v1530 = vpack.c.bf16 %v1503, %v1502
      %v1531 = vpack.c.bf16 %v1505, %v1504
      %v1532 = vpack.c.bf16 %v1507, %v1506
      %v1533 = vpack.c.bf16 %v1509, %v1508
      %v1534 = vpack.c.bf16 %v1511, %v1510
      %v1535 = vpack.c.bf16 %v1513, %v1512
      %v1536 = vpack.c.bf16 %v1515, %v1514
      %v1537 = vpack.c.bf16 %v1517, %v1516
      %v1538 = vpack.c.bf16 %v1519, %v1518
      %v1539 = vpack.c.bf16 %v1521, %v1520
      %v1540 = vpack.c.bf16 %v1523, %v1522
      %v1541 = vpack.c.bf16 %v1525, %v1524
      %s1542 = scalar_lea.vmem %s3, 2
      %v1543 = vld [vmem:[%s1542] sm:$0x3]
      %v1544 = vld [vmem:[#allocation2 + $0x108] sm:$0xff]
      %v1545 = vld [vmem:[#allocation2 + $0x110] sm:$0xff]
      %v1546 = vpack.c.bf16 %v1545, %v1544
      %s1547 = scalar_lea.vmem %s3, 8
      %v1548 = vld [vmem:[%s1547] sm:$0x3]
      %v1550 = vsel %vm334, %v1527, 0
      %v1553 = vsel %vm334, %v1528, 0
      %v1556 = vsel %vm334, %v1529, 0
      %v1559 = vsel %vm334, %v1530, 0
      %v1562 = vsel %vm334, %v1531, 0
      %v1565 = vsel %vm334, %v1532, 0
      %v1568 = vsel %vm334, %v1533, 0
      %v1571 = vsel %vm334, %v1534, 0
      %v1574 = vsel %vm334, %v1535, 0
      %v1577 = vsel %vm334, %v1536, 0
      %v1580 = vsel %vm334, %v1537, 0
      %v1583 = vsel %vm334, %v1538, 0
      %v1586 = vsel %vm334, %v1539, 0
      %v1589 = vsel %vm334, %v1540, 0
      %v1592 = vsel %vm334, %v1541, 0
      %v1595 = vsel %vm334, %v1546, 0
      %v1598 = vsel %vm924, %v1548, 0
      %1600 = vmatpush.bf16.msra.mxu0 0
      %1601 = vmatpush.bf16.msra.mxu0 0
      %1602 = vmatpush.bf16.msra.mxu0 0
      %1603 = vmatpush.bf16.msra.mxu0 0
      %1604 = vmatpush.bf16.msra.mxu0 0
      %1605 = vmatpush.bf16.msra.mxu0 0
      %1606 = vmatpush.bf16.msra.mxu0 0
      %1607 = vmatpush.bf16.msra.mxu0 %v1598
      %1608 = vmatmul.bf16.gmra.mxu0 %v1550
      %v1609 = vpop.f32.mrf.mxu0
      %v1610 = vadd.f32 0.0, %v1609
      %v1611 = vpop.f32.mrf.mxu0
      %v1612 = vadd.f32 0.0, %v1611
      %1613 = vmatmul.bf16.gmra.mxu0 %v1553
      %v1614 = vpop.f32.mrf.mxu0
      %v1615 = vadd.f32 0.0, %v1614
      %v1616 = vpop.f32.mrf.mxu0
      %v1617 = vadd.f32 0.0, %v1616
      %1618 = vmatmul.bf16.gmra.mxu0 %v1556
      %v1619 = vpop.f32.mrf.mxu0
      %v1620 = vadd.f32 0.0, %v1619
      %v1621 = vpop.f32.mrf.mxu0
      %v1622 = vadd.f32 0.0, %v1621
      %1623 = vmatmul.bf16.gmra.mxu0 %v1559
      %v1624 = vpop.f32.mrf.mxu0
      %v1625 = vadd.f32 0.0, %v1624
      %v1626 = vpop.f32.mrf.mxu0
      %v1627 = vadd.f32 0.0, %v1626
      %1628 = vmatmul.bf16.gmra.mxu0 %v1562
      %v1629 = vpop.f32.mrf.mxu0
      %v1630 = vadd.f32 0.0, %v1629
      %v1631 = vpop.f32.mrf.mxu0
      %v1632 = vadd.f32 0.0, %v1631
      %1633 = vmatmul.bf16.gmra.mxu0 %v1565
      %v1634 = vpop.f32.mrf.mxu0
      %v1635 = vadd.f32 0.0, %v1634
      %v1636 = vpop.f32.mrf.mxu0
      %v1637 = vadd.f32 0.0, %v1636
      %1638 = vmatmul.bf16.gmra.mxu0 %v1568
      %v1639 = vpop.f32.mrf.mxu0
      %v1640 = vadd.f32 0.0, %v1639
      %v1641 = vpop.f32.mrf.mxu0
      %v1642 = vadd.f32 0.0, %v1641
      %1643 = vmatmul.bf16.gmra.mxu0 %v1571
      %v1644 = vpop.f32.mrf.mxu0
      %v1645 = vadd.f32 0.0, %v1644
      %v1646 = vpop.f32.mrf.mxu0
      %v1647 = vadd.f32 0.0, %v1646
      %1648 = vmatmul.bf16.gmra.mxu0 %v1574
      %v1649 = vpop.f32.mrf.mxu0
      %v1650 = vadd.f32 0.0, %v1649
      %v1651 = vpop.f32.mrf.mxu0
      %v1652 = vadd.f32 0.0, %v1651
      %1653 = vmatmul.bf16.gmra.mxu0 %v1577
      %v1654 = vpop.f32.mrf.mxu0
      %v1655 = vadd.f32 0.0, %v1654
      %v1656 = vpop.f32.mrf.mxu0
      %v1657 = vadd.f32 0.0, %v1656
      %1658 = vmatmul.bf16.gmra.mxu0 %v1580
      %v1659 = vpop.f32.mrf.mxu0
      %v1660 = vadd.f32 0.0, %v1659
      %v1661 = vpop.f32.mrf.mxu0
      %v1662 = vadd.f32 0.0, %v1661
      %1663 = vmatmul.bf16.gmra.mxu0 %v1583
      %v1664 = vpop.f32.mrf.mxu0
      %v1665 = vadd.f32 0.0, %v1664
      %v1666 = vpop.f32.mrf.mxu0
      %v1667 = vadd.f32 0.0, %v1666
      %1668 = vmatmul.bf16.gmra.mxu0 %v1586
      %v1669 = vpop.f32.mrf.mxu0
      %v1670 = vadd.f32 0.0, %v1669
      %v1671 = vpop.f32.mrf.mxu0
      %v1672 = vadd.f32 0.0, %v1671
      %1673 = vmatmul.bf16.gmra.mxu0 %v1589
      %v1674 = vpop.f32.mrf.mxu0
      %v1675 = vadd.f32 0.0, %v1674
      %v1676 = vpop.f32.mrf.mxu0
      %v1677 = vadd.f32 0.0, %v1676
      %1678 = vmatmul.bf16.gmra.mxu0 %v1592
      %v1679 = vpop.f32.mrf.mxu0
      %v1680 = vadd.f32 0.0, %v1679
      %v1681 = vpop.f32.mrf.mxu0
      %v1682 = vadd.f32 0.0, %v1681
      %1683 = vmatmul.bf16.gmra.mxu0 %v1595
      %v1684 = vpop.f32.mrf.mxu0
      %v1685 = vadd.f32 0.0, %v1684
      %v1686 = vpop.f32.mrf.mxu0
      %v1687 = vadd.f32 0.0, %v1686
      %1688 = vdwg.mxu0
      %v1690 = vsel %vm334, %v1526, 0
      %v1693 = vsel %vm924, %v1543, 0
      %1695 = vmatpush.bf16.msra.mxu0 0
      %1696 = vmatpush.bf16.msra.mxu0 0
      %1697 = vmatpush.bf16.msra.mxu0 0
      %1698 = vmatpush.bf16.msra.mxu0 0
      %1699 = vmatpush.bf16.msra.mxu0 0
      %1700 = vmatpush.bf16.msra.mxu0 0
      %1701 = vmatpush.bf16.msra.mxu0 0
      %1702 = vmatpush.bf16.msra.mxu0 %v1693
      %1703 = vmatmul.bf16.gmra.mxu0 %v1690
      %v1704 = vpop.f32.mrf.mxu0
      %v1705 = vadd.f32 %v1610, %v1704
      %v1706 = vpop.f32.mrf.mxu0
      %v1707 = vadd.f32 %v1612, %v1706
      %1708 = vmatmul.bf16.gmra.mxu0 %v1550
      %v1709 = vpop.f32.mrf.mxu0
      %v1710 = vadd.f32 %v1615, %v1709
      %v1711 = vpop.f32.mrf.mxu0
      %v1712 = vadd.f32 %v1617, %v1711
      %1713 = vmatmul.bf16.gmra.mxu0 %v1553
      %v1714 = vpop.f32.mrf.mxu0
      %v1715 = vadd.f32 %v1620, %v1714
      %v1716 = vpop.f32.mrf.mxu0
      %v1717 = vadd.f32 %v1622, %v1716
      %1718 = vmatmul.bf16.gmra.mxu0 %v1556
      %v1719 = vpop.f32.mrf.mxu0
      %v1720 = vadd.f32 %v1625, %v1719
      %v1721 = vpop.f32.mrf.mxu0
      %v1722 = vadd.f32 %v1627, %v1721
      %1723 = vmatmul.bf16.gmra.mxu0 %v1559
      %v1724 = vpop.f32.mrf.mxu0
      %v1725 = vadd.f32 %v1630, %v1724
      %v1726 = vpop.f32.mrf.mxu0
      %v1727 = vadd.f32 %v1632, %v1726
      %1728 = vmatmul.bf16.gmra.mxu0 %v1562
      %v1729 = vpop.f32.mrf.mxu0
      %v1730 = vadd.f32 %v1635, %v1729
      %v1731 = vpop.f32.mrf.mxu0
      %v1732 = vadd.f32 %v1637, %v1731
      %1733 = vmatmul.bf16.gmra.mxu0 %v1565
      %v1734 = vpop.f32.mrf.mxu0
      %v1735 = vadd.f32 %v1640, %v1734
      %v1736 = vpop.f32.mrf.mxu0
      %v1737 = vadd.f32 %v1642, %v1736
      %1738 = vmatmul.bf16.gmra.mxu0 %v1568
      %v1739 = vpop.f32.mrf.mxu0
      %v1740 = vadd.f32 %v1645, %v1739
      %v1741 = vpop.f32.mrf.mxu0
      %v1742 = vadd.f32 %v1647, %v1741
      %1743 = vmatmul.bf16.gmra.mxu0 %v1571
      %v1744 = vpop.f32.mrf.mxu0
      %v1745 = vadd.f32 %v1650, %v1744
      %v1746 = vpop.f32.mrf.mxu0
      %v1747 = vadd.f32 %v1652, %v1746
      %1748 = vmatmul.bf16.gmra.mxu0 %v1574
      %v1749 = vpop.f32.mrf.mxu0
      %v1750 = vadd.f32 %v1655, %v1749
      %v1751 = vpop.f32.mrf.mxu0
      %v1752 = vadd.f32 %v1657, %v1751
      %1753 = vmatmul.bf16.gmra.mxu0 %v1577
      %v1754 = vpop.f32.mrf.mxu0
      %v1755 = vadd.f32 %v1660, %v1754
      %v1756 = vpop.f32.mrf.mxu0
      %v1757 = vadd.f32 %v1662, %v1756
      %1758 = vmatmul.bf16.gmra.mxu0 %v1580
      %v1759 = vpop.f32.mrf.mxu0
      %v1760 = vadd.f32 %v1665, %v1759
      %v1761 = vpop.f32.mrf.mxu0
      %v1762 = vadd.f32 %v1667, %v1761
      %1763 = vmatmul.bf16.gmra.mxu0 %v1583
      %v1764 = vpop.f32.mrf.mxu0
      %v1765 = vadd.f32 %v1670, %v1764
      %v1766 = vpop.f32.mrf.mxu0
      %v1767 = vadd.f32 %v1672, %v1766
      %1768 = vmatmul.bf16.gmra.mxu0 %v1586
      %v1769 = vpop.f32.mrf.mxu0
      %v1770 = vadd.f32 %v1675, %v1769
      %v1771 = vpop.f32.mrf.mxu0
      %v1772 = vadd.f32 %v1677, %v1771
      %1773 = vmatmul.bf16.gmra.mxu0 %v1589
      %v1774 = vpop.f32.mrf.mxu0
      %v1775 = vadd.f32 %v1680, %v1774
      %v1776 = vpop.f32.mrf.mxu0
      %v1777 = vadd.f32 %v1682, %v1776
      %1778 = vmatmul.bf16.gmra.mxu0 %v1592
      %v1779 = vpop.f32.mrf.mxu0
      %v1780 = vadd.f32 %v1685, %v1779
      %v1781 = vpop.f32.mrf.mxu0
      %v1782 = vadd.f32 %v1687, %v1781
      %1783 = vdwg.mxu0
      %v1784 = vld [vmem:[#allocation2 + $0x28] sm:$0xff]
      %v1785 = vld [vmem:[#allocation2 + $0x30] sm:$0xff]
      %v1786 = vld [vmem:[#allocation2 + $0x38] sm:$0xff]
      %v1787 = vld [vmem:[#allocation2 + $0x40] sm:$0xff]
      %v1788 = vld [vmem:[#allocation2 + $0x48] sm:$0xff]
      %v1789 = vld [vmem:[#allocation2 + $0x50] sm:$0xff]
      %v1790 = vld [vmem:[#allocation2 + $0x58] sm:$0xff]
      %v1791 = vld [vmem:[#allocation2 + $0x60] sm:$0xff]
      %v1792 = vld [vmem:[#allocation2 + $0x68] sm:$0xff]
      %v1793 = vld [vmem:[#allocation2 + $0x70] sm:$0xff]
      %v1794 = vld [vmem:[#allocation2 + $0x78] sm:$0xff]
      %v1795 = vld [vmem:[#allocation2 + $0x80] sm:$0xff]
      %v1796 = vld [vmem:[#allocation2 + $0x88] sm:$0xff]
      %v1797 = vld [vmem:[#allocation2 + $0x90] sm:$0xff]
      %v1798 = vld [vmem:[#allocation2 + $0x98] sm:$0xff]
      %v1799 = vld [vmem:[#allocation2 + $0xa0] sm:$0xff]
      %v1800 = vld [vmem:[#allocation2 + $0xa8] sm:$0xff]
      %v1801 = vld [vmem:[#allocation2 + $0xb0] sm:$0xff]
      %v1802 = vld [vmem:[#allocation2 + $0xb8] sm:$0xff]
      %v1803 = vld [vmem:[#allocation2 + $0xc0] sm:$0xff]
      %v1804 = vld [vmem:[#allocation2 + $0xc8] sm:$0xff]
      %v1805 = vld [vmem:[#allocation2 + $0xd0] sm:$0xff]
      %v1806 = vld [vmem:[#allocation2 + $0xd8] sm:$0xff]
      %v1807 = vld [vmem:[#allocation2 + $0xe0] sm:$0xff]
      %v1808 = vld [vmem:[#allocation2 + $0xe8] sm:$0xff]
      %v1809 = vld [vmem:[#allocation2 + $0xf0] sm:$0xff]
      %v1810 = vld [vmem:[#allocation2 + $0xf8] sm:$0xff]
      %v1811 = vld [vmem:[#allocation2 + $0x100] sm:$0xff]
      %v1812 = vld [vmem:[#allocation2 + $0x108] sm:$0xff]
      %v1813 = vld [vmem:[#allocation2 + $0x110] sm:$0xff]
      %v1814 = vld [vmem:[#allocation2 + $0x118] sm:$0xff]
      %v1815 = vld [vmem:[#allocation2 + $0x120] sm:$0xff]
      %v1816 = vpack.c.bf16 %v1785, %v1784
      %v1817 = vpack.c.bf16 %v1787, %v1786
      %v1818 = vpack.c.bf16 %v1789, %v1788
      %v1819 = vpack.c.bf16 %v1791, %v1790
      %v1820 = vpack.c.bf16 %v1793, %v1792
      %v1821 = vpack.c.bf16 %v1795, %v1794
      %v1822 = vpack.c.bf16 %v1797, %v1796
      %v1823 = vpack.c.bf16 %v1799, %v1798
      %v1824 = vpack.c.bf16 %v1801, %v1800
      %v1825 = vpack.c.bf16 %v1803, %v1802
      %v1826 = vpack.c.bf16 %v1805, %v1804
      %v1827 = vpack.c.bf16 %v1807, %v1806
      %v1828 = vpack.c.bf16 %v1809, %v1808
      %v1829 = vpack.c.bf16 %v1811, %v1810
      %v1830 = vpack.c.bf16 %v1813, %v1812
      %v1831 = vpack.c.bf16 %v1815, %v1814
      %s1832 = scalar_lea.vmem %s3, 14
      %v1833 = vld [vmem:[%s1832] sm:$0x3]
      %v1835 = vsel %vm334, %v1816, 0
      %v1838 = vsel %vm334, %v1817, 0
      %v1841 = vsel %vm334, %v1818, 0
      %v1844 = vsel %vm334, %v1819, 0
      %v1847 = vsel %vm334, %v1820, 0
      %v1850 = vsel %vm334, %v1821, 0
      %v1853 = vsel %vm334, %v1822, 0
      %v1856 = vsel %vm334, %v1823, 0
      %v1859 = vsel %vm334, %v1824, 0
      %v1862 = vsel %vm334, %v1825, 0
      %v1865 = vsel %vm334, %v1826, 0
      %v1868 = vsel %vm334, %v1827, 0
      %v1871 = vsel %vm334, %v1828, 0
      %v1874 = vsel %vm334, %v1829, 0
      %v1877 = vsel %vm334, %v1830, 0
      %v1880 = vsel %vm334, %v1831, 0
      %v1883 = vsel %vm924, %v1833, 0
      %1885 = vmatpush.bf16.msra.mxu0 0
      %1886 = vmatpush.bf16.msra.mxu0 0
      %1887 = vmatpush.bf16.msra.mxu0 0
      %1888 = vmatpush.bf16.msra.mxu0 0
      %1889 = vmatpush.bf16.msra.mxu0 0
      %1890 = vmatpush.bf16.msra.mxu0 0
      %1891 = vmatpush.bf16.msra.mxu0 0
      %1892 = vmatpush.bf16.msra.mxu0 %v1883
      %1893 = vmatmul.bf16.gmra.mxu0 %v1835
      %v1894 = vpop.f32.mrf.mxu0
      %v1895 = vadd.f32 0.0, %v1894
      %v1896 = vpop.f32.mrf.mxu0
      %v1897 = vadd.f32 0.0, %v1896
      %1898 = vmatmul.bf16.gmra.mxu0 %v1838
      %v1899 = vpop.f32.mrf.mxu0
      %v1900 = vadd.f32 0.0, %v1899
      %v1901 = vpop.f32.mrf.mxu0
      %v1902 = vadd.f32 0.0, %v1901
      %1903 = vmatmul.bf16.gmra.mxu0 %v1841
      %v1904 = vpop.f32.mrf.mxu0
      %v1905 = vadd.f32 0.0, %v1904
      %v1906 = vpop.f32.mrf.mxu0
      %v1907 = vadd.f32 0.0, %v1906
      %1908 = vmatmul.bf16.gmra.mxu0 %v1844
      %v1909 = vpop.f32.mrf.mxu0
      %v1910 = vadd.f32 0.0, %v1909
      %v1911 = vpop.f32.mrf.mxu0
      %v1912 = vadd.f32 0.0, %v1911
      %1913 = vmatmul.bf16.gmra.mxu0 %v1847
      %v1914 = vpop.f32.mrf.mxu0
      %v1915 = vadd.f32 0.0, %v1914
      %v1916 = vpop.f32.mrf.mxu0
      %v1917 = vadd.f32 0.0, %v1916
      %1918 = vmatmul.bf16.gmra.mxu0 %v1850
      %v1919 = vpop.f32.mrf.mxu0
      %v1920 = vadd.f32 0.0, %v1919
      %v1921 = vpop.f32.mrf.mxu0
      %v1922 = vadd.f32 0.0, %v1921
      %1923 = vmatmul.bf16.gmra.mxu0 %v1853
      %v1924 = vpop.f32.mrf.mxu0
      %v1925 = vadd.f32 0.0, %v1924
      %v1926 = vpop.f32.mrf.mxu0
      %v1927 = vadd.f32 0.0, %v1926
      %1928 = vmatmul.bf16.gmra.mxu0 %v1856
      %v1929 = vpop.f32.mrf.mxu0
      %v1930 = vadd.f32 0.0, %v1929
      %v1931 = vpop.f32.mrf.mxu0
      %v1932 = vadd.f32 0.0, %v1931
      %1933 = vmatmul.bf16.gmra.mxu0 %v1859
      %v1934 = vpop.f32.mrf.mxu0
      %v1935 = vadd.f32 0.0, %v1934
      %v1936 = vpop.f32.mrf.mxu0
      %v1937 = vadd.f32 0.0, %v1936
      %1938 = vmatmul.bf16.gmra.mxu0 %v1862
      %v1939 = vpop.f32.mrf.mxu0
      %v1940 = vadd.f32 0.0, %v1939
      %v1941 = vpop.f32.mrf.mxu0
      %v1942 = vadd.f32 0.0, %v1941
      %1943 = vmatmul.bf16.gmra.mxu0 %v1865
      %v1944 = vpop.f32.mrf.mxu0
      %v1945 = vadd.f32 0.0, %v1944
      %v1946 = vpop.f32.mrf.mxu0
      %v1947 = vadd.f32 0.0, %v1946
      %1948 = vmatmul.bf16.gmra.mxu0 %v1868
      %v1949 = vpop.f32.mrf.mxu0
      %v1950 = vadd.f32 0.0, %v1949
      %v1951 = vpop.f32.mrf.mxu0
      %v1952 = vadd.f32 0.0, %v1951
      %1953 = vmatmul.bf16.gmra.mxu0 %v1871
      %v1954 = vpop.f32.mrf.mxu0
      %v1955 = vadd.f32 0.0, %v1954
      %v1956 = vpop.f32.mrf.mxu0
      %v1957 = vadd.f32 0.0, %v1956
      %1958 = vmatmul.bf16.gmra.mxu0 %v1874
      %v1959 = vpop.f32.mrf.mxu0
      %v1960 = vadd.f32 0.0, %v1959
      %v1961 = vpop.f32.mrf.mxu0
      %v1962 = vadd.f32 0.0, %v1961
      %1963 = vmatmul.bf16.gmra.mxu0 %v1877
      %v1964 = vpop.f32.mrf.mxu0
      %v1965 = vadd.f32 0.0, %v1964
      %v1966 = vpop.f32.mrf.mxu0
      %v1967 = vadd.f32 0.0, %v1966
      %1968 = vmatmul.bf16.gmra.mxu0 %v1880
      %v1969 = vpop.f32.mrf.mxu0
      %v1970 = vadd.f32 0.0, %v1969
      %v1971 = vpop.f32.mrf.mxu0
      %v1972 = vadd.f32 0.0, %v1971
      %1973 = vdwg.mxu0
      %v1974 = vadd.f32 %v1705, %v1895
      %v1975 = vadd.f32 %v1707, %v1897
      %v1976 = vadd.f32 %v1710, %v1900
      %v1977 = vadd.f32 %v1712, %v1902
      %v1978 = vadd.f32 %v1715, %v1905
      %v1979 = vadd.f32 %v1717, %v1907
      %v1980 = vadd.f32 %v1720, %v1910
      %v1981 = vadd.f32 %v1722, %v1912
      %v1982 = vadd.f32 %v1725, %v1915
      %v1983 = vadd.f32 %v1727, %v1917
      %v1984 = vadd.f32 %v1730, %v1920
      %v1985 = vadd.f32 %v1732, %v1922
      %v1986 = vadd.f32 %v1735, %v1925
      %v1987 = vadd.f32 %v1737, %v1927
      %v1988 = vadd.f32 %v1740, %v1930
      %v1989 = vadd.f32 %v1742, %v1932
      %v1990 = vadd.f32 %v1745, %v1935
      %v1991 = vadd.f32 %v1747, %v1937
      %v1992 = vadd.f32 %v1750, %v1940
      %v1993 = vadd.f32 %v1752, %v1942
      %v1994 = vadd.f32 %v1755, %v1945
      %v1995 = vadd.f32 %v1757, %v1947
      %v1996 = vadd.f32 %v1760, %v1950
      %v1997 = vadd.f32 %v1762, %v1952
      %v1998 = vadd.f32 %v1765, %v1955
      %v1999 = vadd.f32 %v1767, %v1957
      %v2000 = vadd.f32 %v1770, %v1960
      %v2001 = vadd.f32 %v1772, %v1962
      %v2002 = vadd.f32 %v1775, %v1965
      %v2003 = vadd.f32 %v1777, %v1967
      %v2004 = vadd.f32 %v1780, %v1970
      %v2005 = vadd.f32 %v1782, %v1972
      %v2006 = vadd.f32 %v1462, %v1974
      %v2007 = vadd.f32 %v1463, %v1975
      %v2008 = vadd.f32 %v1464, %v1976
      %v2009 = vadd.f32 %v1465, %v1977
      %v2010 = vadd.f32 %v1466, %v1978
      %v2011 = vadd.f32 %v1467, %v1979
      %v2012 = vadd.f32 %v1468, %v1980
      %v2013 = vadd.f32 %v1469, %v1981
      %v2014 = vadd.f32 %v1470, %v1982
      %v2015 = vadd.f32 %v1471, %v1983
      %v2016 = vadd.f32 %v1472, %v1984
      %v2017 = vadd.f32 %v1473, %v1985
      %v2018 = vadd.f32 %v1474, %v1986
      %v2019 = vadd.f32 %v1475, %v1987
      %v2020 = vadd.f32 %v1476, %v1988
      %v2021 = vadd.f32 %v1477, %v1989
      %v2022 = vadd.f32 %v1478, %v1990
      %v2023 = vadd.f32 %v1479, %v1991
      %v2024 = vadd.f32 %v1480, %v1992
      %v2025 = vadd.f32 %v1481, %v1993
      %v2026 = vadd.f32 %v1482, %v1994
      %v2027 = vadd.f32 %v1483, %v1995
      %v2028 = vadd.f32 %v1484, %v1996
      %v2029 = vadd.f32 %v1485, %v1997
      %v2030 = vadd.f32 %v1486, %v1998
      %v2031 = vadd.f32 %v1487, %v1999
      %v2032 = vadd.f32 %v1488, %v2000
      %v2033 = vadd.f32 %v1489, %v2001
      %v2034 = vadd.f32 %v1490, %v2002
      %v2035 = vadd.f32 %v1491, %v2003
      %v2036 = vadd.f32 %v1492, %v2004
      %v2037 = vadd.f32 %v1493, %v2005
      %v2038 = vld [vmem:[#allocation2 + $0x9] sm:$0xff]
      %v2039 = vld [vmem:[#allocation2 + $0x11] sm:$0xff]
      %v2040 = vld [vmem:[#allocation2 + $0x19] sm:$0xff]
      %v2041 = vld [vmem:[#allocation2 + $0x21] sm:$0xff]
      %v2042 = vld [vmem:[#allocation2 + $0x29] sm:$0xff]
      %v2043 = vld [vmem:[#allocation2 + $0x31] sm:$0xff]
      %v2044 = vld [vmem:[#allocation2 + $0x39] sm:$0xff]
      %v2045 = vld [vmem:[#allocation2 + $0x41] sm:$0xff]
      %v2046 = vld [vmem:[#allocation2 + $0x49] sm:$0xff]
      %v2047 = vld [vmem:[#allocation2 + $0x51] sm:$0xff]
      %v2048 = vld [vmem:[#allocation2 + $0x59] sm:$0xff]
      %v2049 = vld [vmem:[#allocation2 + $0x61] sm:$0xff]
      %v2050 = vld [vmem:[#allocation2 + $0x69] sm:$0xff]
      %v2051 = vld [vmem:[#allocation2 + $0x71] sm:$0xff]
      %v2052 = vld [vmem:[#allocation2 + $0x79] sm:$0xff]
      %v2053 = vld [vmem:[#allocation2 + $0x81] sm:$0xff]
      %v2054 = vld [vmem:[#allocation2 + $0x89] sm:$0xff]
      %v2055 = vld [vmem:[#allocation2 + $0x91] sm:$0xff]
      %v2056 = vld [vmem:[#allocation2 + $0x99] sm:$0xff]
      %v2057 = vld [vmem:[#allocation2 + $0xa1] sm:$0xff]
      %v2058 = vld [vmem:[#allocation2 + $0xa9] sm:$0xff]
      %v2059 = vld [vmem:[#allocation2 + $0xb1] sm:$0xff]
      %v2060 = vld [vmem:[#allocation2 + $0xb9] sm:$0xff]
      %v2061 = vld [vmem:[#allocation2 + $0xc1] sm:$0xff]
      %v2062 = vld [vmem:[#allocation2 + $0xc9] sm:$0xff]
      %v2063 = vld [vmem:[#allocation2 + $0xd1] sm:$0xff]
      %v2064 = vld [vmem:[#allocation2 + $0xd9] sm:$0xff]
      %v2065 = vld [vmem:[#allocation2 + $0xe1] sm:$0xff]
      %v2066 = vld [vmem:[#allocation2 + $0xe9] sm:$0xff]
      %v2067 = vld [vmem:[#allocation2 + $0xf1] sm:$0xff]
      %v2068 = vld [vmem:[#allocation2 + $0xf9] sm:$0xff]
      %v2069 = vld [vmem:[#allocation2 + $0x101] sm:$0xff]
      %v2070 = vpack.c.bf16 %v2039, %v2038
      %v2071 = vpack.c.bf16 %v2041, %v2040
      %v2072 = vpack.c.bf16 %v2043, %v2042
      %v2073 = vpack.c.bf16 %v2045, %v2044
      %v2074 = vpack.c.bf16 %v2047, %v2046
      %v2075 = vpack.c.bf16 %v2049, %v2048
      %v2076 = vpack.c.bf16 %v2051, %v2050
      %v2077 = vpack.c.bf16 %v2053, %v2052
      %v2078 = vpack.c.bf16 %v2055, %v2054
      %v2079 = vpack.c.bf16 %v2057, %v2056
      %v2080 = vpack.c.bf16 %v2059, %v2058
      %v2081 = vpack.c.bf16 %v2061, %v2060
      %v2082 = vpack.c.bf16 %v2063, %v2062
      %v2083 = vpack.c.bf16 %v2065, %v2064
      %v2084 = vpack.c.bf16 %v2067, %v2066
      %v2085 = vpack.c.bf16 %v2069, %v2068
      %s2086 = scalar_lea.vmem %s3, 4
      %v2087 = vld [vmem:[%s2086] sm:$0x3]
      %v2088 = vld [vmem:[#allocation2 + $0x109] sm:$0xff]
      %v2089 = vld [vmem:[#allocation2 + $0x111] sm:$0xff]
      %v2090 = vpack.c.bf16 %v2089, %v2088
      %s2091 = scalar_lea.vmem %s3, 10
      %v2092 = vld [vmem:[%s2091] sm:$0x3]
      %v2094 = vsel %vm334, %v2071, 0
      %v2097 = vsel %vm334, %v2072, 0
      %v2100 = vsel %vm334, %v2073, 0
      %v2103 = vsel %vm334, %v2074, 0
      %v2106 = vsel %vm334, %v2075, 0
      %v2109 = vsel %vm334, %v2076, 0
      %v2112 = vsel %vm334, %v2077, 0
      %v2115 = vsel %vm334, %v2078, 0
      %v2118 = vsel %vm334, %v2079, 0
      %v2121 = vsel %vm334, %v2080, 0
      %v2124 = vsel %vm334, %v2081, 0
      %v2127 = vsel %vm334, %v2082, 0
      %v2130 = vsel %vm334, %v2083, 0
      %v2133 = vsel %vm334, %v2084, 0
      %v2136 = vsel %vm334, %v2085, 0
      %v2139 = vsel %vm334, %v2090, 0
      %v2142 = vsel %vm924, %v2092, 0
      %2144 = vmatpush.bf16.msra.mxu0 0
      %2145 = vmatpush.bf16.msra.mxu0 0
      %2146 = vmatpush.bf16.msra.mxu0 0
      %2147 = vmatpush.bf16.msra.mxu0 0
      %2148 = vmatpush.bf16.msra.mxu0 0
      %2149 = vmatpush.bf16.msra.mxu0 0
      %2150 = vmatpush.bf16.msra.mxu0 0
      %2151 = vmatpush.bf16.msra.mxu0 %v2142
      %2152 = vmatmul.bf16.gmra.mxu0 %v2094
      %v2153 = vpop.f32.mrf.mxu0
      %v2154 = vadd.f32 0.0, %v2153
      %v2155 = vpop.f32.mrf.mxu0
      %v2156 = vadd.f32 0.0, %v2155
      %2157 = vmatmul.bf16.gmra.mxu0 %v2097
      %v2158 = vpop.f32.mrf.mxu0
      %v2159 = vadd.f32 0.0, %v2158
      %v2160 = vpop.f32.mrf.mxu0
      %v2161 = vadd.f32 0.0, %v2160
      %2162 = vmatmul.bf16.gmra.mxu0 %v2100
      %v2163 = vpop.f32.mrf.mxu0
      %v2164 = vadd.f32 0.0, %v2163
      %v2165 = vpop.f32.mrf.mxu0
      %v2166 = vadd.f32 0.0, %v2165
      %2167 = vmatmul.bf16.gmra.mxu0 %v2103
      %v2168 = vpop.f32.mrf.mxu0
      %v2169 = vadd.f32 0.0, %v2168
      %v2170 = vpop.f32.mrf.mxu0
      %v2171 = vadd.f32 0.0, %v2170
      %2172 = vmatmul.bf16.gmra.mxu0 %v2106
      %v2173 = vpop.f32.mrf.mxu0
      %v2174 = vadd.f32 0.0, %v2173
      %v2175 = vpop.f32.mrf.mxu0
      %v2176 = vadd.f32 0.0, %v2175
      %2177 = vmatmul.bf16.gmra.mxu0 %v2109
      %v2178 = vpop.f32.mrf.mxu0
      %v2179 = vadd.f32 0.0, %v2178
      %v2180 = vpop.f32.mrf.mxu0
      %v2181 = vadd.f32 0.0, %v2180
      %2182 = vmatmul.bf16.gmra.mxu0 %v2112
      %v2183 = vpop.f32.mrf.mxu0
      %v2184 = vadd.f32 0.0, %v2183
      %v2185 = vpop.f32.mrf.mxu0
      %v2186 = vadd.f32 0.0, %v2185
      %2187 = vmatmul.bf16.gmra.mxu0 %v2115
      %v2188 = vpop.f32.mrf.mxu0
      %v2189 = vadd.f32 0.0, %v2188
      %v2190 = vpop.f32.mrf.mxu0
      %v2191 = vadd.f32 0.0, %v2190
      %2192 = vmatmul.bf16.gmra.mxu0 %v2118
      %v2193 = vpop.f32.mrf.mxu0
      %v2194 = vadd.f32 0.0, %v2193
      %v2195 = vpop.f32.mrf.mxu0
      %v2196 = vadd.f32 0.0, %v2195
      %2197 = vmatmul.bf16.gmra.mxu0 %v2121
      %v2198 = vpop.f32.mrf.mxu0
      %v2199 = vadd.f32 0.0, %v2198
      %v2200 = vpop.f32.mrf.mxu0
      %v2201 = vadd.f32 0.0, %v2200
      %2202 = vmatmul.bf16.gmra.mxu0 %v2124
      %v2203 = vpop.f32.mrf.mxu0
      %v2204 = vadd.f32 0.0, %v2203
      %v2205 = vpop.f32.mrf.mxu0
      %v2206 = vadd.f32 0.0, %v2205
      %2207 = vmatmul.bf16.gmra.mxu0 %v2127
      %v2208 = vpop.f32.mrf.mxu0
      %v2209 = vadd.f32 0.0, %v2208
      %v2210 = vpop.f32.mrf.mxu0
      %v2211 = vadd.f32 0.0, %v2210
      %2212 = vmatmul.bf16.gmra.mxu0 %v2130
      %v2213 = vpop.f32.mrf.mxu0
      %v2214 = vadd.f32 0.0, %v2213
      %v2215 = vpop.f32.mrf.mxu0
      %v2216 = vadd.f32 0.0, %v2215
      %2217 = vmatmul.bf16.gmra.mxu0 %v2133
      %v2218 = vpop.f32.mrf.mxu0
      %v2219 = vadd.f32 0.0, %v2218
      %v2220 = vpop.f32.mrf.mxu0
      %v2221 = vadd.f32 0.0, %v2220
      %2222 = vmatmul.bf16.gmra.mxu0 %v2136
      %v2223 = vpop.f32.mrf.mxu0
      %v2224 = vadd.f32 0.0, %v2223
      %v2225 = vpop.f32.mrf.mxu0
      %v2226 = vadd.f32 0.0, %v2225
      %2227 = vmatmul.bf16.gmra.mxu0 %v2139
      %v2228 = vpop.f32.mrf.mxu0
      %v2229 = vadd.f32 0.0, %v2228
      %v2230 = vpop.f32.mrf.mxu0
      %v2231 = vadd.f32 0.0, %v2230
      %2232 = vdwg.mxu0
      %v2234 = vsel %vm334, %v2070, 0
      %v2237 = vsel %vm924, %v2087, 0
      %2239 = vmatpush.bf16.msra.mxu0 0
      %2240 = vmatpush.bf16.msra.mxu0 0
      %2241 = vmatpush.bf16.msra.mxu0 0
      %2242 = vmatpush.bf16.msra.mxu0 0
      %2243 = vmatpush.bf16.msra.mxu0 0
      %2244 = vmatpush.bf16.msra.mxu0 0
      %2245 = vmatpush.bf16.msra.mxu0 0
      %2246 = vmatpush.bf16.msra.mxu0 %v2237
      %2247 = vmatmul.bf16.gmra.mxu0 %v2234
      %v2248 = vpop.f32.mrf.mxu0
      %v2249 = vadd.f32 %v2154, %v2248
      %v2250 = vpop.f32.mrf.mxu0
      %v2251 = vadd.f32 %v2156, %v2250
      %2252 = vmatmul.bf16.gmra.mxu0 %v2094
      %v2253 = vpop.f32.mrf.mxu0
      %v2254 = vadd.f32 %v2159, %v2253
      %v2255 = vpop.f32.mrf.mxu0
      %v2256 = vadd.f32 %v2161, %v2255
      %2257 = vmatmul.bf16.gmra.mxu0 %v2097
      %v2258 = vpop.f32.mrf.mxu0
      %v2259 = vadd.f32 %v2164, %v2258
      %v2260 = vpop.f32.mrf.mxu0
      %v2261 = vadd.f32 %v2166, %v2260
      %2262 = vmatmul.bf16.gmra.mxu0 %v2100
      %v2263 = vpop.f32.mrf.mxu0
      %v2264 = vadd.f32 %v2169, %v2263
      %v2265 = vpop.f32.mrf.mxu0
      %v2266 = vadd.f32 %v2171, %v2265
      %2267 = vmatmul.bf16.gmra.mxu0 %v2103
      %v2268 = vpop.f32.mrf.mxu0
      %v2269 = vadd.f32 %v2174, %v2268
      %v2270 = vpop.f32.mrf.mxu0
      %v2271 = vadd.f32 %v2176, %v2270
      %2272 = vmatmul.bf16.gmra.mxu0 %v2106
      %v2273 = vpop.f32.mrf.mxu0
      %v2274 = vadd.f32 %v2179, %v2273
      %v2275 = vpop.f32.mrf.mxu0
      %v2276 = vadd.f32 %v2181, %v2275
      %2277 = vmatmul.bf16.gmra.mxu0 %v2109
      %v2278 = vpop.f32.mrf.mxu0
      %v2279 = vadd.f32 %v2184, %v2278
      %v2280 = vpop.f32.mrf.mxu0
      %v2281 = vadd.f32 %v2186, %v2280
      %2282 = vmatmul.bf16.gmra.mxu0 %v2112
      %v2283 = vpop.f32.mrf.mxu0
      %v2284 = vadd.f32 %v2189, %v2283
      %v2285 = vpop.f32.mrf.mxu0
      %v2286 = vadd.f32 %v2191, %v2285
      %2287 = vmatmul.bf16.gmra.mxu0 %v2115
      %v2288 = vpop.f32.mrf.mxu0
      %v2289 = vadd.f32 %v2194, %v2288
      %v2290 = vpop.f32.mrf.mxu0
      %v2291 = vadd.f32 %v2196, %v2290
      %2292 = vmatmul.bf16.gmra.mxu0 %v2118
      %v2293 = vpop.f32.mrf.mxu0
      %v2294 = vadd.f32 %v2199, %v2293
      %v2295 = vpop.f32.mrf.mxu0
      %v2296 = vadd.f32 %v2201, %v2295
      %2297 = vmatmul.bf16.gmra.mxu0 %v2121
      %v2298 = vpop.f32.mrf.mxu0
      %v2299 = vadd.f32 %v2204, %v2298
      %v2300 = vpop.f32.mrf.mxu0
      %v2301 = vadd.f32 %v2206, %v2300
      %2302 = vmatmul.bf16.gmra.mxu0 %v2124
      %v2303 = vpop.f32.mrf.mxu0
      %v2304 = vadd.f32 %v2209, %v2303
      %v2305 = vpop.f32.mrf.mxu0
      %v2306 = vadd.f32 %v2211, %v2305
      %2307 = vmatmul.bf16.gmra.mxu0 %v2127
      %v2308 = vpop.f32.mrf.mxu0
      %v2309 = vadd.f32 %v2214, %v2308
      %v2310 = vpop.f32.mrf.mxu0
      %v2311 = vadd.f32 %v2216, %v2310
      %2312 = vmatmul.bf16.gmra.mxu0 %v2130
      %v2313 = vpop.f32.mrf.mxu0
      %v2314 = vadd.f32 %v2219, %v2313
      %v2315 = vpop.f32.mrf.mxu0
      %v2316 = vadd.f32 %v2221, %v2315
      %2317 = vmatmul.bf16.gmra.mxu0 %v2133
      %v2318 = vpop.f32.mrf.mxu0
      %v2319 = vadd.f32 %v2224, %v2318
      %v2320 = vpop.f32.mrf.mxu0
      %v2321 = vadd.f32 %v2226, %v2320
      %2322 = vmatmul.bf16.gmra.mxu0 %v2136
      %v2323 = vpop.f32.mrf.mxu0
      %v2324 = vadd.f32 %v2229, %v2323
      %v2325 = vpop.f32.mrf.mxu0
      %v2326 = vadd.f32 %v2231, %v2325
      %2327 = vdwg.mxu0
      %v2328 = vld [vmem:[#allocation2 + $0x29] sm:$0xff]
      %v2329 = vld [vmem:[#allocation2 + $0x31] sm:$0xff]
      %v2330 = vld [vmem:[#allocation2 + $0x39] sm:$0xff]
      %v2331 = vld [vmem:[#allocation2 + $0x41] sm:$0xff]
      %v2332 = vld [vmem:[#allocation2 + $0x49] sm:$0xff]
      %v2333 = vld [vmem:[#allocation2 + $0x51] sm:$0xff]
      %v2334 = vld [vmem:[#allocation2 + $0x59] sm:$0xff]
      %v2335 = vld [vmem:[#allocation2 + $0x61] sm:$0xff]
      %v2336 = vld [vmem:[#allocation2 + $0x69] sm:$0xff]
      %v2337 = vld [vmem:[#allocation2 + $0x71] sm:$0xff]
      %v2338 = vld [vmem:[#allocation2 + $0x79] sm:$0xff]
      %v2339 = vld [vmem:[#allocation2 + $0x81] sm:$0xff]
      %v2340 = vld [vmem:[#allocation2 + $0x89] sm:$0xff]
      %v2341 = vld [vmem:[#allocation2 + $0x91] sm:$0xff]
      %v2342 = vld [vmem:[#allocation2 + $0x99] sm:$0xff]
      %v2343 = vld [vmem:[#allocation2 + $0xa1] sm:$0xff]
      %v2344 = vld [vmem:[#allocation2 + $0xa9] sm:$0xff]
      %v2345 = vld [vmem:[#allocation2 + $0xb1] sm:$0xff]
      %v2346 = vld [vmem:[#allocation2 + $0xb9] sm:$0xff]
      %v2347 = vld [vmem:[#allocation2 + $0xc1] sm:$0xff]
      %v2348 = vld [vmem:[#allocation2 + $0xc9] sm:$0xff]
      %v2349 = vld [vmem:[#allocation2 + $0xd1] sm:$0xff]
      %v2350 = vld [vmem:[#allocation2 + $0xd9] sm:$0xff]
      %v2351 = vld [vmem:[#allocation2 + $0xe1] sm:$0xff]
      %v2352 = vld [vmem:[#allocation2 + $0xe9] sm:$0xff]
      %v2353 = vld [vmem:[#allocation2 + $0xf1] sm:$0xff]
      %v2354 = vld [vmem:[#allocation2 + $0xf9] sm:$0xff]
      %v2355 = vld [vmem:[#allocation2 + $0x101] sm:$0xff]
      %v2356 = vld [vmem:[#allocation2 + $0x109] sm:$0xff]
      %v2357 = vld [vmem:[#allocation2 + $0x111] sm:$0xff]
      %v2358 = vld [vmem:[#allocation2 + $0x119] sm:$0xff]
      %v2359 = vld [vmem:[#allocation2 + $0x121] sm:$0xff]
      %v2360 = vpack.c.bf16 %v2329, %v2328
      %v2361 = vpack.c.bf16 %v2331, %v2330
      %v2362 = vpack.c.bf16 %v2333, %v2332
      %v2363 = vpack.c.bf16 %v2335, %v2334
      %v2364 = vpack.c.bf16 %v2337, %v2336
      %v2365 = vpack.c.bf16 %v2339, %v2338
      %v2366 = vpack.c.bf16 %v2341, %v2340
      %v2367 = vpack.c.bf16 %v2343, %v2342
      %v2368 = vpack.c.bf16 %v2345, %v2344
      %v2369 = vpack.c.bf16 %v2347, %v2346
      %v2370 = vpack.c.bf16 %v2349, %v2348
      %v2371 = vpack.c.bf16 %v2351, %v2350
      %v2372 = vpack.c.bf16 %v2353, %v2352
      %v2373 = vpack.c.bf16 %v2355, %v2354
      %v2374 = vpack.c.bf16 %v2357, %v2356
      %v2375 = vpack.c.bf16 %v2359, %v2358
      %s2376 = scalar_lea.vmem %s3, 16
      %v2377 = vld [vmem:[%s2376] sm:$0x3]
      %v2379 = vsel %vm334, %v2360, 0
      %v2382 = vsel %vm334, %v2361, 0
      %v2385 = vsel %vm334, %v2362, 0
      %v2388 = vsel %vm334, %v2363, 0
      %v2391 = vsel %vm334, %v2364, 0
      %v2394 = vsel %vm334, %v2365, 0
      %v2397 = vsel %vm334, %v2366, 0
      %v2400 = vsel %vm334, %v2367, 0
      %v2403 = vsel %vm334, %v2368, 0
      %v2406 = vsel %vm334, %v2369, 0
      %v2409 = vsel %vm334, %v2370, 0
      %v2412 = vsel %vm334, %v2371, 0
      %v2415 = vsel %vm334, %v2372, 0
      %v2418 = vsel %vm334, %v2373, 0
      %v2421 = vsel %vm334, %v2374, 0
      %v2424 = vsel %vm334, %v2375, 0
      %v2427 = vsel %vm924, %v2377, 0
      %2429 = vmatpush.bf16.msra.mxu0 0
      %2430 = vmatpush.bf16.msra.mxu0 0
      %2431 = vmatpush.bf16.msra.mxu0 0
      %2432 = vmatpush.bf16.msra.mxu0 0
      %2433 = vmatpush.bf16.msra.mxu0 0
      %2434 = vmatpush.bf16.msra.mxu0 0
      %2435 = vmatpush.bf16.msra.mxu0 0
      %2436 = vmatpush.bf16.msra.mxu0 %v2427
      %2437 = vmatmul.bf16.gmra.mxu0 %v2379
      %v2438 = vpop.f32.mrf.mxu0
      %v2439 = vadd.f32 0.0, %v2438
      %v2440 = vpop.f32.mrf.mxu0
      %v2441 = vadd.f32 0.0, %v2440
      %2442 = vmatmul.bf16.gmra.mxu0 %v2382
      %v2443 = vpop.f32.mrf.mxu0
      %v2444 = vadd.f32 0.0, %v2443
      %v2445 = vpop.f32.mrf.mxu0
      %v2446 = vadd.f32 0.0, %v2445
      %2447 = vmatmul.bf16.gmra.mxu0 %v2385
      %v2448 = vpop.f32.mrf.mxu0
      %v2449 = vadd.f32 0.0, %v2448
      %v2450 = vpop.f32.mrf.mxu0
      %v2451 = vadd.f32 0.0, %v2450
      %2452 = vmatmul.bf16.gmra.mxu0 %v2388
      %v2453 = vpop.f32.mrf.mxu0
      %v2454 = vadd.f32 0.0, %v2453
      %v2455 = vpop.f32.mrf.mxu0
      %v2456 = vadd.f32 0.0, %v2455
      %2457 = vmatmul.bf16.gmra.mxu0 %v2391
      %v2458 = vpop.f32.mrf.mxu0
      %v2459 = vadd.f32 0.0, %v2458
      %v2460 = vpop.f32.mrf.mxu0
      %v2461 = vadd.f32 0.0, %v2460
      %2462 = vmatmul.bf16.gmra.mxu0 %v2394
      %v2463 = vpop.f32.mrf.mxu0
      %v2464 = vadd.f32 0.0, %v2463
      %v2465 = vpop.f32.mrf.mxu0
      %v2466 = vadd.f32 0.0, %v2465
      %2467 = vmatmul.bf16.gmra.mxu0 %v2397
      %v2468 = vpop.f32.mrf.mxu0
      %v2469 = vadd.f32 0.0, %v2468
      %v2470 = vpop.f32.mrf.mxu0
      %v2471 = vadd.f32 0.0, %v2470
      %2472 = vmatmul.bf16.gmra.mxu0 %v2400
      %v2473 = vpop.f32.mrf.mxu0
      %v2474 = vadd.f32 0.0, %v2473
      %v2475 = vpop.f32.mrf.mxu0
      %v2476 = vadd.f32 0.0, %v2475
      %2477 = vmatmul.bf16.gmra.mxu0 %v2403
      %v2478 = vpop.f32.mrf.mxu0
      %v2479 = vadd.f32 0.0, %v2478
      %v2480 = vpop.f32.mrf.mxu0
      %v2481 = vadd.f32 0.0, %v2480
      %2482 = vmatmul.bf16.gmra.mxu0 %v2406
      %v2483 = vpop.f32.mrf.mxu0
      %v2484 = vadd.f32 0.0, %v2483
      %v2485 = vpop.f32.mrf.mxu0
      %v2486 = vadd.f32 0.0, %v2485
      %2487 = vmatmul.bf16.gmra.mxu0 %v2409
      %v2488 = vpop.f32.mrf.mxu0
      %v2489 = vadd.f32 0.0, %v2488
      %v2490 = vpop.f32.mrf.mxu0
      %v2491 = vadd.f32 0.0, %v2490
      %2492 = vmatmul.bf16.gmra.mxu0 %v2412
      %v2493 = vpop.f32.mrf.mxu0
      %v2494 = vadd.f32 0.0, %v2493
      %v2495 = vpop.f32.mrf.mxu0
      %v2496 = vadd.f32 0.0, %v2495
      %2497 = vmatmul.bf16.gmra.mxu0 %v2415
      %v2498 = vpop.f32.mrf.mxu0
      %v2499 = vadd.f32 0.0, %v2498
      %v2500 = vpop.f32.mrf.mxu0
      %v2501 = vadd.f32 0.0, %v2500
      %2502 = vmatmul.bf16.gmra.mxu0 %v2418
      %v2503 = vpop.f32.mrf.mxu0
      %v2504 = vadd.f32 0.0, %v2503
      %v2505 = vpop.f32.mrf.mxu0
      %v2506 = vadd.f32 0.0, %v2505
      %2507 = vmatmul.bf16.gmra.mxu0 %v2421
      %v2508 = vpop.f32.mrf.mxu0
      %v2509 = vadd.f32 0.0, %v2508
      %v2510 = vpop.f32.mrf.mxu0
      %v2511 = vadd.f32 0.0, %v2510
      %2512 = vmatmul.bf16.gmra.mxu0 %v2424
      %v2513 = vpop.f32.mrf.mxu0
      %v2514 = vadd.f32 0.0, %v2513
      %v2515 = vpop.f32.mrf.mxu0
      %v2516 = vadd.f32 0.0, %v2515
      %2517 = vdwg.mxu0
      %v2518 = vadd.f32 %v2249, %v2439
      %v2519 = vadd.f32 %v2251, %v2441
      %v2520 = vadd.f32 %v2254, %v2444
      %v2521 = vadd.f32 %v2256, %v2446
      %v2522 = vadd.f32 %v2259, %v2449
      %v2523 = vadd.f32 %v2261, %v2451
      %v2524 = vadd.f32 %v2264, %v2454
      %v2525 = vadd.f32 %v2266, %v2456
      %v2526 = vadd.f32 %v2269, %v2459
      %v2527 = vadd.f32 %v2271, %v2461
      %v2528 = vadd.f32 %v2274, %v2464
      %v2529 = vadd.f32 %v2276, %v2466
      %v2530 = vadd.f32 %v2279, %v2469
      %v2531 = vadd.f32 %v2281, %v2471
      %v2532 = vadd.f32 %v2284, %v2474
      %v2533 = vadd.f32 %v2286, %v2476
      %v2534 = vadd.f32 %v2289, %v2479
      %v2535 = vadd.f32 %v2291, %v2481
      %v2536 = vadd.f32 %v2294, %v2484
      %v2537 = vadd.f32 %v2296, %v2486
      %v2538 = vadd.f32 %v2299, %v2489
      %v2539 = vadd.f32 %v2301, %v2491
      %v2540 = vadd.f32 %v2304, %v2494
      %v2541 = vadd.f32 %v2306, %v2496
      %v2542 = vadd.f32 %v2309, %v2499
      %v2543 = vadd.f32 %v2311, %v2501
      %v2544 = vadd.f32 %v2314, %v2504
      %v2545 = vadd.f32 %v2316, %v2506
      %v2546 = vadd.f32 %v2319, %v2509
      %v2547 = vadd.f32 %v2321, %v2511
      %v2548 = vadd.f32 %v2324, %v2514
      %v2549 = vadd.f32 %v2326, %v2516
      %vm2550 = vcmp.le.s32.totalorder %v790, 14
      %vm2551 = vcmp.le.s32.totalorder %v791, 14
      %vm2552 = vcmp.le.s32.totalorder %v792, 14
      %vm2553 = vcmp.le.s32.totalorder %v793, 14
      %vm2554 = vcmp.le.s32.totalorder %v794, 14
      %vm2555 = vcmp.le.s32.totalorder %v795, 14
      %vm2556 = vcmp.le.s32.totalorder %v796, 14
      %vm2557 = vcmp.le.s32.totalorder %v797, 14
      %vm2558 = vcmp.le.s32.totalorder %v798, 14
      %vm2559 = vcmp.le.s32.totalorder %v799, 14
      %vm2560 = vcmp.le.s32.totalorder %v800, 14
      %vm2561 = vcmp.le.s32.totalorder %v801, 14
      %vm2562 = vcmp.le.s32.totalorder %v802, 14
      %vm2563 = vcmp.le.s32.totalorder %v803, 14
      %vm2564 = vcmp.le.s32.totalorder %v804, 14
      %vm2565 = vcmp.le.s32.totalorder %v805, 14
      %vm2566 = vcmp.le.s32.totalorder %v806, 14
      %vm2567 = vcmp.le.s32.totalorder %v807, 14
      %vm2568 = vcmp.le.s32.totalorder %v808, 14
      %vm2569 = vcmp.le.s32.totalorder %v809, 14
      %vm2570 = vcmp.le.s32.totalorder %v810, 14
      %vm2571 = vcmp.le.s32.totalorder %v811, 14
      %vm2572 = vcmp.le.s32.totalorder %v812, 14
      %vm2573 = vcmp.le.s32.totalorder %v813, 14
      %vm2574 = vcmp.le.s32.totalorder %v814, 14
      %vm2575 = vcmp.le.s32.totalorder %v815, 14
      %vm2576 = vcmp.le.s32.totalorder %v816, 14
      %vm2577 = vcmp.le.s32.totalorder %v817, 14
      %vm2578 = vcmp.le.s32.totalorder %v818, 14
      %vm2579 = vcmp.le.s32.totalorder %v819, 14
      %vm2580 = vcmp.le.s32.totalorder %v820, 14
      %vm2581 = vcmp.le.s32.totalorder %v821, 14
      %v2582 = vsel %vm2550, 1, 0
      %v2583 = vsel %vm2551, 1, 0
      %v2584 = vsel %vm2552, 1, 0
      %v2585 = vsel %vm2553, 1, 0
      %v2586 = vsel %vm2554, 1, 0
      %v2587 = vsel %vm2555, 1, 0
      %v2588 = vsel %vm2556, 1, 0
      %v2589 = vsel %vm2557, 1, 0
      %v2590 = vsel %vm2558, 1, 0
      %v2591 = vsel %vm2559, 1, 0
      %v2592 = vsel %vm2560, 1, 0
      %v2593 = vsel %vm2561, 1, 0
      %v2594 = vsel %vm2562, 1, 0
      %v2595 = vsel %vm2563, 1, 0
      %v2596 = vsel %vm2564, 1, 0
      %v2597 = vsel %vm2565, 1, 0
      %v2598 = vsel %vm2566, 1, 0
      %v2599 = vsel %vm2567, 1, 0
      %v2600 = vsel %vm2568, 1, 0
      %v2601 = vsel %vm2569, 1, 0
      %v2602 = vsel %vm2570, 1, 0
      %v2603 = vsel %vm2571, 1, 0
      %v2604 = vsel %vm2572, 1, 0
      %v2605 = vsel %vm2573, 1, 0
      %v2606 = vsel %vm2574, 1, 0
      %v2607 = vsel %vm2575, 1, 0
      %v2608 = vsel %vm2576, 1, 0
      %v2609 = vsel %vm2577, 1, 0
      %v2610 = vsel %vm2578, 1, 0
      %v2611 = vsel %vm2579, 1, 0
      %v2612 = vsel %vm2580, 1, 0
      %v2613 = vsel %vm2581, 1, 0
      %vm2614 = vcmp.eq.s32.totalorder %v2582, 1
      %vm2615 = vcmp.eq.s32.totalorder %v2583, 1
      %vm2616 = vcmp.eq.s32.totalorder %v2584, 1
      %vm2617 = vcmp.eq.s32.totalorder %v2585, 1
      %vm2618 = vcmp.eq.s32.totalorder %v2586, 1
      %vm2619 = vcmp.eq.s32.totalorder %v2587, 1
      %vm2620 = vcmp.eq.s32.totalorder %v2588, 1
      %vm2621 = vcmp.eq.s32.totalorder %v2589, 1
      %vm2622 = vcmp.eq.s32.totalorder %v2590, 1
      %vm2623 = vcmp.eq.s32.totalorder %v2591, 1
      %vm2624 = vcmp.eq.s32.totalorder %v2592, 1
      %vm2625 = vcmp.eq.s32.totalorder %v2593, 1
      %vm2626 = vcmp.eq.s32.totalorder %v2594, 1
      %vm2627 = vcmp.eq.s32.totalorder %v2595, 1
      %vm2628 = vcmp.eq.s32.totalorder %v2596, 1
      %vm2629 = vcmp.eq.s32.totalorder %v2597, 1
      %vm2630 = vcmp.eq.s32.totalorder %v2598, 1
      %vm2631 = vcmp.eq.s32.totalorder %v2599, 1
      %vm2632 = vcmp.eq.s32.totalorder %v2600, 1
      %vm2633 = vcmp.eq.s32.totalorder %v2601, 1
      %vm2634 = vcmp.eq.s32.totalorder %v2602, 1
      %vm2635 = vcmp.eq.s32.totalorder %v2603, 1
      %vm2636 = vcmp.eq.s32.totalorder %v2604, 1
      %vm2637 = vcmp.eq.s32.totalorder %v2605, 1
      %vm2638 = vcmp.eq.s32.totalorder %v2606, 1
      %vm2639 = vcmp.eq.s32.totalorder %v2607, 1
      %vm2640 = vcmp.eq.s32.totalorder %v2608, 1
      %vm2641 = vcmp.eq.s32.totalorder %v2609, 1
      %vm2642 = vcmp.eq.s32.totalorder %v2610, 1
      %vm2643 = vcmp.eq.s32.totalorder %v2611, 1
      %vm2644 = vcmp.eq.s32.totalorder %v2612, 1
      %vm2645 = vcmp.eq.s32.totalorder %v2613, 1
      %v2646 = vsel %vm2614, %v2518, 0.0
      %v2647 = vsel %vm2615, %v2519, 0.0
      %v2648 = vsel %vm2616, %v2520, 0.0
      %v2649 = vsel %vm2617, %v2521, 0.0
      %v2650 = vsel %vm2618, %v2522, 0.0
      %v2651 = vsel %vm2619, %v2523, 0.0
      %v2652 = vsel %vm2620, %v2524, 0.0
      %v2653 = vsel %vm2621, %v2525, 0.0
      %v2654 = vsel %vm2622, %v2526, 0.0
      %v2655 = vsel %vm2623, %v2527, 0.0
      %v2656 = vsel %vm2624, %v2528, 0.0
      %v2657 = vsel %vm2625, %v2529, 0.0
      %v2658 = vsel %vm2626, %v2530, 0.0
      %v2659 = vsel %vm2627, %v2531, 0.0
      %v2660 = vsel %vm2628, %v2532, 0.0
      %v2661 = vsel %vm2629, %v2533, 0.0
      %v2662 = vsel %vm2630, %v2534, 0.0
      %v2663 = vsel %vm2631, %v2535, 0.0
      %v2664 = vsel %vm2632, %v2536, 0.0
      %v2665 = vsel %vm2633, %v2537, 0.0
      %v2666 = vsel %vm2634, %v2538, 0.0
      %v2667 = vsel %vm2635, %v2539, 0.0
      %v2668 = vsel %vm2636, %v2540, 0.0
      %v2669 = vsel %vm2637, %v2541, 0.0
      %v2670 = vsel %vm2638, %v2542, 0.0
      %v2671 = vsel %vm2639, %v2543, 0.0
      %v2672 = vsel %vm2640, %v2544, 0.0
      %v2673 = vsel %vm2641, %v2545, 0.0
      %v2674 = vsel %vm2642, %v2546, 0.0
      %v2675 = vsel %vm2643, %v2547, 0.0
      %v2676 = vsel %vm2644, %v2548, 0.0
      %v2677 = vsel %vm2645, %v2549, 0.0
      %v2678 = vadd.f32 %v2006, %v2646
      %v2679 = vadd.f32 %v2007, %v2647
      %v2680 = vadd.f32 %v2008, %v2648
      %v2681 = vadd.f32 %v2009, %v2649
      %v2682 = vadd.f32 %v2010, %v2650
      %v2683 = vadd.f32 %v2011, %v2651
      %v2684 = vadd.f32 %v2012, %v2652
      %v2685 = vadd.f32 %v2013, %v2653
      %v2686 = vadd.f32 %v2014, %v2654
      %v2687 = vadd.f32 %v2015, %v2655
      %v2688 = vadd.f32 %v2016, %v2656
      %v2689 = vadd.f32 %v2017, %v2657
      %v2690 = vadd.f32 %v2018, %v2658
      %v2691 = vadd.f32 %v2019, %v2659
      %v2692 = vadd.f32 %v2020, %v2660
      %v2693 = vadd.f32 %v2021, %v2661
      %v2694 = vadd.f32 %v2022, %v2662
      %v2695 = vadd.f32 %v2023, %v2663
      %v2696 = vadd.f32 %v2024, %v2664
      %v2697 = vadd.f32 %v2025, %v2665
      %v2698 = vadd.f32 %v2026, %v2666
      %v2699 = vadd.f32 %v2027, %v2667
      %v2700 = vadd.f32 %v2028, %v2668
      %v2701 = vadd.f32 %v2029, %v2669
      %v2702 = vadd.f32 %v2030, %v2670
      %v2703 = vadd.f32 %v2031, %v2671
      %v2704 = vadd.f32 %v2032, %v2672
      %v2705 = vadd.f32 %v2033, %v2673
      %v2706 = vadd.f32 %v2034, %v2674
      %v2707 = vadd.f32 %v2035, %v2675
      %v2708 = vadd.f32 %v2036, %v2676
      %v2709 = vadd.f32 %v2037, %v2677
      %v2710 = vpack.c.bf16 %v2678, %v2678
      %v2711 = vpack.c.bf16 %v2679, %v2679
      %v2712 = vpack.c.bf16 %v2680, %v2680
      %v2713 = vpack.c.bf16 %v2681, %v2681
      %v2714 = vpack.c.bf16 %v2682, %v2682
      %v2715 = vpack.c.bf16 %v2683, %v2683
      %v2716 = vpack.c.bf16 %v2684, %v2684
      %v2717 = vpack.c.bf16 %v2685, %v2685
      %v2718 = vpack.c.bf16 %v2686, %v2686
      %v2719 = vpack.c.bf16 %v2687, %v2687
      %v2720 = vpack.c.bf16 %v2688, %v2688
      %v2721 = vpack.c.bf16 %v2689, %v2689
      %v2722 = vpack.c.bf16 %v2690, %v2690
      %v2723 = vpack.c.bf16 %v2691, %v2691
      %v2724 = vpack.c.bf16 %v2692, %v2692
      %v2725 = vpack.c.bf16 %v2693, %v2693
      %v2726 = vpack.c.bf16 %v2694, %v2694
      %v2727 = vpack.c.bf16 %v2695, %v2695
      %v2728 = vpack.c.bf16 %v2696, %v2696
      %v2729 = vpack.c.bf16 %v2697, %v2697
      %v2730 = vpack.c.bf16 %v2698, %v2698
      %v2731 = vpack.c.bf16 %v2699, %v2699
      %v2732 = vpack.c.bf16 %v2700, %v2700
      %v2733 = vpack.c.bf16 %v2701, %v2701
      %v2734 = vpack.c.bf16 %v2702, %v2702
      %v2735 = vpack.c.bf16 %v2703, %v2703
      %v2736 = vpack.c.bf16 %v2704, %v2704
      %v2737 = vpack.c.bf16 %v2705, %v2705
      %v2738 = vpack.c.bf16 %v2706, %v2706
      %v2739 = vpack.c.bf16 %v2707, %v2707
      %v2740 = vpack.c.bf16 %v2708, %v2708
      %v2741 = vpack.c.bf16 %v2709, %v2709
      %2742 = vst [vmem:[%s262] sm:$0xf] %v2710
      %2743 = vst [vmem:[%s262 + $0x4] sm:$0xf] %v2711
      %2744 = vst [vmem:[%s262 + $0x8] sm:$0xf] %v2712
      %2745 = vst [vmem:[%s262 + $0xc] sm:$0xf] %v2713
      %2746 = vst [vmem:[%s262 + $0x10] sm:$0xf] %v2714
      %2747 = vst [vmem:[%s262 + $0x14] sm:$0xf] %v2715
      %2748 = vst [vmem:[%s262 + $0x18] sm:$0xf] %v2716
      %2749 = vst [vmem:[%s262 + $0x1c] sm:$0xf] %v2717
      %2750 = vst [vmem:[%s262 + $0x20] sm:$0xf] %v2718
      %2751 = vst [vmem:[%s262 + $0x24] sm:$0xf] %v2719
      %2752 = vst [vmem:[%s262 + $0x28] sm:$0xf] %v2720
      %2753 = vst [vmem:[%s262 + $0x2c] sm:$0xf] %v2721
      %2754 = vst [vmem:[%s262 + $0x30] sm:$0xf] %v2722
      %2755 = vst [vmem:[%s262 + $0x34] sm:$0xf] %v2723
      %2756 = vst [vmem:[%s262 + $0x38] sm:$0xf] %v2724
      %2757 = vst [vmem:[%s262 + $0x3c] sm:$0xf] %v2725
      %2758 = vst [vmem:[%s262 + $0x40] sm:$0xf] %v2726
      %2759 = vst [vmem:[%s262 + $0x44] sm:$0xf] %v2727
      %2760 = vst [vmem:[%s262 + $0x48] sm:$0xf] %v2728
      %2761 = vst [vmem:[%s262 + $0x4c] sm:$0xf] %v2729
      %2762 = vst [vmem:[%s262 + $0x50] sm:$0xf] %v2730
      %2763 = vst [vmem:[%s262 + $0x54] sm:$0xf] %v2731
      %2764 = vst [vmem:[%s262 + $0x58] sm:$0xf] %v2732
      %2765 = vst [vmem:[%s262 + $0x5c] sm:$0xf] %v2733
      %2766 = vst [vmem:[%s262 + $0x60] sm:$0xf] %v2734
      %2767 = vst [vmem:[%s262 + $0x64] sm:$0xf] %v2735
      %2768 = vst [vmem:[%s262 + $0x68] sm:$0xf] %v2736
      %2769 = vst [vmem:[%s262 + $0x6c] sm:$0xf] %v2737
      %2770 = vst [vmem:[%s262 + $0x70] sm:$0xf] %v2738
      %2771 = vst [vmem:[%s262 + $0x74] sm:$0xf] %v2739
      %2772 = vst [vmem:[%s262 + $0x78] sm:$0xf] %v2740
      %2773 = vst [vmem:[%s262 + $0x7c] sm:$0xf] %v2741
      %v2774 = vadd.f32 %v2678, %v2679
      %v2775 = vadd.f32 %v2774, %v2680
      %v2776 = vadd.f32 %v2775, %v2681
      %v2777 = vadd.f32 %v2776, %v2682
      %v2778 = vadd.f32 %v2777, %v2683
      %v2779 = vadd.f32 %v2778, %v2684
      %v2780 = vadd.f32 %v2779, %v2685
      %v2781 = vadd.f32 %v2780, %v2686
      %v2782 = vadd.f32 %v2781, %v2687
      %v2783 = vadd.f32 %v2782, %v2688
      %v2784 = vadd.f32 %v2783, %v2689
      %v2785 = vadd.f32 %v2784, %v2690
      %v2786 = vadd.f32 %v2785, %v2691
      %v2787 = vadd.f32 %v2786, %v2692
      %v2788 = vadd.f32 %v2787, %v2693
      %v2789 = vadd.f32 %v2788, %v2694
      %v2790 = vadd.f32 %v2789, %v2695
      %v2791 = vadd.f32 %v2790, %v2696
      %v2792 = vadd.f32 %v2791, %v2697
      %v2793 = vadd.f32 %v2792, %v2698
      %v2794 = vadd.f32 %v2793, %v2699
      %v2795 = vadd.f32 %v2794, %v2700
      %v2796 = vadd.f32 %v2795, %v2701
      %v2797 = vadd.f32 %v2796, %v2702
      %v2798 = vadd.f32 %v2797, %v2703
      %v2799 = vadd.f32 %v2798, %v2704
      %v2800 = vadd.f32 %v2799, %v2705
      %v2801 = vadd.f32 %v2800, %v2706
      %v2802 = vadd.f32 %v2801, %v2707
      %v2803 = vadd.f32 %v2802, %v2708
      %v2804 = vadd.f32 %v2803, %v2709
      %v2805 = vrot.slane %v2804, 4
      %v2806 = vadd.f32 %v2804, %v2805
      %v2807 = vrot.slane %v2806, 2
      %v2808 = vadd.f32 %v2806, %v2807
      %v2809 = vrot.slane %v2808, 1
      %v2810 = vadd.f32 %v2808, %v2809
      %2811 = vst [vmem:[%s265] sm:$0x1] %v2810
      %v2812 = vmul.f32 %v2678, %v2678
      %v2813 = vmul.f32 %v2679, %v2679
      %v2814 = vmul.f32 %v2680, %v2680
      %v2815 = vmul.f32 %v2681, %v2681
      %v2816 = vmul.f32 %v2682, %v2682
      %v2817 = vmul.f32 %v2683, %v2683
      %v2818 = vmul.f32 %v2684, %v2684
      %v2819 = vmul.f32 %v2685, %v2685
      %v2820 = vmul.f32 %v2686, %v2686
      %v2821 = vmul.f32 %v2687, %v2687
      %v2822 = vmul.f32 %v2688, %v2688
      %v2823 = vmul.f32 %v2689, %v2689
      %v2824 = vmul.f32 %v2690, %v2690
      %v2825 = vmul.f32 %v2691, %v2691
      %v2826 = vmul.f32 %v2692, %v2692
      %v2827 = vmul.f32 %v2693, %v2693
      %v2828 = vmul.f32 %v2694, %v2694
      %v2829 = vmul.f32 %v2695, %v2695
      %v2830 = vmul.f32 %v2696, %v2696
      %v2831 = vmul.f32 %v2697, %v2697
      %v2832 = vmul.f32 %v2698, %v2698
      %v2833 = vmul.f32 %v2699, %v2699
      %v2834 = vmul.f32 %v2700, %v2700
      %v2835 = vmul.f32 %v2701, %v2701
      %v2836 = vmul.f32 %v2702, %v2702
      %v2837 = vmul.f32 %v2703, %v2703
      %v2838 = vmul.f32 %v2704, %v2704
      %v2839 = vmul.f32 %v2705, %v2705
      %v2840 = vmul.f32 %v2706, %v2706
      %v2841 = vmul.f32 %v2707, %v2707
      %v2842 = vmul.f32 %v2708, %v2708
      %v2843 = vmul.f32 %v2709, %v2709
      %v2844 = vadd.f32 %v2812, %v2813
      %v2845 = vadd.f32 %v2844, %v2814
      %v2846 = vadd.f32 %v2845, %v2815
      %v2847 = vadd.f32 %v2846, %v2816
      %v2848 = vadd.f32 %v2847, %v2817
      %v2849 = vadd.f32 %v2848, %v2818
      %v2850 = vadd.f32 %v2849, %v2819
      %v2851 = vadd.f32 %v2850, %v2820
      %v2852 = vadd.f32 %v2851, %v2821
      %v2853 = vadd.f32 %v2852, %v2822
      %v2854 = vadd.f32 %v2853, %v2823
      %v2855 = vadd.f32 %v2854, %v2824
      %v2856 = vadd.f32 %v2855, %v2825
      %v2857 = vadd.f32 %v2856, %v2826
      %v2858 = vadd.f32 %v2857, %v2827
      %v2859 = vadd.f32 %v2858, %v2828
      %v2860 = vadd.f32 %v2859, %v2829
      %v2861 = vadd.f32 %v2860, %v2830
      %v2862 = vadd.f32 %v2861, %v2831
      %v2863 = vadd.f32 %v2862, %v2832
      %v2864 = vadd.f32 %v2863, %v2833
      %v2865 = vadd.f32 %v2864, %v2834
      %v2866 = vadd.f32 %v2865, %v2835
      %v2867 = vadd.f32 %v2866, %v2836
      %v2868 = vadd.f32 %v2867, %v2837
      %v2869 = vadd.f32 %v2868, %v2838
      %v2870 = vadd.f32 %v2869, %v2839
      %v2871 = vadd.f32 %v2870, %v2840
      %v2872 = vadd.f32 %v2871, %v2841
      %v2873 = vadd.f32 %v2872, %v2842
      %v2874 = vadd.f32 %v2873, %v2843
      %v2875 = vrot.slane %v2874, 4
      %v2876 = vadd.f32 %v2874, %v2875
      %v2877 = vrot.slane %v2876, 2
      %v2878 = vadd.f32 %v2876, %v2877
      %v2879 = vrot.slane %v2878, 1
      %v2880 = vadd.f32 %v2878, %v2879
      %2881 = vst [vmem:[%s268] sm:$0x1] %v2880
      %p2882 = scmp.lt.s32.totalorder %s18, 1
      %s2883 = scalar_select %p2882, %s18, 1
      %s2884 = smul.addr %s2883, 32
      %s2885 = smul.addr %s2884, 4
      %s2886 = scalar_lea.vmem %s4, %s2885
      %p2887 = scmp.lt.s32.totalorder %s18, 1
      %s2888 = scalar_select %p2887, %s18, 1
      %s2889 = scalar_lea.vmem %s5, %s2888
      %p2890 = scmp.lt.s32.totalorder %s18, 1
      %s2891 = scalar_select %p2890, %s18, 1
      %s2892 = scalar_lea.vmem %s6, %s2891
      // Predicated region
      $region37: #{double_conv_forward.3} parent=35 // pred_check
        %p2893 = pneg %p125
      $region38: #{double_conv_forward.3} parent=35 // pred_check_branch
        %2895 = sbr.rel (%p2893) target = $region40
      $region39: #{double_conv_forward.3} parent=35 // pred_region
        _
      $region40: #{double_conv_forward.3} parent=35 // pred_fallthru
        _
      // Predicated region
      $region41: #{double_conv_forward.3} parent=35 // pred_check
        %p2896 = pneg %p151
      $region42: #{double_conv_forward.3} parent=35 // pred_check_branch
        %2898 = sbr.rel (%p2896) target = $region44
      $region43: #{double_conv_forward.3} parent=35 // pred_region
        _
      $region44: #{double_conv_forward.3} parent=35 // pred_fallthru
        _
      // Predicated region
      $region45: #{double_conv_forward.3} parent=35 // pred_check
        %p2899 = pneg %p177
      $region46: #{double_conv_forward.3} parent=35 // pred_check_branch
        %2901 = sbr.rel (%p2899) target = $region48
      $region47: #{double_conv_forward.3} parent=35 // pred_region
        _
      $region48: #{double_conv_forward.3} parent=35 // pred_fallthru
        _
    $region36: #{double_conv_forward.3} parent=5 // pred_fallthru
      _
    %p2902 = scmp.le.s32.totalorder 2, %s13
    // Predicated region
    $region49: #{double_conv_forward.3} parent=5 // pred_check
      %p2903 = pneg %p2902
    $region50: #{double_conv_forward.3} parent=5 // pred_check_branch
      %2905 = sbr.rel (%p2903) target = $region52
    $region51: #{double_conv_forward.3} parent=5 // pred_region
      %s2906 = ssub.s32 %s13, 2
      // Predicated region
      $region53: #{double_conv_forward.3} parent=51 // pred_check
        %p2907 = pneg %p131
      $region54: #{double_conv_forward.3} parent=51 // pred_check_branch
        %2909 = sbr.rel (%p2907) target = $region56
      $region55: #{double_conv_forward.3} parent=51 // pred_region
        %p2910 = scmp.lt.s32.totalorder %s19, 1
        %s2911 = scalar_select %p2910, %s19, 1
        %s2912 = smul.addr %s2911, 32
        %s2913 = smul.addr %s2912, 4
        %s2914 = scalar_lea.vmem %s4, %s2913
      $region56: #{double_conv_forward.3} parent=51 // pred_fallthru
        _
      // Predicated region
      $region57: #{double_conv_forward.3} parent=51 // pred_check
        %p2915 = pneg %p157
      $region58: #{double_conv_forward.3} parent=51 // pred_check_branch
        %2917 = sbr.rel (%p2915) target = $region60
      $region59: #{double_conv_forward.3} parent=51 // pred_region
        %p2918 = scmp.lt.s32.totalorder %s19, 1
        %s2919 = scalar_select %p2918, %s19, 1
        %s2920 = scalar_lea.vmem %s5, %s2919
      $region60: #{double_conv_forward.3} parent=51 // pred_fallthru
        _
      // Predicated region
      $region61: #{double_conv_forward.3} parent=51 // pred_check
        %p2921 = pneg %p183
      $region62: #{double_conv_forward.3} parent=51 // pred_check_branch
        %2923 = sbr.rel (%p2921) target = $region64
      $region63: #{double_conv_forward.3} parent=51 // pred_region
        %p2924 = scmp.lt.s32.totalorder %s19, 1
        %s2925 = scalar_select %p2924, %s19, 1
        %s2926 = scalar_lea.vmem %s6, %s2925
      $region64: #{double_conv_forward.3} parent=51 // pred_fallthru
        _
    $region52: #{double_conv_forward.3} parent=5 // pred_fallthru
      _
  $region6: #{double_conv_forward.3} parent=0 // loop_footer
    %s17 = sadd.s32 1, %s13
  $region7: #{double_conv_forward.3} parent=0 // loop_footer_branch
    %12 = sbr.rel target = $region3
  $region8: #{double_conv_forward.3} parent=0 // loop_exit
    _

// kernel: double_conv_forward.4
$region0: #{double_conv_forward.4}
  #allocation0 [shape = 'u32[]', space=smem, size = 0x4, offset = 0x4, fixed_abs, tag = 'smem constant byte address 0x4 - core index']
  #allocation1 [shape = 'u32[72,128]{1,0:T(1,128)}', space=vmem, size = 0x9000, scoped, tag = 'internal scratch']
  #allocation2 [shape = 'f32[304,128]{1,0:T(8,128)}', space=vmem, size = 0x26000, scoped, tag = 'scratch operand']
  %s0 = inlined_call_operand.vmem [shape: bf16[2,256,128], index: 0, kind: input, shape index: {}]
  %s1 = inlined_call_operand.vmem [shape: f32[1,128], index: 1, kind: input, shape index: {}]
  %s2 = inlined_call_operand.vmem [shape: f32[1,128], index: 2, kind: input, shape index: {}]
  %s3 = inlined_call_operand.vmem [shape: bf16[9,128,128], index: 3, kind: input, shape index: {}]
  %s4 = inlined_call_operand.vmem [shape: bf16[2,256,128], index: 4, kind: output, shape index: {0}]
  %s5 = inlined_call_operand.vmem [shape: f32[2,1,128], index: 5, kind: output, shape index: {1}]
  %s6 = inlined_call_operand.vmem [shape: f32[2,1,128], index: 6, kind: output, shape index: {2}]
  %7 = xla_tuple %s4, %s5, %s6
  %s8 = sld [smem:[#allocation0]]
  $region65: #{double_conv_forward.4} parent=0
    _
  %s10 = ssub.s32 1, %s8
  %s11 = scalar_select 0, %s10, %s8
  loop: start=0, step=1, limit=4
  $region2: #{double_conv_forward.4} parent=0 // loop_pre_header
    _
  $region3: #{double_conv_forward.4} parent=0 // loop_header
    %s13 = sphi 0, %s17
    %p14 = scmp.ge.s32.totalorder %s13, 4
    %s23 = sphi 0, %s25
    %s26 = sphi 0, %s23
    %s27 = sphi 0, %s26
    %s43 = sphi 0, %s27
    %s47 = sphi 0, %s47
    %s49 = sphi 0, %s47
    %s50 = sphi 0, %s49
    %s64 = sphi 0, %s50
    %s68 = sphi 0, %s68
    %s70 = sphi 0, %s68
    %s71 = sphi 0, %s70
    %s85 = sphi 0, %s71
    %s89 = sphi 0, %s89
    %s91 = sphi 0, %s89
    %s92 = sphi 0, %s91
    %s106 = sphi 0, %s92
    %s112 = sphi 0, %s114
    %s115 = sphi 0, %s112
    %s116 = sphi 0, %s115
    %s132 = sphi 0, %s116
    %s138 = sphi 0, %s140
    %s141 = sphi 0, %s138
    %s142 = sphi 0, %s141
    %s158 = sphi 0, %s142
    %s164 = sphi 0, %s166
    %s167 = sphi 0, %s164
    %s168 = sphi 0, %s167
    %s184 = sphi 0, %s168
  $region4: #{double_conv_forward.4} parent=0 // loop_header_branch
    %16 = sbr.rel (%p14) target = $region8
  $region5: #{double_conv_forward.4} parent=0 // loop_body
    %s18 = ssub.s32 %s13, 1
    %s19 = ssub.s32 %s13, 2
    %s20 = sadd.s32 %s13, 1
    %s21 = ssub.s32 %s13, %s20
    %p22 = scmp.eq.s32.totalorder %s21, 0
    %s24 = sadd.s32 %s23, 1
    %s25 = scalar_select %p22, %s23, %s24
    %p28 = pneg %p22
    %p29 = scmp.eq.s32.totalorder %s13, 1
    %p30 = por %p28, %p29
    %p31 = scmp.ne.s32.totalorder %s23, %s26
    %p32 = scmp.eq.s32.totalorder %s13, 0
    %p33 = por %p31, %p32
    %p34 = scmp.ne.s32.totalorder %s23, %s26
    %p35 = scmp.eq.s32.totalorder %s18, 1
    %p36 = por %p34, %p35
    %p37 = scmp.ne.s32.totalorder %s26, %s27
    %p38 = scmp.eq.s32.totalorder %s18, 0
    %p39 = por %p37, %p38
    %p40 = scmp.ne.s32.totalorder %s26, %s27
    %p41 = scmp.eq.s32.totalorder %s19, 1
    %p42 = por %p40, %p41
    %p44 = scmp.ne.s32.totalorder %s27, %s43
    %p45 = scmp.eq.s32.totalorder %s19, 0
    %p46 = por %p44, %p45
    %s48 = sadd.s32 %s47, 1
    %p51 = scmp.eq.s32.totalorder %s13, 1
    %p52 = scmp.ne.s32.totalorder %s47, %s49
    %p53 = scmp.eq.s32.totalorder %s13, 0
    %p54 = por %p52, %p53
    %p55 = scmp.ne.s32.totalorder %s47, %s49
    %p56 = scmp.eq.s32.totalorder %s18, 1
    %p57 = por %p55, %p56
    %p58 = scmp.ne.s32.totalorder %s49, %s50
    %p59 = scmp.eq.s32.totalorder %s18, 0
    %p60 = por %p58, %p59
    %p61 = scmp.ne.s32.totalorder %s49, %s50
    %p62 = scmp.eq.s32.totalorder %s19, 1
    %p63 = por %p61, %p62
    %p65 = scmp.ne.s32.totalorder %s50, %s64
    %p66 = scmp.eq.s32.totalorder %s19, 0
    %p67 = por %p65, %p66
    %s69 = sadd.s32 %s68, 1
    %p72 = scmp.eq.s32.totalorder %s13, 1
    %p73 = scmp.ne.s32.totalorder %s68, %s70
    %p74 = scmp.eq.s32.totalorder %s13, 0
    %p75 = por %p73, %p74
    %p76 = scmp.ne.s32.totalorder %s68, %s70
    %p77 = scmp.eq.s32.totalorder %s18, 1
    %p78 = por %p76, %p77
    %p79 = scmp.ne.s32.totalorder %s70, %s71
    %p80 = scmp.eq.s32.totalorder %s18, 0
    %p81 = por %p79, %p80
    %p82 = scmp.ne.s32.totalorder %s70, %s71
    %p83 = scmp.eq.s32.totalorder %s19, 1
    %p84 = por %p82, %p83
    %p86 = scmp.ne.s32.totalorder %s71, %s85
    %p87 = scmp.eq.s32.totalorder %s19, 0
    %p88 = por %p86, %p87
    %s90 = sadd.s32 %s89, 1
    %p93 = scmp.eq.s32.totalorder %s13, 1
    %p94 = scmp.ne.s32.totalorder %s89, %s91
    %p95 = scmp.eq.s32.totalorder %s13, 0
    %p96 = por %p94, %p95
    %p97 = scmp.ne.s32.totalorder %s89, %s91
    %p98 = scmp.eq.s32.totalorder %s18, 1
    %p99 = por %p97, %p98
    %p100 = scmp.ne.s32.totalorder %s91, %s92
    %p101 = scmp.eq.s32.totalorder %s18, 0
    %p102 = por %p100, %p101
    %p103 = scmp.ne.s32.totalorder %s91, %s92
    %p104 = scmp.eq.s32.totalorder %s19, 1
    %p105 = por %p103, %p104
    %p107 = scmp.ne.s32.totalorder %s92, %s106
    %p108 = scmp.eq.s32.totalorder %s19, 0
    %p109 = por %p107, %p108
    %s110 = ssub.s32 %s13, %s20
    %p111 = scmp.eq.s32.totalorder %s110, 0
    %s113 = sadd.s32 %s112, 1
    %s114 = scalar_select %p111, %s112, %s113
    %p117 = pneg %p111
    %p118 = scmp.eq.s32.totalorder %s13, 1
    %p119 = por %p117, %p118
    %p120 = scmp.ne.s32.totalorder %s112, %s115
    %p121 = scmp.eq.s32.totalorder %s13, 0
    %p122 = por %p120, %p121
    %p123 = scmp.ne.s32.totalorder %s112, %s115
    %p124 = scmp.eq.s32.totalorder %s18, 1
    %p125 = por %p123, %p124
    %p126 = scmp.ne.s32.totalorder %s115, %s116
    %p127 = scmp.eq.s32.totalorder %s18, 0
    %p128 = por %p126, %p127
    %p129 = scmp.ne.s32.totalorder %s115, %s116
    %p130 = scmp.eq.s32.totalorder %s19, 1
    %p131 = por %p129, %p130
    %p133 = scmp.ne.s32.totalorder %s116, %s132
    %p134 = scmp.eq.s32.totalorder %s19, 0
    %p135 = por %p133, %p134
    %s136 = ssub.s32 %s13, %s20
    %p137 = scmp.eq.s32.totalorder %s136, 0
    %s139 = sadd.s32 %s138, 1
    %s140 = scalar_select %p137, %s138, %s139
    %p143 = pneg %p137
    %p144 = scmp.eq.s32.totalorder %s13, 1
    %p145 = por %p143, %p144
    %p146 = scmp.ne.s32.totalorder %s138, %s141
    %p147 = scmp.eq.s32.totalorder %s13, 0
    %p148 = por %p146, %p147
    %p149 = scmp.ne.s32.totalorder %s138, %s141
    %p150 = scmp.eq.s32.totalorder %s18, 1
    %p151 = por %p149, %p150
    %p152 = scmp.ne.s32.totalorder %s141, %s142
    %p153 = scmp.eq.s32.totalorder %s18, 0
    %p154 = por %p152, %p153
    %p155 = scmp.ne.s32.totalorder %s141, %s142
    %p156 = scmp.eq.s32.totalorder %s19, 1
    %p157 = por %p155, %p156
    %p159 = scmp.ne.s32.totalorder %s142, %s158
    %p160 = scmp.eq.s32.totalorder %s19, 0
    %p161 = por %p159, %p160
    %s162 = ssub.s32 %s13, %s20
    %p163 = scmp.eq.s32.totalorder %s162, 0
    %s165 = sadd.s32 %s164, 1
    %s166 = scalar_select %p163, %s164, %s165
    %p169 = pneg %p163
    %p170 = scmp.eq.s32.totalorder %s13, 1
    %p171 = por %p169, %p170
    %p172 = scmp.ne.s32.totalorder %s164, %s167
    %p173 = scmp.eq.s32.totalorder %s13, 0
    %p174 = por %p172, %p173
    %p175 = scmp.ne.s32.totalorder %s164, %s167
    %p176 = scmp.eq.s32.totalorder %s18, 1
    %p177 = por %p175, %p176
    %p178 = scmp.ne.s32.totalorder %s167, %s168
    %p179 = scmp.eq.s32.totalorder %s18, 0
    %p180 = por %p178, %p179
    %p181 = scmp.ne.s32.totalorder %s167, %s168
    %p182 = scmp.eq.s32.totalorder %s19, 1
    %p183 = por %p181, %p182
    %p185 = scmp.ne.s32.totalorder %s168, %s184
    %p186 = scmp.eq.s32.totalorder %s19, 0
    %p187 = por %p185, %p186
    %p188 = scmp.le.s32.totalorder 1, %s13
    %p189 = scmp.lt.s32.totalorder %s13, 3
    %p190 = pnand %p188, %p189
    %p191 = pneg %p190
    // Predicated region
    $region9: #{double_conv_forward.4} parent=5 // pred_check
      _
    $region10: #{double_conv_forward.4} parent=5 // pred_check_branch
      %193 = sbr.rel (%p190) target = $region12
    $region11: #{double_conv_forward.4} parent=5 // pred_region
      %s194 = ssub.s32 %s13, 1
      // Predicated region
      $region13: #{double_conv_forward.4} parent=11 // pred_check
        %p195 = pneg %p60
      $region14: #{double_conv_forward.4} parent=11 // pred_check_branch
        %197 = sbr.rel (%p195) target = $region16
      $region15: #{double_conv_forward.4} parent=11 // pred_region
        _
      $region16: #{double_conv_forward.4} parent=11 // pred_fallthru
        _
      // Predicated region
      $region17: #{double_conv_forward.4} parent=11 // pred_check
        %p198 = pneg %p81
      $region18: #{double_conv_forward.4} parent=11 // pred_check_branch
        %200 = sbr.rel (%p198) target = $region20
      $region19: #{double_conv_forward.4} parent=11 // pred_region
        _
      $region20: #{double_conv_forward.4} parent=11 // pred_fallthru
        _
      // Predicated region
      $region21: #{double_conv_forward.4} parent=11 // pred_check
        %p201 = pneg %p102
      $region22: #{double_conv_forward.4} parent=11 // pred_check_branch
        %203 = sbr.rel (%p201) target = $region24
      $region23: #{double_conv_forward.4} parent=11 // pred_region
        _
      $region24: #{double_conv_forward.4} parent=11 // pred_fallthru
        _
    $region12: #{double_conv_forward.4} parent=5 // pred_fallthru
      _
    %p204 = scmp.lt.s32.totalorder %s13, 2
    // Predicated region
    $region25: #{double_conv_forward.4} parent=5 // pred_check
      %p205 = pneg %p204
    $region26: #{double_conv_forward.4} parent=5 // pred_check_branch
      %207 = sbr.rel (%p205) target = $region28
    $region27: #{double_conv_forward.4} parent=5 // pred_region
      // Predicated region
      $region29: #{double_conv_forward.4} parent=27 // pred_check
        %p208 = pneg %p33
      $region30: #{double_conv_forward.4} parent=27 // pred_check_branch
        %210 = sbr.rel (%p208) target = $region32
      $region31: #{double_conv_forward.4} parent=27 // pred_region
        %p211 = scmp.lt.s32.totalorder %s13, 1
        %s212 = scalar_select %p211, %s13, 1
        %s213 = smul.addr %s212, 32
        %s214 = smul.addr %s213, 4
        %s215 = scalar_lea.vmem %s0, %s214
      $region32: #{double_conv_forward.4} parent=27 // pred_fallthru
        _
    $region28: #{double_conv_forward.4} parent=5 // pred_fallthru
      _
    %p216 = scmp.le.s32.totalorder 1, %s13
    %p217 = scmp.lt.s32.totalorder %s13, 3
    %p218 = pnand %p216, %p217
    %p219 = pneg %p218
    // Predicated region
    $region33: #{double_conv_forward.4} parent=5 // pred_check
      _
    $region34: #{double_conv_forward.4} parent=5 // pred_check_branch
      %221 = sbr.rel (%p218) target = $region36
    $region35: #{double_conv_forward.4} parent=5 // pred_region
      %s222 = ssub.s32 %s13, 1
      %p223 = scmp.lt.s32.totalorder %s18, 1
      %s224 = scalar_select %p223, %s18, 1
      %s225 = smul.addr %s224, 32
      %s226 = smul.addr %s225, 4
      %s227 = scalar_lea.vmem %s0, %s226
      %p228 = pneg %p39
      %p229 = pneg %p36
      %p230 = pneg %p60
      %p231 = pneg %p57
      %p232 = pneg %p81
      %p233 = pneg %p78
      %p234 = pneg %p102
      %p235 = pneg %p99
      %p236 = pneg %p128
      %p237 = pneg %p125
      %p238 = scmp.lt.s32.totalorder %s18, 1
      %s239 = scalar_select %p238, %s18, 1
      %s240 = smul.addr %s239, 32
      %s241 = smul.addr %s240, 4
      %s242 = scalar_lea.vmem %s4, %s241
      %p243 = pneg %p154
      %p244 = pneg %p151
      %p245 = scmp.lt.s32.totalorder %s18, 1
      %s246 = scalar_select %p245, %s18, 1
      %s247 = scalar_lea.vmem %s5, %s246
      %p248 = pneg %p180
      %p249 = pneg %p177
      %p250 = scmp.lt.s32.totalorder %s18, 1
      %s251 = scalar_select %p250, %s18, 1
      %s252 = scalar_lea.vmem %s6, %s251
      %p253 = scmp.lt.s32.totalorder %s18, 1
      %s254 = scalar_select %p253, %s18, 1
      %s255 = smul.addr %s254, 32
      %s256 = smul.addr %s255, 4
      %s257 = scalar_lea.vmem %s0, %s256
      %p258 = scmp.lt.s32.totalorder %s18, 1
      %s259 = scalar_select %p258, %s18, 1
      %s260 = smul.addr %s259, 32
      %s261 = smul.addr %s260, 4
      %s262 = scalar_lea.vmem %s4, %s261
      %p263 = scmp.lt.s32.totalorder %s18, 1
      %s264 = scalar_select %p263, %s18, 1
      %s265 = scalar_lea.vmem %s5, %s264
      %p266 = scmp.lt.s32.totalorder %s18, 1
      %s267 = scalar_select %p266, %s18, 1
      %s268 = scalar_lea.vmem %s6, %s267
      %v269 = vld [vmem:[%s257] sm:$0xf]
      %v270 = vld [vmem:[%s257 + $0x4] sm:$0xf]
      %v271 = vld [vmem:[%s257 + $0x8] sm:$0xf]
      %v272 = vld [vmem:[%s257 + $0xc] sm:$0xf]
      %v273 = vld [vmem:[%s257 + $0x10] sm:$0xf]
      %v274 = vld [vmem:[%s257 + $0x14] sm:$0xf]
      %v275 = vld [vmem:[%s257 + $0x18] sm:$0xf]
      %v276 = vld [vmem:[%s257 + $0x1c] sm:$0xf]
      %v277 = vld [vmem:[%s257 + $0x20] sm:$0xf]
      %v278 = vld [vmem:[%s257 + $0x24] sm:$0xf]
      %v279 = vld [vmem:[%s257 + $0x28] sm:$0xf]
      %v280 = vld [vmem:[%s257 + $0x2c] sm:$0xf]
      %v281 = vld [vmem:[%s257 + $0x30] sm:$0xf]
      %v282 = vld [vmem:[%s257 + $0x34] sm:$0xf]
      %v283 = vld [vmem:[%s257 + $0x38] sm:$0xf]
      %v284 = vld [vmem:[%s257 + $0x3c] sm:$0xf]
      %v285 = vld [vmem:[%s257 + $0x40] sm:$0xf]
      %v286 = vld [vmem:[%s257 + $0x44] sm:$0xf]
      %v287 = vld [vmem:[%s257 + $0x48] sm:$0xf]
      %v288 = vld [vmem:[%s257 + $0x4c] sm:$0xf]
      %v289 = vld [vmem:[%s257 + $0x50] sm:$0xf]
      %v290 = vld [vmem:[%s257 + $0x54] sm:$0xf]
      %v291 = vld [vmem:[%s257 + $0x58] sm:$0xf]
      %v292 = vld [vmem:[%s257 + $0x5c] sm:$0xf]
      %v293 = vld [vmem:[%s257 + $0x60] sm:$0xf]
      %v294 = vld [vmem:[%s257 + $0x64] sm:$0xf]
      %v295 = vld [vmem:[%s257 + $0x68] sm:$0xf]
      %v296 = vld [vmem:[%s257 + $0x6c] sm:$0xf]
      %v297 = vld [vmem:[%s257 + $0x70] sm:$0xf]
      %v298 = vld [vmem:[%s257 + $0x74] sm:$0xf]
      %v299 = vld [vmem:[%s257 + $0x78] sm:$0xf]
      %v300 = vld [vmem:[%s257 + $0x7c] sm:$0xf]
      %v301 = vunpack.c.l.bf16 %v269
      %v302 = vunpack.c.l.bf16 %v270
      %v303 = vunpack.c.l.bf16 %v271
      %v304 = vunpack.c.l.bf16 %v272
      %v305 = vunpack.c.l.bf16 %v273
      %v306 = vunpack.c.l.bf16 %v274
      %v307 = vunpack.c.l.bf16 %v275
      %v308 = vunpack.c.l.bf16 %v276
      %v309 = vunpack.c.l.bf16 %v277
      %v310 = vunpack.c.l.bf16 %v278
      %v311 = vunpack.c.l.bf16 %v279
      %v312 = vunpack.c.l.bf16 %v280
      %v313 = vunpack.c.l.bf16 %v281
      %v314 = vunpack.c.l.bf16 %v282
      %v315 = vunpack.c.l.bf16 %v283
      %v316 = vunpack.c.l.bf16 %v284
      %v317 = vunpack.c.l.bf16 %v285
      %v318 = vunpack.c.l.bf16 %v286
      %v319 = vunpack.c.l.bf16 %v287
      %v320 = vunpack.c.l.bf16 %v288
      %v321 = vunpack.c.l.bf16 %v289
      %v322 = vunpack.c.l.bf16 %v290
      %v323 = vunpack.c.l.bf16 %v291
      %v324 = vunpack.c.l.bf16 %v292
      %v325 = vunpack.c.l.bf16 %v293
      %v326 = vunpack.c.l.bf16 %v294
      %v327 = vunpack.c.l.bf16 %v295
      %v328 = vunpack.c.l.bf16 %v296
      %v329 = vunpack.c.l.bf16 %v297
      %v330 = vunpack.c.l.bf16 %v298
      %v331 = vunpack.c.l.bf16 %v299
      %v332 = vunpack.c.l.bf16 %v300
      %v333 = vld [vmem:[%s1] sm:$0x1]
      %v335 = vperm.slane %v333, 0
      %v337 = vmul.f32 %v301, %v335
      %v338 = vmul.f32 %v302, %v335
      %v339 = vmul.f32 %v303, %v335
      %v340 = vmul.f32 %v304, %v335
      %v341 = vmul.f32 %v305, %v335
      %v342 = vmul.f32 %v306, %v335
      %v343 = vmul.f32 %v307, %v335
      %v344 = vmul.f32 %v308, %v335
      %v345 = vmul.f32 %v309, %v335
      %v346 = vmul.f32 %v310, %v335
      %v347 = vmul.f32 %v311, %v335
      %v348 = vmul.f32 %v312, %v335
      %v349 = vmul.f32 %v313, %v335
      %v350 = vmul.f32 %v314, %v335
      %v351 = vmul.f32 %v315, %v335
      %v352 = vmul.f32 %v316, %v335
      %v353 = vmul.f32 %v317, %v335
      %v354 = vmul.f32 %v318, %v335
      %v355 = vmul.f32 %v319, %v335
      %v356 = vmul.f32 %v320, %v335
      %v357 = vmul.f32 %v321, %v335
      %v358 = vmul.f32 %v322, %v335
      %v359 = vmul.f32 %v323, %v335
      %v360 = vmul.f32 %v324, %v335
      %v361 = vmul.f32 %v325, %v335
      %v362 = vmul.f32 %v326, %v335
      %v363 = vmul.f32 %v327, %v335
      %v364 = vmul.f32 %v328, %v335
      %v365 = vmul.f32 %v329, %v335
      %v366 = vmul.f32 %v330, %v335
      %v367 = vmul.f32 %v331, %v335
      %v368 = vmul.f32 %v332, %v335
      %v369 = vld [vmem:[%s2] sm:$0x1]
      %v371 = vperm.slane %v369, 0
      %v373 = vadd.f32 %v337, %v371
      %v374 = vadd.f32 %v338, %v371
      %v375 = vadd.f32 %v339, %v371
      %v376 = vadd.f32 %v340, %v371
      %v377 = vadd.f32 %v341, %v371
      %v378 = vadd.f32 %v342, %v371
      %v379 = vadd.f32 %v343, %v371
      %v380 = vadd.f32 %v344, %v371
      %v381 = vadd.f32 %v345, %v371
      %v382 = vadd.f32 %v346, %v371
      %v383 = vadd.f32 %v347, %v371
      %v384 = vadd.f32 %v348, %v371
      %v385 = vadd.f32 %v349, %v371
      %v386 = vadd.f32 %v350, %v371
      %v387 = vadd.f32 %v351, %v371
      %v388 = vadd.f32 %v352, %v371
      %v389 = vadd.f32 %v353, %v371
      %v390 = vadd.f32 %v354, %v371
      %v391 = vadd.f32 %v355, %v371
      %v392 = vadd.f32 %v356, %v371
      %v393 = vadd.f32 %v357, %v371
      %v394 = vadd.f32 %v358, %v371
      %v395 = vadd.f32 %v359, %v371
      %v396 = vadd.f32 %v360, %v371
      %v397 = vadd.f32 %v361, %v371
      %v398 = vadd.f32 %v362, %v371
      %v399 = vadd.f32 %v363, %v371
      %v400 = vadd.f32 %v364, %v371
      %v401 = vadd.f32 %v365, %v371
      %v402 = vadd.f32 %v366, %v371
      %v403 = vadd.f32 %v367, %v371
      %v404 = vadd.f32 %v368, %v371
      %v405 = vmax.f32 %v373, 0.0
      %v406 = vmax.f32 %v374, 0.0
      %v407 = vmax.f32 %v375, 0.0
      %v408 = vmax.f32 %v376, 0.0
      %v409 = vmax.f32 %v377, 0.0
      %v410 = vmax.f32 %v378, 0.0
      %v411 = vmax.f32 %v379, 0.0
      %v412 = vmax.f32 %v380, 0.0
      %v413 = vmax.f32 %v381, 0.0
      %v414 = vmax.f32 %v382, 0.0
      %v415 = vmax.f32 %v383, 0.0
      %v416 = vmax.f32 %v384, 0.0
      %v417 = vmax.f32 %v385, 0.0
      %v418 = vmax.f32 %v386, 0.0
      %v419 = vmax.f32 %v387, 0.0
      %v420 = vmax.f32 %v388, 0.0
      %v421 = vmax.f32 %v389, 0.0
      %v422 = vmax.f32 %v390, 0.0
      %v423 = vmax.f32 %v391, 0.0
      %v424 = vmax.f32 %v392, 0.0
      %v425 = vmax.f32 %v393, 0.0
      %v426 = vmax.f32 %v394, 0.0
      %v427 = vmax.f32 %v395, 0.0
      %v428 = vmax.f32 %v396, 0.0
      %v429 = vmax.f32 %v397, 0.0
      %v430 = vmax.f32 %v398, 0.0
      %v431 = vmax.f32 %v399, 0.0
      %v432 = vmax.f32 %v400, 0.0
      %v433 = vmax.f32 %v401, 0.0
      %v434 = vmax.f32 %v402, 0.0
      %v435 = vmax.f32 %v403, 0.0
      %v436 = vmax.f32 %v404, 0.0
      %437 = vst [vmem:[#allocation2] sm:$0xff] 0.0
      %438 = vst [vmem:[#allocation2 + $0x8] sm:$0xff] 0.0
      %439 = vst [vmem:[#allocation2 + $0x10] sm:$0xff] 0.0
      %440 = vst [vmem:[#allocation2 + $0x18] sm:$0xff] 0.0
      %441 = vst [vmem:[#allocation2 + $0x20] sm:$0xff] 0.0
      %442 = vst [vmem:[#allocation2 + $0x28] sm:$0xff] 0.0
      %443 = vst [vmem:[#allocation2 + $0x30] sm:$0xff] 0.0
      %444 = vst [vmem:[#allocation2 + $0x38] sm:$0xff] 0.0
      %445 = vst [vmem:[#allocation2 + $0x40] sm:$0xff] 0.0
      %446 = vst [vmem:[#allocation2 + $0x48] sm:$0xff] 0.0
      %447 = vst [vmem:[#allocation2 + $0x50] sm:$0xff] 0.0
      %448 = vst [vmem:[#allocation2 + $0x58] sm:$0xff] 0.0
      %449 = vst [vmem:[#allocation2 + $0x60] sm:$0xff] 0.0
      %450 = vst [vmem:[#allocation2 + $0x68] sm:$0xff] 0.0
      %451 = vst [vmem:[#allocation2 + $0x70] sm:$0xff] 0.0
      %452 = vst [vmem:[#allocation2 + $0x78] sm:$0xff] 0.0
      %453 = vst [vmem:[#allocation2 + $0x80] sm:$0xff] 0.0
      %454 = vst [vmem:[#allocation2 + $0x88] sm:$0xff] 0.0
      %455 = vst [vmem:[#allocation2 + $0x90] sm:$0xff] 0.0
      %456 = vst [vmem:[#allocation2 + $0x98] sm:$0xff] 0.0
      %457 = vst [vmem:[#allocation2 + $0xa0] sm:$0xff] 0.0
      %458 = vst [vmem:[#allocation2 + $0xa8] sm:$0xff] 0.0
      %459 = vst [vmem:[#allocation2 + $0xb0] sm:$0xff] 0.0
      %460 = vst [vmem:[#allocation2 + $0xb8] sm:$0xff] 0.0
      %461 = vst [vmem:[#allocation2 + $0xc0] sm:$0xff] 0.0
      %462 = vst [vmem:[#allocation2 + $0xc8] sm:$0xff] 0.0
      %463 = vst [vmem:[#allocation2 + $0xd0] sm:$0xff] 0.0
      %464 = vst [vmem:[#allocation2 + $0xd8] sm:$0xff] 0.0
      %465 = vst [vmem:[#allocation2 + $0xe0] sm:$0xff] 0.0
      %466 = vst [vmem:[#allocation2 + $0xe8] sm:$0xff] 0.0
      %467 = vst [vmem:[#allocation2 + $0xf0] sm:$0xff] 0.0
      %468 = vst [vmem:[#allocation2 + $0xf8] sm:$0xff] 0.0
      %469 = vst [vmem:[#allocation2 + $0x100] sm:$0xff] 0.0
      %470 = vst [vmem:[#allocation2 + $0x108] sm:$0xff] 0.0
      %471 = vst [vmem:[#allocation2 + $0x110] sm:$0xff] 0.0
      %472 = vst [vmem:[#allocation2 + $0x118] sm:$0xff] 0.0
      %473 = vst [vmem:[#allocation2 + $0x120] sm:$0xff] 0.0
      %474 = vst [vmem:[#allocation2 + $0x128] sm:$0xff] 0.0
      %475 = vst [vmem:[#allocation2 + $0x18] sm:$0xff] %v405
      %476 = vst [vmem:[#allocation2 + $0x20] sm:$0xff] %v406
      %477 = vst [vmem:[#allocation2 + $0x28] sm:$0xff] %v407
      %478 = vst [vmem:[#allocation2 + $0x30] sm:$0xff] %v408
      %479 = vst [vmem:[#allocation2 + $0x38] sm:$0xff] %v409
      %480 = vst [vmem:[#allocation2 + $0x40] sm:$0xff] %v410
      %481 = vst [vmem:[#allocation2 + $0x48] sm:$0xff] %v411
      %482 = vst [vmem:[#allocation2 + $0x50] sm:$0xff] %v412
      %483 = vst [vmem:[#allocation2 + $0x58] sm:$0xff] %v413
      %484 = vst [vmem:[#allocation2 + $0x60] sm:$0xff] %v414
      %485 = vst [vmem:[#allocation2 + $0x68] sm:$0xff] %v415
      %486 = vst [vmem:[#allocation2 + $0x70] sm:$0xff] %v416
      %487 = vst [vmem:[#allocation2 + $0x78] sm:$0xff] %v417
      %488 = vst [vmem:[#allocation2 + $0x80] sm:$0xff] %v418
      %489 = vst [vmem:[#allocation2 + $0x88] sm:$0xff] %v419
      %490 = vst [vmem:[#allocation2 + $0x90] sm:$0xff] %v420
      %491 = vst [vmem:[#allocation2 + $0x98] sm:$0xff] %v421
      %492 = vst [vmem:[#allocation2 + $0xa0] sm:$0xff] %v422
      %493 = vst [vmem:[#allocation2 + $0xa8] sm:$0xff] %v423
      %494 = vst [vmem:[#allocation2 + $0xb0] sm:$0xff] %v424
      %495 = vst [vmem:[#allocation2 + $0xb8] sm:$0xff] %v425
      %496 = vst [vmem:[#allocation2 + $0xc0] sm:$0xff] %v426
      %497 = vst [vmem:[#allocation2 + $0xc8] sm:$0xff] %v427
      %498 = vst [vmem:[#allocation2 + $0xd0] sm:$0xff] %v428
      %499 = vst [vmem:[#allocation2 + $0xd8] sm:$0xff] %v429
      %500 = vst [vmem:[#allocation2 + $0xe0] sm:$0xff] %v430
      %501 = vst [vmem:[#allocation2 + $0xe8] sm:$0xff] %v431
      %502 = vst [vmem:[#allocation2 + $0xf0] sm:$0xff] %v432
      %503 = vst [vmem:[#allocation2 + $0xf8] sm:$0xff] %v433
      %504 = vst [vmem:[#allocation2 + $0x100] sm:$0xff] %v434
      %505 = vst [vmem:[#allocation2 + $0x108] sm:$0xff] %v435
      %506 = vst [vmem:[#allocation2 + $0x110] sm:$0xff] %v436
      %v507 = vlaneseq
      %v508 = vshrl.u32 %v507, 7
      %v509 = vadd.s32 %v508, 8
      %v510 = vadd.s32 %v508, 16
      %v511 = vadd.s32 %v508, 24
      %v512 = vadd.s32 %v508, 32
      %v513 = vadd.s32 %v508, 40
      %v514 = vadd.s32 %v508, 48
      %v515 = vadd.s32 %v508, 56
      %v516 = vadd.s32 %v508, 64
      %v517 = vadd.s32 %v508, 72
      %v518 = vadd.s32 %v508, 80
      %v519 = vadd.s32 %v508, 88
      %v520 = vadd.s32 %v508, 96
      %v521 = vadd.s32 %v508, 104
      %v522 = vadd.s32 %v508, 112
      %v523 = vadd.s32 %v508, 120
      %v524 = vadd.s32 %v508, 128
      %v525 = vadd.s32 %v508, 136
      %v526 = vadd.s32 %v508, 144
      %v527 = vadd.s32 %v508, 152
      %v528 = vadd.s32 %v508, 160
      %v529 = vadd.s32 %v508, 168
      %v530 = vadd.s32 %v508, 176
      %v531 = vadd.s32 %v508, 184
      %v532 = vadd.s32 %v508, 192
      %v533 = vadd.s32 %v508, 200
      %v534 = vadd.s32 %v508, 208
      %v535 = vadd.s32 %v508, 216
      %v536 = vadd.s32 %v508, 224
      %v537 = vadd.s32 %v508, 232
      %v538 = vadd.s32 %v508, 240
      %v539 = vadd.s32 %v508, 248
      %vm540 = vcmp.lt.s32.totalorder %v508, 0
      %v541 = vsub.s32 0, %v508
      %v542 = vsel %vm540, %v541, %v508
      %v543 = vshrl.u32 %v542, 4
      %v544 = vand.u32 %v542, 15
      %v545 = vsub.s32 0, %v544
      %v546 = vsel %vm540, %v545, %v544
      %vm547 = vcmp.lt.s32.totalorder %v509, 0
      %v548 = vsub.s32 0, %v509
      %v549 = vsel %vm547, %v548, %v509
      %v550 = vshrl.u32 %v549, 4
      %v551 = vand.u32 %v549, 15
      %v552 = vsub.s32 0, %v551
      %v553 = vsel %vm547, %v552, %v551
      %vm554 = vcmp.lt.s32.totalorder %v510, 0
      %v555 = vsub.s32 0, %v510
      %v556 = vsel %vm554, %v555, %v510
      %v557 = vshrl.u32 %v556, 4
      %v558 = vand.u32 %v556, 15
      %v559 = vsub.s32 0, %v558
      %v560 = vsel %vm554, %v559, %v558
      %vm561 = vcmp.lt.s32.totalorder %v511, 0
      %v562 = vsub.s32 0, %v511
      %v563 = vsel %vm561, %v562, %v511
      %v564 = vshrl.u32 %v563, 4
      %v565 = vand.u32 %v563, 15
      %v566 = vsub.s32 0, %v565
      %v567 = vsel %vm561, %v566, %v565
      %vm568 = vcmp.lt.s32.totalorder %v512, 0
      %v569 = vsub.s32 0, %v512
      %v570 = vsel %vm568, %v569, %v512
      %v571 = vshrl.u32 %v570, 4
      %v572 = vand.u32 %v570, 15
      %v573 = vsub.s32 0, %v572
      %v574 = vsel %vm568, %v573, %v572
      %vm575 = vcmp.lt.s32.totalorder %v513, 0
      %v576 = vsub.s32 0, %v513
      %v577 = vsel %vm575, %v576, %v513
      %v578 = vshrl.u32 %v577, 4
      %v579 = vand.u32 %v577, 15
      %v580 = vsub.s32 0, %v579
      %v581 = vsel %vm575, %v580, %v579
      %vm582 = vcmp.lt.s32.totalorder %v514, 0
      %v583 = vsub.s32 0, %v514
      %v584 = vsel %vm582, %v583, %v514
      %v585 = vshrl.u32 %v584, 4
      %v586 = vand.u32 %v584, 15
      %v587 = vsub.s32 0, %v586
      %v588 = vsel %vm582, %v587, %v586
      %vm589 = vcmp.lt.s32.totalorder %v515, 0
      %v590 = vsub.s32 0, %v515
      %v591 = vsel %vm589, %v590, %v515
      %v592 = vshrl.u32 %v591, 4
      %v593 = vand.u32 %v591, 15
      %v594 = vsub.s32 0, %v593
      %v595 = vsel %vm589, %v594, %v593
      %vm596 = vcmp.lt.s32.totalorder %v516, 0
      %v597 = vsub.s32 0, %v516
      %v598 = vsel %vm596, %v597, %v516
      %v599 = vshrl.u32 %v598, 4
      %v600 = vand.u32 %v598, 15
      %v601 = vsub.s32 0, %v600
      %v602 = vsel %vm596, %v601, %v600
      %vm603 = vcmp.lt.s32.totalorder %v517, 0
      %v604 = vsub.s32 0, %v517
      %v605 = vsel %vm603, %v604, %v517
      %v606 = vshrl.u32 %v605, 4
      %v607 = vand.u32 %v605, 15
      %v608 = vsub.s32 0, %v607
      %v609 = vsel %vm603, %v608, %v607
      %vm610 = vcmp.lt.s32.totalorder %v518, 0
      %v611 = vsub.s32 0, %v518
      %v612 = vsel %vm610, %v611, %v518
      %v613 = vshrl.u32 %v612, 4
      %v614 = vand.u32 %v612, 15
      %v615 = vsub.s32 0, %v614
      %v616 = vsel %vm610, %v615, %v614
      %vm617 = vcmp.lt.s32.totalorder %v519, 0
      %v618 = vsub.s32 0, %v519
      %v619 = vsel %vm617, %v618, %v519
      %v620 = vshrl.u32 %v619, 4
      %v621 = vand.u32 %v619, 15
      %v622 = vsub.s32 0, %v621
      %v623 = vsel %vm617, %v622, %v621
      %vm624 = vcmp.lt.s32.totalorder %v520, 0
      %v625 = vsub.s32 0, %v520
      %v626 = vsel %vm624, %v625, %v520
      %v627 = vshrl.u32 %v626, 4
      %v628 = vand.u32 %v626, 15
      %v629 = vsub.s32 0, %v628
      %v630 = vsel %vm624, %v629, %v628
      %vm631 = vcmp.lt.s32.totalorder %v521, 0
      %v632 = vsub.s32 0, %v521
      %v633 = vsel %vm631, %v632, %v521
      %v634 = vshrl.u32 %v633, 4
      %v635 = vand.u32 %v633, 15
      %v636 = vsub.s32 0, %v635
      %v637 = vsel %vm631, %v636, %v635
      %vm638 = vcmp.lt.s32.totalorder %v522, 0
      %v639 = vsub.s32 0, %v522
      %v640 = vsel %vm638, %v639, %v522
      %v641 = vshrl.u32 %v640, 4
      %v642 = vand.u32 %v640, 15
      %v643 = vsub.s32 0, %v642
      %v644 = vsel %vm638, %v643, %v642
      %vm645 = vcmp.lt.s32.totalorder %v523, 0
      %v646 = vsub.s32 0, %v523
      %v647 = vsel %vm645, %v646, %v523
      %v648 = vshrl.u32 %v647, 4
      %v649 = vand.u32 %v647, 15
      %v650 = vsub.s32 0, %v649
      %v651 = vsel %vm645, %v650, %v649
      %vm652 = vcmp.lt.s32.totalorder %v524, 0
      %v653 = vsub.s32 0, %v524
      %v654 = vsel %vm652, %v653, %v524
      %v655 = vshrl.u32 %v654, 4
      %v656 = vand.u32 %v654, 15
      %v657 = vsub.s32 0, %v656
      %v658 = vsel %vm652, %v657, %v656
      %vm659 = vcmp.lt.s32.totalorder %v525, 0
      %v660 = vsub.s32 0, %v525
      %v661 = vsel %vm659, %v660, %v525
      %v662 = vshrl.u32 %v661, 4
      %v663 = vand.u32 %v661, 15
      %v664 = vsub.s32 0, %v663
      %v665 = vsel %vm659, %v664, %v663
      %vm666 = vcmp.lt.s32.totalorder %v526, 0
      %v667 = vsub.s32 0, %v526
      %v668 = vsel %vm666, %v667, %v526
      %v669 = vshrl.u32 %v668, 4
      %v670 = vand.u32 %v668, 15
      %v671 = vsub.s32 0, %v670
      %v672 = vsel %vm666, %v671, %v670
      %vm673 = vcmp.lt.s32.totalorder %v527, 0
      %v674 = vsub.s32 0, %v527
      %v675 = vsel %vm673, %v674, %v527
      %v676 = vshrl.u32 %v675, 4
      %v677 = vand.u32 %v675, 15
      %v678 = vsub.s32 0, %v677
      %v679 = vsel %vm673, %v678, %v677
      %vm680 = vcmp.lt.s32.totalorder %v528, 0
      %v681 = vsub.s32 0, %v528
      %v682 = vsel %vm680, %v681, %v528
      %v683 = vshrl.u32 %v682, 4
      %v684 = vand.u32 %v682, 15
      %v685 = vsub.s32 0, %v684
      %v686 = vsel %vm680, %v685, %v684
      %vm687 = vcmp.lt.s32.totalorder %v529, 0
      %v688 = vsub.s32 0, %v529
      %v689 = vsel %vm687, %v688, %v529
      %v690 = vshrl.u32 %v689, 4
      %v691 = vand.u32 %v689, 15
      %v692 = vsub.s32 0, %v691
      %v693 = vsel %vm687, %v692, %v691
      %vm694 = vcmp.lt.s32.totalorder %v530, 0
      %v695 = vsub.s32 0, %v530
      %v696 = vsel %vm694, %v695, %v530
      %v697 = vshrl.u32 %v696, 4
      %v698 = vand.u32 %v696, 15
      %v699 = vsub.s32 0, %v698
      %v700 = vsel %vm694, %v699, %v698
      %vm701 = vcmp.lt.s32.totalorder %v531, 0
      %v702 = vsub.s32 0, %v531
      %v703 = vsel %vm701, %v702, %v531
      %v704 = vshrl.u32 %v703, 4
      %v705 = vand.u32 %v703, 15
      %v706 = vsub.s32 0, %v705
      %v707 = vsel %vm701, %v706, %v705
      %vm708 = vcmp.lt.s32.totalorder %v532, 0
      %v709 = vsub.s32 0, %v532
      %v710 = vsel %vm708, %v709, %v532
      %v711 = vshrl.u32 %v710, 4
      %v712 = vand.u32 %v710, 15
      %v713 = vsub.s32 0, %v712
      %v714 = vsel %vm708, %v713, %v712
      %vm715 = vcmp.lt.s32.totalorder %v533, 0
      %v716 = vsub.s32 0, %v533
      %v717 = vsel %vm715, %v716, %v533
      %v718 = vshrl.u32 %v717, 4
      %v719 = vand.u32 %v717, 15
      %v720 = vsub.s32 0, %v719
      %v721 = vsel %vm715, %v720, %v719
      %vm722 = vcmp.lt.s32.totalorder %v534, 0
      %v723 = vsub.s32 0, %v534
      %v724 = vsel %vm722, %v723, %v534
      %v725 = vshrl.u32 %v724, 4
      %v726 = vand.u32 %v724, 15
      %v727 = vsub.s32 0, %v726
      %v728 = vsel %vm722, %v727, %v726
      %vm729 = vcmp.lt.s32.totalorder %v535, 0
      %v730 = vsub.s32 0, %v535
      %v731 = vsel %vm729, %v730, %v535
      %v732 = vshrl.u32 %v731, 4
      %v733 = vand.u32 %v731, 15
      %v734 = vsub.s32 0, %v733
      %v735 = vsel %vm729, %v734, %v733
      %vm736 = vcmp.lt.s32.totalorder %v536, 0
      %v737 = vsub.s32 0, %v536
      %v738 = vsel %vm736, %v737, %v536
      %v739 = vshrl.u32 %v738, 4
      %v740 = vand.u32 %v738, 15
      %v741 = vsub.s32 0, %v740
      %v742 = vsel %vm736, %v741, %v740
      %vm743 = vcmp.lt.s32.totalorder %v537, 0
      %v744 = vsub.s32 0, %v537
      %v745 = vsel %vm743, %v744, %v537
      %v746 = vshrl.u32 %v745, 4
      %v747 = vand.u32 %v745, 15
      %v748 = vsub.s32 0, %v747
      %v749 = vsel %vm743, %v748, %v747
      %vm750 = vcmp.lt.s32.totalorder %v538, 0
      %v751 = vsub.s32 0, %v538
      %v752 = vsel %vm750, %v751, %v538
      %v753 = vshrl.u32 %v752, 4
      %v754 = vand.u32 %v752, 15
      %v755 = vsub.s32 0, %v754
      %v756 = vsel %vm750, %v755, %v754
      %vm757 = vcmp.lt.s32.totalorder %v539, 0
      %v758 = vsub.s32 0, %v539
      %v759 = vsel %vm757, %v758, %v539
      %v760 = vshrl.u32 %v759, 4
      %v761 = vand.u32 %v759, 15
      %v762 = vsub.s32 0, %v761
      %v763 = vsel %vm757, %v762, %v761
      %vm764 = vcmp.ne.s32.totalorder %v546, 0
      %vm765 = vcmp.ne.s32.totalorder %v553, 0
      %vm766 = vcmp.ne.s32.totalorder %v560, 0
      %vm767 = vcmp.ne.s32.totalorder %v567, 0
      %vm768 = vcmp.ne.s32.totalorder %v574, 0
      %vm769 = vcmp.ne.s32.totalorder %v581, 0
      %vm770 = vcmp.ne.s32.totalorder %v588, 0
      %vm771 = vcmp.ne.s32.totalorder %v595, 0
      %vm772 = vcmp.ne.s32.totalorder %v602, 0
      %vm773 = vcmp.ne.s32.totalorder %v609, 0
      %vm774 = vcmp.ne.s32.totalorder %v616, 0
      %vm775 = vcmp.ne.s32.totalorder %v623, 0
      %vm776 = vcmp.ne.s32.totalorder %v630, 0
      %vm777 = vcmp.ne.s32.totalorder %v637, 0
      %vm778 = vcmp.ne.s32.totalorder %v644, 0
      %vm779 = vcmp.ne.s32.totalorder %v651, 0
      %vm780 = vcmp.ne.s32.totalorder %v658, 0
      %vm781 = vcmp.ne.s32.totalorder %v665, 0
      %vm782 = vcmp.ne.s32.totalorder %v672, 0
      %vm783 = vcmp.ne.s32.totalorder %v679, 0
      %vm784 = vcmp.ne.s32.totalorder %v686, 0
      %vm785 = vcmp.ne.s32.totalorder %v693, 0
      %vm786 = vcmp.ne.s32.totalorder %v700, 0
      %vm787 = vcmp.ne.s32.totalorder %v707, 0
      %vm788 = vcmp.ne.s32.totalorder %v714, 0
      %vm789 = vcmp.ne.s32.totalorder %v721, 0
      %vm790 = vcmp.ne.s32.totalorder %v728, 0
      %vm791 = vcmp.ne.s32.totalorder %v735, 0
      %vm792 = vcmp.ne.s32.totalorder %v742, 0
      %vm793 = vcmp.ne.s32.totalorder %v749, 0
      %vm794 = vcmp.ne.s32.totalorder %v756, 0
      %vm795 = vcmp.ne.s32.totalorder %v763, 0
      %vm796 = vcmp.lt.s32.totalorder %v546, 0
      %vm797 = vcmp.lt.s32.totalorder %v553, 0
      %vm798 = vcmp.lt.s32.totalorder %v560, 0
      %vm799 = vcmp.lt.s32.totalorder %v567, 0
      %vm800 = vcmp.lt.s32.totalorder %v574, 0
      %vm801 = vcmp.lt.s32.totalorder %v581, 0
      %vm802 = vcmp.lt.s32.totalorder %v588, 0
      %vm803 = vcmp.lt.s32.totalorder %v595, 0
      %vm804 = vcmp.lt.s32.totalorder %v602, 0
      %vm805 = vcmp.lt.s32.totalorder %v609, 0
      %vm806 = vcmp.lt.s32.totalorder %v616, 0
      %vm807 = vcmp.lt.s32.totalorder %v623, 0
      %vm808 = vcmp.lt.s32.totalorder %v630, 0
      %vm809 = vcmp.lt.s32.totalorder %v637, 0
      %vm810 = vcmp.lt.s32.totalorder %v644, 0
      %vm811 = vcmp.lt.s32.totalorder %v651, 0
      %vm812 = vcmp.lt.s32.totalorder %v658, 0
      %vm813 = vcmp.lt.s32.totalorder %v665, 0
      %vm814 = vcmp.lt.s32.totalorder %v672, 0
      %vm815 = vcmp.lt.s32.totalorder %v679, 0
      %vm816 = vcmp.lt.s32.totalorder %v686, 0
      %vm817 = vcmp.lt.s32.totalorder %v693, 0
      %vm818 = vcmp.lt.s32.totalorder %v700, 0
      %vm819 = vcmp.lt.s32.totalorder %v707, 0
      %vm820 = vcmp.lt.s32.totalorder %v714, 0
      %vm821 = vcmp.lt.s32.totalorder %v721, 0
      %vm822 = vcmp.lt.s32.totalorder %v728, 0
      %vm823 = vcmp.lt.s32.totalorder %v735, 0
      %vm824 = vcmp.lt.s32.totalorder %v742, 0
      %vm825 = vcmp.lt.s32.totalorder %v749, 0
      %vm826 = vcmp.lt.s32.totalorder %v756, 0
      %vm827 = vcmp.lt.s32.totalorder %v763, 0
      %vm828 = vmand %vm796, %vm764
      %vm829 = vmand %vm797, %vm765
      %vm830 = vmand %vm798, %vm766
      %vm831 = vmand %vm799, %vm767
      %vm832 = vmand %vm800, %vm768
      %vm833 = vmand %vm801, %vm769
      %vm834 = vmand %vm802, %vm770
      %vm835 = vmand %vm803, %vm771
      %vm836 = vmand %vm804, %vm772
      %vm837 = vmand %vm805, %vm773
      %vm838 = vmand %vm806, %vm774
      %vm839 = vmand %vm807, %vm775
      %vm840 = vmand %vm808, %vm776
      %vm841 = vmand %vm809, %vm777
      %vm842 = vmand %vm810, %vm778
      %vm843 = vmand %vm811, %vm779
      %vm844 = vmand %vm812, %vm780
      %vm845 = vmand %vm813, %vm781
      %vm846 = vmand %vm814, %vm782
      %vm847 = vmand %vm815, %vm783
      %vm848 = vmand %vm816, %vm784
      %vm849 = vmand %vm817, %vm785
      %vm850 = vmand %vm818, %vm786
      %vm851 = vmand %vm819, %vm787
      %vm852 = vmand %vm820, %vm788
      %vm853 = vmand %vm821, %vm789
      %vm854 = vmand %vm822, %vm790
      %vm855 = vmand %vm823, %vm791
      %vm856 = vmand %vm824, %vm792
      %vm857 = vmand %vm825, %vm793
      %vm858 = vmand %vm826, %vm794
      %vm859 = vmand %vm827, %vm795
      %v860 = vadd.s32 %v546, 16
      %v861 = vadd.s32 %v553, 16
      %v862 = vadd.s32 %v560, 16
      %v863 = vadd.s32 %v567, 16
      %v864 = vadd.s32 %v574, 16
      %v865 = vadd.s32 %v581, 16
      %v866 = vadd.s32 %v588, 16
      %v867 = vadd.s32 %v595, 16
      %v868 = vadd.s32 %v602, 16
      %v869 = vadd.s32 %v609, 16
      %v870 = vadd.s32 %v616, 16
      %v871 = vadd.s32 %v623, 16
      %v872 = vadd.s32 %v630, 16
      %v873 = vadd.s32 %v637, 16
      %v874 = vadd.s32 %v644, 16
      %v875 = vadd.s32 %v651, 16
      %v876 = vadd.s32 %v658, 16
      %v877 = vadd.s32 %v665, 16
      %v878 = vadd.s32 %v672, 16
      %v879 = vadd.s32 %v679, 16
      %v880 = vadd.s32 %v686, 16
      %v881 = vadd.s32 %v693, 16
      %v882 = vadd.s32 %v700, 16
      %v883 = vadd.s32 %v707, 16
      %v884 = vadd.s32 %v714, 16
      %v885 = vadd.s32 %v721, 16
      %v886 = vadd.s32 %v728, 16
      %v887 = vadd.s32 %v735, 16
      %v888 = vadd.s32 %v742, 16
      %v889 = vadd.s32 %v749, 16
      %v890 = vadd.s32 %v756, 16
      %v891 = vadd.s32 %v763, 16
      %v892 = vsel %vm828, %v860, %v546
      %v893 = vsel %vm829, %v861, %v553
      %v894 = vsel %vm830, %v862, %v560
      %v895 = vsel %vm831, %v863, %v567
      %v896 = vsel %vm832, %v864, %v574
      %v897 = vsel %vm833, %v865, %v581
      %v898 = vsel %vm834, %v866, %v588
      %v899 = vsel %vm835, %v867, %v595
      %v900 = vsel %vm836, %v868, %v602
      %v901 = vsel %vm837, %v869, %v609
      %v902 = vsel %vm838, %v870, %v616
      %v903 = vsel %vm839, %v871, %v623
      %v904 = vsel %vm840, %v872, %v630
      %v905 = vsel %vm841, %v873, %v637
      %v906 = vsel %vm842, %v874, %v644
      %v907 = vsel %vm843, %v875, %v651
      %v908 = vsel %vm844, %v876, %v658
      %v909 = vsel %vm845, %v877, %v665
      %v910 = vsel %vm846, %v878, %v672
      %v911 = vsel %vm847, %v879, %v679
      %v912 = vsel %vm848, %v880, %v686
      %v913 = vsel %vm849, %v881, %v693
      %v914 = vsel %vm850, %v882, %v700
      %v915 = vsel %vm851, %v883, %v707
      %v916 = vsel %vm852, %v884, %v714
      %v917 = vsel %vm853, %v885, %v721
      %v918 = vsel %vm854, %v886, %v728
      %v919 = vsel %vm855, %v887, %v735
      %v920 = vsel %vm856, %v888, %v742
      %v921 = vsel %vm857, %v889, %v749
      %v922 = vsel %vm858, %v890, %v756
      %v923 = vsel %vm859, %v891, %v763
      %v924 = vld [vmem:[#allocation2 + $0x7] sm:$0xff]
      %v925 = vld [vmem:[#allocation2 + $0xf] sm:$0xff]
      %v926 = vld [vmem:[#allocation2 + $0x17] sm:$0xff]
      %v927 = vld [vmem:[#allocation2 + $0x1f] sm:$0xff]
      %v928 = vld [vmem:[#allocation2 + $0x27] sm:$0xff]
      %v929 = vld [vmem:[#allocation2 + $0x2f] sm:$0xff]
      %v930 = vld [vmem:[#allocation2 + $0x37] sm:$0xff]
      %v931 = vld [vmem:[#allocation2 + $0x3f] sm:$0xff]
      %v932 = vld [vmem:[#allocation2 + $0x47] sm:$0xff]
      %v933 = vld [vmem:[#allocation2 + $0x4f] sm:$0xff]
      %v934 = vld [vmem:[#allocation2 + $0x57] sm:$0xff]
      %v935 = vld [vmem:[#allocation2 + $0x5f] sm:$0xff]
      %v936 = vld [vmem:[#allocation2 + $0x67] sm:$0xff]
      %v937 = vld [vmem:[#allocation2 + $0x6f] sm:$0xff]
      %v938 = vld [vmem:[#allocation2 + $0x77] sm:$0xff]
      %v939 = vld [vmem:[#allocation2 + $0x7f] sm:$0xff]
      %v940 = vld [vmem:[#allocation2 + $0x87] sm:$0xff]
      %v941 = vld [vmem:[#allocation2 + $0x8f] sm:$0xff]
      %v942 = vld [vmem:[#allocation2 + $0x97] sm:$0xff]
      %v943 = vld [vmem:[#allocation2 + $0x9f] sm:$0xff]
      %v944 = vld [vmem:[#allocation2 + $0xa7] sm:$0xff]
      %v945 = vld [vmem:[#allocation2 + $0xaf] sm:$0xff]
      %v946 = vld [vmem:[#allocation2 + $0xb7] sm:$0xff]
      %v947 = vld [vmem:[#allocation2 + $0xbf] sm:$0xff]
      %v948 = vld [vmem:[#allocation2 + $0xc7] sm:$0xff]
      %v949 = vld [vmem:[#allocation2 + $0xcf] sm:$0xff]
      %v950 = vld [vmem:[#allocation2 + $0xd7] sm:$0xff]
      %v951 = vld [vmem:[#allocation2 + $0xdf] sm:$0xff]
      %v952 = vld [vmem:[#allocation2 + $0xe7] sm:$0xff]
      %v953 = vld [vmem:[#allocation2 + $0xef] sm:$0xff]
      %v954 = vld [vmem:[#allocation2 + $0xf7] sm:$0xff]
      %v955 = vld [vmem:[#allocation2 + $0xff] sm:$0xff]
      %v956 = vpack.c.bf16 %v925, %v924
      %v957 = vpack.c.bf16 %v927, %v926
      %v958 = vpack.c.bf16 %v929, %v928
      %v959 = vpack.c.bf16 %v931, %v930
      %v960 = vpack.c.bf16 %v933, %v932
      %v961 = vpack.c.bf16 %v935, %v934
      %v962 = vpack.c.bf16 %v937, %v936
      %v963 = vpack.c.bf16 %v939, %v938
      %v964 = vpack.c.bf16 %v941, %v940
      %v965 = vpack.c.bf16 %v943, %v942
      %v966 = vpack.c.bf16 %v945, %v944
      %v967 = vpack.c.bf16 %v947, %v946
      %v968 = vpack.c.bf16 %v949, %v948
      %v969 = vpack.c.bf16 %v951, %v950
      %v970 = vpack.c.bf16 %v953, %v952
      %v971 = vpack.c.bf16 %v955, %v954
      %v972 = vld [vmem:[%s3] sm:$0xf]
      %v973 = vld [vmem:[%s3 + $0x4] sm:$0xf]
      %v974 = vld [vmem:[%s3 + $0x8] sm:$0xf]
      %v975 = vld [vmem:[%s3 + $0xc] sm:$0xf]
      %v976 = vld [vmem:[%s3 + $0x10] sm:$0xf]
      %v977 = vld [vmem:[%s3 + $0x14] sm:$0xf]
      %v978 = vld [vmem:[%s3 + $0x18] sm:$0xf]
      %v979 = vld [vmem:[%s3 + $0x1c] sm:$0xf]
      %v980 = vld [vmem:[%s3 + $0x20] sm:$0xf]
      %v981 = vld [vmem:[%s3 + $0x24] sm:$0xf]
      %v982 = vld [vmem:[%s3 + $0x28] sm:$0xf]
      %v983 = vld [vmem:[%s3 + $0x2c] sm:$0xf]
      %v984 = vld [vmem:[%s3 + $0x30] sm:$0xf]
      %v985 = vld [vmem:[%s3 + $0x34] sm:$0xf]
      %v986 = vld [vmem:[%s3 + $0x38] sm:$0xf]
      %v987 = vld [vmem:[%s3 + $0x3c] sm:$0xf]
      %v988 = vld [vmem:[#allocation2 + $0x107] sm:$0xff]
      %v989 = vld [vmem:[#allocation2 + $0x10f] sm:$0xff]
      %v990 = vpack.c.bf16 %v989, %v988
      %s991 = scalar_lea.vmem %s3, 192
      %v992 = vld [vmem:[%s991] sm:$0xf]
      %v993 = vld [vmem:[%s991 + $0x4] sm:$0xf]
      %v994 = vld [vmem:[%s991 + $0x8] sm:$0xf]
      %v995 = vld [vmem:[%s991 + $0xc] sm:$0xf]
      %v996 = vld [vmem:[%s991 + $0x10] sm:$0xf]
      %v997 = vld [vmem:[%s991 + $0x14] sm:$0xf]
      %v998 = vld [vmem:[%s991 + $0x18] sm:$0xf]
      %v999 = vld [vmem:[%s991 + $0x1c] sm:$0xf]
      %v1000 = vld [vmem:[%s991 + $0x20] sm:$0xf]
      %v1001 = vld [vmem:[%s991 + $0x24] sm:$0xf]
      %v1002 = vld [vmem:[%s991 + $0x28] sm:$0xf]
      %v1003 = vld [vmem:[%s991 + $0x2c] sm:$0xf]
      %v1004 = vld [vmem:[%s991 + $0x30] sm:$0xf]
      %v1005 = vld [vmem:[%s991 + $0x34] sm:$0xf]
      %v1006 = vld [vmem:[%s991 + $0x38] sm:$0xf]
      %v1007 = vld [vmem:[%s991 + $0x3c] sm:$0xf]
      %v1024 = vunpack.c.l.b16 %v992
      %v1025 = vunpack.c.l.b16 %v993
      %v1026 = vunpack.c.l.b16 %v994
      %v1027 = vunpack.c.l.b16 %v995
      %v1028 = vunpack.c.l.b16 %v996
      %v1029 = vunpack.c.l.b16 %v997
      %v1030 = vunpack.c.l.b16 %v998
      %v1031 = vunpack.c.l.b16 %v999
      %v1032 = vunpack.c.l.b16 %v1000
      %v1033 = vunpack.c.l.b16 %v1001
      %v1034 = vunpack.c.l.b16 %v1002
      %v1035 = vunpack.c.l.b16 %v1003
      %v1036 = vunpack.c.l.b16 %v1004
      %v1037 = vunpack.c.l.b16 %v1005
      %v1038 = vunpack.c.l.b16 %v1006
      %v1039 = vunpack.c.l.b16 %v1007
      %v1040 = vpack.c.b16 %v1025, %v1024
      %v1041 = vpack.c.b16 %v1027, %v1026
      %v1042 = vpack.c.b16 %v1029, %v1028
      %v1043 = vpack.c.b16 %v1031, %v1030
      %v1044 = vpack.c.b16 %v1033, %v1032
      %v1045 = vpack.c.b16 %v1035, %v1034
      %v1046 = vpack.c.b16 %v1037, %v1036
      %v1047 = vpack.c.b16 %v1039, %v1038
      %1056 = vmatpush.bf16.msra.mxu0 %v1047
      %1057 = vmatpush.bf16.msra.mxu0 %v1046
      %1058 = vmatpush.bf16.msra.mxu0 %v1045
      %1059 = vmatpush.bf16.msra.mxu0 %v1044
      %1060 = vmatpush.bf16.msra.mxu0 %v1043
      %1061 = vmatpush.bf16.msra.mxu0 %v1042
      %1062 = vmatpush.bf16.msra.mxu0 %v1041
      %1063 = vmatpush.bf16.msra.mxu0 %v1040
      %1064 = vmatmul.bf16.gmra.mxu0 %v957
      %v1065 = vpop.f32.mrf.mxu0
      %v1066 = vadd.f32 0.0, %v1065
      %v1067 = vpop.f32.mrf.mxu0
      %v1068 = vadd.f32 0.0, %v1067
      %1069 = vmatmul.bf16.gmra.mxu0 %v958
      %v1070 = vpop.f32.mrf.mxu0
      %v1071 = vadd.f32 0.0, %v1070
      %v1072 = vpop.f32.mrf.mxu0
      %v1073 = vadd.f32 0.0, %v1072
      %1074 = vmatmul.bf16.gmra.mxu0 %v959
      %v1075 = vpop.f32.mrf.mxu0
      %v1076 = vadd.f32 0.0, %v1075
      %v1077 = vpop.f32.mrf.mxu0
      %v1078 = vadd.f32 0.0, %v1077
      %1079 = vmatmul.bf16.gmra.mxu0 %v960
      %v1080 = vpop.f32.mrf.mxu0
      %v1081 = vadd.f32 0.0, %v1080
      %v1082 = vpop.f32.mrf.mxu0
      %v1083 = vadd.f32 0.0, %v1082
      %1084 = vmatmul.bf16.gmra.mxu0 %v961
      %v1085 = vpop.f32.mrf.mxu0
      %v1086 = vadd.f32 0.0, %v1085
      %v1087 = vpop.f32.mrf.mxu0
      %v1088 = vadd.f32 0.0, %v1087
      %1089 = vmatmul.bf16.gmra.mxu0 %v962
      %v1090 = vpop.f32.mrf.mxu0
      %v1091 = vadd.f32 0.0, %v1090
      %v1092 = vpop.f32.mrf.mxu0
      %v1093 = vadd.f32 0.0, %v1092
      %1094 = vmatmul.bf16.gmra.mxu0 %v963
      %v1095 = vpop.f32.mrf.mxu0
      %v1096 = vadd.f32 0.0, %v1095
      %v1097 = vpop.f32.mrf.mxu0
      %v1098 = vadd.f32 0.0, %v1097
      %1099 = vmatmul.bf16.gmra.mxu0 %v964
      %v1100 = vpop.f32.mrf.mxu0
      %v1101 = vadd.f32 0.0, %v1100
      %v1102 = vpop.f32.mrf.mxu0
      %v1103 = vadd.f32 0.0, %v1102
      %1104 = vmatmul.bf16.gmra.mxu0 %v965
      %v1105 = vpop.f32.mrf.mxu0
      %v1106 = vadd.f32 0.0, %v1105
      %v1107 = vpop.f32.mrf.mxu0
      %v1108 = vadd.f32 0.0, %v1107
      %1109 = vmatmul.bf16.gmra.mxu0 %v966
      %v1110 = vpop.f32.mrf.mxu0
      %v1111 = vadd.f32 0.0, %v1110
      %v1112 = vpop.f32.mrf.mxu0
      %v1113 = vadd.f32 0.0, %v1112
      %1114 = vmatmul.bf16.gmra.mxu0 %v967
      %v1115 = vpop.f32.mrf.mxu0
      %v1116 = vadd.f32 0.0, %v1115
      %v1117 = vpop.f32.mrf.mxu0
      %v1118 = vadd.f32 0.0, %v1117
      %1119 = vmatmul.bf16.gmra.mxu0 %v968
      %v1120 = vpop.f32.mrf.mxu0
      %v1121 = vadd.f32 0.0, %v1120
      %v1122 = vpop.f32.mrf.mxu0
      %v1123 = vadd.f32 0.0, %v1122
      %1124 = vmatmul.bf16.gmra.mxu0 %v969
      %v1125 = vpop.f32.mrf.mxu0
      %v1126 = vadd.f32 0.0, %v1125
      %v1127 = vpop.f32.mrf.mxu0
      %v1128 = vadd.f32 0.0, %v1127
      %1129 = vmatmul.bf16.gmra.mxu0 %v970
      %v1130 = vpop.f32.mrf.mxu0
      %v1131 = vadd.f32 0.0, %v1130
      %v1132 = vpop.f32.mrf.mxu0
      %v1133 = vadd.f32 0.0, %v1132
      %1134 = vmatmul.bf16.gmra.mxu0 %v971
      %v1135 = vpop.f32.mrf.mxu0
      %v1136 = vadd.f32 0.0, %v1135
      %v1137 = vpop.f32.mrf.mxu0
      %v1138 = vadd.f32 0.0, %v1137
      %1139 = vmatmul.bf16.gmra.mxu0 %v990
      %v1140 = vpop.f32.mrf.mxu0
      %v1141 = vadd.f32 0.0, %v1140
      %v1142 = vpop.f32.mrf.mxu0
      %v1143 = vadd.f32 0.0, %v1142
      %1144 = vdwg.mxu0
      %v1161 = vunpack.c.l.b16 %v972
      %v1162 = vunpack.c.l.b16 %v973
      %v1163 = vunpack.c.l.b16 %v974
      %v1164 = vunpack.c.l.b16 %v975
      %v1165 = vunpack.c.l.b16 %v976
      %v1166 = vunpack.c.l.b16 %v977
      %v1167 = vunpack.c.l.b16 %v978
      %v1168 = vunpack.c.l.b16 %v979
      %v1169 = vunpack.c.l.b16 %v980
      %v1170 = vunpack.c.l.b16 %v981
      %v1171 = vunpack.c.l.b16 %v982
      %v1172 = vunpack.c.l.b16 %v983
      %v1173 = vunpack.c.l.b16 %v984
      %v1174 = vunpack.c.l.b16 %v985
      %v1175 = vunpack.c.l.b16 %v986
      %v1176 = vunpack.c.l.b16 %v987
      %v1177 = vpack.c.b16 %v1162, %v1161
      %v1178 = vpack.c.b16 %v1164, %v1163
      %v1179 = vpack.c.b16 %v1166, %v1165
      %v1180 = vpack.c.b16 %v1168, %v1167
      %v1181 = vpack.c.b16 %v1170, %v1169
      %v1182 = vpack.c.b16 %v1172, %v1171
      %v1183 = vpack.c.b16 %v1174, %v1173
      %v1184 = vpack.c.b16 %v1176, %v1175
      %1193 = vmatpush.bf16.msra.mxu0 %v1184
      %1194 = vmatpush.bf16.msra.mxu0 %v1183
      %1195 = vmatpush.bf16.msra.mxu0 %v1182
      %1196 = vmatpush.bf16.msra.mxu0 %v1181
      %1197 = vmatpush.bf16.msra.mxu0 %v1180
      %1198 = vmatpush.bf16.msra.mxu0 %v1179
      %1199 = vmatpush.bf16.msra.mxu0 %v1178
      %1200 = vmatpush.bf16.msra.mxu0 %v1177
      %1201 = vmatmul.bf16.gmra.mxu0 %v956
      %v1202 = vpop.f32.mrf.mxu0
      %v1203 = vadd.f32 %v1066, %v1202
      %v1204 = vpop.f32.mrf.mxu0
      %v1205 = vadd.f32 %v1068, %v1204
      %1206 = vmatmul.bf16.gmra.mxu0 %v957
      %v1207 = vpop.f32.mrf.mxu0
      %v1208 = vadd.f32 %v1071, %v1207
      %v1209 = vpop.f32.mrf.mxu0
      %v1210 = vadd.f32 %v1073, %v1209
      %1211 = vmatmul.bf16.gmra.mxu0 %v958
      %v1212 = vpop.f32.mrf.mxu0
      %v1213 = vadd.f32 %v1076, %v1212
      %v1214 = vpop.f32.mrf.mxu0
      %v1215 = vadd.f32 %v1078, %v1214
      %1216 = vmatmul.bf16.gmra.mxu0 %v959
      %v1217 = vpop.f32.mrf.mxu0
      %v1218 = vadd.f32 %v1081, %v1217
      %v1219 = vpop.f32.mrf.mxu0
      %v1220 = vadd.f32 %v1083, %v1219
      %1221 = vmatmul.bf16.gmra.mxu0 %v960
      %v1222 = vpop.f32.mrf.mxu0
      %v1223 = vadd.f32 %v1086, %v1222
      %v1224 = vpop.f32.mrf.mxu0
      %v1225 = vadd.f32 %v1088, %v1224
      %1226 = vmatmul.bf16.gmra.mxu0 %v961
      %v1227 = vpop.f32.mrf.mxu0
      %v1228 = vadd.f32 %v1091, %v1227
      %v1229 = vpop.f32.mrf.mxu0
      %v1230 = vadd.f32 %v1093, %v1229
      %1231 = vmatmul.bf16.gmra.mxu0 %v962
      %v1232 = vpop.f32.mrf.mxu0
      %v1233 = vadd.f32 %v1096, %v1232
      %v1234 = vpop.f32.mrf.mxu0
      %v1235 = vadd.f32 %v1098, %v1234
      %1236 = vmatmul.bf16.gmra.mxu0 %v963
      %v1237 = vpop.f32.mrf.mxu0
      %v1238 = vadd.f32 %v1101, %v1237
      %v1239 = vpop.f32.mrf.mxu0
      %v1240 = vadd.f32 %v1103, %v1239
      %1241 = vmatmul.bf16.gmra.mxu0 %v964
      %v1242 = vpop.f32.mrf.mxu0
      %v1243 = vadd.f32 %v1106, %v1242
      %v1244 = vpop.f32.mrf.mxu0
      %v1245 = vadd.f32 %v1108, %v1244
      %1246 = vmatmul.bf16.gmra.mxu0 %v965
      %v1247 = vpop.f32.mrf.mxu0
      %v1248 = vadd.f32 %v1111, %v1247
      %v1249 = vpop.f32.mrf.mxu0
      %v1250 = vadd.f32 %v1113, %v1249
      %1251 = vmatmul.bf16.gmra.mxu0 %v966
      %v1252 = vpop.f32.mrf.mxu0
      %v1253 = vadd.f32 %v1116, %v1252
      %v1254 = vpop.f32.mrf.mxu0
      %v1255 = vadd.f32 %v1118, %v1254
      %1256 = vmatmul.bf16.gmra.mxu0 %v967
      %v1257 = vpop.f32.mrf.mxu0
      %v1258 = vadd.f32 %v1121, %v1257
      %v1259 = vpop.f32.mrf.mxu0
      %v1260 = vadd.f32 %v1123, %v1259
      %1261 = vmatmul.bf16.gmra.mxu0 %v968
      %v1262 = vpop.f32.mrf.mxu0
      %v1263 = vadd.f32 %v1126, %v1262
      %v1264 = vpop.f32.mrf.mxu0
      %v1265 = vadd.f32 %v1128, %v1264
      %1266 = vmatmul.bf16.gmra.mxu0 %v969
      %v1267 = vpop.f32.mrf.mxu0
      %v1268 = vadd.f32 %v1131, %v1267
      %v1269 = vpop.f32.mrf.mxu0
      %v1270 = vadd.f32 %v1133, %v1269
      %1271 = vmatmul.bf16.gmra.mxu0 %v970
      %v1272 = vpop.f32.mrf.mxu0
      %v1273 = vadd.f32 %v1136, %v1272
      %v1274 = vpop.f32.mrf.mxu0
      %v1275 = vadd.f32 %v1138, %v1274
      %1276 = vmatmul.bf16.gmra.mxu0 %v971
      %v1277 = vpop.f32.mrf.mxu0
      %v1278 = vadd.f32 %v1141, %v1277
      %v1279 = vpop.f32.mrf.mxu0
      %v1280 = vadd.f32 %v1143, %v1279
      %1281 = vdwg.mxu0
      %v1282 = vld [vmem:[#allocation2 + $0x27] sm:$0xff]
      %v1283 = vld [vmem:[#allocation2 + $0x2f] sm:$0xff]
      %v1284 = vld [vmem:[#allocation2 + $0x37] sm:$0xff]
      %v1285 = vld [vmem:[#allocation2 + $0x3f] sm:$0xff]
      %v1286 = vld [vmem:[#allocation2 + $0x47] sm:$0xff]
      %v1287 = vld [vmem:[#allocation2 + $0x4f] sm:$0xff]
      %v1288 = vld [vmem:[#allocation2 + $0x57] sm:$0xff]
      %v1289 = vld [vmem:[#allocation2 + $0x5f] sm:$0xff]
      %v1290 = vld [vmem:[#allocation2 + $0x67] sm:$0xff]
      %v1291 = vld [vmem:[#allocation2 + $0x6f] sm:$0xff]
      %v1292 = vld [vmem:[#allocation2 + $0x77] sm:$0xff]
      %v1293 = vld [vmem:[#allocation2 + $0x7f] sm:$0xff]
      %v1294 = vld [vmem:[#allocation2 + $0x87] sm:$0xff]
      %v1295 = vld [vmem:[#allocation2 + $0x8f] sm:$0xff]
      %v1296 = vld [vmem:[#allocation2 + $0x97] sm:$0xff]
      %v1297 = vld [vmem:[#allocation2 + $0x9f] sm:$0xff]
      %v1298 = vld [vmem:[#allocation2 + $0xa7] sm:$0xff]
      %v1299 = vld [vmem:[#allocation2 + $0xaf] sm:$0xff]
      %v1300 = vld [vmem:[#allocation2 + $0xb7] sm:$0xff]
      %v1301 = vld [vmem:[#allocation2 + $0xbf] sm:$0xff]
      %v1302 = vld [vmem:[#allocation2 + $0xc7] sm:$0xff]
      %v1303 = vld [vmem:[#allocation2 + $0xcf] sm:$0xff]
      %v1304 = vld [vmem:[#allocation2 + $0xd7] sm:$0xff]
      %v1305 = vld [vmem:[#allocation2 + $0xdf] sm:$0xff]
      %v1306 = vld [vmem:[#allocation2 + $0xe7] sm:$0xff]
      %v1307 = vld [vmem:[#allocation2 + $0xef] sm:$0xff]
      %v1308 = vld [vmem:[#allocation2 + $0xf7] sm:$0xff]
      %v1309 = vld [vmem:[#allocation2 + $0xff] sm:$0xff]
      %v1310 = vld [vmem:[#allocation2 + $0x107] sm:$0xff]
      %v1311 = vld [vmem:[#allocation2 + $0x10f] sm:$0xff]
      %v1312 = vld [vmem:[#allocation2 + $0x117] sm:$0xff]
      %v1313 = vld [vmem:[#allocation2 + $0x11f] sm:$0xff]
      %v1314 = vpack.c.bf16 %v1283, %v1282
      %v1315 = vpack.c.bf16 %v1285, %v1284
      %v1316 = vpack.c.bf16 %v1287, %v1286
      %v1317 = vpack.c.bf16 %v1289, %v1288
      %v1318 = vpack.c.bf16 %v1291, %v1290
      %v1319 = vpack.c.bf16 %v1293, %v1292
      %v1320 = vpack.c.bf16 %v1295, %v1294
      %v1321 = vpack.c.bf16 %v1297, %v1296
      %v1322 = vpack.c.bf16 %v1299, %v1298
      %v1323 = vpack.c.bf16 %v1301, %v1300
      %v1324 = vpack.c.bf16 %v1303, %v1302
      %v1325 = vpack.c.bf16 %v1305, %v1304
      %v1326 = vpack.c.bf16 %v1307, %v1306
      %v1327 = vpack.c.bf16 %v1309, %v1308
      %v1328 = vpack.c.bf16 %v1311, %v1310
      %v1329 = vpack.c.bf16 %v1313, %v1312
      %s1330 = scalar_lea.vmem %s3, 384
      %v1331 = vld [vmem:[%s1330] sm:$0xf]
      %v1332 = vld [vmem:[%s1330 + $0x4] sm:$0xf]
      %v1333 = vld [vmem:[%s1330 + $0x8] sm:$0xf]
      %v1334 = vld [vmem:[%s1330 + $0xc] sm:$0xf]
      %v1335 = vld [vmem:[%s1330 + $0x10] sm:$0xf]
      %v1336 = vld [vmem:[%s1330 + $0x14] sm:$0xf]
      %v1337 = vld [vmem:[%s1330 + $0x18] sm:$0xf]
      %v1338 = vld [vmem:[%s1330 + $0x1c] sm:$0xf]
      %v1339 = vld [vmem:[%s1330 + $0x20] sm:$0xf]
      %v1340 = vld [vmem:[%s1330 + $0x24] sm:$0xf]
      %v1341 = vld [vmem:[%s1330 + $0x28] sm:$0xf]
      %v1342 = vld [vmem:[%s1330 + $0x2c] sm:$0xf]
      %v1343 = vld [vmem:[%s1330 + $0x30] sm:$0xf]
      %v1344 = vld [vmem:[%s1330 + $0x34] sm:$0xf]
      %v1345 = vld [vmem:[%s1330 + $0x38] sm:$0xf]
      %v1346 = vld [vmem:[%s1330 + $0x3c] sm:$0xf]
      %v1363 = vunpack.c.l.b16 %v1331
      %v1364 = vunpack.c.l.b16 %v1332
      %v1365 = vunpack.c.l.b16 %v1333
      %v1366 = vunpack.c.l.b16 %v1334
      %v1367 = vunpack.c.l.b16 %v1335
      %v1368 = vunpack.c.l.b16 %v1336
      %v1369 = vunpack.c.l.b16 %v1337
      %v1370 = vunpack.c.l.b16 %v1338
      %v1371 = vunpack.c.l.b16 %v1339
      %v1372 = vunpack.c.l.b16 %v1340
      %v1373 = vunpack.c.l.b16 %v1341
      %v1374 = vunpack.c.l.b16 %v1342
      %v1375 = vunpack.c.l.b16 %v1343
      %v1376 = vunpack.c.l.b16 %v1344
      %v1377 = vunpack.c.l.b16 %v1345
      %v1378 = vunpack.c.l.b16 %v1346
      %v1379 = vpack.c.b16 %v1364, %v1363
      %v1380 = vpack.c.b16 %v1366, %v1365
      %v1381 = vpack.c.b16 %v1368, %v1367
      %v1382 = vpack.c.b16 %v1370, %v1369
      %v1383 = vpack.c.b16 %v1372, %v1371
      %v1384 = vpack.c.b16 %v1374, %v1373
      %v1385 = vpack.c.b16 %v1376, %v1375
      %v1386 = vpack.c.b16 %v1378, %v1377
      %1395 = vmatpush.bf16.msra.mxu0 %v1386
      %1396 = vmatpush.bf16.msra.mxu0 %v1385
      %1397 = vmatpush.bf16.msra.mxu0 %v1384
      %1398 = vmatpush.bf16.msra.mxu0 %v1383
      %1399 = vmatpush.bf16.msra.mxu0 %v1382
      %1400 = vmatpush.bf16.msra.mxu0 %v1381
      %1401 = vmatpush.bf16.msra.mxu0 %v1380
      %1402 = vmatpush.bf16.msra.mxu0 %v1379
      %1403 = vmatmul.bf16.gmra.mxu0 %v1314
      %v1404 = vpop.f32.mrf.mxu0
      %v1405 = vadd.f32 0.0, %v1404
      %v1406 = vpop.f32.mrf.mxu0
      %v1407 = vadd.f32 0.0, %v1406
      %1408 = vmatmul.bf16.gmra.mxu0 %v1315
      %v1409 = vpop.f32.mrf.mxu0
      %v1410 = vadd.f32 0.0, %v1409
      %v1411 = vpop.f32.mrf.mxu0
      %v1412 = vadd.f32 0.0, %v1411
      %1413 = vmatmul.bf16.gmra.mxu0 %v1316
      %v1414 = vpop.f32.mrf.mxu0
      %v1415 = vadd.f32 0.0, %v1414
      %v1416 = vpop.f32.mrf.mxu0
      %v1417 = vadd.f32 0.0, %v1416
      %1418 = vmatmul.bf16.gmra.mxu0 %v1317
      %v1419 = vpop.f32.mrf.mxu0
      %v1420 = vadd.f32 0.0, %v1419
      %v1421 = vpop.f32.mrf.mxu0
      %v1422 = vadd.f32 0.0, %v1421
      %1423 = vmatmul.bf16.gmra.mxu0 %v1318
      %v1424 = vpop.f32.mrf.mxu0
      %v1425 = vadd.f32 0.0, %v1424
      %v1426 = vpop.f32.mrf.mxu0
      %v1427 = vadd.f32 0.0, %v1426
      %1428 = vmatmul.bf16.gmra.mxu0 %v1319
      %v1429 = vpop.f32.mrf.mxu0
      %v1430 = vadd.f32 0.0, %v1429
      %v1431 = vpop.f32.mrf.mxu0
      %v1432 = vadd.f32 0.0, %v1431
      %1433 = vmatmul.bf16.gmra.mxu0 %v1320
      %v1434 = vpop.f32.mrf.mxu0
      %v1435 = vadd.f32 0.0, %v1434
      %v1436 = vpop.f32.mrf.mxu0
      %v1437 = vadd.f32 0.0, %v1436
      %1438 = vmatmul.bf16.gmra.mxu0 %v1321
      %v1439 = vpop.f32.mrf.mxu0
      %v1440 = vadd.f32 0.0, %v1439
      %v1441 = vpop.f32.mrf.mxu0
      %v1442 = vadd.f32 0.0, %v1441
      %1443 = vmatmul.bf16.gmra.mxu0 %v1322
      %v1444 = vpop.f32.mrf.mxu0
      %v1445 = vadd.f32 0.0, %v1444
      %v1446 = vpop.f32.mrf.mxu0
      %v1447 = vadd.f32 0.0, %v1446
      %1448 = vmatmul.bf16.gmra.mxu0 %v1323
      %v1449 = vpop.f32.mrf.mxu0
      %v1450 = vadd.f32 0.0, %v1449
      %v1451 = vpop.f32.mrf.mxu0
      %v1452 = vadd.f32 0.0, %v1451
      %1453 = vmatmul.bf16.gmra.mxu0 %v1324
      %v1454 = vpop.f32.mrf.mxu0
      %v1455 = vadd.f32 0.0, %v1454
      %v1456 = vpop.f32.mrf.mxu0
      %v1457 = vadd.f32 0.0, %v1456
      %1458 = vmatmul.bf16.gmra.mxu0 %v1325
      %v1459 = vpop.f32.mrf.mxu0
      %v1460 = vadd.f32 0.0, %v1459
      %v1461 = vpop.f32.mrf.mxu0
      %v1462 = vadd.f32 0.0, %v1461
      %1463 = vmatmul.bf16.gmra.mxu0 %v1326
      %v1464 = vpop.f32.mrf.mxu0
      %v1465 = vadd.f32 0.0, %v1464
      %v1466 = vpop.f32.mrf.mxu0
      %v1467 = vadd.f32 0.0, %v1466
      %1468 = vmatmul.bf16.gmra.mxu0 %v1327
      %v1469 = vpop.f32.mrf.mxu0
      %v1470 = vadd.f32 0.0, %v1469
      %v1471 = vpop.f32.mrf.mxu0
      %v1472 = vadd.f32 0.0, %v1471
      %1473 = vmatmul.bf16.gmra.mxu0 %v1328
      %v1474 = vpop.f32.mrf.mxu0
      %v1475 = vadd.f32 0.0, %v1474
      %v1476 = vpop.f32.mrf.mxu0
      %v1477 = vadd.f32 0.0, %v1476
      %1478 = vmatmul.bf16.gmra.mxu0 %v1329
      %v1479 = vpop.f32.mrf.mxu0
      %v1480 = vadd.f32 0.0, %v1479
      %v1481 = vpop.f32.mrf.mxu0
      %v1482 = vadd.f32 0.0, %v1481
      %1483 = vdwg.mxu0
      %v1484 = vadd.f32 %v1203, %v1405
      %v1485 = vadd.f32 %v1205, %v1407
      %v1486 = vadd.f32 %v1208, %v1410
      %v1487 = vadd.f32 %v1210, %v1412
      %v1488 = vadd.f32 %v1213, %v1415
      %v1489 = vadd.f32 %v1215, %v1417
      %v1490 = vadd.f32 %v1218, %v1420
      %v1491 = vadd.f32 %v1220, %v1422
      %v1492 = vadd.f32 %v1223, %v1425
      %v1493 = vadd.f32 %v1225, %v1427
      %v1494 = vadd.f32 %v1228, %v1430
      %v1495 = vadd.f32 %v1230, %v1432
      %v1496 = vadd.f32 %v1233, %v1435
      %v1497 = vadd.f32 %v1235, %v1437
      %v1498 = vadd.f32 %v1238, %v1440
      %v1499 = vadd.f32 %v1240, %v1442
      %v1500 = vadd.f32 %v1243, %v1445
      %v1501 = vadd.f32 %v1245, %v1447
      %v1502 = vadd.f32 %v1248, %v1450
      %v1503 = vadd.f32 %v1250, %v1452
      %v1504 = vadd.f32 %v1253, %v1455
      %v1505 = vadd.f32 %v1255, %v1457
      %v1506 = vadd.f32 %v1258, %v1460
      %v1507 = vadd.f32 %v1260, %v1462
      %v1508 = vadd.f32 %v1263, %v1465
      %v1509 = vadd.f32 %v1265, %v1467
      %v1510 = vadd.f32 %v1268, %v1470
      %v1511 = vadd.f32 %v1270, %v1472
      %v1512 = vadd.f32 %v1273, %v1475
      %v1513 = vadd.f32 %v1275, %v1477
      %v1514 = vadd.f32 %v1278, %v1480
      %v1515 = vadd.f32 %v1280, %v1482
      %vm1516 = vcmp.ge.s32.totalorder %v892, 1
      %vm1517 = vcmp.ge.s32.totalorder %v893, 1
      %vm1518 = vcmp.ge.s32.totalorder %v894, 1
      %vm1519 = vcmp.ge.s32.totalorder %v895, 1
      %vm1520 = vcmp.ge.s32.totalorder %v896, 1
      %vm1521 = vcmp.ge.s32.totalorder %v897, 1
      %vm1522 = vcmp.ge.s32.totalorder %v898, 1
      %vm1523 = vcmp.ge.s32.totalorder %v899, 1
      %vm1524 = vcmp.ge.s32.totalorder %v900, 1
      %vm1525 = vcmp.ge.s32.totalorder %v901, 1
      %vm1526 = vcmp.ge.s32.totalorder %v902, 1
      %vm1527 = vcmp.ge.s32.totalorder %v903, 1
      %vm1528 = vcmp.ge.s32.totalorder %v904, 1
      %vm1529 = vcmp.ge.s32.totalorder %v905, 1
      %vm1530 = vcmp.ge.s32.totalorder %v906, 1
      %vm1531 = vcmp.ge.s32.totalorder %v907, 1
      %vm1532 = vcmp.ge.s32.totalorder %v908, 1
      %vm1533 = vcmp.ge.s32.totalorder %v909, 1
      %vm1534 = vcmp.ge.s32.totalorder %v910, 1
      %vm1535 = vcmp.ge.s32.totalorder %v911, 1
      %vm1536 = vcmp.ge.s32.totalorder %v912, 1
      %vm1537 = vcmp.ge.s32.totalorder %v913, 1
      %vm1538 = vcmp.ge.s32.totalorder %v914, 1
      %vm1539 = vcmp.ge.s32.totalorder %v915, 1
      %vm1540 = vcmp.ge.s32.totalorder %v916, 1
      %vm1541 = vcmp.ge.s32.totalorder %v917, 1
      %vm1542 = vcmp.ge.s32.totalorder %v918, 1
      %vm1543 = vcmp.ge.s32.totalorder %v919, 1
      %vm1544 = vcmp.ge.s32.totalorder %v920, 1
      %vm1545 = vcmp.ge.s32.totalorder %v921, 1
      %vm1546 = vcmp.ge.s32.totalorder %v922, 1
      %vm1547 = vcmp.ge.s32.totalorder %v923, 1
      %v1548 = vsel %vm1516, 1, 0
      %v1549 = vsel %vm1517, 1, 0
      %v1550 = vsel %vm1518, 1, 0
      %v1551 = vsel %vm1519, 1, 0
      %v1552 = vsel %vm1520, 1, 0
      %v1553 = vsel %vm1521, 1, 0
      %v1554 = vsel %vm1522, 1, 0
      %v1555 = vsel %vm1523, 1, 0
      %v1556 = vsel %vm1524, 1, 0
      %v1557 = vsel %vm1525, 1, 0
      %v1558 = vsel %vm1526, 1, 0
      %v1559 = vsel %vm1527, 1, 0
      %v1560 = vsel %vm1528, 1, 0
      %v1561 = vsel %vm1529, 1, 0
      %v1562 = vsel %vm1530, 1, 0
      %v1563 = vsel %vm1531, 1, 0
      %v1564 = vsel %vm1532, 1, 0
      %v1565 = vsel %vm1533, 1, 0
      %v1566 = vsel %vm1534, 1, 0
      %v1567 = vsel %vm1535, 1, 0
      %v1568 = vsel %vm1536, 1, 0
      %v1569 = vsel %vm1537, 1, 0
      %v1570 = vsel %vm1538, 1, 0
      %v1571 = vsel %vm1539, 1, 0
      %v1572 = vsel %vm1540, 1, 0
      %v1573 = vsel %vm1541, 1, 0
      %v1574 = vsel %vm1542, 1, 0
      %v1575 = vsel %vm1543, 1, 0
      %v1576 = vsel %vm1544, 1, 0
      %v1577 = vsel %vm1545, 1, 0
      %v1578 = vsel %vm1546, 1, 0
      %v1579 = vsel %vm1547, 1, 0
      %vm1580 = vcmp.eq.s32.totalorder %v1548, 1
      %vm1581 = vcmp.eq.s32.totalorder %v1549, 1
      %vm1582 = vcmp.eq.s32.totalorder %v1550, 1
      %vm1583 = vcmp.eq.s32.totalorder %v1551, 1
      %vm1584 = vcmp.eq.s32.totalorder %v1552, 1
      %vm1585 = vcmp.eq.s32.totalorder %v1553, 1
      %vm1586 = vcmp.eq.s32.totalorder %v1554, 1
      %vm1587 = vcmp.eq.s32.totalorder %v1555, 1
      %vm1588 = vcmp.eq.s32.totalorder %v1556, 1
      %vm1589 = vcmp.eq.s32.totalorder %v1557, 1
      %vm1590 = vcmp.eq.s32.totalorder %v1558, 1
      %vm1591 = vcmp.eq.s32.totalorder %v1559, 1
      %vm1592 = vcmp.eq.s32.totalorder %v1560, 1
      %vm1593 = vcmp.eq.s32.totalorder %v1561, 1
      %vm1594 = vcmp.eq.s32.totalorder %v1562, 1
      %vm1595 = vcmp.eq.s32.totalorder %v1563, 1
      %vm1596 = vcmp.eq.s32.totalorder %v1564, 1
      %vm1597 = vcmp.eq.s32.totalorder %v1565, 1
      %vm1598 = vcmp.eq.s32.totalorder %v1566, 1
      %vm1599 = vcmp.eq.s32.totalorder %v1567, 1
      %vm1600 = vcmp.eq.s32.totalorder %v1568, 1
      %vm1601 = vcmp.eq.s32.totalorder %v1569, 1
      %vm1602 = vcmp.eq.s32.totalorder %v1570, 1
      %vm1603 = vcmp.eq.s32.totalorder %v1571, 1
      %vm1604 = vcmp.eq.s32.totalorder %v1572, 1
      %vm1605 = vcmp.eq.s32.totalorder %v1573, 1
      %vm1606 = vcmp.eq.s32.totalorder %v1574, 1
      %vm1607 = vcmp.eq.s32.totalorder %v1575, 1
      %vm1608 = vcmp.eq.s32.totalorder %v1576, 1
      %vm1609 = vcmp.eq.s32.totalorder %v1577, 1
      %vm1610 = vcmp.eq.s32.totalorder %v1578, 1
      %vm1611 = vcmp.eq.s32.totalorder %v1579, 1
      %v1612 = vsel %vm1580, %v1484, 0.0
      %v1613 = vsel %vm1581, %v1485, 0.0
      %v1614 = vsel %vm1582, %v1486, 0.0
      %v1615 = vsel %vm1583, %v1487, 0.0
      %v1616 = vsel %vm1584, %v1488, 0.0
      %v1617 = vsel %vm1585, %v1489, 0.0
      %v1618 = vsel %vm1586, %v1490, 0.0
      %v1619 = vsel %vm1587, %v1491, 0.0
      %v1620 = vsel %vm1588, %v1492, 0.0
      %v1621 = vsel %vm1589, %v1493, 0.0
      %v1622 = vsel %vm1590, %v1494, 0.0
      %v1623 = vsel %vm1591, %v1495, 0.0
      %v1624 = vsel %vm1592, %v1496, 0.0
      %v1625 = vsel %vm1593, %v1497, 0.0
      %v1626 = vsel %vm1594, %v1498, 0.0
      %v1627 = vsel %vm1595, %v1499, 0.0
      %v1628 = vsel %vm1596, %v1500, 0.0
      %v1629 = vsel %vm1597, %v1501, 0.0
      %v1630 = vsel %vm1598, %v1502, 0.0
      %v1631 = vsel %vm1599, %v1503, 0.0
      %v1632 = vsel %vm1600, %v1504, 0.0
      %v1633 = vsel %vm1601, %v1505, 0.0
      %v1634 = vsel %vm1602, %v1506, 0.0
      %v1635 = vsel %vm1603, %v1507, 0.0
      %v1636 = vsel %vm1604, %v1508, 0.0
      %v1637 = vsel %vm1605, %v1509, 0.0
      %v1638 = vsel %vm1606, %v1510, 0.0
      %v1639 = vsel %vm1607, %v1511, 0.0
      %v1640 = vsel %vm1608, %v1512, 0.0
      %v1641 = vsel %vm1609, %v1513, 0.0
      %v1642 = vsel %vm1610, %v1514, 0.0
      %v1643 = vsel %vm1611, %v1515, 0.0
      %v1644 = vadd.f32 %v1612, 0.0
      %v1645 = vadd.f32 %v1613, 0.0
      %v1646 = vadd.f32 %v1614, 0.0
      %v1647 = vadd.f32 %v1615, 0.0
      %v1648 = vadd.f32 %v1616, 0.0
      %v1649 = vadd.f32 %v1617, 0.0
      %v1650 = vadd.f32 %v1618, 0.0
      %v1651 = vadd.f32 %v1619, 0.0
      %v1652 = vadd.f32 %v1620, 0.0
      %v1653 = vadd.f32 %v1621, 0.0
      %v1654 = vadd.f32 %v1622, 0.0
      %v1655 = vadd.f32 %v1623, 0.0
      %v1656 = vadd.f32 %v1624, 0.0
      %v1657 = vadd.f32 %v1625, 0.0
      %v1658 = vadd.f32 %v1626, 0.0
      %v1659 = vadd.f32 %v1627, 0.0
      %v1660 = vadd.f32 %v1628, 0.0
      %v1661 = vadd.f32 %v1629, 0.0
      %v1662 = vadd.f32 %v1630, 0.0
      %v1663 = vadd.f32 %v1631, 0.0
      %v1664 = vadd.f32 %v1632, 0.0
      %v1665 = vadd.f32 %v1633, 0.0
      %v1666 = vadd.f32 %v1634, 0.0
      %v1667 = vadd.f32 %v1635, 0.0
      %v1668 = vadd.f32 %v1636, 0.0
      %v1669 = vadd.f32 %v1637, 0.0
      %v1670 = vadd.f32 %v1638, 0.0
      %v1671 = vadd.f32 %v1639, 0.0
      %v1672 = vadd.f32 %v1640, 0.0
      %v1673 = vadd.f32 %v1641, 0.0
      %v1674 = vadd.f32 %v1642, 0.0
      %v1675 = vadd.f32 %v1643, 0.0
      %v1676 = vld [vmem:[#allocation2 + $0x8] sm:$0xff]
      %v1677 = vld [vmem:[#allocation2 + $0x10] sm:$0xff]
      %v1678 = vld [vmem:[#allocation2 + $0x18] sm:$0xff]
      %v1679 = vld [vmem:[#allocation2 + $0x20] sm:$0xff]
      %v1680 = vld [vmem:[#allocation2 + $0x28] sm:$0xff]
      %v1681 = vld [vmem:[#allocation2 + $0x30] sm:$0xff]
      %v1682 = vld [vmem:[#allocation2 + $0x38] sm:$0xff]
      %v1683 = vld [vmem:[#allocation2 + $0x40] sm:$0xff]
      %v1684 = vld [vmem:[#allocation2 + $0x48] sm:$0xff]
      %v1685 = vld [vmem:[#allocation2 + $0x50] sm:$0xff]
      %v1686 = vld [vmem:[#allocation2 + $0x58] sm:$0xff]
      %v1687 = vld [vmem:[#allocation2 + $0x60] sm:$0xff]
      %v1688 = vld [vmem:[#allocation2 + $0x68] sm:$0xff]
      %v1689 = vld [vmem:[#allocation2 + $0x70] sm:$0xff]
      %v1690 = vld [vmem:[#allocation2 + $0x78] sm:$0xff]
      %v1691 = vld [vmem:[#allocation2 + $0x80] sm:$0xff]
      %v1692 = vld [vmem:[#allocation2 + $0x88] sm:$0xff]
      %v1693 = vld [vmem:[#allocation2 + $0x90] sm:$0xff]
      %v1694 = vld [vmem:[#allocation2 + $0x98] sm:$0xff]
      %v1695 = vld [vmem:[#allocation2 + $0xa0] sm:$0xff]
      %v1696 = vld [vmem:[#allocation2 + $0xa8] sm:$0xff]
      %v1697 = vld [vmem:[#allocation2 + $0xb0] sm:$0xff]
      %v1698 = vld [vmem:[#allocation2 + $0xb8] sm:$0xff]
      %v1699 = vld [vmem:[#allocation2 + $0xc0] sm:$0xff]
      %v1700 = vld [vmem:[#allocation2 + $0xc8] sm:$0xff]
      %v1701 = vld [vmem:[#allocation2 + $0xd0] sm:$0xff]
      %v1702 = vld [vmem:[#allocation2 + $0xd8] sm:$0xff]
      %v1703 = vld [vmem:[#allocation2 + $0xe0] sm:$0xff]
      %v1704 = vld [vmem:[#allocation2 + $0xe8] sm:$0xff]
      %v1705 = vld [vmem:[#allocation2 + $0xf0] sm:$0xff]
      %v1706 = vld [vmem:[#allocation2 + $0xf8] sm:$0xff]
      %v1707 = vld [vmem:[#allocation2 + $0x100] sm:$0xff]
      %v1708 = vpack.c.bf16 %v1677, %v1676
      %v1709 = vpack.c.bf16 %v1679, %v1678
      %v1710 = vpack.c.bf16 %v1681, %v1680
      %v1711 = vpack.c.bf16 %v1683, %v1682
      %v1712 = vpack.c.bf16 %v1685, %v1684
      %v1713 = vpack.c.bf16 %v1687, %v1686
      %v1714 = vpack.c.bf16 %v1689, %v1688
      %v1715 = vpack.c.bf16 %v1691, %v1690
      %v1716 = vpack.c.bf16 %v1693, %v1692
      %v1717 = vpack.c.bf16 %v1695, %v1694
      %v1718 = vpack.c.bf16 %v1697, %v1696
      %v1719 = vpack.c.bf16 %v1699, %v1698
      %v1720 = vpack.c.bf16 %v1701, %v1700
      %v1721 = vpack.c.bf16 %v1703, %v1702
      %v1722 = vpack.c.bf16 %v1705, %v1704
      %v1723 = vpack.c.bf16 %v1707, %v1706
      %s1724 = scalar_lea.vmem %s3, 64
      %v1725 = vld [vmem:[%s1724] sm:$0xf]
      %v1726 = vld [vmem:[%s1724 + $0x4] sm:$0xf]
      %v1727 = vld [vmem:[%s1724 + $0x8] sm:$0xf]
      %v1728 = vld [vmem:[%s1724 + $0xc] sm:$0xf]
      %v1729 = vld [vmem:[%s1724 + $0x10] sm:$0xf]
      %v1730 = vld [vmem:[%s1724 + $0x14] sm:$0xf]
      %v1731 = vld [vmem:[%s1724 + $0x18] sm:$0xf]
      %v1732 = vld [vmem:[%s1724 + $0x1c] sm:$0xf]
      %v1733 = vld [vmem:[%s1724 + $0x20] sm:$0xf]
      %v1734 = vld [vmem:[%s1724 + $0x24] sm:$0xf]
      %v1735 = vld [vmem:[%s1724 + $0x28] sm:$0xf]
      %v1736 = vld [vmem:[%s1724 + $0x2c] sm:$0xf]
      %v1737 = vld [vmem:[%s1724 + $0x30] sm:$0xf]
      %v1738 = vld [vmem:[%s1724 + $0x34] sm:$0xf]
      %v1739 = vld [vmem:[%s1724 + $0x38] sm:$0xf]
      %v1740 = vld [vmem:[%s1724 + $0x3c] sm:$0xf]
      %v1741 = vld [vmem:[#allocation2 + $0x108] sm:$0xff]
      %v1742 = vld [vmem:[#allocation2 + $0x110] sm:$0xff]
      %v1743 = vpack.c.bf16 %v1742, %v1741
      %s1744 = scalar_lea.vmem %s3, 256
      %v1745 = vld [vmem:[%s1744] sm:$0xf]
      %v1746 = vld [vmem:[%s1744 + $0x4] sm:$0xf]
      %v1747 = vld [vmem:[%s1744 + $0x8] sm:$0xf]
      %v1748 = vld [vmem:[%s1744 + $0xc] sm:$0xf]
      %v1749 = vld [vmem:[%s1744 + $0x10] sm:$0xf]
      %v1750 = vld [vmem:[%s1744 + $0x14] sm:$0xf]
      %v1751 = vld [vmem:[%s1744 + $0x18] sm:$0xf]
      %v1752 = vld [vmem:[%s1744 + $0x1c] sm:$0xf]
      %v1753 = vld [vmem:[%s1744 + $0x20] sm:$0xf]
      %v1754 = vld [vmem:[%s1744 + $0x24] sm:$0xf]
      %v1755 = vld [vmem:[%s1744 + $0x28] sm:$0xf]
      %v1756 = vld [vmem:[%s1744 + $0x2c] sm:$0xf]
      %v1757 = vld [vmem:[%s1744 + $0x30] sm:$0xf]
      %v1758 = vld [vmem:[%s1744 + $0x34] sm:$0xf]
      %v1759 = vld [vmem:[%s1744 + $0x38] sm:$0xf]
      %v1760 = vld [vmem:[%s1744 + $0x3c] sm:$0xf]
      %v1777 = vunpack.c.l.b16 %v1745
      %v1778 = vunpack.c.l.b16 %v1746
      %v1779 = vunpack.c.l.b16 %v1747
      %v1780 = vunpack.c.l.b16 %v1748
      %v1781 = vunpack.c.l.b16 %v1749
      %v1782 = vunpack.c.l.b16 %v1750
      %v1783 = vunpack.c.l.b16 %v1751
      %v1784 = vunpack.c.l.b16 %v1752
      %v1785 = vunpack.c.l.b16 %v1753
      %v1786 = vunpack.c.l.b16 %v1754
      %v1787 = vunpack.c.l.b16 %v1755
      %v1788 = vunpack.c.l.b16 %v1756
      %v1789 = vunpack.c.l.b16 %v1757
      %v1790 = vunpack.c.l.b16 %v1758
      %v1791 = vunpack.c.l.b16 %v1759
      %v1792 = vunpack.c.l.b16 %v1760
      %v1793 = vpack.c.b16 %v1778, %v1777
      %v1794 = vpack.c.b16 %v1780, %v1779
      %v1795 = vpack.c.b16 %v1782, %v1781
      %v1796 = vpack.c.b16 %v1784, %v1783
      %v1797 = vpack.c.b16 %v1786, %v1785
      %v1798 = vpack.c.b16 %v1788, %v1787
      %v1799 = vpack.c.b16 %v1790, %v1789
      %v1800 = vpack.c.b16 %v1792, %v1791
      %1809 = vmatpush.bf16.msra.mxu0 %v1800
      %1810 = vmatpush.bf16.msra.mxu0 %v1799
      %1811 = vmatpush.bf16.msra.mxu0 %v1798
      %1812 = vmatpush.bf16.msra.mxu0 %v1797
      %1813 = vmatpush.bf16.msra.mxu0 %v1796
      %1814 = vmatpush.bf16.msra.mxu0 %v1795
      %1815 = vmatpush.bf16.msra.mxu0 %v1794
      %1816 = vmatpush.bf16.msra.mxu0 %v1793
      %1817 = vmatmul.bf16.gmra.mxu0 %v1709
      %v1818 = vpop.f32.mrf.mxu0
      %v1819 = vadd.f32 0.0, %v1818
      %v1820 = vpop.f32.mrf.mxu0
      %v1821 = vadd.f32 0.0, %v1820
      %1822 = vmatmul.bf16.gmra.mxu0 %v1710
      %v1823 = vpop.f32.mrf.mxu0
      %v1824 = vadd.f32 0.0, %v1823
      %v1825 = vpop.f32.mrf.mxu0
      %v1826 = vadd.f32 0.0, %v1825
      %1827 = vmatmul.bf16.gmra.mxu0 %v1711
      %v1828 = vpop.f32.mrf.mxu0
      %v1829 = vadd.f32 0.0, %v1828
      %v1830 = vpop.f32.mrf.mxu0
      %v1831 = vadd.f32 0.0, %v1830
      %1832 = vmatmul.bf16.gmra.mxu0 %v1712
      %v1833 = vpop.f32.mrf.mxu0
      %v1834 = vadd.f32 0.0, %v1833
      %v1835 = vpop.f32.mrf.mxu0
      %v1836 = vadd.f32 0.0, %v1835
      %1837 = vmatmul.bf16.gmra.mxu0 %v1713
      %v1838 = vpop.f32.mrf.mxu0
      %v1839 = vadd.f32 0.0, %v1838
      %v1840 = vpop.f32.mrf.mxu0
      %v1841 = vadd.f32 0.0, %v1840
      %1842 = vmatmul.bf16.gmra.mxu0 %v1714
      %v1843 = vpop.f32.mrf.mxu0
      %v1844 = vadd.f32 0.0, %v1843
      %v1845 = vpop.f32.mrf.mxu0
      %v1846 = vadd.f32 0.0, %v1845
      %1847 = vmatmul.bf16.gmra.mxu0 %v1715
      %v1848 = vpop.f32.mrf.mxu0
      %v1849 = vadd.f32 0.0, %v1848
      %v1850 = vpop.f32.mrf.mxu0
      %v1851 = vadd.f32 0.0, %v1850
      %1852 = vmatmul.bf16.gmra.mxu0 %v1716
      %v1853 = vpop.f32.mrf.mxu0
      %v1854 = vadd.f32 0.0, %v1853
      %v1855 = vpop.f32.mrf.mxu0
      %v1856 = vadd.f32 0.0, %v1855
      %1857 = vmatmul.bf16.gmra.mxu0 %v1717
      %v1858 = vpop.f32.mrf.mxu0
      %v1859 = vadd.f32 0.0, %v1858
      %v1860 = vpop.f32.mrf.mxu0
      %v1861 = vadd.f32 0.0, %v1860
      %1862 = vmatmul.bf16.gmra.mxu0 %v1718
      %v1863 = vpop.f32.mrf.mxu0
      %v1864 = vadd.f32 0.0, %v1863
      %v1865 = vpop.f32.mrf.mxu0
      %v1866 = vadd.f32 0.0, %v1865
      %1867 = vmatmul.bf16.gmra.mxu0 %v1719
      %v1868 = vpop.f32.mrf.mxu0
      %v1869 = vadd.f32 0.0, %v1868
      %v1870 = vpop.f32.mrf.mxu0
      %v1871 = vadd.f32 0.0, %v1870
      %1872 = vmatmul.bf16.gmra.mxu0 %v1720
      %v1873 = vpop.f32.mrf.mxu0
      %v1874 = vadd.f32 0.0, %v1873
      %v1875 = vpop.f32.mrf.mxu0
      %v1876 = vadd.f32 0.0, %v1875
      %1877 = vmatmul.bf16.gmra.mxu0 %v1721
      %v1878 = vpop.f32.mrf.mxu0
      %v1879 = vadd.f32 0.0, %v1878
      %v1880 = vpop.f32.mrf.mxu0
      %v1881 = vadd.f32 0.0, %v1880
      %1882 = vmatmul.bf16.gmra.mxu0 %v1722
      %v1883 = vpop.f32.mrf.mxu0
      %v1884 = vadd.f32 0.0, %v1883
      %v1885 = vpop.f32.mrf.mxu0
      %v1886 = vadd.f32 0.0, %v1885
      %1887 = vmatmul.bf16.gmra.mxu0 %v1723
      %v1888 = vpop.f32.mrf.mxu0
      %v1889 = vadd.f32 0.0, %v1888
      %v1890 = vpop.f32.mrf.mxu0
      %v1891 = vadd.f32 0.0, %v1890
      %1892 = vmatmul.bf16.gmra.mxu0 %v1743
      %v1893 = vpop.f32.mrf.mxu0
      %v1894 = vadd.f32 0.0, %v1893
      %v1895 = vpop.f32.mrf.mxu0
      %v1896 = vadd.f32 0.0, %v1895
      %1897 = vdwg.mxu0
      %v1914 = vunpack.c.l.b16 %v1725
      %v1915 = vunpack.c.l.b16 %v1726
      %v1916 = vunpack.c.l.b16 %v1727
      %v1917 = vunpack.c.l.b16 %v1728
      %v1918 = vunpack.c.l.b16 %v1729
      %v1919 = vunpack.c.l.b16 %v1730
      %v1920 = vunpack.c.l.b16 %v1731
      %v1921 = vunpack.c.l.b16 %v1732
      %v1922 = vunpack.c.l.b16 %v1733
      %v1923 = vunpack.c.l.b16 %v1734
      %v1924 = vunpack.c.l.b16 %v1735
      %v1925 = vunpack.c.l.b16 %v1736
      %v1926 = vunpack.c.l.b16 %v1737
      %v1927 = vunpack.c.l.b16 %v1738
      %v1928 = vunpack.c.l.b16 %v1739
      %v1929 = vunpack.c.l.b16 %v1740
      %v1930 = vpack.c.b16 %v1915, %v1914
      %v1931 = vpack.c.b16 %v1917, %v1916
      %v1932 = vpack.c.b16 %v1919, %v1918
      %v1933 = vpack.c.b16 %v1921, %v1920
      %v1934 = vpack.c.b16 %v1923, %v1922
      %v1935 = vpack.c.b16 %v1925, %v1924
      %v1936 = vpack.c.b16 %v1927, %v1926
      %v1937 = vpack.c.b16 %v1929, %v1928
      %1946 = vmatpush.bf16.msra.mxu0 %v1937
      %1947 = vmatpush.bf16.msra.mxu0 %v1936
      %1948 = vmatpush.bf16.msra.mxu0 %v1935
      %1949 = vmatpush.bf16.msra.mxu0 %v1934
      %1950 = vmatpush.bf16.msra.mxu0 %v1933
      %1951 = vmatpush.bf16.msra.mxu0 %v1932
      %1952 = vmatpush.bf16.msra.mxu0 %v1931
      %1953 = vmatpush.bf16.msra.mxu0 %v1930
      %1954 = vmatmul.bf16.gmra.mxu0 %v1708
      %v1955 = vpop.f32.mrf.mxu0
      %v1956 = vadd.f32 %v1819, %v1955
      %v1957 = vpop.f32.mrf.mxu0
      %v1958 = vadd.f32 %v1821, %v1957
      %1959 = vmatmul.bf16.gmra.mxu0 %v1709
      %v1960 = vpop.f32.mrf.mxu0
      %v1961 = vadd.f32 %v1824, %v1960
      %v1962 = vpop.f32.mrf.mxu0
      %v1963 = vadd.f32 %v1826, %v1962
      %1964 = vmatmul.bf16.gmra.mxu0 %v1710
      %v1965 = vpop.f32.mrf.mxu0
      %v1966 = vadd.f32 %v1829, %v1965
      %v1967 = vpop.f32.mrf.mxu0
      %v1968 = vadd.f32 %v1831, %v1967
      %1969 = vmatmul.bf16.gmra.mxu0 %v1711
      %v1970 = vpop.f32.mrf.mxu0
      %v1971 = vadd.f32 %v1834, %v1970
      %v1972 = vpop.f32.mrf.mxu0
      %v1973 = vadd.f32 %v1836, %v1972
      %1974 = vmatmul.bf16.gmra.mxu0 %v1712
      %v1975 = vpop.f32.mrf.mxu0
      %v1976 = vadd.f32 %v1839, %v1975
      %v1977 = vpop.f32.mrf.mxu0
      %v1978 = vadd.f32 %v1841, %v1977
      %1979 = vmatmul.bf16.gmra.mxu0 %v1713
      %v1980 = vpop.f32.mrf.mxu0
      %v1981 = vadd.f32 %v1844, %v1980
      %v1982 = vpop.f32.mrf.mxu0
      %v1983 = vadd.f32 %v1846, %v1982
      %1984 = vmatmul.bf16.gmra.mxu0 %v1714
      %v1985 = vpop.f32.mrf.mxu0
      %v1986 = vadd.f32 %v1849, %v1985
      %v1987 = vpop.f32.mrf.mxu0
      %v1988 = vadd.f32 %v1851, %v1987
      %1989 = vmatmul.bf16.gmra.mxu0 %v1715
      %v1990 = vpop.f32.mrf.mxu0
      %v1991 = vadd.f32 %v1854, %v1990
      %v1992 = vpop.f32.mrf.mxu0
      %v1993 = vadd.f32 %v1856, %v1992
      %1994 = vmatmul.bf16.gmra.mxu0 %v1716
      %v1995 = vpop.f32.mrf.mxu0
      %v1996 = vadd.f32 %v1859, %v1995
      %v1997 = vpop.f32.mrf.mxu0
      %v1998 = vadd.f32 %v1861, %v1997
      %1999 = vmatmul.bf16.gmra.mxu0 %v1717
      %v2000 = vpop.f32.mrf.mxu0
      %v2001 = vadd.f32 %v1864, %v2000
      %v2002 = vpop.f32.mrf.mxu0
      %v2003 = vadd.f32 %v1866, %v2002
      %2004 = vmatmul.bf16.gmra.mxu0 %v1718
      %v2005 = vpop.f32.mrf.mxu0
      %v2006 = vadd.f32 %v1869, %v2005
      %v2007 = vpop.f32.mrf.mxu0
      %v2008 = vadd.f32 %v1871, %v2007
      %2009 = vmatmul.bf16.gmra.mxu0 %v1719
      %v2010 = vpop.f32.mrf.mxu0
      %v2011 = vadd.f32 %v1874, %v2010
      %v2012 = vpop.f32.mrf.mxu0
      %v2013 = vadd.f32 %v1876, %v2012
      %2014 = vmatmul.bf16.gmra.mxu0 %v1720
      %v2015 = vpop.f32.mrf.mxu0
      %v2016 = vadd.f32 %v1879, %v2015
      %v2017 = vpop.f32.mrf.mxu0
      %v2018 = vadd.f32 %v1881, %v2017
      %2019 = vmatmul.bf16.gmra.mxu0 %v1721
      %v2020 = vpop.f32.mrf.mxu0
      %v2021 = vadd.f32 %v1884, %v2020
      %v2022 = vpop.f32.mrf.mxu0
      %v2023 = vadd.f32 %v1886, %v2022
      %2024 = vmatmul.bf16.gmra.mxu0 %v1722
      %v2025 = vpop.f32.mrf.mxu0
      %v2026 = vadd.f32 %v1889, %v2025
      %v2027 = vpop.f32.mrf.mxu0
      %v2028 = vadd.f32 %v1891, %v2027
      %2029 = vmatmul.bf16.gmra.mxu0 %v1723
      %v2030 = vpop.f32.mrf.mxu0
      %v2031 = vadd.f32 %v1894, %v2030
      %v2032 = vpop.f32.mrf.mxu0
      %v2033 = vadd.f32 %v1896, %v2032
      %2034 = vdwg.mxu0
      %v2035 = vld [vmem:[#allocation2 + $0x28] sm:$0xff]
      %v2036 = vld [vmem:[#allocation2 + $0x30] sm:$0xff]
      %v2037 = vld [vmem:[#allocation2 + $0x38] sm:$0xff]
      %v2038 = vld [vmem:[#allocation2 + $0x40] sm:$0xff]
      %v2039 = vld [vmem:[#allocation2 + $0x48] sm:$0xff]
      %v2040 = vld [vmem:[#allocation2 + $0x50] sm:$0xff]
      %v2041 = vld [vmem:[#allocation2 + $0x58] sm:$0xff]
      %v2042 = vld [vmem:[#allocation2 + $0x60] sm:$0xff]
      %v2043 = vld [vmem:[#allocation2 + $0x68] sm:$0xff]
      %v2044 = vld [vmem:[#allocation2 + $0x70] sm:$0xff]
      %v2045 = vld [vmem:[#allocation2 + $0x78] sm:$0xff]
      %v2046 = vld [vmem:[#allocation2 + $0x80] sm:$0xff]
      %v2047 = vld [vmem:[#allocation2 + $0x88] sm:$0xff]
      %v2048 = vld [vmem:[#allocation2 + $0x90] sm:$0xff]
      %v2049 = vld [vmem:[#allocation2 + $0x98] sm:$0xff]
      %v2050 = vld [vmem:[#allocation2 + $0xa0] sm:$0xff]
      %v2051 = vld [vmem:[#allocation2 + $0xa8] sm:$0xff]
      %v2052 = vld [vmem:[#allocation2 + $0xb0] sm:$0xff]
      %v2053 = vld [vmem:[#allocation2 + $0xb8] sm:$0xff]
      %v2054 = vld [vmem:[#allocation2 + $0xc0] sm:$0xff]
      %v2055 = vld [vmem:[#allocation2 + $0xc8] sm:$0xff]
      %v2056 = vld [vmem:[#allocation2 + $0xd0] sm:$0xff]
      %v2057 = vld [vmem:[#allocation2 + $0xd8] sm:$0xff]
      %v2058 = vld [vmem:[#allocation2 + $0xe0] sm:$0xff]
      %v2059 = vld [vmem:[#allocation2 + $0xe8] sm:$0xff]
      %v2060 = vld [vmem:[#allocation2 + $0xf0] sm:$0xff]
      %v2061 = vld [vmem:[#allocation2 + $0xf8] sm:$0xff]
      %v2062 = vld [vmem:[#allocation2 + $0x100] sm:$0xff]
      %v2063 = vld [vmem:[#allocation2 + $0x108] sm:$0xff]
      %v2064 = vld [vmem:[#allocation2 + $0x110] sm:$0xff]
      %v2065 = vld [vmem:[#allocation2 + $0x118] sm:$0xff]
      %v2066 = vld [vmem:[#allocation2 + $0x120] sm:$0xff]
      %v2067 = vpack.c.bf16 %v2036, %v2035
      %v2068 = vpack.c.bf16 %v2038, %v2037
      %v2069 = vpack.c.bf16 %v2040, %v2039
      %v2070 = vpack.c.bf16 %v2042, %v2041
      %v2071 = vpack.c.bf16 %v2044, %v2043
      %v2072 = vpack.c.bf16 %v2046, %v2045
      %v2073 = vpack.c.bf16 %v2048, %v2047
      %v2074 = vpack.c.bf16 %v2050, %v2049
      %v2075 = vpack.c.bf16 %v2052, %v2051
      %v2076 = vpack.c.bf16 %v2054, %v2053
      %v2077 = vpack.c.bf16 %v2056, %v2055
      %v2078 = vpack.c.bf16 %v2058, %v2057
      %v2079 = vpack.c.bf16 %v2060, %v2059
      %v2080 = vpack.c.bf16 %v2062, %v2061
      %v2081 = vpack.c.bf16 %v2064, %v2063
      %v2082 = vpack.c.bf16 %v2066, %v2065
      %s2083 = scalar_lea.vmem %s3, 448
      %v2084 = vld [vmem:[%s2083] sm:$0xf]
      %v2085 = vld [vmem:[%s2083 + $0x4] sm:$0xf]
      %v2086 = vld [vmem:[%s2083 + $0x8] sm:$0xf]
      %v2087 = vld [vmem:[%s2083 + $0xc] sm:$0xf]
      %v2088 = vld [vmem:[%s2083 + $0x10] sm:$0xf]
      %v2089 = vld [vmem:[%s2083 + $0x14] sm:$0xf]
      %v2090 = vld [vmem:[%s2083 + $0x18] sm:$0xf]
      %v2091 = vld [vmem:[%s2083 + $0x1c] sm:$0xf]
      %v2092 = vld [vmem:[%s2083 + $0x20] sm:$0xf]
      %v2093 = vld [vmem:[%s2083 + $0x24] sm:$0xf]
      %v2094 = vld [vmem:[%s2083 + $0x28] sm:$0xf]
      %v2095 = vld [vmem:[%s2083 + $0x2c] sm:$0xf]
      %v2096 = vld [vmem:[%s2083 + $0x30] sm:$0xf]
      %v2097 = vld [vmem:[%s2083 + $0x34] sm:$0xf]
      %v2098 = vld [vmem:[%s2083 + $0x38] sm:$0xf]
      %v2099 = vld [vmem:[%s2083 + $0x3c] sm:$0xf]
      %v2116 = vunpack.c.l.b16 %v2084
      %v2117 = vunpack.c.l.b16 %v2085
      %v2118 = vunpack.c.l.b16 %v2086
      %v2119 = vunpack.c.l.b16 %v2087
      %v2120 = vunpack.c.l.b16 %v2088
      %v2121 = vunpack.c.l.b16 %v2089
      %v2122 = vunpack.c.l.b16 %v2090
      %v2123 = vunpack.c.l.b16 %v2091
      %v2124 = vunpack.c.l.b16 %v2092
      %v2125 = vunpack.c.l.b16 %v2093
      %v2126 = vunpack.c.l.b16 %v2094
      %v2127 = vunpack.c.l.b16 %v2095
      %v2128 = vunpack.c.l.b16 %v2096
      %v2129 = vunpack.c.l.b16 %v2097
      %v2130 = vunpack.c.l.b16 %v2098
      %v2131 = vunpack.c.l.b16 %v2099
      %v2132 = vpack.c.b16 %v2117, %v2116
      %v2133 = vpack.c.b16 %v2119, %v2118
      %v2134 = vpack.c.b16 %v2121, %v2120
      %v2135 = vpack.c.b16 %v2123, %v2122
      %v2136 = vpack.c.b16 %v2125, %v2124
      %v2137 = vpack.c.b16 %v2127, %v2126
      %v2138 = vpack.c.b16 %v2129, %v2128
      %v2139 = vpack.c.b16 %v2131, %v2130
      %2148 = vmatpush.bf16.msra.mxu0 %v2139
      %2149 = vmatpush.bf16.msra.mxu0 %v2138
      %2150 = vmatpush.bf16.msra.mxu0 %v2137
      %2151 = vmatpush.bf16.msra.mxu0 %v2136
      %2152 = vmatpush.bf16.msra.mxu0 %v2135
      %2153 = vmatpush.bf16.msra.mxu0 %v2134
      %2154 = vmatpush.bf16.msra.mxu0 %v2133
      %2155 = vmatpush.bf16.msra.mxu0 %v2132
      %2156 = vmatmul.bf16.gmra.mxu0 %v2067
      %v2157 = vpop.f32.mrf.mxu0
      %v2158 = vadd.f32 0.0, %v2157
      %v2159 = vpop.f32.mrf.mxu0
      %v2160 = vadd.f32 0.0, %v2159
      %2161 = vmatmul.bf16.gmra.mxu0 %v2068
      %v2162 = vpop.f32.mrf.mxu0
      %v2163 = vadd.f32 0.0, %v2162
      %v2164 = vpop.f32.mrf.mxu0
      %v2165 = vadd.f32 0.0, %v2164
      %2166 = vmatmul.bf16.gmra.mxu0 %v2069
      %v2167 = vpop.f32.mrf.mxu0
      %v2168 = vadd.f32 0.0, %v2167
      %v2169 = vpop.f32.mrf.mxu0
      %v2170 = vadd.f32 0.0, %v2169
      %2171 = vmatmul.bf16.gmra.mxu0 %v2070
      %v2172 = vpop.f32.mrf.mxu0
      %v2173 = vadd.f32 0.0, %v2172
      %v2174 = vpop.f32.mrf.mxu0
      %v2175 = vadd.f32 0.0, %v2174
      %2176 = vmatmul.bf16.gmra.mxu0 %v2071
      %v2177 = vpop.f32.mrf.mxu0
      %v2178 = vadd.f32 0.0, %v2177
      %v2179 = vpop.f32.mrf.mxu0
      %v2180 = vadd.f32 0.0, %v2179
      %2181 = vmatmul.bf16.gmra.mxu0 %v2072
      %v2182 = vpop.f32.mrf.mxu0
      %v2183 = vadd.f32 0.0, %v2182
      %v2184 = vpop.f32.mrf.mxu0
      %v2185 = vadd.f32 0.0, %v2184
      %2186 = vmatmul.bf16.gmra.mxu0 %v2073
      %v2187 = vpop.f32.mrf.mxu0
      %v2188 = vadd.f32 0.0, %v2187
      %v2189 = vpop.f32.mrf.mxu0
      %v2190 = vadd.f32 0.0, %v2189
      %2191 = vmatmul.bf16.gmra.mxu0 %v2074
      %v2192 = vpop.f32.mrf.mxu0
      %v2193 = vadd.f32 0.0, %v2192
      %v2194 = vpop.f32.mrf.mxu0
      %v2195 = vadd.f32 0.0, %v2194
      %2196 = vmatmul.bf16.gmra.mxu0 %v2075
      %v2197 = vpop.f32.mrf.mxu0
      %v2198 = vadd.f32 0.0, %v2197
      %v2199 = vpop.f32.mrf.mxu0
      %v2200 = vadd.f32 0.0, %v2199
      %2201 = vmatmul.bf16.gmra.mxu0 %v2076
      %v2202 = vpop.f32.mrf.mxu0
      %v2203 = vadd.f32 0.0, %v2202
      %v2204 = vpop.f32.mrf.mxu0
      %v2205 = vadd.f32 0.0, %v2204
      %2206 = vmatmul.bf16.gmra.mxu0 %v2077
      %v2207 = vpop.f32.mrf.mxu0
      %v2208 = vadd.f32 0.0, %v2207
      %v2209 = vpop.f32.mrf.mxu0
      %v2210 = vadd.f32 0.0, %v2209
      %2211 = vmatmul.bf16.gmra.mxu0 %v2078
      %v2212 = vpop.f32.mrf.mxu0
      %v2213 = vadd.f32 0.0, %v2212
      %v2214 = vpop.f32.mrf.mxu0
      %v2215 = vadd.f32 0.0, %v2214
      %2216 = vmatmul.bf16.gmra.mxu0 %v2079
      %v2217 = vpop.f32.mrf.mxu0
      %v2218 = vadd.f32 0.0, %v2217
      %v2219 = vpop.f32.mrf.mxu0
      %v2220 = vadd.f32 0.0, %v2219
      %2221 = vmatmul.bf16.gmra.mxu0 %v2080
      %v2222 = vpop.f32.mrf.mxu0
      %v2223 = vadd.f32 0.0, %v2222
      %v2224 = vpop.f32.mrf.mxu0
      %v2225 = vadd.f32 0.0, %v2224
      %2226 = vmatmul.bf16.gmra.mxu0 %v2081
      %v2227 = vpop.f32.mrf.mxu0
      %v2228 = vadd.f32 0.0, %v2227
      %v2229 = vpop.f32.mrf.mxu0
      %v2230 = vadd.f32 0.0, %v2229
      %2231 = vmatmul.bf16.gmra.mxu0 %v2082
      %v2232 = vpop.f32.mrf.mxu0
      %v2233 = vadd.f32 0.0, %v2232
      %v2234 = vpop.f32.mrf.mxu0
      %v2235 = vadd.f32 0.0, %v2234
      %2236 = vdwg.mxu0
      %v2237 = vadd.f32 %v1956, %v2158
      %v2238 = vadd.f32 %v1958, %v2160
      %v2239 = vadd.f32 %v1961, %v2163
      %v2240 = vadd.f32 %v1963, %v2165
      %v2241 = vadd.f32 %v1966, %v2168
      %v2242 = vadd.f32 %v1968, %v2170
      %v2243 = vadd.f32 %v1971, %v2173
      %v2244 = vadd.f32 %v1973, %v2175
      %v2245 = vadd.f32 %v1976, %v2178
      %v2246 = vadd.f32 %v1978, %v2180
      %v2247 = vadd.f32 %v1981, %v2183
      %v2248 = vadd.f32 %v1983, %v2185
      %v2249 = vadd.f32 %v1986, %v2188
      %v2250 = vadd.f32 %v1988, %v2190
      %v2251 = vadd.f32 %v1991, %v2193
      %v2252 = vadd.f32 %v1993, %v2195
      %v2253 = vadd.f32 %v1996, %v2198
      %v2254 = vadd.f32 %v1998, %v2200
      %v2255 = vadd.f32 %v2001, %v2203
      %v2256 = vadd.f32 %v2003, %v2205
      %v2257 = vadd.f32 %v2006, %v2208
      %v2258 = vadd.f32 %v2008, %v2210
      %v2259 = vadd.f32 %v2011, %v2213
      %v2260 = vadd.f32 %v2013, %v2215
      %v2261 = vadd.f32 %v2016, %v2218
      %v2262 = vadd.f32 %v2018, %v2220
      %v2263 = vadd.f32 %v2021, %v2223
      %v2264 = vadd.f32 %v2023, %v2225
      %v2265 = vadd.f32 %v2026, %v2228
      %v2266 = vadd.f32 %v2028, %v2230
      %v2267 = vadd.f32 %v2031, %v2233
      %v2268 = vadd.f32 %v2033, %v2235
      %v2269 = vadd.f32 %v1644, %v2237
      %v2270 = vadd.f32 %v1645, %v2238
      %v2271 = vadd.f32 %v1646, %v2239
      %v2272 = vadd.f32 %v1647, %v2240
      %v2273 = vadd.f32 %v1648, %v2241
      %v2274 = vadd.f32 %v1649, %v2242
      %v2275 = vadd.f32 %v1650, %v2243
      %v2276 = vadd.f32 %v1651, %v2244
      %v2277 = vadd.f32 %v1652, %v2245
      %v2278 = vadd.f32 %v1653, %v2246
      %v2279 = vadd.f32 %v1654, %v2247
      %v2280 = vadd.f32 %v1655, %v2248
      %v2281 = vadd.f32 %v1656, %v2249
      %v2282 = vadd.f32 %v1657, %v2250
      %v2283 = vadd.f32 %v1658, %v2251
      %v2284 = vadd.f32 %v1659, %v2252
      %v2285 = vadd.f32 %v1660, %v2253
      %v2286 = vadd.f32 %v1661, %v2254
      %v2287 = vadd.f32 %v1662, %v2255
      %v2288 = vadd.f32 %v1663, %v2256
      %v2289 = vadd.f32 %v1664, %v2257
      %v2290 = vadd.f32 %v1665, %v2258
      %v2291 = vadd.f32 %v1666, %v2259
      %v2292 = vadd.f32 %v1667, %v2260
      %v2293 = vadd.f32 %v1668, %v2261
      %v2294 = vadd.f32 %v1669, %v2262
      %v2295 = vadd.f32 %v1670, %v2263
      %v2296 = vadd.f32 %v1671, %v2264
      %v2297 = vadd.f32 %v1672, %v2265
      %v2298 = vadd.f32 %v1673, %v2266
      %v2299 = vadd.f32 %v1674, %v2267
      %v2300 = vadd.f32 %v1675, %v2268
      %v2301 = vld [vmem:[#allocation2 + $0x9] sm:$0xff]
      %v2302 = vld [vmem:[#allocation2 + $0x11] sm:$0xff]
      %v2303 = vld [vmem:[#allocation2 + $0x19] sm:$0xff]
      %v2304 = vld [vmem:[#allocation2 + $0x21] sm:$0xff]
      %v2305 = vld [vmem:[#allocation2 + $0x29] sm:$0xff]
      %v2306 = vld [vmem:[#allocation2 + $0x31] sm:$0xff]
      %v2307 = vld [vmem:[#allocation2 + $0x39] sm:$0xff]
      %v2308 = vld [vmem:[#allocation2 + $0x41] sm:$0xff]
      %v2309 = vld [vmem:[#allocation2 + $0x49] sm:$0xff]
      %v2310 = vld [vmem:[#allocation2 + $0x51] sm:$0xff]
      %v2311 = vld [vmem:[#allocation2 + $0x59] sm:$0xff]
      %v2312 = vld [vmem:[#allocation2 + $0x61] sm:$0xff]
      %v2313 = vld [vmem:[#allocation2 + $0x69] sm:$0xff]
      %v2314 = vld [vmem:[#allocation2 + $0x71] sm:$0xff]
      %v2315 = vld [vmem:[#allocation2 + $0x79] sm:$0xff]
      %v2316 = vld [vmem:[#allocation2 + $0x81] sm:$0xff]
      %v2317 = vld [vmem:[#allocation2 + $0x89] sm:$0xff]
      %v2318 = vld [vmem:[#allocation2 + $0x91] sm:$0xff]
      %v2319 = vld [vmem:[#allocation2 + $0x99] sm:$0xff]
      %v2320 = vld [vmem:[#allocation2 + $0xa1] sm:$0xff]
      %v2321 = vld [vmem:[#allocation2 + $0xa9] sm:$0xff]
      %v2322 = vld [vmem:[#allocation2 + $0xb1] sm:$0xff]
      %v2323 = vld [vmem:[#allocation2 + $0xb9] sm:$0xff]
      %v2324 = vld [vmem:[#allocation2 + $0xc1] sm:$0xff]
      %v2325 = vld [vmem:[#allocation2 + $0xc9] sm:$0xff]
      %v2326 = vld [vmem:[#allocation2 + $0xd1] sm:$0xff]
      %v2327 = vld [vmem:[#allocation2 + $0xd9] sm:$0xff]
      %v2328 = vld [vmem:[#allocation2 + $0xe1] sm:$0xff]
      %v2329 = vld [vmem:[#allocation2 + $0xe9] sm:$0xff]
      %v2330 = vld [vmem:[#allocation2 + $0xf1] sm:$0xff]
      %v2331 = vld [vmem:[#allocation2 + $0xf9] sm:$0xff]
      %v2332 = vld [vmem:[#allocation2 + $0x101] sm:$0xff]
      %v2333 = vpack.c.bf16 %v2302, %v2301
      %v2334 = vpack.c.bf16 %v2304, %v2303
      %v2335 = vpack.c.bf16 %v2306, %v2305
      %v2336 = vpack.c.bf16 %v2308, %v2307
      %v2337 = vpack.c.bf16 %v2310, %v2309
      %v2338 = vpack.c.bf16 %v2312, %v2311
      %v2339 = vpack.c.bf16 %v2314, %v2313
      %v2340 = vpack.c.bf16 %v2316, %v2315
      %v2341 = vpack.c.bf16 %v2318, %v2317
      %v2342 = vpack.c.bf16 %v2320, %v2319
      %v2343 = vpack.c.bf16 %v2322, %v2321
      %v2344 = vpack.c.bf16 %v2324, %v2323
      %v2345 = vpack.c.bf16 %v2326, %v2325
      %v2346 = vpack.c.bf16 %v2328, %v2327
      %v2347 = vpack.c.bf16 %v2330, %v2329
      %v2348 = vpack.c.bf16 %v2332, %v2331
      %s2349 = scalar_lea.vmem %s3, 128
      %v2350 = vld [vmem:[%s2349] sm:$0xf]
      %v2351 = vld [vmem:[%s2349 + $0x4] sm:$0xf]
      %v2352 = vld [vmem:[%s2349 + $0x8] sm:$0xf]
      %v2353 = vld [vmem:[%s2349 + $0xc] sm:$0xf]
      %v2354 = vld [vmem:[%s2349 + $0x10] sm:$0xf]
      %v2355 = vld [vmem:[%s2349 + $0x14] sm:$0xf]
      %v2356 = vld [vmem:[%s2349 + $0x18] sm:$0xf]
      %v2357 = vld [vmem:[%s2349 + $0x1c] sm:$0xf]
      %v2358 = vld [vmem:[%s2349 + $0x20] sm:$0xf]
      %v2359 = vld [vmem:[%s2349 + $0x24] sm:$0xf]
      %v2360 = vld [vmem:[%s2349 + $0x28] sm:$0xf]
      %v2361 = vld [vmem:[%s2349 + $0x2c] sm:$0xf]
      %v2362 = vld [vmem:[%s2349 + $0x30] sm:$0xf]
      %v2363 = vld [vmem:[%s2349 + $0x34] sm:$0xf]
      %v2364 = vld [vmem:[%s2349 + $0x38] sm:$0xf]
      %v2365 = vld [vmem:[%s2349 + $0x3c] sm:$0xf]
      %v2366 = vld [vmem:[#allocation2 + $0x109] sm:$0xff]
      %v2367 = vld [vmem:[#allocation2 + $0x111] sm:$0xff]
      %v2368 = vpack.c.bf16 %v2367, %v2366
      %s2369 = scalar_lea.vmem %s3, 320
      %v2370 = vld [vmem:[%s2369] sm:$0xf]
      %v2371 = vld [vmem:[%s2369 + $0x4] sm:$0xf]
      %v2372 = vld [vmem:[%s2369 + $0x8] sm:$0xf]
      %v2373 = vld [vmem:[%s2369 + $0xc] sm:$0xf]
      %v2374 = vld [vmem:[%s2369 + $0x10] sm:$0xf]
      %v2375 = vld [vmem:[%s2369 + $0x14] sm:$0xf]
      %v2376 = vld [vmem:[%s2369 + $0x18] sm:$0xf]
      %v2377 = vld [vmem:[%s2369 + $0x1c] sm:$0xf]
      %v2378 = vld [vmem:[%s2369 + $0x20] sm:$0xf]
      %v2379 = vld [vmem:[%s2369 + $0x24] sm:$0xf]
      %v2380 = vld [vmem:[%s2369 + $0x28] sm:$0xf]
      %v2381 = vld [vmem:[%s2369 + $0x2c] sm:$0xf]
      %v2382 = vld [vmem:[%s2369 + $0x30] sm:$0xf]
      %v2383 = vld [vmem:[%s2369 + $0x34] sm:$0xf]
      %v2384 = vld [vmem:[%s2369 + $0x38] sm:$0xf]
      %v2385 = vld [vmem:[%s2369 + $0x3c] sm:$0xf]
      %v2402 = vunpack.c.l.b16 %v2370
      %v2403 = vunpack.c.l.b16 %v2371
      %v2404 = vunpack.c.l.b16 %v2372
      %v2405 = vunpack.c.l.b16 %v2373
      %v2406 = vunpack.c.l.b16 %v2374
      %v2407 = vunpack.c.l.b16 %v2375
      %v2408 = vunpack.c.l.b16 %v2376
      %v2409 = vunpack.c.l.b16 %v2377
      %v2410 = vunpack.c.l.b16 %v2378
      %v2411 = vunpack.c.l.b16 %v2379
      %v2412 = vunpack.c.l.b16 %v2380
      %v2413 = vunpack.c.l.b16 %v2381
      %v2414 = vunpack.c.l.b16 %v2382
      %v2415 = vunpack.c.l.b16 %v2383
      %v2416 = vunpack.c.l.b16 %v2384
      %v2417 = vunpack.c.l.b16 %v2385
      %v2418 = vpack.c.b16 %v2403, %v2402
      %v2419 = vpack.c.b16 %v2405, %v2404
      %v2420 = vpack.c.b16 %v2407, %v2406
      %v2421 = vpack.c.b16 %v2409, %v2408
      %v2422 = vpack.c.b16 %v2411, %v2410
      %v2423 = vpack.c.b16 %v2413, %v2412
      %v2424 = vpack.c.b16 %v2415, %v2414
      %v2425 = vpack.c.b16 %v2417, %v2416
      %2434 = vmatpush.bf16.msra.mxu0 %v2425
      %2435 = vmatpush.bf16.msra.mxu0 %v2424
      %2436 = vmatpush.bf16.msra.mxu0 %v2423
      %2437 = vmatpush.bf16.msra.mxu0 %v2422
      %2438 = vmatpush.bf16.msra.mxu0 %v2421
      %2439 = vmatpush.bf16.msra.mxu0 %v2420
      %2440 = vmatpush.bf16.msra.mxu0 %v2419
      %2441 = vmatpush.bf16.msra.mxu0 %v2418
      %2442 = vmatmul.bf16.gmra.mxu0 %v2334
      %v2443 = vpop.f32.mrf.mxu0
      %v2444 = vadd.f32 0.0, %v2443
      %v2445 = vpop.f32.mrf.mxu0
      %v2446 = vadd.f32 0.0, %v2445
      %2447 = vmatmul.bf16.gmra.mxu0 %v2335
      %v2448 = vpop.f32.mrf.mxu0
      %v2449 = vadd.f32 0.0, %v2448
      %v2450 = vpop.f32.mrf.mxu0
      %v2451 = vadd.f32 0.0, %v2450
      %2452 = vmatmul.bf16.gmra.mxu0 %v2336
      %v2453 = vpop.f32.mrf.mxu0
      %v2454 = vadd.f32 0.0, %v2453
      %v2455 = vpop.f32.mrf.mxu0
      %v2456 = vadd.f32 0.0, %v2455
      %2457 = vmatmul.bf16.gmra.mxu0 %v2337
      %v2458 = vpop.f32.mrf.mxu0
      %v2459 = vadd.f32 0.0, %v2458
      %v2460 = vpop.f32.mrf.mxu0
      %v2461 = vadd.f32 0.0, %v2460
      %2462 = vmatmul.bf16.gmra.mxu0 %v2338
      %v2463 = vpop.f32.mrf.mxu0
      %v2464 = vadd.f32 0.0, %v2463
      %v2465 = vpop.f32.mrf.mxu0
      %v2466 = vadd.f32 0.0, %v2465
      %2467 = vmatmul.bf16.gmra.mxu0 %v2339
      %v2468 = vpop.f32.mrf.mxu0
      %v2469 = vadd.f32 0.0, %v2468
      %v2470 = vpop.f32.mrf.mxu0
      %v2471 = vadd.f32 0.0, %v2470
      %2472 = vmatmul.bf16.gmra.mxu0 %v2340
      %v2473 = vpop.f32.mrf.mxu0
      %v2474 = vadd.f32 0.0, %v2473
      %v2475 = vpop.f32.mrf.mxu0
      %v2476 = vadd.f32 0.0, %v2475
      %2477 = vmatmul.bf16.gmra.mxu0 %v2341
      %v2478 = vpop.f32.mrf.mxu0
      %v2479 = vadd.f32 0.0, %v2478
      %v2480 = vpop.f32.mrf.mxu0
      %v2481 = vadd.f32 0.0, %v2480
      %2482 = vmatmul.bf16.gmra.mxu0 %v2342
      %v2483 = vpop.f32.mrf.mxu0
      %v2484 = vadd.f32 0.0, %v2483
      %v2485 = vpop.f32.mrf.mxu0
      %v2486 = vadd.f32 0.0, %v2485
      %2487 = vmatmul.bf16.gmra.mxu0 %v2343
      %v2488 = vpop.f32.mrf.mxu0
      %v2489 = vadd.f32 0.0, %v2488
      %v2490 = vpop.f32.mrf.mxu0
      %v2491 = vadd.f32 0.0, %v2490
      %2492 = vmatmul.bf16.gmra.mxu0 %v2344
      %v2493 = vpop.f32.mrf.mxu0
      %v2494 = vadd.f32 0.0, %v2493
      %v2495 = vpop.f32.mrf.mxu0
      %v2496 = vadd.f32 0.0, %v2495
      %2497 = vmatmul.bf16.gmra.mxu0 %v2345
      %v2498 = vpop.f32.mrf.mxu0
      %v2499 = vadd.f32 0.0, %v2498
      %v2500 = vpop.f32.mrf.mxu0
      %v2501 = vadd.f32 0.0, %v2500
      %2502 = vmatmul.bf16.gmra.mxu0 %v2346
      %v2503 = vpop.f32.mrf.mxu0
      %v2504 = vadd.f32 0.0, %v2503
      %v2505 = vpop.f32.mrf.mxu0
      %v2506 = vadd.f32 0.0, %v2505
      %2507 = vmatmul.bf16.gmra.mxu0 %v2347
      %v2508 = vpop.f32.mrf.mxu0
      %v2509 = vadd.f32 0.0, %v2508
      %v2510 = vpop.f32.mrf.mxu0
      %v2511 = vadd.f32 0.0, %v2510
      %2512 = vmatmul.bf16.gmra.mxu0 %v2348
      %v2513 = vpop.f32.mrf.mxu0
      %v2514 = vadd.f32 0.0, %v2513
      %v2515 = vpop.f32.mrf.mxu0
      %v2516 = vadd.f32 0.0, %v2515
      %2517 = vmatmul.bf16.gmra.mxu0 %v2368
      %v2518 = vpop.f32.mrf.mxu0
      %v2519 = vadd.f32 0.0, %v2518
      %v2520 = vpop.f32.mrf.mxu0
      %v2521 = vadd.f32 0.0, %v2520
      %2522 = vdwg.mxu0
      %v2539 = vunpack.c.l.b16 %v2350
      %v2540 = vunpack.c.l.b16 %v2351
      %v2541 = vunpack.c.l.b16 %v2352
      %v2542 = vunpack.c.l.b16 %v2353
      %v2543 = vunpack.c.l.b16 %v2354
      %v2544 = vunpack.c.l.b16 %v2355
      %v2545 = vunpack.c.l.b16 %v2356
      %v2546 = vunpack.c.l.b16 %v2357
      %v2547 = vunpack.c.l.b16 %v2358
      %v2548 = vunpack.c.l.b16 %v2359
      %v2549 = vunpack.c.l.b16 %v2360
      %v2550 = vunpack.c.l.b16 %v2361
      %v2551 = vunpack.c.l.b16 %v2362
      %v2552 = vunpack.c.l.b16 %v2363
      %v2553 = vunpack.c.l.b16 %v2364
      %v2554 = vunpack.c.l.b16 %v2365
      %v2555 = vpack.c.b16 %v2540, %v2539
      %v2556 = vpack.c.b16 %v2542, %v2541
      %v2557 = vpack.c.b16 %v2544, %v2543
      %v2558 = vpack.c.b16 %v2546, %v2545
      %v2559 = vpack.c.b16 %v2548, %v2547
      %v2560 = vpack.c.b16 %v2550, %v2549
      %v2561 = vpack.c.b16 %v2552, %v2551
      %v2562 = vpack.c.b16 %v2554, %v2553
      %2571 = vmatpush.bf16.msra.mxu0 %v2562
      %2572 = vmatpush.bf16.msra.mxu0 %v2561
      %2573 = vmatpush.bf16.msra.mxu0 %v2560
      %2574 = vmatpush.bf16.msra.mxu0 %v2559
      %2575 = vmatpush.bf16.msra.mxu0 %v2558
      %2576 = vmatpush.bf16.msra.mxu0 %v2557
      %2577 = vmatpush.bf16.msra.mxu0 %v2556
      %2578 = vmatpush.bf16.msra.mxu0 %v2555
      %2579 = vmatmul.bf16.gmra.mxu0 %v2333
      %v2580 = vpop.f32.mrf.mxu0
      %v2581 = vadd.f32 %v2444, %v2580
      %v2582 = vpop.f32.mrf.mxu0
      %v2583 = vadd.f32 %v2446, %v2582
      %2584 = vmatmul.bf16.gmra.mxu0 %v2334
      %v2585 = vpop.f32.mrf.mxu0
      %v2586 = vadd.f32 %v2449, %v2585
      %v2587 = vpop.f32.mrf.mxu0
      %v2588 = vadd.f32 %v2451, %v2587
      %2589 = vmatmul.bf16.gmra.mxu0 %v2335
      %v2590 = vpop.f32.mrf.mxu0
      %v2591 = vadd.f32 %v2454, %v2590
      %v2592 = vpop.f32.mrf.mxu0
      %v2593 = vadd.f32 %v2456, %v2592
      %2594 = vmatmul.bf16.gmra.mxu0 %v2336
      %v2595 = vpop.f32.mrf.mxu0
      %v2596 = vadd.f32 %v2459, %v2595
      %v2597 = vpop.f32.mrf.mxu0
      %v2598 = vadd.f32 %v2461, %v2597
      %2599 = vmatmul.bf16.gmra.mxu0 %v2337
      %v2600 = vpop.f32.mrf.mxu0
      %v2601 = vadd.f32 %v2464, %v2600
      %v2602 = vpop.f32.mrf.mxu0
      %v2603 = vadd.f32 %v2466, %v2602
      %2604 = vmatmul.bf16.gmra.mxu0 %v2338
      %v2605 = vpop.f32.mrf.mxu0
      %v2606 = vadd.f32 %v2469, %v2605
      %v2607 = vpop.f32.mrf.mxu0
      %v2608 = vadd.f32 %v2471, %v2607
      %2609 = vmatmul.bf16.gmra.mxu0 %v2339
      %v2610 = vpop.f32.mrf.mxu0
      %v2611 = vadd.f32 %v2474, %v2610
      %v2612 = vpop.f32.mrf.mxu0
      %v2613 = vadd.f32 %v2476, %v2612
      %2614 = vmatmul.bf16.gmra.mxu0 %v2340
      %v2615 = vpop.f32.mrf.mxu0
      %v2616 = vadd.f32 %v2479, %v2615
      %v2617 = vpop.f32.mrf.mxu0
      %v2618 = vadd.f32 %v2481, %v2617
      %2619 = vmatmul.bf16.gmra.mxu0 %v2341
      %v2620 = vpop.f32.mrf.mxu0
      %v2621 = vadd.f32 %v2484, %v2620
      %v2622 = vpop.f32.mrf.mxu0
      %v2623 = vadd.f32 %v2486, %v2622
      %2624 = vmatmul.bf16.gmra.mxu0 %v2342
      %v2625 = vpop.f32.mrf.mxu0
      %v2626 = vadd.f32 %v2489, %v2625
      %v2627 = vpop.f32.mrf.mxu0
      %v2628 = vadd.f32 %v2491, %v2627
      %2629 = vmatmul.bf16.gmra.mxu0 %v2343
      %v2630 = vpop.f32.mrf.mxu0
      %v2631 = vadd.f32 %v2494, %v2630
      %v2632 = vpop.f32.mrf.mxu0
      %v2633 = vadd.f32 %v2496, %v2632
      %2634 = vmatmul.bf16.gmra.mxu0 %v2344
      %v2635 = vpop.f32.mrf.mxu0
      %v2636 = vadd.f32 %v2499, %v2635
      %v2637 = vpop.f32.mrf.mxu0
      %v2638 = vadd.f32 %v2501, %v2637
      %2639 = vmatmul.bf16.gmra.mxu0 %v2345
      %v2640 = vpop.f32.mrf.mxu0
      %v2641 = vadd.f32 %v2504, %v2640
      %v2642 = vpop.f32.mrf.mxu0
      %v2643 = vadd.f32 %v2506, %v2642
      %2644 = vmatmul.bf16.gmra.mxu0 %v2346
      %v2645 = vpop.f32.mrf.mxu0
      %v2646 = vadd.f32 %v2509, %v2645
      %v2647 = vpop.f32.mrf.mxu0
      %v2648 = vadd.f32 %v2511, %v2647
      %2649 = vmatmul.bf16.gmra.mxu0 %v2347
      %v2650 = vpop.f32.mrf.mxu0
      %v2651 = vadd.f32 %v2514, %v2650
      %v2652 = vpop.f32.mrf.mxu0
      %v2653 = vadd.f32 %v2516, %v2652
      %2654 = vmatmul.bf16.gmra.mxu0 %v2348
      %v2655 = vpop.f32.mrf.mxu0
      %v2656 = vadd.f32 %v2519, %v2655
      %v2657 = vpop.f32.mrf.mxu0
      %v2658 = vadd.f32 %v2521, %v2657
      %2659 = vdwg.mxu0
      %v2660 = vld [vmem:[#allocation2 + $0x29] sm:$0xff]
      %v2661 = vld [vmem:[#allocation2 + $0x31] sm:$0xff]
      %v2662 = vld [vmem:[#allocation2 + $0x39] sm:$0xff]
      %v2663 = vld [vmem:[#allocation2 + $0x41] sm:$0xff]
      %v2664 = vld [vmem:[#allocation2 + $0x49] sm:$0xff]
      %v2665 = vld [vmem:[#allocation2 + $0x51] sm:$0xff]
      %v2666 = vld [vmem:[#allocation2 + $0x59] sm:$0xff]
      %v2667 = vld [vmem:[#allocation2 + $0x61] sm:$0xff]
      %v2668 = vld [vmem:[#allocation2 + $0x69] sm:$0xff]
      %v2669 = vld [vmem:[#allocation2 + $0x71] sm:$0xff]
      %v2670 = vld [vmem:[#allocation2 + $0x79] sm:$0xff]
      %v2671 = vld [vmem:[#allocation2 + $0x81] sm:$0xff]
      %v2672 = vld [vmem:[#allocation2 + $0x89] sm:$0xff]
      %v2673 = vld [vmem:[#allocation2 + $0x91] sm:$0xff]
      %v2674 = vld [vmem:[#allocation2 + $0x99] sm:$0xff]
      %v2675 = vld [vmem:[#allocation2 + $0xa1] sm:$0xff]
      %v2676 = vld [vmem:[#allocation2 + $0xa9] sm:$0xff]
      %v2677 = vld [vmem:[#allocation2 + $0xb1] sm:$0xff]
      %v2678 = vld [vmem:[#allocation2 + $0xb9] sm:$0xff]
      %v2679 = vld [vmem:[#allocation2 + $0xc1] sm:$0xff]
      %v2680 = vld [vmem:[#allocation2 + $0xc9] sm:$0xff]
      %v2681 = vld [vmem:[#allocation2 + $0xd1] sm:$0xff]
      %v2682 = vld [vmem:[#allocation2 + $0xd9] sm:$0xff]
      %v2683 = vld [vmem:[#allocation2 + $0xe1] sm:$0xff]
      %v2684 = vld [vmem:[#allocation2 + $0xe9] sm:$0xff]
      %v2685 = vld [vmem:[#allocation2 + $0xf1] sm:$0xff]
      %v2686 = vld [vmem:[#allocation2 + $0xf9] sm:$0xff]
      %v2687 = vld [vmem:[#allocation2 + $0x101] sm:$0xff]
      %v2688 = vld [vmem:[#allocation2 + $0x109] sm:$0xff]
      %v2689 = vld [vmem:[#allocation2 + $0x111] sm:$0xff]
      %v2690 = vld [vmem:[#allocation2 + $0x119] sm:$0xff]
      %v2691 = vld [vmem:[#allocation2 + $0x121] sm:$0xff]
      %v2692 = vpack.c.bf16 %v2661, %v2660
      %v2693 = vpack.c.bf16 %v2663, %v2662
      %v2694 = vpack.c.bf16 %v2665, %v2664
      %v2695 = vpack.c.bf16 %v2667, %v2666
      %v2696 = vpack.c.bf16 %v2669, %v2668
      %v2697 = vpack.c.bf16 %v2671, %v2670
      %v2698 = vpack.c.bf16 %v2673, %v2672
      %v2699 = vpack.c.bf16 %v2675, %v2674
      %v2700 = vpack.c.bf16 %v2677, %v2676
      %v2701 = vpack.c.bf16 %v2679, %v2678
      %v2702 = vpack.c.bf16 %v2681, %v2680
      %v2703 = vpack.c.bf16 %v2683, %v2682
      %v2704 = vpack.c.bf16 %v2685, %v2684
      %v2705 = vpack.c.bf16 %v2687, %v2686
      %v2706 = vpack.c.bf16 %v2689, %v2688
      %v2707 = vpack.c.bf16 %v2691, %v2690
      %s2708 = scalar_lea.vmem %s3, 512
      %v2709 = vld [vmem:[%s2708] sm:$0xf]
      %v2710 = vld [vmem:[%s2708 + $0x4] sm:$0xf]
      %v2711 = vld [vmem:[%s2708 + $0x8] sm:$0xf]
      %v2712 = vld [vmem:[%s2708 + $0xc] sm:$0xf]
      %v2713 = vld [vmem:[%s2708 + $0x10] sm:$0xf]
      %v2714 = vld [vmem:[%s2708 + $0x14] sm:$0xf]
      %v2715 = vld [vmem:[%s2708 + $0x18] sm:$0xf]
      %v2716 = vld [vmem:[%s2708 + $0x1c] sm:$0xf]
      %v2717 = vld [vmem:[%s2708 + $0x20] sm:$0xf]
      %v2718 = vld [vmem:[%s2708 + $0x24] sm:$0xf]
      %v2719 = vld [vmem:[%s2708 + $0x28] sm:$0xf]
      %v2720 = vld [vmem:[%s2708 + $0x2c] sm:$0xf]
      %v2721 = vld [vmem:[%s2708 + $0x30] sm:$0xf]
      %v2722 = vld [vmem:[%s2708 + $0x34] sm:$0xf]
      %v2723 = vld [vmem:[%s2708 + $0x38] sm:$0xf]
      %v2724 = vld [vmem:[%s2708 + $0x3c] sm:$0xf]
      %v2741 = vunpack.c.l.b16 %v2709
      %v2742 = vunpack.c.l.b16 %v2710
      %v2743 = vunpack.c.l.b16 %v2711
      %v2744 = vunpack.c.l.b16 %v2712
      %v2745 = vunpack.c.l.b16 %v2713
      %v2746 = vunpack.c.l.b16 %v2714
      %v2747 = vunpack.c.l.b16 %v2715
      %v2748 = vunpack.c.l.b16 %v2716
      %v2749 = vunpack.c.l.b16 %v2717
      %v2750 = vunpack.c.l.b16 %v2718
      %v2751 = vunpack.c.l.b16 %v2719
      %v2752 = vunpack.c.l.b16 %v2720
      %v2753 = vunpack.c.l.b16 %v2721
      %v2754 = vunpack.c.l.b16 %v2722
      %v2755 = vunpack.c.l.b16 %v2723
      %v2756 = vunpack.c.l.b16 %v2724
      %v2757 = vpack.c.b16 %v2742, %v2741
      %v2758 = vpack.c.b16 %v2744, %v2743
      %v2759 = vpack.c.b16 %v2746, %v2745
      %v2760 = vpack.c.b16 %v2748, %v2747
      %v2761 = vpack.c.b16 %v2750, %v2749
      %v2762 = vpack.c.b16 %v2752, %v2751
      %v2763 = vpack.c.b16 %v2754, %v2753
      %v2764 = vpack.c.b16 %v2756, %v2755
      %2773 = vmatpush.bf16.msra.mxu0 %v2764
      %2774 = vmatpush.bf16.msra.mxu0 %v2763
      %2775 = vmatpush.bf16.msra.mxu0 %v2762
      %2776 = vmatpush.bf16.msra.mxu0 %v2761
      %2777 = vmatpush.bf16.msra.mxu0 %v2760
      %2778 = vmatpush.bf16.msra.mxu0 %v2759
      %2779 = vmatpush.bf16.msra.mxu0 %v2758
      %2780 = vmatpush.bf16.msra.mxu0 %v2757
      %2781 = vmatmul.bf16.gmra.mxu0 %v2692
      %v2782 = vpop.f32.mrf.mxu0
      %v2783 = vadd.f32 0.0, %v2782
      %v2784 = vpop.f32.mrf.mxu0
      %v2785 = vadd.f32 0.0, %v2784
      %2786 = vmatmul.bf16.gmra.mxu0 %v2693
      %v2787 = vpop.f32.mrf.mxu0
      %v2788 = vadd.f32 0.0, %v2787
      %v2789 = vpop.f32.mrf.mxu0
      %v2790 = vadd.f32 0.0, %v2789
      %2791 = vmatmul.bf16.gmra.mxu0 %v2694
      %v2792 = vpop.f32.mrf.mxu0
      %v2793 = vadd.f32 0.0, %v2792
      %v2794 = vpop.f32.mrf.mxu0
      %v2795 = vadd.f32 0.0, %v2794
      %2796 = vmatmul.bf16.gmra.mxu0 %v2695
      %v2797 = vpop.f32.mrf.mxu0
      %v2798 = vadd.f32 0.0, %v2797
      %v2799 = vpop.f32.mrf.mxu0
      %v2800 = vadd.f32 0.0, %v2799
      %2801 = vmatmul.bf16.gmra.mxu0 %v2696
      %v2802 = vpop.f32.mrf.mxu0
      %v2803 = vadd.f32 0.0, %v2802
      %v2804 = vpop.f32.mrf.mxu0
      %v2805 = vadd.f32 0.0, %v2804
      %2806 = vmatmul.bf16.gmra.mxu0 %v2697
      %v2807 = vpop.f32.mrf.mxu0
      %v2808 = vadd.f32 0.0, %v2807
      %v2809 = vpop.f32.mrf.mxu0
      %v2810 = vadd.f32 0.0, %v2809
      %2811 = vmatmul.bf16.gmra.mxu0 %v2698
      %v2812 = vpop.f32.mrf.mxu0
      %v2813 = vadd.f32 0.0, %v2812
      %v2814 = vpop.f32.mrf.mxu0
      %v2815 = vadd.f32 0.0, %v2814
      %2816 = vmatmul.bf16.gmra.mxu0 %v2699
      %v2817 = vpop.f32.mrf.mxu0
      %v2818 = vadd.f32 0.0, %v2817
      %v2819 = vpop.f32.mrf.mxu0
      %v2820 = vadd.f32 0.0, %v2819
      %2821 = vmatmul.bf16.gmra.mxu0 %v2700
      %v2822 = vpop.f32.mrf.mxu0
      %v2823 = vadd.f32 0.0, %v2822
      %v2824 = vpop.f32.mrf.mxu0
      %v2825 = vadd.f32 0.0, %v2824
      %2826 = vmatmul.bf16.gmra.mxu0 %v2701
      %v2827 = vpop.f32.mrf.mxu0
      %v2828 = vadd.f32 0.0, %v2827
      %v2829 = vpop.f32.mrf.mxu0
      %v2830 = vadd.f32 0.0, %v2829
      %2831 = vmatmul.bf16.gmra.mxu0 %v2702
      %v2832 = vpop.f32.mrf.mxu0
      %v2833 = vadd.f32 0.0, %v2832
      %v2834 = vpop.f32.mrf.mxu0
      %v2835 = vadd.f32 0.0, %v2834
      %2836 = vmatmul.bf16.gmra.mxu0 %v2703
      %v2837 = vpop.f32.mrf.mxu0
      %v2838 = vadd.f32 0.0, %v2837
      %v2839 = vpop.f32.mrf.mxu0
      %v2840 = vadd.f32 0.0, %v2839
      %2841 = vmatmul.bf16.gmra.mxu0 %v2704
      %v2842 = vpop.f32.mrf.mxu0
      %v2843 = vadd.f32 0.0, %v2842
      %v2844 = vpop.f32.mrf.mxu0
      %v2845 = vadd.f32 0.0, %v2844
      %2846 = vmatmul.bf16.gmra.mxu0 %v2705
      %v2847 = vpop.f32.mrf.mxu0
      %v2848 = vadd.f32 0.0, %v2847
      %v2849 = vpop.f32.mrf.mxu0
      %v2850 = vadd.f32 0.0, %v2849
      %2851 = vmatmul.bf16.gmra.mxu0 %v2706
      %v2852 = vpop.f32.mrf.mxu0
      %v2853 = vadd.f32 0.0, %v2852
      %v2854 = vpop.f32.mrf.mxu0
      %v2855 = vadd.f32 0.0, %v2854
      %2856 = vmatmul.bf16.gmra.mxu0 %v2707
      %v2857 = vpop.f32.mrf.mxu0
      %v2858 = vadd.f32 0.0, %v2857
      %v2859 = vpop.f32.mrf.mxu0
      %v2860 = vadd.f32 0.0, %v2859
      %2861 = vdwg.mxu0
      %v2862 = vadd.f32 %v2581, %v2783
      %v2863 = vadd.f32 %v2583, %v2785
      %v2864 = vadd.f32 %v2586, %v2788
      %v2865 = vadd.f32 %v2588, %v2790
      %v2866 = vadd.f32 %v2591, %v2793
      %v2867 = vadd.f32 %v2593, %v2795
      %v2868 = vadd.f32 %v2596, %v2798
      %v2869 = vadd.f32 %v2598, %v2800
      %v2870 = vadd.f32 %v2601, %v2803
      %v2871 = vadd.f32 %v2603, %v2805
      %v2872 = vadd.f32 %v2606, %v2808
      %v2873 = vadd.f32 %v2608, %v2810
      %v2874 = vadd.f32 %v2611, %v2813
      %v2875 = vadd.f32 %v2613, %v2815
      %v2876 = vadd.f32 %v2616, %v2818
      %v2877 = vadd.f32 %v2618, %v2820
      %v2878 = vadd.f32 %v2621, %v2823
      %v2879 = vadd.f32 %v2623, %v2825
      %v2880 = vadd.f32 %v2626, %v2828
      %v2881 = vadd.f32 %v2628, %v2830
      %v2882 = vadd.f32 %v2631, %v2833
      %v2883 = vadd.f32 %v2633, %v2835
      %v2884 = vadd.f32 %v2636, %v2838
      %v2885 = vadd.f32 %v2638, %v2840
      %v2886 = vadd.f32 %v2641, %v2843
      %v2887 = vadd.f32 %v2643, %v2845
      %v2888 = vadd.f32 %v2646, %v2848
      %v2889 = vadd.f32 %v2648, %v2850
      %v2890 = vadd.f32 %v2651, %v2853
      %v2891 = vadd.f32 %v2653, %v2855
      %v2892 = vadd.f32 %v2656, %v2858
      %v2893 = vadd.f32 %v2658, %v2860
      %vm2894 = vcmp.le.s32.totalorder %v892, 14
      %vm2895 = vcmp.le.s32.totalorder %v893, 14
      %vm2896 = vcmp.le.s32.totalorder %v894, 14
      %vm2897 = vcmp.le.s32.totalorder %v895, 14
      %vm2898 = vcmp.le.s32.totalorder %v896, 14
      %vm2899 = vcmp.le.s32.totalorder %v897, 14
      %vm2900 = vcmp.le.s32.totalorder %v898, 14
      %vm2901 = vcmp.le.s32.totalorder %v899, 14
      %vm2902 = vcmp.le.s32.totalorder %v900, 14
      %vm2903 = vcmp.le.s32.totalorder %v901, 14
      %vm2904 = vcmp.le.s32.totalorder %v902, 14
      %vm2905 = vcmp.le.s32.totalorder %v903, 14
      %vm2906 = vcmp.le.s32.totalorder %v904, 14
      %vm2907 = vcmp.le.s32.totalorder %v905, 14
      %vm2908 = vcmp.le.s32.totalorder %v906, 14
      %vm2909 = vcmp.le.s32.totalorder %v907, 14
      %vm2910 = vcmp.le.s32.totalorder %v908, 14
      %vm2911 = vcmp.le.s32.totalorder %v909, 14
      %vm2912 = vcmp.le.s32.totalorder %v910, 14
      %vm2913 = vcmp.le.s32.totalorder %v911, 14
      %vm2914 = vcmp.le.s32.totalorder %v912, 14
      %vm2915 = vcmp.le.s32.totalorder %v913, 14
      %vm2916 = vcmp.le.s32.totalorder %v914, 14
      %vm2917 = vcmp.le.s32.totalorder %v915, 14
      %vm2918 = vcmp.le.s32.totalorder %v916, 14
      %vm2919 = vcmp.le.s32.totalorder %v917, 14
      %vm2920 = vcmp.le.s32.totalorder %v918, 14
      %vm2921 = vcmp.le.s32.totalorder %v919, 14
      %vm2922 = vcmp.le.s32.totalorder %v920, 14
      %vm2923 = vcmp.le.s32.totalorder %v921, 14
      %vm2924 = vcmp.le.s32.totalorder %v922, 14
      %vm2925 = vcmp.le.s32.totalorder %v923, 14
      %v2926 = vsel %vm2894, 1, 0
      %v2927 = vsel %vm2895, 1, 0
      %v2928 = vsel %vm2896, 1, 0
      %v2929 = vsel %vm2897, 1, 0
      %v2930 = vsel %vm2898, 1, 0
      %v2931 = vsel %vm2899, 1, 0
      %v2932 = vsel %vm2900, 1, 0
      %v2933 = vsel %vm2901, 1, 0
      %v2934 = vsel %vm2902, 1, 0
      %v2935 = vsel %vm2903, 1, 0
      %v2936 = vsel %vm2904, 1, 0
      %v2937 = vsel %vm2905, 1, 0
      %v2938 = vsel %vm2906, 1, 0
      %v2939 = vsel %vm2907, 1, 0
      %v2940 = vsel %vm2908, 1, 0
      %v2941 = vsel %vm2909, 1, 0
      %v2942 = vsel %vm2910, 1, 0
      %v2943 = vsel %vm2911, 1, 0
      %v2944 = vsel %vm2912, 1, 0
      %v2945 = vsel %vm2913, 1, 0
      %v2946 = vsel %vm2914, 1, 0
      %v2947 = vsel %vm2915, 1, 0
      %v2948 = vsel %vm2916, 1, 0
      %v2949 = vsel %vm2917, 1, 0
      %v2950 = vsel %vm2918, 1, 0
      %v2951 = vsel %vm2919, 1, 0
      %v2952 = vsel %vm2920, 1, 0
      %v2953 = vsel %vm2921, 1, 0
      %v2954 = vsel %vm2922, 1, 0
      %v2955 = vsel %vm2923, 1, 0
      %v2956 = vsel %vm2924, 1, 0
      %v2957 = vsel %vm2925, 1, 0
      %vm2958 = vcmp.eq.s32.totalorder %v2926, 1
      %vm2959 = vcmp.eq.s32.totalorder %v2927, 1
      %vm2960 = vcmp.eq.s32.totalorder %v2928, 1
      %vm2961 = vcmp.eq.s32.totalorder %v2929, 1
      %vm2962 = vcmp.eq.s32.totalorder %v2930, 1
      %vm2963 = vcmp.eq.s32.totalorder %v2931, 1
      %vm2964 = vcmp.eq.s32.totalorder %v2932, 1
      %vm2965 = vcmp.eq.s32.totalorder %v2933, 1
      %vm2966 = vcmp.eq.s32.totalorder %v2934, 1
      %vm2967 = vcmp.eq.s32.totalorder %v2935, 1
      %vm2968 = vcmp.eq.s32.totalorder %v2936, 1
      %vm2969 = vcmp.eq.s32.totalorder %v2937, 1
      %vm2970 = vcmp.eq.s32.totalorder %v2938, 1
      %vm2971 = vcmp.eq.s32.totalorder %v2939, 1
      %vm2972 = vcmp.eq.s32.totalorder %v2940, 1
      %vm2973 = vcmp.eq.s32.totalorder %v2941, 1
      %vm2974 = vcmp.eq.s32.totalorder %v2942, 1
      %vm2975 = vcmp.eq.s32.totalorder %v2943, 1
      %vm2976 = vcmp.eq.s32.totalorder %v2944, 1
      %vm2977 = vcmp.eq.s32.totalorder %v2945, 1
      %vm2978 = vcmp.eq.s32.totalorder %v2946, 1
      %vm2979 = vcmp.eq.s32.totalorder %v2947, 1
      %vm2980 = vcmp.eq.s32.totalorder %v2948, 1
      %vm2981 = vcmp.eq.s32.totalorder %v2949, 1
      %vm2982 = vcmp.eq.s32.totalorder %v2950, 1
      %vm2983 = vcmp.eq.s32.totalorder %v2951, 1
      %vm2984 = vcmp.eq.s32.totalorder %v2952, 1
      %vm2985 = vcmp.eq.s32.totalorder %v2953, 1
      %vm2986 = vcmp.eq.s32.totalorder %v2954, 1
      %vm2987 = vcmp.eq.s32.totalorder %v2955, 1
      %vm2988 = vcmp.eq.s32.totalorder %v2956, 1
      %vm2989 = vcmp.eq.s32.totalorder %v2957, 1
      %v2990 = vsel %vm2958, %v2862, 0.0
      %v2991 = vsel %vm2959, %v2863, 0.0
      %v2992 = vsel %vm2960, %v2864, 0.0
      %v2993 = vsel %vm2961, %v2865, 0.0
      %v2994 = vsel %vm2962, %v2866, 0.0
      %v2995 = vsel %vm2963, %v2867, 0.0
      %v2996 = vsel %vm2964, %v2868, 0.0
      %v2997 = vsel %vm2965, %v2869, 0.0
      %v2998 = vsel %vm2966, %v2870, 0.0
      %v2999 = vsel %vm2967, %v2871, 0.0
      %v3000 = vsel %vm2968, %v2872, 0.0
      %v3001 = vsel %vm2969, %v2873, 0.0
      %v3002 = vsel %vm2970, %v2874, 0.0
      %v3003 = vsel %vm2971, %v2875, 0.0
      %v3004 = vsel %vm2972, %v2876, 0.0
      %v3005 = vsel %vm2973, %v2877, 0.0
      %v3006 = vsel %vm2974, %v2878, 0.0
      %v3007 = vsel %vm2975, %v2879, 0.0
      %v3008 = vsel %vm2976, %v2880, 0.0
      %v3009 = vsel %vm2977, %v2881, 0.0
      %v3010 = vsel %vm2978, %v2882, 0.0
      %v3011 = vsel %vm2979, %v2883, 0.0
      %v3012 = vsel %vm2980, %v2884, 0.0
      %v3013 = vsel %vm2981, %v2885, 0.0
      %v3014 = vsel %vm2982, %v2886, 0.0
      %v3015 = vsel %vm2983, %v2887, 0.0
      %v3016 = vsel %vm2984, %v2888, 0.0
      %v3017 = vsel %vm2985, %v2889, 0.0
      %v3018 = vsel %vm2986, %v2890, 0.0
      %v3019 = vsel %vm2987, %v2891, 0.0
      %v3020 = vsel %vm2988, %v2892, 0.0
      %v3021 = vsel %vm2989, %v2893, 0.0
      %v3022 = vadd.f32 %v2269, %v2990
      %v3023 = vadd.f32 %v2270, %v2991
      %v3024 = vadd.f32 %v2271, %v2992
      %v3025 = vadd.f32 %v2272, %v2993
      %v3026 = vadd.f32 %v2273, %v2994
      %v3027 = vadd.f32 %v2274, %v2995
      %v3028 = vadd.f32 %v2275, %v2996
      %v3029 = vadd.f32 %v2276, %v2997
      %v3030 = vadd.f32 %v2277, %v2998
      %v3031 = vadd.f32 %v2278, %v2999
      %v3032 = vadd.f32 %v2279, %v3000
      %v3033 = vadd.f32 %v2280, %v3001
      %v3034 = vadd.f32 %v2281, %v3002
      %v3035 = vadd.f32 %v2282, %v3003
      %v3036 = vadd.f32 %v2283, %v3004
      %v3037 = vadd.f32 %v2284, %v3005
      %v3038 = vadd.f32 %v2285, %v3006
      %v3039 = vadd.f32 %v2286, %v3007
      %v3040 = vadd.f32 %v2287, %v3008
      %v3041 = vadd.f32 %v2288, %v3009
      %v3042 = vadd.f32 %v2289, %v3010
      %v3043 = vadd.f32 %v2290, %v3011
      %v3044 = vadd.f32 %v2291, %v3012
      %v3045 = vadd.f32 %v2292, %v3013
      %v3046 = vadd.f32 %v2293, %v3014
      %v3047 = vadd.f32 %v2294, %v3015
      %v3048 = vadd.f32 %v2295, %v3016
      %v3049 = vadd.f32 %v2296, %v3017
      %v3050 = vadd.f32 %v2297, %v3018
      %v3051 = vadd.f32 %v2298, %v3019
      %v3052 = vadd.f32 %v2299, %v3020
      %v3053 = vadd.f32 %v2300, %v3021
      %v3054 = vpack.c.bf16 %v3022, %v3022
      %v3055 = vpack.c.bf16 %v3023, %v3023
      %v3056 = vpack.c.bf16 %v3024, %v3024
      %v3057 = vpack.c.bf16 %v3025, %v3025
      %v3058 = vpack.c.bf16 %v3026, %v3026
      %v3059 = vpack.c.bf16 %v3027, %v3027
      %v3060 = vpack.c.bf16 %v3028, %v3028
      %v3061 = vpack.c.bf16 %v3029, %v3029
      %v3062 = vpack.c.bf16 %v3030, %v3030
      %v3063 = vpack.c.bf16 %v3031, %v3031
      %v3064 = vpack.c.bf16 %v3032, %v3032
      %v3065 = vpack.c.bf16 %v3033, %v3033
      %v3066 = vpack.c.bf16 %v3034, %v3034
      %v3067 = vpack.c.bf16 %v3035, %v3035
      %v3068 = vpack.c.bf16 %v3036, %v3036
      %v3069 = vpack.c.bf16 %v3037, %v3037
      %v3070 = vpack.c.bf16 %v3038, %v3038
      %v3071 = vpack.c.bf16 %v3039, %v3039
      %v3072 = vpack.c.bf16 %v3040, %v3040
      %v3073 = vpack.c.bf16 %v3041, %v3041
      %v3074 = vpack.c.bf16 %v3042, %v3042
      %v3075 = vpack.c.bf16 %v3043, %v3043
      %v3076 = vpack.c.bf16 %v3044, %v3044
      %v3077 = vpack.c.bf16 %v3045, %v3045
      %v3078 = vpack.c.bf16 %v3046, %v3046
      %v3079 = vpack.c.bf16 %v3047, %v3047
      %v3080 = vpack.c.bf16 %v3048, %v3048
      %v3081 = vpack.c.bf16 %v3049, %v3049
      %v3082 = vpack.c.bf16 %v3050, %v3050
      %v3083 = vpack.c.bf16 %v3051, %v3051
      %v3084 = vpack.c.bf16 %v3052, %v3052
      %v3085 = vpack.c.bf16 %v3053, %v3053
      %3086 = vst [vmem:[%s262] sm:$0xf] %v3054
      %3087 = vst [vmem:[%s262 + $0x4] sm:$0xf] %v3055
      %3088 = vst [vmem:[%s262 + $0x8] sm:$0xf] %v3056
      %3089 = vst [vmem:[%s262 + $0xc] sm:$0xf] %v3057
      %3090 = vst [vmem:[%s262 + $0x10] sm:$0xf] %v3058
      %3091 = vst [vmem:[%s262 + $0x14] sm:$0xf] %v3059
      %3092 = vst [vmem:[%s262 + $0x18] sm:$0xf] %v3060
      %3093 = vst [vmem:[%s262 + $0x1c] sm:$0xf] %v3061
      %3094 = vst [vmem:[%s262 + $0x20] sm:$0xf] %v3062
      %3095 = vst [vmem:[%s262 + $0x24] sm:$0xf] %v3063
      %3096 = vst [vmem:[%s262 + $0x28] sm:$0xf] %v3064
      %3097 = vst [vmem:[%s262 + $0x2c] sm:$0xf] %v3065
      %3098 = vst [vmem:[%s262 + $0x30] sm:$0xf] %v3066
      %3099 = vst [vmem:[%s262 + $0x34] sm:$0xf] %v3067
      %3100 = vst [vmem:[%s262 + $0x38] sm:$0xf] %v3068
      %3101 = vst [vmem:[%s262 + $0x3c] sm:$0xf] %v3069
      %3102 = vst [vmem:[%s262 + $0x40] sm:$0xf] %v3070
      %3103 = vst [vmem:[%s262 + $0x44] sm:$0xf] %v3071
      %3104 = vst [vmem:[%s262 + $0x48] sm:$0xf] %v3072
      %3105 = vst [vmem:[%s262 + $0x4c] sm:$0xf] %v3073
      %3106 = vst [vmem:[%s262 + $0x50] sm:$0xf] %v3074
      %3107 = vst [vmem:[%s262 + $0x54] sm:$0xf] %v3075
      %3108 = vst [vmem:[%s262 + $0x58] sm:$0xf] %v3076
      %3109 = vst [vmem:[%s262 + $0x5c] sm:$0xf] %v3077
      %3110 = vst [vmem:[%s262 + $0x60] sm:$0xf] %v3078
      %3111 = vst [vmem:[%s262 + $0x64] sm:$0xf] %v3079
      %3112 = vst [vmem:[%s262 + $0x68] sm:$0xf] %v3080
      %3113 = vst [vmem:[%s262 + $0x6c] sm:$0xf] %v3081
      %3114 = vst [vmem:[%s262 + $0x70] sm:$0xf] %v3082
      %3115 = vst [vmem:[%s262 + $0x74] sm:$0xf] %v3083
      %3116 = vst [vmem:[%s262 + $0x78] sm:$0xf] %v3084
      %3117 = vst [vmem:[%s262 + $0x7c] sm:$0xf] %v3085
      %v3118 = vadd.f32 %v3022, %v3023
      %v3119 = vadd.f32 %v3118, %v3024
      %v3120 = vadd.f32 %v3119, %v3025
      %v3121 = vadd.f32 %v3120, %v3026
      %v3122 = vadd.f32 %v3121, %v3027
      %v3123 = vadd.f32 %v3122, %v3028
      %v3124 = vadd.f32 %v3123, %v3029
      %v3125 = vadd.f32 %v3124, %v3030
      %v3126 = vadd.f32 %v3125, %v3031
      %v3127 = vadd.f32 %v3126, %v3032
      %v3128 = vadd.f32 %v3127, %v3033
      %v3129 = vadd.f32 %v3128, %v3034
      %v3130 = vadd.f32 %v3129, %v3035
      %v3131 = vadd.f32 %v3130, %v3036
      %v3132 = vadd.f32 %v3131, %v3037
      %v3133 = vadd.f32 %v3132, %v3038
      %v3134 = vadd.f32 %v3133, %v3039
      %v3135 = vadd.f32 %v3134, %v3040
      %v3136 = vadd.f32 %v3135, %v3041
      %v3137 = vadd.f32 %v3136, %v3042
      %v3138 = vadd.f32 %v3137, %v3043
      %v3139 = vadd.f32 %v3138, %v3044
      %v3140 = vadd.f32 %v3139, %v3045
      %v3141 = vadd.f32 %v3140, %v3046
      %v3142 = vadd.f32 %v3141, %v3047
      %v3143 = vadd.f32 %v3142, %v3048
      %v3144 = vadd.f32 %v3143, %v3049
      %v3145 = vadd.f32 %v3144, %v3050
      %v3146 = vadd.f32 %v3145, %v3051
      %v3147 = vadd.f32 %v3146, %v3052
      %v3148 = vadd.f32 %v3147, %v3053
      %v3149 = vrot.slane %v3148, 4
      %v3150 = vadd.f32 %v3148, %v3149
      %v3151 = vrot.slane %v3150, 2
      %v3152 = vadd.f32 %v3150, %v3151
      %v3153 = vrot.slane %v3152, 1
      %v3154 = vadd.f32 %v3152, %v3153
      %3155 = vst [vmem:[%s265] sm:$0x1] %v3154
      %v3156 = vmul.f32 %v3022, %v3022
      %v3157 = vmul.f32 %v3023, %v3023
      %v3158 = vmul.f32 %v3024, %v3024
      %v3159 = vmul.f32 %v3025, %v3025
      %v3160 = vmul.f32 %v3026, %v3026
      %v3161 = vmul.f32 %v3027, %v3027
      %v3162 = vmul.f32 %v3028, %v3028
      %v3163 = vmul.f32 %v3029, %v3029
      %v3164 = vmul.f32 %v3030, %v3030
      %v3165 = vmul.f32 %v3031, %v3031
      %v3166 = vmul.f32 %v3032, %v3032
      %v3167 = vmul.f32 %v3033, %v3033
      %v3168 = vmul.f32 %v3034, %v3034
      %v3169 = vmul.f32 %v3035, %v3035
      %v3170 = vmul.f32 %v3036, %v3036
      %v3171 = vmul.f32 %v3037, %v3037
      %v3172 = vmul.f32 %v3038, %v3038
      %v3173 = vmul.f32 %v3039, %v3039
      %v3174 = vmul.f32 %v3040, %v3040
      %v3175 = vmul.f32 %v3041, %v3041
      %v3176 = vmul.f32 %v3042, %v3042
      %v3177 = vmul.f32 %v3043, %v3043
      %v3178 = vmul.f32 %v3044, %v3044
      %v3179 = vmul.f32 %v3045, %v3045
      %v3180 = vmul.f32 %v3046, %v3046
      %v3181 = vmul.f32 %v3047, %v3047
      %v3182 = vmul.f32 %v3048, %v3048
      %v3183 = vmul.f32 %v3049, %v3049
      %v3184 = vmul.f32 %v3050, %v3050
      %v3185 = vmul.f32 %v3051, %v3051
      %v3186 = vmul.f32 %v3052, %v3052
      %v3187 = vmul.f32 %v3053, %v3053
      %v3188 = vadd.f32 %v3156, %v3157
      %v3189 = vadd.f32 %v3188, %v3158
      %v3190 = vadd.f32 %v3189, %v3159
      %v3191 = vadd.f32 %v3190, %v3160
      %v3192 = vadd.f32 %v3191, %v3161
      %v3193 = vadd.f32 %v3192, %v3162
      %v3194 = vadd.f32 %v3193, %v3163
      %v3195 = vadd.f32 %v3194, %v3164
      %v3196 = vadd.f32 %v3195, %v3165
      %v3197 = vadd.f32 %v3196, %v3166
      %v3198 = vadd.f32 %v3197, %v3167
      %v3199 = vadd.f32 %v3198, %v3168
      %v3200 = vadd.f32 %v3199, %v3169
      %v3201 = vadd.f32 %v3200, %v3170
      %v3202 = vadd.f32 %v3201, %v3171
      %v3203 = vadd.f32 %v3202, %v3172
      %v3204 = vadd.f32 %v3203, %v3173
      %v3205 = vadd.f32 %v3204, %v3174
      %v3206 = vadd.f32 %v3205, %v3175
      %v3207 = vadd.f32 %v3206, %v3176
      %v3208 = vadd.f32 %v3207, %v3177
      %v3209 = vadd.f32 %v3208, %v3178
      %v3210 = vadd.f32 %v3209, %v3179
      %v3211 = vadd.f32 %v3210, %v3180
      %v3212 = vadd.f32 %v3211, %v3181
      %v3213 = vadd.f32 %v3212, %v3182
      %v3214 = vadd.f32 %v3213, %v3183
      %v3215 = vadd.f32 %v3214, %v3184
      %v3216 = vadd.f32 %v3215, %v3185
      %v3217 = vadd.f32 %v3216, %v3186
      %v3218 = vadd.f32 %v3217, %v3187
      %v3219 = vrot.slane %v3218, 4
      %v3220 = vadd.f32 %v3218, %v3219
      %v3221 = vrot.slane %v3220, 2
      %v3222 = vadd.f32 %v3220, %v3221
      %v3223 = vrot.slane %v3222, 1
      %v3224 = vadd.f32 %v3222, %v3223
      %3225 = vst [vmem:[%s268] sm:$0x1] %v3224
      %p3226 = scmp.lt.s32.totalorder %s18, 1
      %s3227 = scalar_select %p3226, %s18, 1
      %s3228 = smul.addr %s3227, 32
      %s3229 = smul.addr %s3228, 4
      %s3230 = scalar_lea.vmem %s4, %s3229
      %p3231 = scmp.lt.s32.totalorder %s18, 1
      %s3232 = scalar_select %p3231, %s18, 1
      %s3233 = scalar_lea.vmem %s5, %s3232
      %p3234 = scmp.lt.s32.totalorder %s18, 1
      %s3235 = scalar_select %p3234, %s18, 1
      %s3236 = scalar_lea.vmem %s6, %s3235
      // Predicated region
      $region37: #{double_conv_forward.4} parent=35 // pred_check
        %p3237 = pneg %p125
      $region38: #{double_conv_forward.4} parent=35 // pred_check_branch
        %3239 = sbr.rel (%p3237) target = $region40
      $region39: #{double_conv_forward.4} parent=35 // pred_region
        _
      $region40: #{double_conv_forward.4} parent=35 // pred_fallthru
        _
      // Predicated region
      $region41: #{double_conv_forward.4} parent=35 // pred_check
        %p3240 = pneg %p151
      $region42: #{double_conv_forward.4} parent=35 // pred_check_branch
        %3242 = sbr.rel (%p3240) target = $region44
      $region43: #{double_conv_forward.4} parent=35 // pred_region
        _
      $region44: #{double_conv_forward.4} parent=35 // pred_fallthru
        _
      // Predicated region
      $region45: #{double_conv_forward.4} parent=35 // pred_check
        %p3243 = pneg %p177
      $region46: #{double_conv_forward.4} parent=35 // pred_check_branch
        %3245 = sbr.rel (%p3243) target = $region48
      $region47: #{double_conv_forward.4} parent=35 // pred_region
        _
      $region48: #{double_conv_forward.4} parent=35 // pred_fallthru
        _
    $region36: #{double_conv_forward.4} parent=5 // pred_fallthru
      _
    %p3246 = scmp.le.s32.totalorder 2, %s13
    // Predicated region
    $region49: #{double_conv_forward.4} parent=5 // pred_check
      %p3247 = pneg %p3246
    $region50: #{double_conv_forward.4} parent=5 // pred_check_branch
      %3249 = sbr.rel (%p3247) target = $region52
    $region51: #{double_conv_forward.4} parent=5 // pred_region
      %s3250 = ssub.s32 %s13, 2
      // Predicated region
      $region53: #{double_conv_forward.4} parent=51 // pred_check
        %p3251 = pneg %p131
      $region54: #{double_conv_forward.4} parent=51 // pred_check_branch
        %3253 = sbr.rel (%p3251) target = $region56
      $region55: #{double_conv_forward.4} parent=51 // pred_region
        %p3254 = scmp.lt.s32.totalorder %s19, 1
        %s3255 = scalar_select %p3254, %s19, 1
        %s3256 = smul.addr %s3255, 32
        %s3257 = smul.addr %s3256, 4
        %s3258 = scalar_lea.vmem %s4, %s3257
      $region56: #{double_conv_forward.4} parent=51 // pred_fallthru
        _
      // Predicated region
      $region57: #{double_conv_forward.4} parent=51 // pred_check
        %p3259 = pneg %p157
      $region58: #{double_conv_forward.4} parent=51 // pred_check_branch
        %3261 = sbr.rel (%p3259) target = $region60
      $region59: #{double_conv_forward.4} parent=51 // pred_region
        %p3262 = scmp.lt.s32.totalorder %s19, 1
        %s3263 = scalar_select %p3262, %s19, 1
        %s3264 = scalar_lea.vmem %s5, %s3263
      $region60: #{double_conv_forward.4} parent=51 // pred_fallthru
        _
      // Predicated region
      $region61: #{double_conv_forward.4} parent=51 // pred_check
        %p3265 = pneg %p183
      $region62: #{double_conv_forward.4} parent=51 // pred_check_branch
        %3267 = sbr.rel (%p3265) target = $region64
      $region63: #{double_conv_forward.4} parent=51 // pred_region
        %p3268 = scmp.lt.s32.totalorder %s19, 1
        %s3269 = scalar_select %p3268, %s19, 1
        %s3270 = scalar_lea.vmem %s6, %s3269
      $region64: #{double_conv_forward.4} parent=51 // pred_fallthru
        _
    $region52: #{double_conv_forward.4} parent=5 // pred_fallthru
      _
  $region6: #{double_conv_forward.4} parent=0 // loop_footer
    %s17 = sadd.s32 1, %s13
  $region7: #{double_conv_forward.4} parent=0 // loop_footer_branch
    %12 = sbr.rel target = $region3
  $region8: #{double_conv_forward.4} parent=0 // loop_exit
    _

</llo_original>
